<compile_context>
chip_gen: v5e
topology: v5e:2x2
jax: 0.10.0
libtpu: 0.0.40
codegen_flags: <defaults>
</compile_context>

<pallas_src>
import functools

import jax
import jax.numpy as jnp
from jax import lax
from jax.experimental import pallas as pl
from jax.experimental.pallas import tpu as pltpu


def _clip_loss_kernel(nvalid_ref,
                      img_row_ref, txt_row_ref, txt_col_ref, img_col_ref,
                      lse_img_ref, lse_txt_ref, diag_ref,
                      m_img, l_img, m_txt, l_txt,
                      *, needs_mask):
    # nvalid_ref : SMEM (1,) int32 -- number of real (unpadded) rows/cols
    # *_row_ref  : VMEM (tm, D) blocks (image row / text row) for row block i
    # *_col_ref  : VMEM (tn, D) blocks (text col / image col) for col block j
    # outputs    : (tm, 1) f32 per row block (lse_img, lse_txt, diag logits)
    # scratch    : (tm, 1) f32 online-softmax accumulators
    # logit_scale is already folded into the image features in the wrapper.
    j = pl.program_id(1)
    tn = txt_col_ref.shape[0]

    img_row = img_row_ref[...]          # (tm, D) bf16 (scale pre-folded)
    txt_row = txt_row_ref[...]          # (tm, D) bf16

    @pl.when(j == 0)
    def _init():
        m_img[...] = jnp.full_like(m_img, -jnp.inf)
        l_img[...] = jnp.zeros_like(l_img)
        m_txt[...] = jnp.full_like(m_txt, -jnp.inf)
        l_txt[...] = jnp.zeros_like(l_txt)
        # Diagonal logits for this row block, O(tm*D), from the same bf16
        # inputs the MXU sees (f32 accumulation).
        diag_ref[...] = jnp.sum(
            img_row.astype(jnp.float32) * txt_row.astype(jnp.float32),
            axis=-1, keepdims=True)

    if needs_mask:
        n_valid = nvalid_ref[0]
        col_ids = j * tn + lax.broadcasted_iota(jnp.int32, (1, tn), 1)
        col_ok = col_ids < n_valid      # (1, tn), broadcasts over rows
    neg = jnp.float32(-1e30)            # finite: avoids exp(-inf - -inf) NaNs

    # Contract feature dims directly (no transposed copies of (.., D) operands).
    dn = (((1,), (1,)), ((), ()))

    # ---- image-side tile; finish its whole online update before the text-side
    # dot so only one (tm, tn) f32 tile + exp temps is live at a time ----------
    s_img = lax.dot_general(img_row, txt_col_ref[...], dn,
                            preferred_element_type=jnp.float32)
    if needs_mask:
        s_img = jnp.where(col_ok, s_img, neg)
    m_new = jnp.maximum(m_img[...], jnp.max(s_img, axis=-1, keepdims=True))
    l_img[...] = (l_img[...] * jnp.exp(m_img[...] - m_new)
                  + jnp.sum(jnp.exp(s_img - m_new), axis=-1, keepdims=True))
    m_img[...] = m_new

    # ---- text-side tile --------------------------------------------------------
    s_txt = lax.dot_general(txt_row, img_col_ref[...], dn,
                            preferred_element_type=jnp.float32)
    if needs_mask:
        s_txt = jnp.where(col_ok, s_txt, neg)
    m_new = jnp.maximum(m_txt[...], jnp.max(s_txt, axis=-1, keepdims=True))
    l_txt[...] = (l_txt[...] * jnp.exp(m_txt[...] - m_new)
                  + jnp.sum(jnp.exp(s_txt - m_new), axis=-1, keepdims=True))
    m_txt[...] = m_new

    @pl.when(j == pl.num_programs(1) - 1)
    def _finalize():
        lse_img_ref[...] = m_img[...] + jnp.log(l_img[...])
        lse_txt_ref[...] = m_txt[...] + jnp.log(l_txt[...])


def _pick_tm(n_pad, tn, d, itemsize, budget_bytes=20 * 1024 * 1024):
    """Largest row tile that fits the VMEM budget and keeps >= 2 row blocks."""
    candidates = [c for c in (1024, 768, 512, 384, 256, 128) if n_pad % c == 0]
    if not candidates:                       # n_pad is a multiple of 128 anyway
        candidates = [128]
    for tm in candidates:
        if n_pad // tm < 2 and tm != candidates[-1]:
            continue  # keep both v7x TensorCores busy when possible
        # 4 input streams (2 row + 2 col), double-buffered, + f32 logit/exp temps.
        est = 4 * (tm + tn) * d * itemsize + 6 * tm * tn * 4
        if est <= budget_bytes:
            return tm
    return candidates[-1]


def clip_loss(image_features, text_features, logit_scale, *,
              compute_dtype=jnp.bfloat16, tn=256):
    """Pallas implementation of ClipLoss.forward (world_size=1)."""
    n, d = image_features.shape
    assert text_features.shape == (n, d)

    # Fold the logit scale into the image features once (O(N*D)) so the kernel
    # never multiplies (tm, tn) logit tiles.  Cast MXU operands to bf16.
    scale = jnp.asarray(logit_scale, jnp.float32)
    img = (image_features.astype(jnp.float32) * scale).astype(compute_dtype)
    txt = text_features.astype(compute_dtype)

    # Pad N up to a multiple of the column tile (lane/MXU friendly); padded
    # columns are masked in-kernel, padded rows dropped from the final mean.
    tn = 128 if n <= 128 else tn
    n_pad = ((n + tn - 1) // tn) * tn
    if n_pad != n:
        pad = n_pad - n
        img = jnp.pad(img, ((0, pad), (0, 0)))
        txt = jnp.pad(txt, ((0, pad), (0, 0)))

    itemsize = jnp.dtype(compute_dtype).itemsize
    tm = _pick_tm(n_pad, tn, d, itemsize)
    grid = (n_pad // tm, n_pad // tn)

    n_valid = jnp.asarray([n], jnp.int32)

    nvalid_spec = pl.BlockSpec(memory_space=pltpu.MemorySpace.SMEM)
    row_spec = pl.BlockSpec((tm, d), lambda i, j: (i, 0))
    col_spec = pl.BlockSpec((tn, d), lambda i, j: (j, 0))
    out_spec = pl.BlockSpec((tm, 1), lambda i, j: (i, 0))

    # Explicit VMEM budget (double-buffered inputs + logit temps + headroom),
    # capped at 48 MiB so it stays safe on v7x's 64 MiB physical VMEM.
    est_bytes = 4 * (tm + tn) * d * itemsize + 6 * tm * tn * 4
    vmem_limit = int(min(max(est_bytes + (2 << 20), 32 << 20), 48 << 20))

    grid_spec = pltpu.PrefetchScalarGridSpec(
        num_scalar_prefetch=0,
        grid=grid,
        in_specs=[nvalid_spec, row_spec, row_spec, col_spec, col_spec],
        out_specs=[out_spec, out_spec, out_spec],
        scratch_shapes=[pltpu.VMEM((tm, 1), jnp.float32)] * 4,
    )

    kernel = functools.partial(_clip_loss_kernel, needs_mask=bool(n_pad != n))

    lse_img, lse_txt, diag = pl.pallas_call(
        kernel,
        out_shape=(jax.ShapeDtypeStruct((n_pad, 1), jnp.float32),
                   jax.ShapeDtypeStruct((n_pad, 1), jnp.float32),
                   jax.ShapeDtypeStruct((n_pad, 1), jnp.float32)),
        grid_spec=grid_spec,
        compiler_params=pltpu.CompilerParams(
            dimension_semantics=("parallel", "arbitrary"),
            vmem_limit_bytes=vmem_limit),
    )(n_valid, img, txt, txt, img)

    # CE(img) = mean(lse_row - diag), CE(txt) = mean(lse_col - diag);
    # tiny O(N) tail, padded rows excluded.
    lse_img = lse_img[:n, 0]
    lse_txt = lse_txt[:n, 0]
    diag = diag[:n, 0]
    return 0.5 * (jnp.mean(lse_img - diag) + jnp.mean(lse_txt - diag))


def clip_loss_ref(image_features, text_features, logit_scale):
    """Pure-JAX f32 reference matching the PyTorch module (world_size=1)."""
    logits_per_image = logit_scale * image_features @ text_features.T
    logits_per_text = logit_scale * text_features @ image_features.T
    labels = jnp.arange(logits_per_image.shape[0])

    def ce(logits):
        lse = jax.scipy.special.logsumexp(logits, axis=-1)
        tgt = logits[jnp.arange(logits.shape[0]), labels]
        return jnp.mean(lse - tgt)

    return 0.5 * (ce(logits_per_image) + ce(logits_per_text))


if __name__ == "__main__":
    key = jax.random.PRNGKey(0)
    k_img, k_txt = jax.random.split(key)

    # Ragged N exercises the padding/masking path; D=256 keeps the demo small.
    # Tiles: tn=256, n_pad=768, tm=384 -> rectangular blocks, grid=(2, 3).
    N, D = 750, 256
    image_features = jax.random.normal(k_img, (N, D), dtype=jnp.float32)
    text_features = jax.random.normal(k_txt, (N, D), dtype=jnp.float32)
    # normalize like CLIP encoders typically do
    image_features = image_features / jnp.linalg.norm(image_features, axis=-1, keepdims=True)
    text_features = text_features / jnp.linalg.norm(text_features, axis=-1, keepdims=True)
    logit_scale = jnp.float32(jnp.exp(0.7))  # deterministic learned-temperature stand-in

    loss = jax.block_until_ready(clip_loss(image_features, text_features, logit_scale))
    ref = clip_loss_ref(image_features, text_features, logit_scale)
    # bf16 MXU operands vs f32 reference -> relaxed (but still tight relative to
    # the ~log(N) magnitude of the loss) tolerance.
    assert jnp.isfinite(loss), loss
    assert jnp.allclose(loss, ref, atol=3e-2, rtol=0.0), (loss, ref)

    print("KERNEL_OK")
</pallas_src>

<mosaic_0001>
module attributes {stable_mosaic.version = 11 : i64} {
  func.func @_clip_loss_kernel(%arg0: i32, %arg1: i32, %arg2: memref<1xi32, #tpu.memory_space<smem>>, %arg3: memref<384x256xbf16, #tpu.memory_space<vmem>>, %arg4: memref<384x256xbf16, #tpu.memory_space<vmem>>, %arg5: memref<256x256xbf16, #tpu.memory_space<vmem>>, %arg6: memref<256x256xbf16, #tpu.memory_space<vmem>>, %arg7: memref<384x1xf32, #tpu.memory_space<vmem>>, %arg8: memref<384x1xf32, #tpu.memory_space<vmem>>, %arg9: memref<384x1xf32, #tpu.memory_space<vmem>>, %arg10: memref<384x1xf32, #tpu.memory_space<vmem>>, %arg11: memref<384x1xf32, #tpu.memory_space<vmem>>, %arg12: memref<384x1xf32, #tpu.memory_space<vmem>>, %arg13: memref<384x1xf32, #tpu.memory_space<vmem>>) attributes {dimension_semantics = [#tpu.dimension_semantics<parallel>, #tpu.dimension_semantics<arbitrary>], iteration_bounds = array<i64: 2, 3>, scalar_prefetch = 0 : i64, scratch_operands = 4 : i64, tpu.core_type = #tpu.core_type<tc>, window_params = [{transform_indices = @transform_0, window_bounds = array<i64: 1>}, {transform_indices = @transform_1, window_bounds = array<i64: 384, 256>}, {transform_indices = @transform_2, window_bounds = array<i64: 384, 256>}, {transform_indices = @transform_3, window_bounds = array<i64: 256, 256>}, {transform_indices = @transform_4, window_bounds = array<i64: 256, 256>}, {transform_indices = @transform_5, window_bounds = array<i64: 384, 1>}, {transform_indices = @transform_6, window_bounds = array<i64: 384, 1>}, {transform_indices = @transform_7, window_bounds = array<i64: 384, 1>}]} {
    %c0 = arith.constant 0 : index
    %c0_0 = arith.constant 0 : index
    %0 = vector.load %arg3[%c0, %c0_0] : memref<384x256xbf16, #tpu.memory_space<vmem>>, vector<384x256xbf16>
    %c0_1 = arith.constant 0 : index
    %c0_2 = arith.constant 0 : index
    %1 = vector.load %arg4[%c0_1, %c0_2] : memref<384x256xbf16, #tpu.memory_space<vmem>>, vector<384x256xbf16>
    %c0_i32 = arith.constant 0 : i32
    %2 = arith.cmpi eq, %arg1, %c0_i32 : i32
    %3 = arith.extui %2 : i1 to i32
    %c0_i32_3 = arith.constant 0 : i32
    %4 = arith.cmpi ne, %3, %c0_i32_3 : i32
    scf.if %4 {
      %cst_37 = arith.constant 0xFF800000 : f32
      %61 = vector.broadcast %cst_37 : f32 to vector<384x1xf32>
      %c0_38 = arith.constant 0 : index
      %c0_39 = arith.constant 0 : index
      %62 = vector.load %arg10[%c0_38, %c0_39] : memref<384x1xf32, #tpu.memory_space<vmem>>, vector<384x1xf32>
      tpu.vector_store %arg10[%c0_38, %c0_39], %61 {strides = array<i32>} : memref<384x1xf32, #tpu.memory_space<vmem>>, vector<384x1xf32>,
      %cst_40 = arith.constant 0.000000e+00 : f32
      %63 = vector.broadcast %cst_40 : f32 to vector<384x1xf32>
      %c0_41 = arith.constant 0 : index
      %c0_42 = arith.constant 0 : index
      %64 = vector.load %arg11[%c0_41, %c0_42] : memref<384x1xf32, #tpu.memory_space<vmem>>, vector<384x1xf32>
      tpu.vector_store %arg11[%c0_41, %c0_42], %63 {strides = array<i32>} : memref<384x1xf32, #tpu.memory_space<vmem>>, vector<384x1xf32>,
      %cst_43 = arith.constant 0xFF800000 : f32
      %65 = vector.broadcast %cst_43 : f32 to vector<384x1xf32>
      %c0_44 = arith.constant 0 : index
      %c0_45 = arith.constant 0 : index
      %66 = vector.load %arg12[%c0_44, %c0_45] : memref<384x1xf32, #tpu.memory_space<vmem>>, vector<384x1xf32>
      tpu.vector_store %arg12[%c0_44, %c0_45], %65 {strides = array<i32>} : memref<384x1xf32, #tpu.memory_space<vmem>>, vector<384x1xf32>,
      %cst_46 = arith.constant 0.000000e+00 : f32
      %67 = vector.broadcast %cst_46 : f32 to vector<384x1xf32>
      %c0_47 = arith.constant 0 : index
      %c0_48 = arith.constant 0 : index
      %68 = vector.load %arg13[%c0_47, %c0_48] : memref<384x1xf32, #tpu.memory_space<vmem>>, vector<384x1xf32>
      tpu.vector_store %arg13[%c0_47, %c0_48], %67 {strides = array<i32>} : memref<384x1xf32, #tpu.memory_space<vmem>>, vector<384x1xf32>,
      %69 = arith.extf %0 : vector<384x256xbf16> to vector<384x256xf32>
      %70 = arith.extf %1 : vector<384x256xbf16> to vector<384x256xf32>
      %71 = arith.mulf %69, %70 : vector<384x256xf32>
      %cst_49 = arith.constant dense<0.000000e+00> : vector<384xf32>
      %72 = vector.multi_reduction <add>, %71, %cst_49 [1] : vector<384x256xf32> to vector<384xf32>
      %73 = vector.shape_cast %72 : vector<384xf32> to vector<384x1xf32>
      %c0_50 = arith.constant 0 : index
      %c0_51 = arith.constant 0 : index
      %74 = vector.load %arg9[%c0_50, %c0_51] : memref<384x1xf32, #tpu.memory_space<vmem>>, vector<384x1xf32>
      tpu.vector_store %arg9[%c0_50, %c0_51], %73 {strides = array<i32>} : memref<384x1xf32, #tpu.memory_space<vmem>>, vector<384x1xf32>,
    } else {
    }
    %c0_4 = arith.constant 0 : index
    %5 = memref.load %arg2[%c0_4] : memref<1xi32, #tpu.memory_space<smem>>
    %c256_i32 = arith.constant 256 : i32
    %6 = arith.muli %arg1, %c256_i32 : i32
    %7 = tpu.iota {dimensions = array<i32: 1>} : vector<1x256xi32>
    %8 = vector.broadcast %6 : i32 to vector<1x256xi32>
    %9 = arith.addi %8, %7 : vector<1x256xi32>
    %10 = vector.broadcast %5 : i32 to vector<1x256xi32>
    %11 = arith.cmpi slt, %9, %10 : vector<1x256xi32>
    %c0_5 = arith.constant 0 : index
    %c0_6 = arith.constant 0 : index
    %12 = vector.load %arg5[%c0_5, %c0_6] : memref<256x256xbf16, #tpu.memory_space<vmem>>, vector<256x256xbf16>
    %cst = arith.constant dense<0.000000e+00> : vector<384x256xf32>
    %13 = tpu.matmul %0, %12, %cst {dimension_numbers = #tpu.dot_dimension_numbers<[1], [1], [0], [0], [0, 0, 1, 0], [], []>} : vector<384x256xbf16>, vector<256x256xbf16>, vector<384x256xf32> -> vector<384x256xf32>
    %cst_7 = arith.constant -1.000000e+30 : f32
    %14 = vector.shape_cast %11 : vector<1x256xi1> to vector<1x256xi1>
    %15 = vector.broadcast %14 : vector<1x256xi1> to vector<384x256xi1>
    %16 = vector.broadcast %cst_7 : f32 to vector<384x256xf32>
    %17 = arith.select %15, %13, %16 : vector<384x256xi1>, vector<384x256xf32>
    %c0_8 = arith.constant 0 : index
    %c0_9 = arith.constant 0 : index
    %18 = vector.load %arg10[%c0_8, %c0_9] : memref<384x1xf32, #tpu.memory_space<vmem>>, vector<384x1xf32>
    %cst_10 = arith.constant dense<0xFF800000> : vector<384xf32>
    %19 = vector.multi_reduction <maximumf>, %17, %cst_10 [1] : vector<384x256xf32> to vector<384xf32>
    %20 = vector.shape_cast %19 : vector<384xf32> to vector<384x1xf32>
    %21 = arith.maximumf %18, %20 : vector<384x1xf32>
    %c0_11 = arith.constant 0 : index
    %c0_12 = arith.constant 0 : index
    %22 = vector.load %arg11[%c0_11, %c0_12] : memref<384x1xf32, #tpu.memory_space<vmem>>, vector<384x1xf32>
    %c0_13 = arith.constant 0 : index
    %c0_14 = arith.constant 0 : index
    %23 = vector.load %arg10[%c0_13, %c0_14] : memref<384x1xf32, #tpu.memory_space<vmem>>, vector<384x1xf32>
    %24 = arith.subf %23, %21 : vector<384x1xf32>
    %25 = math.exp %24 : vector<384x1xf32>
    %26 = arith.mulf %22, %25 : vector<384x1xf32>
    %27 = vector.broadcast %21 : vector<384x1xf32> to vector<384x256xf32>
    %28 = arith.subf %17, %27 : vector<384x256xf32>
    %29 = math.exp %28 : vector<384x256xf32>
    %cst_15 = arith.constant dense<0.000000e+00> : vector<384xf32>
    %30 = vector.multi_reduction <add>, %29, %cst_15 [1] : vector<384x256xf32> to vector<384xf32>
    %31 = vector.shape_cast %30 : vector<384xf32> to vector<384x1xf32>
    %32 = arith.addf %26, %31 : vector<384x1xf32>
    %c0_16 = arith.constant 0 : index
    %c0_17 = arith.constant 0 : index
    %33 = vector.load %arg11[%c0_16, %c0_17] : memref<384x1xf32, #tpu.memory_space<vmem>>, vector<384x1xf32>
    tpu.vector_store %arg11[%c0_16, %c0_17], %32 {strides = array<i32>} : memref<384x1xf32, #tpu.memory_space<vmem>>, vector<384x1xf32>,
    %c0_18 = arith.constant 0 : index
    %c0_19 = arith.constant 0 : index
    %34 = vector.load %arg10[%c0_18, %c0_19] : memref<384x1xf32, #tpu.memory_space<vmem>>, vector<384x1xf32>
    tpu.vector_store %arg10[%c0_18, %c0_19], %21 {strides = array<i32>} : memref<384x1xf32, #tpu.memory_space<vmem>>, vector<384x1xf32>,
    %c0_20 = arith.constant 0 : index
    %c0_21 = arith.constant 0 : index
    %35 = vector.load %arg6[%c0_20, %c0_21] : memref<256x256xbf16, #tpu.memory_space<vmem>>, vector<256x256xbf16>
    %cst_22 = arith.constant dense<0.000000e+00> : vector<384x256xf32>
    %36 = tpu.matmul %1, %35, %cst_22 {dimension_numbers = #tpu.dot_dimension_numbers<[1], [1], [0], [0], [0, 0, 1, 0], [], []>} : vector<384x256xbf16>, vector<256x256xbf16>, vector<384x256xf32> -> vector<384x256xf32>
    %cst_23 = arith.constant -1.000000e+30 : f32
    %37 = vector.shape_cast %11 : vector<1x256xi1> to vector<1x256xi1>
    %38 = vector.broadcast %37 : vector<1x256xi1> to vector<384x256xi1>
    %39 = vector.broadcast %cst_23 : f32 to vector<384x256xf32>
    %40 = arith.select %38, %36, %39 : vector<384x256xi1>, vector<384x256xf32>
    %c0_24 = arith.constant 0 : index
    %c0_25 = arith.constant 0 : index
    %41 = vector.load %arg12[%c0_24, %c0_25] : memref<384x1xf32, #tpu.memory_space<vmem>>, vector<384x1xf32>
    %cst_26 = arith.constant dense<0xFF800000> : vector<384xf32>
    %42 = vector.multi_reduction <maximumf>, %40, %cst_26 [1] : vector<384x256xf32> to vector<384xf32>
    %43 = vector.shape_cast %42 : vector<384xf32> to vector<384x1xf32>
    %44 = arith.maximumf %41, %43 : vector<384x1xf32>
    %c0_27 = arith.constant 0 : index
    %c0_28 = arith.constant 0 : index
    %45 = vector.load %arg13[%c0_27, %c0_28] : memref<384x1xf32, #tpu.memory_space<vmem>>, vector<384x1xf32>
    %c0_29 = arith.constant 0 : index
    %c0_30 = arith.constant 0 : index
    %46 = vector.load %arg12[%c0_29, %c0_30] : memref<384x1xf32, #tpu.memory_space<vmem>>, vector<384x1xf32>
    %47 = arith.subf %46, %44 : vector<384x1xf32>
    %48 = math.exp %47 : vector<384x1xf32>
    %49 = arith.mulf %45, %48 : vector<384x1xf32>
    %50 = vector.broadcast %44 : vector<384x1xf32> to vector<384x256xf32>
    %51 = arith.subf %40, %50 : vector<384x256xf32>
    %52 = math.exp %51 : vector<384x256xf32>
    %cst_31 = arith.constant dense<0.000000e+00> : vector<384xf32>
    %53 = vector.multi_reduction <add>, %52, %cst_31 [1] : vector<384x256xf32> to vector<384xf32>
    %54 = vector.shape_cast %53 : vector<384xf32> to vector<384x1xf32>
    %55 = arith.addf %49, %54 : vector<384x1xf32>
    %c0_32 = arith.constant 0 : index
    %c0_33 = arith.constant 0 : index
    %56 = vector.load %arg13[%c0_32, %c0_33] : memref<384x1xf32, #tpu.memory_space<vmem>>, vector<384x1xf32>
    tpu.vector_store %arg13[%c0_32, %c0_33], %55 {strides = array<i32>} : memref<384x1xf32, #tpu.memory_space<vmem>>, vector<384x1xf32>,
    %c0_34 = arith.constant 0 : index
    %c0_35 = arith.constant 0 : index
    %57 = vector.load %arg12[%c0_34, %c0_35] : memref<384x1xf32, #tpu.memory_space<vmem>>, vector<384x1xf32>
    tpu.vector_store %arg12[%c0_34, %c0_35], %44 {strides = array<i32>} : memref<384x1xf32, #tpu.memory_space<vmem>>, vector<384x1xf32>,
    %c2_i32 = arith.constant 2 : i32
    %58 = arith.cmpi eq, %arg1, %c2_i32 : i32
    %59 = arith.extui %58 : i1 to i32
    %c0_i32_36 = arith.constant 0 : i32
    %60 = arith.cmpi ne, %59, %c0_i32_36 : i32
    scf.if %60 {
      %c0_37 = arith.constant 0 : index
      %c0_38 = arith.constant 0 : index
      %61 = vector.load %arg10[%c0_37, %c0_38] : memref<384x1xf32, #tpu.memory_space<vmem>>, vector<384x1xf32>
      %c0_39 = arith.constant 0 : index
      %c0_40 = arith.constant 0 : index
      %62 = vector.load %arg11[%c0_39, %c0_40] : memref<384x1xf32, #tpu.memory_space<vmem>>, vector<384x1xf32>
      %63 = math.log %62 : vector<384x1xf32>
      %64 = arith.addf %61, %63 : vector<384x1xf32>
      %c0_41 = arith.constant 0 : index
      %c0_42 = arith.constant 0 : index
      %65 = vector.load %arg7[%c0_41, %c0_42] : memref<384x1xf32, #tpu.memory_space<vmem>>, vector<384x1xf32>
      tpu.vector_store %arg7[%c0_41, %c0_42], %64 {strides = array<i32>} : memref<384x1xf32, #tpu.memory_space<vmem>>, vector<384x1xf32>,
      %c0_43 = arith.constant 0 : index
      %c0_44 = arith.constant 0 : index
      %66 = vector.load %arg12[%c0_43, %c0_44] : memref<384x1xf32, #tpu.memory_space<vmem>>, vector<384x1xf32>
      %c0_45 = arith.constant 0 : index
      %c0_46 = arith.constant 0 : index
      %67 = vector.load %arg13[%c0_45, %c0_46] : memref<384x1xf32, #tpu.memory_space<vmem>>, vector<384x1xf32>
      %68 = math.log %67 : vector<384x1xf32>
      %69 = arith.addf %66, %68 : vector<384x1xf32>
      %c0_47 = arith.constant 0 : index
      %c0_48 = arith.constant 0 : index
      %70 = vector.load %arg8[%c0_47, %c0_48] : memref<384x1xf32, #tpu.memory_space<vmem>>, vector<384x1xf32>
      tpu.vector_store %arg8[%c0_47, %c0_48], %69 {strides = array<i32>} : memref<384x1xf32, #tpu.memory_space<vmem>>, vector<384x1xf32>,
    } else {
    }
    return
  }
  func.func @transform_0(%arg0: i32, %arg1: i32) -> i32 {
    %c0_i32 = arith.constant 0 : i32
    %c0_i32_0 = arith.constant 0 : i32
    return %c0_i32 : i32
  }
  func.func @transform_1(%arg0: i32, %arg1: i32) -> (i32, i32) {
    %c0_i32 = arith.constant 0 : i32
    %c0_i32_0 = arith.constant 0 : i32
    return %arg0, %c0_i32 : i32, i32
  }
  func.func @transform_2(%arg0: i32, %arg1: i32) -> (i32, i32) {
    %c0_i32 = arith.constant 0 : i32
    %c0_i32_0 = arith.constant 0 : i32
    return %arg0, %c0_i32 : i32, i32
  }
  func.func @transform_3(%arg0: i32, %arg1: i32) -> (i32, i32) {
    %c0_i32 = arith.constant 0 : i32
    %c0_i32_0 = arith.constant 0 : i32
    return %arg1, %c0_i32 : i32, i32
  }
  func.func @transform_4(%arg0: i32, %arg1: i32) -> (i32, i32) {
    %c0_i32 = arith.constant 0 : i32
    %c0_i32_0 = arith.constant 0 : i32
    return %arg1, %c0_i32 : i32, i32
  }
  func.func @transform_5(%arg0: i32, %arg1: i32) -> (i32, i32) {
    %c0_i32 = arith.constant 0 : i32
    %c0_i32_0 = arith.constant 0 : i32
    return %arg0, %c0_i32 : i32, i32
  }
  func.func @transform_6(%arg0: i32, %arg1: i32) -> (i32, i32) {
    %c0_i32 = arith.constant 0 : i32
    %c0_i32_0 = arith.constant 0 : i32
    return %arg0, %c0_i32 : i32, i32
  }
  func.func @transform_7(%arg0: i32, %arg1: i32) -> (i32, i32) {
    %c0_i32 = arith.constant 0 : i32
    %c0_i32_0 = arith.constant 0 : i32
    return %arg0, %c0_i32 : i32, i32
  }
}

</mosaic_0001>

<llo_original>
// kernel: tpu_custom_call.1
$region0: #{tpu_custom_call.1}
  #allocation0 [shape = 'u32[]', space=smem, size = 0x4, offset = 0x4, fixed_abs, tag = 'smem constant byte address 0x4 - core index']
  #allocation1 [shape = 'u32[72,128]{1,0:T(1,128)}', space=vmem, size = 0x9000, scoped, tag = 'internal scratch']
  #allocation2 [shape = 'f32[384,1]{1,0:T(8,128)}', space=vmem, size = 0x30000, scoped, tag = 'scratch operand']
  #allocation3 [shape = 'f32[384,1]{1,0:T(8,128)}', space=vmem, size = 0x30000, scoped, tag = 'scratch operand']
  #allocation4 [shape = 'f32[384,1]{1,0:T(8,128)}', space=vmem, size = 0x30000, scoped, tag = 'scratch operand']
  #allocation5 [shape = 'f32[384,1]{1,0:T(8,128)}', space=vmem, size = 0x30000, scoped, tag = 'scratch operand']
  #allocation6 [shape = 's32[1]{0:T(128)S(6)}', space=smem, size = 0x200, scoped, tag = 'scoped memory for tpu_custom_call.1']
  %s0 = inlined_call_operand.<no memory space> [shape: s32[1], index: 0, kind: input, shape index: {}]
  %s1 = inlined_call_operand.hbm [shape: bf16[768,256], index: 1, kind: input, shape index: {}]
  %s2 = inlined_call_operand.hbm [shape: bf16[768,256], index: 2, kind: input, shape index: {}]
  %s3 = inlined_call_operand.hbm [shape: bf16[768,256], index: 3, kind: input, shape index: {}]
  %s4 = inlined_call_operand.hbm [shape: bf16[768,256], index: 4, kind: input, shape index: {}]
  %s5 = inlined_call_operand.vmem [shape: f32[768,1], index: 5, kind: output, shape index: {0}]
  %s6 = inlined_call_operand.vmem [shape: f32[768,1], index: 6, kind: output, shape index: {1}]
  %s7 = inlined_call_operand.vmem [shape: f32[768,1], index: 7, kind: output, shape index: {2}]
  %8 = xla_tuple %s5, %s6, %s7
  %s9 = sld [smem:[#allocation0]]
  $region93: #{tpu_custom_call.1} parent=0
    _
  %s11 = ssub.s32 1, %s9
  %s12 = scalar_select 0, %s11, %s9
  %13 = sst [smem:[#allocation6]] %s0
  $region1: #{tpu_custom_call.1} parent=0
    #allocation7 [shape = 'u8[393216]{0}', space=vmem, size = 0x60000, scoped, tag = 'input window, operand 1']
    #allocation8 [shape = 's32[2]{0}', space=sflag, size = 0x8, scoped, tag = 'scoped memory for tpu_custom_call.1']
    #allocation9 [shape = 'u8[393216]{0}', space=vmem, size = 0x60000, scoped, tag = 'input window, operand 2']
    #allocation10 [shape = 's32[2]{0}', space=sflag, size = 0x8, scoped, tag = 'scoped memory for tpu_custom_call.1']
    #allocation11 [shape = 'u8[262144]{0}', space=vmem, size = 0x40000, scoped, tag = 'input window, operand 3']
    #allocation12 [shape = 'u8[262144]{0}', space=vmem, size = 0x40000, scoped, tag = 'input window, operand 4']
    #allocation13 [shape = 's32[2]{0}', space=sflag, size = 0x8, scoped, tag = 'scoped memory for tpu_custom_call.1']
    %14 = vsyncpa [#allocation8], 0
    %s15 = scalar_lea.sflag [#allocation8], 1
    %16 = vsyncpa %s15, 0
    %17 = vsyncpa [#allocation10], 0
    %s18 = scalar_lea.sflag [#allocation10], 1
    %19 = vsyncpa %s18, 0
    %20 = vsyncpa [#allocation13], 0
    %s21 = scalar_lea.sflag [#allocation13], 1
    %22 = vsyncpa %s21, 0
    loop: start=0, step=1, limit=8
    $region2: #{tpu_custom_call.1} parent=1 // loop_pre_header
      _
    $region3: #{tpu_custom_call.1} parent=1 // loop_header
      %s24 = sphi 0, %s28
      %p25 = scmp.ge.s32.totalorder %s24, 8
      %s31 = sphi 0, %s43
      %s32 = sphi 0, %s39
      %s33 = sphi 0, %s31
      %s34 = sphi 0, %s32
      %s35 = sphi 0, %s33
      %s36 = sphi 0, %s34
      %s44 = sphi 0, %s44
      %s46 = sphi 0, %s44
      %s47 = sphi 0, %s46
      %s61 = sphi 0, %s47
      %s67 = sphi 0, %s69
      %s70 = sphi 0, %s67
      %s71 = sphi 0, %s70
      %s87 = sphi 0, %s71
      %s93 = sphi 0, %s95
      %s96 = sphi 0, %s93
      %s97 = sphi 0, %s96
      %s113 = sphi 0, %s97
      %s119 = sphi 0, %s121
      %s122 = sphi 0, %s119
      %s123 = sphi 0, %s122
      %s139 = sphi 0, %s123
      %s145 = sphi 0, %s147
      %s148 = sphi 0, %s145
      %s149 = sphi 0, %s148
      %s165 = sphi 0, %s149
      %s171 = sphi 0, %s173
      %s174 = sphi 0, %s171
      %s175 = sphi 0, %s174
      %s191 = sphi 0, %s175
      %s197 = sphi 0, %s199
      %s200 = sphi 0, %s197
      %s201 = sphi 0, %s200
      %s217 = sphi 0, %s201
      %s223 = sphi 0, %s225
      %s226 = sphi 0, %s223
      %s227 = sphi 0, %s226
      %s243 = sphi 0, %s227
    $region4: #{tpu_custom_call.1} parent=1 // loop_header_branch
      %27 = sbr.rel (%p25) target = $region8
    $region5: #{tpu_custom_call.1} parent=1 // loop_body
      %s29 = ssub.s32 %s24, 1
      %s30 = ssub.s32 %s24, 2
      %s37 = sadd.s32 1, %s32
      %p38 = scmp.ge.s32.totalorder %s37, 3
      %s39 = scalar_select %p38, 0, %s37
      %s40 = sadd.s32 1, %s31
      %s41 = scalar_select %p38, %s40, %s31
      %p42 = scmp.ge.s32.totalorder %s41, 2
      %s43 = scalar_select %p42, 0, %s41
      %s45 = sadd.s32 %s44, 1
      %p48 = scmp.eq.s32.totalorder %s24, 5
      %p49 = scmp.ne.s32.totalorder %s44, %s46
      %p50 = scmp.eq.s32.totalorder %s24, 0
      %p51 = por %p49, %p50
      %p52 = scmp.ne.s32.totalorder %s44, %s46
      %p53 = scmp.eq.s32.totalorder %s29, 5
      %p54 = por %p52, %p53
      %p55 = scmp.ne.s32.totalorder %s46, %s47
      %p56 = scmp.eq.s32.totalorder %s29, 0
      %p57 = por %p55, %p56
      %p58 = scmp.ne.s32.totalorder %s46, %s47
      %p59 = scmp.eq.s32.totalorder %s30, 5
      %p60 = por %p58, %p59
      %p62 = scmp.ne.s32.totalorder %s47, %s61
      %p63 = scmp.eq.s32.totalorder %s30, 0
      %p64 = por %p62, %p63
      %s65 = ssub.s32 %s31, %s43
      %p66 = scmp.eq.s32.totalorder %s65, 0
      %s68 = sadd.s32 %s67, 1
      %s69 = scalar_select %p66, %s67, %s68
      %p72 = pneg %p66
      %p73 = scmp.eq.s32.totalorder %s24, 5
      %p74 = por %p72, %p73
      %p75 = scmp.ne.s32.totalorder %s67, %s70
      %p76 = scmp.eq.s32.totalorder %s24, 0
      %p77 = por %p75, %p76
      %p78 = scmp.ne.s32.totalorder %s67, %s70
      %p79 = scmp.eq.s32.totalorder %s29, 5
      %p80 = por %p78, %p79
      %p81 = scmp.ne.s32.totalorder %s70, %s71
      %p82 = scmp.eq.s32.totalorder %s29, 0
      %p83 = por %p81, %p82
      %p84 = scmp.ne.s32.totalorder %s70, %s71
      %p85 = scmp.eq.s32.totalorder %s30, 5
      %p86 = por %p84, %p85
      %p88 = scmp.ne.s32.totalorder %s71, %s87
      %p89 = scmp.eq.s32.totalorder %s30, 0
      %p90 = por %p88, %p89
      %s91 = ssub.s32 %s31, %s43
      %p92 = scmp.eq.s32.totalorder %s91, 0
      %s94 = sadd.s32 %s93, 1
      %s95 = scalar_select %p92, %s93, %s94
      %p98 = pneg %p92
      %p99 = scmp.eq.s32.totalorder %s24, 5
      %p100 = por %p98, %p99
      %p101 = scmp.ne.s32.totalorder %s93, %s96
      %p102 = scmp.eq.s32.totalorder %s24, 0
      %p103 = por %p101, %p102
      %p104 = scmp.ne.s32.totalorder %s93, %s96
      %p105 = scmp.eq.s32.totalorder %s29, 5
      %p106 = por %p104, %p105
      %p107 = scmp.ne.s32.totalorder %s96, %s97
      %p108 = scmp.eq.s32.totalorder %s29, 0
      %p109 = por %p107, %p108
      %p110 = scmp.ne.s32.totalorder %s96, %s97
      %p111 = scmp.eq.s32.totalorder %s30, 5
      %p112 = por %p110, %p111
      %p114 = scmp.ne.s32.totalorder %s97, %s113
      %p115 = scmp.eq.s32.totalorder %s30, 0
      %p116 = por %p114, %p115
      %s117 = ssub.s32 %s32, %s39
      %p118 = scmp.eq.s32.totalorder %s117, 0
      %s120 = sadd.s32 %s119, 1
      %s121 = scalar_select %p118, %s119, %s120
      %p124 = pneg %p118
      %p125 = scmp.eq.s32.totalorder %s24, 5
      %p126 = por %p124, %p125
      %p127 = scmp.ne.s32.totalorder %s119, %s122
      %p128 = scmp.eq.s32.totalorder %s24, 0
      %p129 = por %p127, %p128
      %p130 = scmp.ne.s32.totalorder %s119, %s122
      %p131 = scmp.eq.s32.totalorder %s29, 5
      %p132 = por %p130, %p131
      %p133 = scmp.ne.s32.totalorder %s122, %s123
      %p134 = scmp.eq.s32.totalorder %s29, 0
      %p135 = por %p133, %p134
      %p136 = scmp.ne.s32.totalorder %s122, %s123
      %p137 = scmp.eq.s32.totalorder %s30, 5
      %p138 = por %p136, %p137
      %p140 = scmp.ne.s32.totalorder %s123, %s139
      %p141 = scmp.eq.s32.totalorder %s30, 0
      %p142 = por %p140, %p141
      %s143 = ssub.s32 %s32, %s39
      %p144 = scmp.eq.s32.totalorder %s143, 0
      %s146 = sadd.s32 %s145, 1
      %s147 = scalar_select %p144, %s145, %s146
      %p150 = pneg %p144
      %p151 = scmp.eq.s32.totalorder %s24, 5
      %p152 = por %p150, %p151
      %p153 = scmp.ne.s32.totalorder %s145, %s148
      %p154 = scmp.eq.s32.totalorder %s24, 0
      %p155 = por %p153, %p154
      %p156 = scmp.ne.s32.totalorder %s145, %s148
      %p157 = scmp.eq.s32.totalorder %s29, 5
      %p158 = por %p156, %p157
      %p159 = scmp.ne.s32.totalorder %s148, %s149
      %p160 = scmp.eq.s32.totalorder %s29, 0
      %p161 = por %p159, %p160
      %p162 = scmp.ne.s32.totalorder %s148, %s149
      %p163 = scmp.eq.s32.totalorder %s30, 5
      %p164 = por %p162, %p163
      %p166 = scmp.ne.s32.totalorder %s149, %s165
      %p167 = scmp.eq.s32.totalorder %s30, 0
      %p168 = por %p166, %p167
      %s169 = ssub.s32 %s31, %s43
      %p170 = scmp.eq.s32.totalorder %s169, 0
      %s172 = sadd.s32 %s171, 1
      %s173 = scalar_select %p170, %s171, %s172
      %p176 = pneg %p170
      %p177 = scmp.eq.s32.totalorder %s24, 5
      %p178 = por %p176, %p177
      %p179 = scmp.ne.s32.totalorder %s171, %s174
      %p180 = scmp.eq.s32.totalorder %s24, 0
      %p181 = por %p179, %p180
      %p182 = scmp.ne.s32.totalorder %s171, %s174
      %p183 = scmp.eq.s32.totalorder %s29, 5
      %p184 = por %p182, %p183
      %p185 = scmp.ne.s32.totalorder %s174, %s175
      %p186 = scmp.eq.s32.totalorder %s29, 0
      %p187 = por %p185, %p186
      %p188 = scmp.ne.s32.totalorder %s174, %s175
      %p189 = scmp.eq.s32.totalorder %s30, 5
      %p190 = por %p188, %p189
      %p192 = scmp.ne.s32.totalorder %s175, %s191
      %p193 = scmp.eq.s32.totalorder %s30, 0
      %p194 = por %p192, %p193
      %s195 = ssub.s32 %s31, %s43
      %p196 = scmp.eq.s32.totalorder %s195, 0
      %s198 = sadd.s32 %s197, 1
      %s199 = scalar_select %p196, %s197, %s198
      %p202 = pneg %p196
      %p203 = scmp.eq.s32.totalorder %s24, 5
      %p204 = por %p202, %p203
      %p205 = scmp.ne.s32.totalorder %s197, %s200
      %p206 = scmp.eq.s32.totalorder %s24, 0
      %p207 = por %p205, %p206
      %p208 = scmp.ne.s32.totalorder %s197, %s200
      %p209 = scmp.eq.s32.totalorder %s29, 5
      %p210 = por %p208, %p209
      %p211 = scmp.ne.s32.totalorder %s200, %s201
      %p212 = scmp.eq.s32.totalorder %s29, 0
      %p213 = por %p211, %p212
      %p214 = scmp.ne.s32.totalorder %s200, %s201
      %p215 = scmp.eq.s32.totalorder %s30, 5
      %p216 = por %p214, %p215
      %p218 = scmp.ne.s32.totalorder %s201, %s217
      %p219 = scmp.eq.s32.totalorder %s30, 0
      %p220 = por %p218, %p219
      %s221 = ssub.s32 %s31, %s43
      %p222 = scmp.eq.s32.totalorder %s221, 0
      %s224 = sadd.s32 %s223, 1
      %s225 = scalar_select %p222, %s223, %s224
      %p228 = pneg %p222
      %p229 = scmp.eq.s32.totalorder %s24, 5
      %p230 = por %p228, %p229
      %p231 = scmp.ne.s32.totalorder %s223, %s226
      %p232 = scmp.eq.s32.totalorder %s24, 0
      %p233 = por %p231, %p232
      %p234 = scmp.ne.s32.totalorder %s223, %s226
      %p235 = scmp.eq.s32.totalorder %s29, 5
      %p236 = por %p234, %p235
      %p237 = scmp.ne.s32.totalorder %s226, %s227
      %p238 = scmp.eq.s32.totalorder %s29, 0
      %p239 = por %p237, %p238
      %p240 = scmp.ne.s32.totalorder %s226, %s227
      %p241 = scmp.eq.s32.totalorder %s30, 5
      %p242 = por %p240, %p241
      %p244 = scmp.ne.s32.totalorder %s227, %s243
      %p245 = scmp.eq.s32.totalorder %s30, 0
      %p246 = por %p244, %p245
      %p247 = scmp.le.s32.totalorder 1, %s24
      %p248 = scmp.lt.s32.totalorder %s24, 7
      %p249 = pnand %p247, %p248
      %p250 = pneg %p249
      // Predicated region
      $region9: #{tpu_custom_call.1} parent=5 // pred_check
        _
      $region10: #{tpu_custom_call.1} parent=5 // pred_check_branch
        %252 = sbr.rel (%p249) target = $region12
      $region11: #{tpu_custom_call.1} parent=5 // pred_region
        %s253 = ssub.s32 %s24, 1
        // Predicated region
        $region13: #{tpu_custom_call.1} parent=11 // pred_check
          %p254 = pneg %p57
        $region14: #{tpu_custom_call.1} parent=11 // pred_check_branch
          %256 = sbr.rel (%p254) target = $region16
        $region15: #{tpu_custom_call.1} parent=11 // pred_region
          _
        $region16: #{tpu_custom_call.1} parent=11 // pred_fallthru
          _
      $region12: #{tpu_custom_call.1} parent=5 // pred_fallthru
        _
      %p257 = scmp.lt.s32.totalorder %s24, 6
      // Predicated region
      $region17: #{tpu_custom_call.1} parent=5 // pred_check
        %p258 = pneg %p257
      $region18: #{tpu_custom_call.1} parent=5 // pred_check_branch
        %260 = sbr.rel (%p258) target = $region20
      $region19: #{tpu_custom_call.1} parent=5 // pred_region
        // Predicated region
        $region21: #{tpu_custom_call.1} parent=19 // pred_check
          %p261 = pneg %p77
        $region22: #{tpu_custom_call.1} parent=19 // pred_check_branch
          %263 = sbr.rel (%p261) target = $region24
        $region23: #{tpu_custom_call.1} parent=19 // pred_region
          %s264 = sand.u32 %s67, 1
          %s265 = scalar_lea.sflag [#allocation8], %s264
          %s266 = sand.u32 %s67, 1
          %s267 = smul.addr %s266, 384
          %s268 = scalar_lea.vmem [#allocation7], %s267
          %s269 = smul.u32 48, %s31
          %271 = vsyncadd %s265, 0
          %s272 = smul.addr %s269, 2
          %s273 = smul.addr %s272, 4
          %s274 = scalar_lea.hbm %s1, %s273
          %s275 = sshll.u32 %s274, 4
          %s276 = int_to_ptr.hbm [resolvable:$true] %s275
          %s277 = sshll.u32 %s268, 4
          %s278 = int_to_ptr.vmem [resolvable:$true] %s277
          %283 = dma.hbm_to_vmem [thread:$0]  %s276, 6144, %s278, %s265, 128, 128, 8
        $region24: #{tpu_custom_call.1} parent=19 // pred_fallthru
          _
        // Predicated region
        $region25: #{tpu_custom_call.1} parent=19 // pred_check
          %p284 = pneg %p103
        $region26: #{tpu_custom_call.1} parent=19 // pred_check_branch
          %286 = sbr.rel (%p284) target = $region28
        $region27: #{tpu_custom_call.1} parent=19 // pred_region
          %s287 = sand.u32 %s24, 1
          %s288 = scalar_lea.sflag [#allocation10], %s287
          %s289 = sand.u32 %s93, 1
          %s290 = smul.addr %s289, 384
          %s291 = scalar_lea.vmem [#allocation9], %s290
          %s292 = smul.u32 48, %s31
          %294 = vsyncadd %s288, 0
          %s295 = smul.addr %s292, 2
          %s296 = smul.addr %s295, 4
          %s297 = scalar_lea.hbm %s2, %s296
          %s298 = sshll.u32 %s297, 4
          %s299 = int_to_ptr.hbm [resolvable:$true] %s298
          %s300 = sshll.u32 %s291, 4
          %s301 = int_to_ptr.vmem [resolvable:$true] %s300
          %306 = dma.hbm_to_vmem [thread:$0]  %s299, 6144, %s301, %s288, 128, 128, 8
        $region28: #{tpu_custom_call.1} parent=19 // pred_fallthru
          _
        // Predicated region
        $region29: #{tpu_custom_call.1} parent=19 // pred_check
          %p307 = pneg %p129
        $region30: #{tpu_custom_call.1} parent=19 // pred_check_branch
          %309 = sbr.rel (%p307) target = $region32
        $region31: #{tpu_custom_call.1} parent=19 // pred_region
          %s310 = sand.u32 %s24, 1
          %s311 = scalar_lea.sflag [#allocation10], %s310
          %s312 = sand.u32 %s119, 1
          %s313 = smul.addr %s312, 256
          %s314 = scalar_lea.vmem [#allocation11], %s313
          %s315 = smul.u32 32, %s32
          %317 = vsyncadd %s311, 0
          %s318 = smul.addr %s315, 2
          %s319 = smul.addr %s318, 4
          %s320 = scalar_lea.hbm %s3, %s319
          %s321 = sshll.u32 %s320, 4
          %s322 = int_to_ptr.hbm [resolvable:$true] %s321
          %s323 = sshll.u32 %s314, 4
          %s324 = int_to_ptr.vmem [resolvable:$true] %s323
          %329 = dma.hbm_to_vmem [thread:$0]  %s322, 4096, %s324, %s311, 128, 128, 8
        $region32: #{tpu_custom_call.1} parent=19 // pred_fallthru
          _
        // Predicated region
        $region33: #{tpu_custom_call.1} parent=19 // pred_check
          %p330 = pneg %p155
        $region34: #{tpu_custom_call.1} parent=19 // pred_check_branch
          %332 = sbr.rel (%p330) target = $region36
        $region35: #{tpu_custom_call.1} parent=19 // pred_region
          %s333 = sand.u32 %s145, 1
          %s334 = scalar_lea.sflag [#allocation13], %s333
          %s335 = sand.u32 %s145, 1
          %s336 = smul.addr %s335, 256
          %s337 = scalar_lea.vmem [#allocation12], %s336
          %s338 = smul.u32 32, %s32
          %340 = vsyncadd %s334, 0
          %s341 = smul.addr %s338, 2
          %s342 = smul.addr %s341, 4
          %s343 = scalar_lea.hbm %s4, %s342
          %s344 = sshll.u32 %s343, 4
          %s345 = int_to_ptr.hbm [resolvable:$true] %s344
          %s346 = sshll.u32 %s337, 4
          %s347 = int_to_ptr.vmem [resolvable:$true] %s346
          %352 = dma.hbm_to_vmem [thread:$0]  %s345, 4096, %s347, %s334, 128, 128, 8
        $region36: #{tpu_custom_call.1} parent=19 // pred_fallthru
          _
      $region20: #{tpu_custom_call.1} parent=5 // pred_fallthru
        _
      %p353 = scmp.le.s32.totalorder 1, %s24
      %p354 = scmp.lt.s32.totalorder %s24, 7
      %p355 = pnand %p353, %p354
      %p356 = pneg %p355
      // Predicated region
      $region37: #{tpu_custom_call.1} parent=5 // pred_check
        _
      $region38: #{tpu_custom_call.1} parent=5 // pred_check_branch
        %358 = sbr.rel (%p355) target = $region40
      $region39: #{tpu_custom_call.1} parent=5 // pred_region
        %s359 = ssub.s32 %s24, 1
        %s360 = sand.u32 %s70, 1
        %s361 = scalar_lea.sflag [#allocation8], %s360
        %s362 = sand.u32 %s70, 1
        %s363 = smul.addr %s362, 384
        %s364 = scalar_lea.vmem [#allocation7], %s363
        // Predicated region
        $region41: #{tpu_custom_call.1} parent=39 // pred_check
          %p365 = pneg %p83
        $region42: #{tpu_custom_call.1} parent=39 // pred_check_branch
          %367 = sbr.rel (%p365) target = $region44
        $region43: #{tpu_custom_call.1} parent=39 // pred_region
          %369 = dma.done %s361, 6144
        $region44: #{tpu_custom_call.1} parent=39 // pred_fallthru
          _
        %s370 = sand.u32 %s29, 1
        %s371 = scalar_lea.sflag [#allocation10], %s370
        %s372 = sand.u32 %s96, 1
        %s373 = smul.addr %s372, 384
        %s374 = scalar_lea.vmem [#allocation9], %s373
        // Predicated region
        $region45: #{tpu_custom_call.1} parent=39 // pred_check
          %p375 = pneg %p109
        $region46: #{tpu_custom_call.1} parent=39 // pred_check_branch
          %377 = sbr.rel (%p375) target = $region48
        $region47: #{tpu_custom_call.1} parent=39 // pred_region
          %379 = dma.done %s371, 6144
        $region48: #{tpu_custom_call.1} parent=39 // pred_fallthru
          _
        %s380 = sand.u32 %s29, 1
        %s381 = scalar_lea.sflag [#allocation10], %s380
        %s382 = sand.u32 %s122, 1
        %s383 = smul.addr %s382, 256
        %s384 = scalar_lea.vmem [#allocation11], %s383
        // Predicated region
        $region49: #{tpu_custom_call.1} parent=39 // pred_check
          %p385 = pneg %p135
        $region50: #{tpu_custom_call.1} parent=39 // pred_check_branch
          %387 = sbr.rel (%p385) target = $region52
        $region51: #{tpu_custom_call.1} parent=39 // pred_region
          %389 = dma.done %s381, 4096
        $region52: #{tpu_custom_call.1} parent=39 // pred_fallthru
          _
        %s390 = sand.u32 %s148, 1
        %s391 = scalar_lea.sflag [#allocation13], %s390
        %s392 = sand.u32 %s148, 1
        %s393 = smul.addr %s392, 256
        %s394 = scalar_lea.vmem [#allocation12], %s393
        // Predicated region
        $region53: #{tpu_custom_call.1} parent=39 // pred_check
          %p395 = pneg %p161
        $region54: #{tpu_custom_call.1} parent=39 // pred_check_branch
          %397 = sbr.rel (%p395) target = $region56
        $region55: #{tpu_custom_call.1} parent=39 // pred_region
          %399 = dma.done %s391, 4096
        $region56: #{tpu_custom_call.1} parent=39 // pred_fallthru
          _
        %p400 = pneg %p57
        %p401 = pneg %p54
        %s402 = sand.u32 %s70, 1
        %s403 = scalar_lea.sflag [#allocation8], %s402
        %s404 = sand.u32 %s70, 1
        %s405 = smul.addr %s404, 384
        %s406 = scalar_lea.vmem [#allocation7], %s405
        %p407 = pneg %p83
        %p408 = pneg %p80
        %s409 = sand.u32 %s29, 1
        %s410 = scalar_lea.sflag [#allocation10], %s409
        %s411 = sand.u32 %s96, 1
        %s412 = smul.addr %s411, 384
        %s413 = scalar_lea.vmem [#allocation9], %s412
        %p414 = pneg %p109
        %p415 = pneg %p106
        %s416 = sand.u32 %s29, 1
        %s417 = scalar_lea.sflag [#allocation10], %s416
        %s418 = sand.u32 %s122, 1
        %s419 = smul.addr %s418, 256
        %s420 = scalar_lea.vmem [#allocation11], %s419
        %p421 = pneg %p135
        %p422 = pneg %p132
        %s423 = sand.u32 %s148, 1
        %s424 = scalar_lea.sflag [#allocation13], %s423
        %s425 = sand.u32 %s148, 1
        %s426 = smul.addr %s425, 256
        %s427 = scalar_lea.vmem [#allocation12], %s426
        %p428 = pneg %p161
        %p429 = pneg %p158
        %p430 = pneg %p187
        %p431 = pneg %p184
        %s432 = smul.u32 48, %s33
        %p433 = scmp.lt.s32.totalorder %s432, 95
        %s434 = scalar_select %p433, %s432, 95
        %s435 = smul.addr %s434, 8
        %s436 = scalar_lea.vmem %s5, %s435
        %p437 = pneg %p213
        %p438 = pneg %p210
        %s439 = smul.u32 48, %s33
        %p440 = scmp.lt.s32.totalorder %s439, 95
        %s441 = scalar_select %p440, %s439, 95
        %s442 = smul.addr %s441, 8
        %s443 = scalar_lea.vmem %s6, %s442
        %p444 = pneg %p239
        %p445 = pneg %p236
        %s446 = smul.u32 48, %s33
        %p447 = scmp.lt.s32.totalorder %s446, 95
        %s448 = scalar_select %p447, %s446, 95
        %s449 = smul.addr %s448, 8
        %s450 = scalar_lea.vmem %s7, %s449
        %s451 = smul.u32 48, %s33
        %s452 = smul.u32 48, %s33
        %s453 = smul.u32 32, %s34
        %s454 = smul.u32 32, %s34
        %s455 = smul.u32 48, %s33
        %p456 = scmp.lt.s32.totalorder %s455, 95
        %s457 = scalar_select %p456, %s455, 95
        %s458 = smul.addr %s457, 8
        %s459 = scalar_lea.vmem %s5, %s458
        %s460 = smul.u32 48, %s33
        %s461 = smul.u32 48, %s33
        %p462 = scmp.lt.s32.totalorder %s461, 95
        %s463 = scalar_select %p462, %s461, 95
        %s464 = smul.addr %s463, 8
        %s465 = scalar_lea.vmem %s6, %s464
        %s466 = smul.u32 48, %s33
        %s467 = smul.u32 48, %s33
        %p468 = scmp.lt.s32.totalorder %s467, 95
        %s469 = scalar_select %p468, %s467, 95
        %s470 = smul.addr %s469, 8
        %s471 = scalar_lea.vmem %s7, %s470
        %s472 = smul.u32 48, %s33
        %v473 = vld [vmem:[%s364] sm:$0xff]
        %v474 = vld [vmem:[%s364 + $0x8] sm:$0xff]
        %v475 = vld [vmem:[%s364 + $0x10] sm:$0xff]
        %v476 = vld [vmem:[%s364 + $0x18] sm:$0xff]
        %v477 = vld [vmem:[%s364 + $0x20] sm:$0xff]
        %v478 = vld [vmem:[%s364 + $0x28] sm:$0xff]
        %v479 = vld [vmem:[%s364 + $0x30] sm:$0xff]
        %v480 = vld [vmem:[%s364 + $0x38] sm:$0xff]
        %v481 = vld [vmem:[%s364 + $0x40] sm:$0xff]
        %v482 = vld [vmem:[%s364 + $0x48] sm:$0xff]
        %v483 = vld [vmem:[%s364 + $0x50] sm:$0xff]
        %v484 = vld [vmem:[%s364 + $0x58] sm:$0xff]
        %v485 = vld [vmem:[%s364 + $0x60] sm:$0xff]
        %v486 = vld [vmem:[%s364 + $0x68] sm:$0xff]
        %v487 = vld [vmem:[%s364 + $0x70] sm:$0xff]
        %v488 = vld [vmem:[%s364 + $0x78] sm:$0xff]
        %v489 = vld [vmem:[%s364 + $0x80] sm:$0xff]
        %v490 = vld [vmem:[%s364 + $0x88] sm:$0xff]
        %v491 = vld [vmem:[%s364 + $0x90] sm:$0xff]
        %v492 = vld [vmem:[%s364 + $0x98] sm:$0xff]
        %v493 = vld [vmem:[%s364 + $0xa0] sm:$0xff]
        %v494 = vld [vmem:[%s364 + $0xa8] sm:$0xff]
        %v495 = vld [vmem:[%s364 + $0xb0] sm:$0xff]
        %v496 = vld [vmem:[%s364 + $0xb8] sm:$0xff]
        %v497 = vld [vmem:[%s364 + $0xc0] sm:$0xff]
        %v498 = vld [vmem:[%s364 + $0xc8] sm:$0xff]
        %v499 = vld [vmem:[%s364 + $0xd0] sm:$0xff]
        %v500 = vld [vmem:[%s364 + $0xd8] sm:$0xff]
        %v501 = vld [vmem:[%s364 + $0xe0] sm:$0xff]
        %v502 = vld [vmem:[%s364 + $0xe8] sm:$0xff]
        %v503 = vld [vmem:[%s364 + $0xf0] sm:$0xff]
        %v504 = vld [vmem:[%s364 + $0xf8] sm:$0xff]
        %v505 = vld [vmem:[%s364 + $0x100] sm:$0xff]
        %v506 = vld [vmem:[%s364 + $0x108] sm:$0xff]
        %v507 = vld [vmem:[%s364 + $0x110] sm:$0xff]
        %v508 = vld [vmem:[%s364 + $0x118] sm:$0xff]
        %v509 = vld [vmem:[%s364 + $0x120] sm:$0xff]
        %v510 = vld [vmem:[%s364 + $0x128] sm:$0xff]
        %v511 = vld [vmem:[%s364 + $0x130] sm:$0xff]
        %v512 = vld [vmem:[%s364 + $0x138] sm:$0xff]
        %v513 = vld [vmem:[%s364 + $0x140] sm:$0xff]
        %v514 = vld [vmem:[%s364 + $0x148] sm:$0xff]
        %v515 = vld [vmem:[%s364 + $0x150] sm:$0xff]
        %v516 = vld [vmem:[%s364 + $0x158] sm:$0xff]
        %v517 = vld [vmem:[%s364 + $0x160] sm:$0xff]
        %v518 = vld [vmem:[%s364 + $0x168] sm:$0xff]
        %v519 = vld [vmem:[%s364 + $0x170] sm:$0xff]
        %v520 = vld [vmem:[%s364 + $0x178] sm:$0xff]
        %v521 = vld [vmem:[%s374] sm:$0xff]
        %v522 = vld [vmem:[%s374 + $0x8] sm:$0xff]
        %v523 = vld [vmem:[%s374 + $0x10] sm:$0xff]
        %v524 = vld [vmem:[%s374 + $0x18] sm:$0xff]
        %v525 = vld [vmem:[%s374 + $0x20] sm:$0xff]
        %v526 = vld [vmem:[%s374 + $0x28] sm:$0xff]
        %v527 = vld [vmem:[%s374 + $0x30] sm:$0xff]
        %v528 = vld [vmem:[%s374 + $0x38] sm:$0xff]
        %v529 = vld [vmem:[%s374 + $0x40] sm:$0xff]
        %v530 = vld [vmem:[%s374 + $0x48] sm:$0xff]
        %v531 = vld [vmem:[%s374 + $0x50] sm:$0xff]
        %v532 = vld [vmem:[%s374 + $0x58] sm:$0xff]
        %v533 = vld [vmem:[%s374 + $0x60] sm:$0xff]
        %v534 = vld [vmem:[%s374 + $0x68] sm:$0xff]
        %v535 = vld [vmem:[%s374 + $0x70] sm:$0xff]
        %v536 = vld [vmem:[%s374 + $0x78] sm:$0xff]
        %v537 = vld [vmem:[%s374 + $0x80] sm:$0xff]
        %v538 = vld [vmem:[%s374 + $0x88] sm:$0xff]
        %v539 = vld [vmem:[%s374 + $0x90] sm:$0xff]
        %v540 = vld [vmem:[%s374 + $0x98] sm:$0xff]
        %v541 = vld [vmem:[%s374 + $0xa0] sm:$0xff]
        %v542 = vld [vmem:[%s374 + $0xa8] sm:$0xff]
        %v543 = vld [vmem:[%s374 + $0xb0] sm:$0xff]
        %v544 = vld [vmem:[%s374 + $0xb8] sm:$0xff]
        %v545 = vld [vmem:[%s374 + $0xc0] sm:$0xff]
        %v546 = vld [vmem:[%s374 + $0xc8] sm:$0xff]
        %v547 = vld [vmem:[%s374 + $0xd0] sm:$0xff]
        %v548 = vld [vmem:[%s374 + $0xd8] sm:$0xff]
        %v549 = vld [vmem:[%s374 + $0xe0] sm:$0xff]
        %v550 = vld [vmem:[%s374 + $0xe8] sm:$0xff]
        %v551 = vld [vmem:[%s374 + $0xf0] sm:$0xff]
        %v552 = vld [vmem:[%s374 + $0xf8] sm:$0xff]
        %v553 = vld [vmem:[%s374 + $0x100] sm:$0xff]
        %v554 = vld [vmem:[%s374 + $0x108] sm:$0xff]
        %v555 = vld [vmem:[%s374 + $0x110] sm:$0xff]
        %v556 = vld [vmem:[%s374 + $0x118] sm:$0xff]
        %v557 = vld [vmem:[%s374 + $0x120] sm:$0xff]
        %v558 = vld [vmem:[%s374 + $0x128] sm:$0xff]
        %v559 = vld [vmem:[%s374 + $0x130] sm:$0xff]
        %v560 = vld [vmem:[%s374 + $0x138] sm:$0xff]
        %v561 = vld [vmem:[%s374 + $0x140] sm:$0xff]
        %v562 = vld [vmem:[%s374 + $0x148] sm:$0xff]
        %v563 = vld [vmem:[%s374 + $0x150] sm:$0xff]
        %v564 = vld [vmem:[%s374 + $0x158] sm:$0xff]
        %v565 = vld [vmem:[%s374 + $0x160] sm:$0xff]
        %v566 = vld [vmem:[%s374 + $0x168] sm:$0xff]
        %v567 = vld [vmem:[%s374 + $0x170] sm:$0xff]
        %v568 = vld [vmem:[%s374 + $0x178] sm:$0xff]
        %p569 = scmp.eq.s32.totalorder %s34, 0
        // Predicated region
        $region57: #{tpu_custom_call.1} parent=39 // pred_check
          %p570 = pneg %p569
        $region58: #{tpu_custom_call.1} parent=39 // pred_check_branch
          %572 = sbr.rel (%p570) target = $region60
        $region59: #{tpu_custom_call.1} parent=39 // pred_region
          %vm573 = vcmask 7168
          %574 = vst.msk [vmem:[#allocation2] sm:$0xff] %vm573, -inf
          %575 = vst.msk [vmem:[#allocation2 + $0x8] sm:$0xff] %vm573, -inf
          %576 = vst.msk [vmem:[#allocation2 + $0x10] sm:$0xff] %vm573, -inf
          %577 = vst.msk [vmem:[#allocation2 + $0x18] sm:$0xff] %vm573, -inf
          %578 = vst.msk [vmem:[#allocation2 + $0x20] sm:$0xff] %vm573, -inf
          %579 = vst.msk [vmem:[#allocation2 + $0x28] sm:$0xff] %vm573, -inf
          %580 = vst.msk [vmem:[#allocation2 + $0x30] sm:$0xff] %vm573, -inf
          %581 = vst.msk [vmem:[#allocation2 + $0x38] sm:$0xff] %vm573, -inf
          %582 = vst.msk [vmem:[#allocation2 + $0x40] sm:$0xff] %vm573, -inf
          %583 = vst.msk [vmem:[#allocation2 + $0x48] sm:$0xff] %vm573, -inf
          %584 = vst.msk [vmem:[#allocation2 + $0x50] sm:$0xff] %vm573, -inf
          %585 = vst.msk [vmem:[#allocation2 + $0x58] sm:$0xff] %vm573, -inf
          %586 = vst.msk [vmem:[#allocation2 + $0x60] sm:$0xff] %vm573, -inf
          %587 = vst.msk [vmem:[#allocation2 + $0x68] sm:$0xff] %vm573, -inf
          %588 = vst.msk [vmem:[#allocation2 + $0x70] sm:$0xff] %vm573, -inf
          %589 = vst.msk [vmem:[#allocation2 + $0x78] sm:$0xff] %vm573, -inf
          %590 = vst.msk [vmem:[#allocation2 + $0x80] sm:$0xff] %vm573, -inf
          %591 = vst.msk [vmem:[#allocation2 + $0x88] sm:$0xff] %vm573, -inf
          %592 = vst.msk [vmem:[#allocation2 + $0x90] sm:$0xff] %vm573, -inf
          %593 = vst.msk [vmem:[#allocation2 + $0x98] sm:$0xff] %vm573, -inf
          %594 = vst.msk [vmem:[#allocation2 + $0xa0] sm:$0xff] %vm573, -inf
          %595 = vst.msk [vmem:[#allocation2 + $0xa8] sm:$0xff] %vm573, -inf
          %596 = vst.msk [vmem:[#allocation2 + $0xb0] sm:$0xff] %vm573, -inf
          %597 = vst.msk [vmem:[#allocation2 + $0xb8] sm:$0xff] %vm573, -inf
          %598 = vst.msk [vmem:[#allocation2 + $0xc0] sm:$0xff] %vm573, -inf
          %599 = vst.msk [vmem:[#allocation2 + $0xc8] sm:$0xff] %vm573, -inf
          %600 = vst.msk [vmem:[#allocation2 + $0xd0] sm:$0xff] %vm573, -inf
          %601 = vst.msk [vmem:[#allocation2 + $0xd8] sm:$0xff] %vm573, -inf
          %602 = vst.msk [vmem:[#allocation2 + $0xe0] sm:$0xff] %vm573, -inf
          %603 = vst.msk [vmem:[#allocation2 + $0xe8] sm:$0xff] %vm573, -inf
          %604 = vst.msk [vmem:[#allocation2 + $0xf0] sm:$0xff] %vm573, -inf
          %605 = vst.msk [vmem:[#allocation2 + $0xf8] sm:$0xff] %vm573, -inf
          %606 = vst.msk [vmem:[#allocation2 + $0x100] sm:$0xff] %vm573, -inf
          %607 = vst.msk [vmem:[#allocation2 + $0x108] sm:$0xff] %vm573, -inf
          %608 = vst.msk [vmem:[#allocation2 + $0x110] sm:$0xff] %vm573, -inf
          %609 = vst.msk [vmem:[#allocation2 + $0x118] sm:$0xff] %vm573, -inf
          %610 = vst.msk [vmem:[#allocation2 + $0x120] sm:$0xff] %vm573, -inf
          %611 = vst.msk [vmem:[#allocation2 + $0x128] sm:$0xff] %vm573, -inf
          %612 = vst.msk [vmem:[#allocation2 + $0x130] sm:$0xff] %vm573, -inf
          %613 = vst.msk [vmem:[#allocation2 + $0x138] sm:$0xff] %vm573, -inf
          %614 = vst.msk [vmem:[#allocation2 + $0x140] sm:$0xff] %vm573, -inf
          %615 = vst.msk [vmem:[#allocation2 + $0x148] sm:$0xff] %vm573, -inf
          %616 = vst.msk [vmem:[#allocation2 + $0x150] sm:$0xff] %vm573, -inf
          %617 = vst.msk [vmem:[#allocation2 + $0x158] sm:$0xff] %vm573, -inf
          %618 = vst.msk [vmem:[#allocation2 + $0x160] sm:$0xff] %vm573, -inf
          %619 = vst.msk [vmem:[#allocation2 + $0x168] sm:$0xff] %vm573, -inf
          %620 = vst.msk [vmem:[#allocation2 + $0x170] sm:$0xff] %vm573, -inf
          %621 = vst.msk [vmem:[#allocation2 + $0x178] sm:$0xff] %vm573, -inf
          %622 = vst.msk [vmem:[#allocation3] sm:$0xff] %vm573, 0.0
          %623 = vst.msk [vmem:[#allocation3 + $0x8] sm:$0xff] %vm573, 0.0
          %624 = vst.msk [vmem:[#allocation3 + $0x10] sm:$0xff] %vm573, 0.0
          %625 = vst.msk [vmem:[#allocation3 + $0x18] sm:$0xff] %vm573, 0.0
          %626 = vst.msk [vmem:[#allocation3 + $0x20] sm:$0xff] %vm573, 0.0
          %627 = vst.msk [vmem:[#allocation3 + $0x28] sm:$0xff] %vm573, 0.0
          %628 = vst.msk [vmem:[#allocation3 + $0x30] sm:$0xff] %vm573, 0.0
          %629 = vst.msk [vmem:[#allocation3 + $0x38] sm:$0xff] %vm573, 0.0
          %630 = vst.msk [vmem:[#allocation3 + $0x40] sm:$0xff] %vm573, 0.0
          %631 = vst.msk [vmem:[#allocation3 + $0x48] sm:$0xff] %vm573, 0.0
          %632 = vst.msk [vmem:[#allocation3 + $0x50] sm:$0xff] %vm573, 0.0
          %633 = vst.msk [vmem:[#allocation3 + $0x58] sm:$0xff] %vm573, 0.0
          %634 = vst.msk [vmem:[#allocation3 + $0x60] sm:$0xff] %vm573, 0.0
          %635 = vst.msk [vmem:[#allocation3 + $0x68] sm:$0xff] %vm573, 0.0
          %636 = vst.msk [vmem:[#allocation3 + $0x70] sm:$0xff] %vm573, 0.0
          %637 = vst.msk [vmem:[#allocation3 + $0x78] sm:$0xff] %vm573, 0.0
          %638 = vst.msk [vmem:[#allocation3 + $0x80] sm:$0xff] %vm573, 0.0
          %639 = vst.msk [vmem:[#allocation3 + $0x88] sm:$0xff] %vm573, 0.0
          %640 = vst.msk [vmem:[#allocation3 + $0x90] sm:$0xff] %vm573, 0.0
          %641 = vst.msk [vmem:[#allocation3 + $0x98] sm:$0xff] %vm573, 0.0
          %642 = vst.msk [vmem:[#allocation3 + $0xa0] sm:$0xff] %vm573, 0.0
          %643 = vst.msk [vmem:[#allocation3 + $0xa8] sm:$0xff] %vm573, 0.0
          %644 = vst.msk [vmem:[#allocation3 + $0xb0] sm:$0xff] %vm573, 0.0
          %645 = vst.msk [vmem:[#allocation3 + $0xb8] sm:$0xff] %vm573, 0.0
          %646 = vst.msk [vmem:[#allocation3 + $0xc0] sm:$0xff] %vm573, 0.0
          %647 = vst.msk [vmem:[#allocation3 + $0xc8] sm:$0xff] %vm573, 0.0
          %648 = vst.msk [vmem:[#allocation3 + $0xd0] sm:$0xff] %vm573, 0.0
          %649 = vst.msk [vmem:[#allocation3 + $0xd8] sm:$0xff] %vm573, 0.0
          %650 = vst.msk [vmem:[#allocation3 + $0xe0] sm:$0xff] %vm573, 0.0
          %651 = vst.msk [vmem:[#allocation3 + $0xe8] sm:$0xff] %vm573, 0.0
          %652 = vst.msk [vmem:[#allocation3 + $0xf0] sm:$0xff] %vm573, 0.0
          %653 = vst.msk [vmem:[#allocation3 + $0xf8] sm:$0xff] %vm573, 0.0
          %654 = vst.msk [vmem:[#allocation3 + $0x100] sm:$0xff] %vm573, 0.0
          %655 = vst.msk [vmem:[#allocation3 + $0x108] sm:$0xff] %vm573, 0.0
          %656 = vst.msk [vmem:[#allocation3 + $0x110] sm:$0xff] %vm573, 0.0
          %657 = vst.msk [vmem:[#allocation3 + $0x118] sm:$0xff] %vm573, 0.0
          %658 = vst.msk [vmem:[#allocation3 + $0x120] sm:$0xff] %vm573, 0.0
          %659 = vst.msk [vmem:[#allocation3 + $0x128] sm:$0xff] %vm573, 0.0
          %660 = vst.msk [vmem:[#allocation3 + $0x130] sm:$0xff] %vm573, 0.0
          %661 = vst.msk [vmem:[#allocation3 + $0x138] sm:$0xff] %vm573, 0.0
          %662 = vst.msk [vmem:[#allocation3 + $0x140] sm:$0xff] %vm573, 0.0
          %663 = vst.msk [vmem:[#allocation3 + $0x148] sm:$0xff] %vm573, 0.0
          %664 = vst.msk [vmem:[#allocation3 + $0x150] sm:$0xff] %vm573, 0.0
          %665 = vst.msk [vmem:[#allocation3 + $0x158] sm:$0xff] %vm573, 0.0
          %666 = vst.msk [vmem:[#allocation3 + $0x160] sm:$0xff] %vm573, 0.0
          %667 = vst.msk [vmem:[#allocation3 + $0x168] sm:$0xff] %vm573, 0.0
          %668 = vst.msk [vmem:[#allocation3 + $0x170] sm:$0xff] %vm573, 0.0
          %669 = vst.msk [vmem:[#allocation3 + $0x178] sm:$0xff] %vm573, 0.0
          %670 = vst.msk [vmem:[#allocation4] sm:$0xff] %vm573, -inf
          %671 = vst.msk [vmem:[#allocation4 + $0x8] sm:$0xff] %vm573, -inf
          %672 = vst.msk [vmem:[#allocation4 + $0x10] sm:$0xff] %vm573, -inf
          %673 = vst.msk [vmem:[#allocation4 + $0x18] sm:$0xff] %vm573, -inf
          %674 = vst.msk [vmem:[#allocation4 + $0x20] sm:$0xff] %vm573, -inf
          %675 = vst.msk [vmem:[#allocation4 + $0x28] sm:$0xff] %vm573, -inf
          %676 = vst.msk [vmem:[#allocation4 + $0x30] sm:$0xff] %vm573, -inf
          %677 = vst.msk [vmem:[#allocation4 + $0x38] sm:$0xff] %vm573, -inf
          %678 = vst.msk [vmem:[#allocation4 + $0x40] sm:$0xff] %vm573, -inf
          %679 = vst.msk [vmem:[#allocation4 + $0x48] sm:$0xff] %vm573, -inf
          %680 = vst.msk [vmem:[#allocation4 + $0x50] sm:$0xff] %vm573, -inf
          %681 = vst.msk [vmem:[#allocation4 + $0x58] sm:$0xff] %vm573, -inf
          %682 = vst.msk [vmem:[#allocation4 + $0x60] sm:$0xff] %vm573, -inf
          %683 = vst.msk [vmem:[#allocation4 + $0x68] sm:$0xff] %vm573, -inf
          %684 = vst.msk [vmem:[#allocation4 + $0x70] sm:$0xff] %vm573, -inf
          %685 = vst.msk [vmem:[#allocation4 + $0x78] sm:$0xff] %vm573, -inf
          %686 = vst.msk [vmem:[#allocation4 + $0x80] sm:$0xff] %vm573, -inf
          %687 = vst.msk [vmem:[#allocation4 + $0x88] sm:$0xff] %vm573, -inf
          %688 = vst.msk [vmem:[#allocation4 + $0x90] sm:$0xff] %vm573, -inf
          %689 = vst.msk [vmem:[#allocation4 + $0x98] sm:$0xff] %vm573, -inf
          %690 = vst.msk [vmem:[#allocation4 + $0xa0] sm:$0xff] %vm573, -inf
          %691 = vst.msk [vmem:[#allocation4 + $0xa8] sm:$0xff] %vm573, -inf
          %692 = vst.msk [vmem:[#allocation4 + $0xb0] sm:$0xff] %vm573, -inf
          %693 = vst.msk [vmem:[#allocation4 + $0xb8] sm:$0xff] %vm573, -inf
          %694 = vst.msk [vmem:[#allocation4 + $0xc0] sm:$0xff] %vm573, -inf
          %695 = vst.msk [vmem:[#allocation4 + $0xc8] sm:$0xff] %vm573, -inf
          %696 = vst.msk [vmem:[#allocation4 + $0xd0] sm:$0xff] %vm573, -inf
          %697 = vst.msk [vmem:[#allocation4 + $0xd8] sm:$0xff] %vm573, -inf
          %698 = vst.msk [vmem:[#allocation4 + $0xe0] sm:$0xff] %vm573, -inf
          %699 = vst.msk [vmem:[#allocation4 + $0xe8] sm:$0xff] %vm573, -inf
          %700 = vst.msk [vmem:[#allocation4 + $0xf0] sm:$0xff] %vm573, -inf
          %701 = vst.msk [vmem:[#allocation4 + $0xf8] sm:$0xff] %vm573, -inf
          %702 = vst.msk [vmem:[#allocation4 + $0x100] sm:$0xff] %vm573, -inf
          %703 = vst.msk [vmem:[#allocation4 + $0x108] sm:$0xff] %vm573, -inf
          %704 = vst.msk [vmem:[#allocation4 + $0x110] sm:$0xff] %vm573, -inf
          %705 = vst.msk [vmem:[#allocation4 + $0x118] sm:$0xff] %vm573, -inf
          %706 = vst.msk [vmem:[#allocation4 + $0x120] sm:$0xff] %vm573, -inf
          %707 = vst.msk [vmem:[#allocation4 + $0x128] sm:$0xff] %vm573, -inf
          %708 = vst.msk [vmem:[#allocation4 + $0x130] sm:$0xff] %vm573, -inf
          %709 = vst.msk [vmem:[#allocation4 + $0x138] sm:$0xff] %vm573, -inf
          %710 = vst.msk [vmem:[#allocation4 + $0x140] sm:$0xff] %vm573, -inf
          %711 = vst.msk [vmem:[#allocation4 + $0x148] sm:$0xff] %vm573, -inf
          %712 = vst.msk [vmem:[#allocation4 + $0x150] sm:$0xff] %vm573, -inf
          %713 = vst.msk [vmem:[#allocation4 + $0x158] sm:$0xff] %vm573, -inf
          %714 = vst.msk [vmem:[#allocation4 + $0x160] sm:$0xff] %vm573, -inf
          %715 = vst.msk [vmem:[#allocation4 + $0x168] sm:$0xff] %vm573, -inf
          %716 = vst.msk [vmem:[#allocation4 + $0x170] sm:$0xff] %vm573, -inf
          %717 = vst.msk [vmem:[#allocation4 + $0x178] sm:$0xff] %vm573, -inf
          %718 = vst.msk [vmem:[#allocation5] sm:$0xff] %vm573, 0.0
          %719 = vst.msk [vmem:[#allocation5 + $0x8] sm:$0xff] %vm573, 0.0
          %720 = vst.msk [vmem:[#allocation5 + $0x10] sm:$0xff] %vm573, 0.0
          %721 = vst.msk [vmem:[#allocation5 + $0x18] sm:$0xff] %vm573, 0.0
          %722 = vst.msk [vmem:[#allocation5 + $0x20] sm:$0xff] %vm573, 0.0
          %723 = vst.msk [vmem:[#allocation5 + $0x28] sm:$0xff] %vm573, 0.0
          %724 = vst.msk [vmem:[#allocation5 + $0x30] sm:$0xff] %vm573, 0.0
          %725 = vst.msk [vmem:[#allocation5 + $0x38] sm:$0xff] %vm573, 0.0
          %726 = vst.msk [vmem:[#allocation5 + $0x40] sm:$0xff] %vm573, 0.0
          %727 = vst.msk [vmem:[#allocation5 + $0x48] sm:$0xff] %vm573, 0.0
          %728 = vst.msk [vmem:[#allocation5 + $0x50] sm:$0xff] %vm573, 0.0
          %729 = vst.msk [vmem:[#allocation5 + $0x58] sm:$0xff] %vm573, 0.0
          %730 = vst.msk [vmem:[#allocation5 + $0x60] sm:$0xff] %vm573, 0.0
          %731 = vst.msk [vmem:[#allocation5 + $0x68] sm:$0xff] %vm573, 0.0
          %732 = vst.msk [vmem:[#allocation5 + $0x70] sm:$0xff] %vm573, 0.0
          %733 = vst.msk [vmem:[#allocation5 + $0x78] sm:$0xff] %vm573, 0.0
          %734 = vst.msk [vmem:[#allocation5 + $0x80] sm:$0xff] %vm573, 0.0
          %735 = vst.msk [vmem:[#allocation5 + $0x88] sm:$0xff] %vm573, 0.0
          %736 = vst.msk [vmem:[#allocation5 + $0x90] sm:$0xff] %vm573, 0.0
          %737 = vst.msk [vmem:[#allocation5 + $0x98] sm:$0xff] %vm573, 0.0
          %738 = vst.msk [vmem:[#allocation5 + $0xa0] sm:$0xff] %vm573, 0.0
          %739 = vst.msk [vmem:[#allocation5 + $0xa8] sm:$0xff] %vm573, 0.0
          %740 = vst.msk [vmem:[#allocation5 + $0xb0] sm:$0xff] %vm573, 0.0
          %741 = vst.msk [vmem:[#allocation5 + $0xb8] sm:$0xff] %vm573, 0.0
          %742 = vst.msk [vmem:[#allocation5 + $0xc0] sm:$0xff] %vm573, 0.0
          %743 = vst.msk [vmem:[#allocation5 + $0xc8] sm:$0xff] %vm573, 0.0
          %744 = vst.msk [vmem:[#allocation5 + $0xd0] sm:$0xff] %vm573, 0.0
          %745 = vst.msk [vmem:[#allocation5 + $0xd8] sm:$0xff] %vm573, 0.0
          %746 = vst.msk [vmem:[#allocation5 + $0xe0] sm:$0xff] %vm573, 0.0
          %747 = vst.msk [vmem:[#allocation5 + $0xe8] sm:$0xff] %vm573, 0.0
          %748 = vst.msk [vmem:[#allocation5 + $0xf0] sm:$0xff] %vm573, 0.0
          %749 = vst.msk [vmem:[#allocation5 + $0xf8] sm:$0xff] %vm573, 0.0
          %750 = vst.msk [vmem:[#allocation5 + $0x100] sm:$0xff] %vm573, 0.0
          %751 = vst.msk [vmem:[#allocation5 + $0x108] sm:$0xff] %vm573, 0.0
          %752 = vst.msk [vmem:[#allocation5 + $0x110] sm:$0xff] %vm573, 0.0
          %753 = vst.msk [vmem:[#allocation5 + $0x118] sm:$0xff] %vm573, 0.0
          %754 = vst.msk [vmem:[#allocation5 + $0x120] sm:$0xff] %vm573, 0.0
          %755 = vst.msk [vmem:[#allocation5 + $0x128] sm:$0xff] %vm573, 0.0
          %756 = vst.msk [vmem:[#allocation5 + $0x130] sm:$0xff] %vm573, 0.0
          %757 = vst.msk [vmem:[#allocation5 + $0x138] sm:$0xff] %vm573, 0.0
          %758 = vst.msk [vmem:[#allocation5 + $0x140] sm:$0xff] %vm573, 0.0
          %759 = vst.msk [vmem:[#allocation5 + $0x148] sm:$0xff] %vm573, 0.0
          %760 = vst.msk [vmem:[#allocation5 + $0x150] sm:$0xff] %vm573, 0.0
          %761 = vst.msk [vmem:[#allocation5 + $0x158] sm:$0xff] %vm573, 0.0
          %762 = vst.msk [vmem:[#allocation5 + $0x160] sm:$0xff] %vm573, 0.0
          %763 = vst.msk [vmem:[#allocation5 + $0x168] sm:$0xff] %vm573, 0.0
          %764 = vst.msk [vmem:[#allocation5 + $0x170] sm:$0xff] %vm573, 0.0
          %765 = vst.msk [vmem:[#allocation5 + $0x178] sm:$0xff] %vm573, 0.0
          %v766 = vunpack.c.l.bf16 %v473
          %v767 = vunpack.c.h.bf16 %v473
          %v768 = vunpack.c.l.bf16 %v474
          %v769 = vunpack.c.h.bf16 %v474
          %v770 = vunpack.c.l.bf16 %v475
          %v771 = vunpack.c.h.bf16 %v475
          %v772 = vunpack.c.l.bf16 %v476
          %v773 = vunpack.c.h.bf16 %v476
          %v774 = vunpack.c.l.bf16 %v477
          %v775 = vunpack.c.h.bf16 %v477
          %v776 = vunpack.c.l.bf16 %v478
          %v777 = vunpack.c.h.bf16 %v478
          %v778 = vunpack.c.l.bf16 %v479
          %v779 = vunpack.c.h.bf16 %v479
          %v780 = vunpack.c.l.bf16 %v480
          %v781 = vunpack.c.h.bf16 %v480
          %v782 = vunpack.c.l.bf16 %v481
          %v783 = vunpack.c.h.bf16 %v481
          %v784 = vunpack.c.l.bf16 %v482
          %v785 = vunpack.c.h.bf16 %v482
          %v786 = vunpack.c.l.bf16 %v483
          %v787 = vunpack.c.h.bf16 %v483
          %v788 = vunpack.c.l.bf16 %v484
          %v789 = vunpack.c.h.bf16 %v484
          %v790 = vunpack.c.l.bf16 %v485
          %v791 = vunpack.c.h.bf16 %v485
          %v792 = vunpack.c.l.bf16 %v486
          %v793 = vunpack.c.h.bf16 %v486
          %v794 = vunpack.c.l.bf16 %v487
          %v795 = vunpack.c.h.bf16 %v487
          %v796 = vunpack.c.l.bf16 %v488
          %v797 = vunpack.c.h.bf16 %v488
          %v798 = vunpack.c.l.bf16 %v489
          %v799 = vunpack.c.h.bf16 %v489
          %v800 = vunpack.c.l.bf16 %v490
          %v801 = vunpack.c.h.bf16 %v490
          %v802 = vunpack.c.l.bf16 %v491
          %v803 = vunpack.c.h.bf16 %v491
          %v804 = vunpack.c.l.bf16 %v492
          %v805 = vunpack.c.h.bf16 %v492
          %v806 = vunpack.c.l.bf16 %v493
          %v807 = vunpack.c.h.bf16 %v493
          %v808 = vunpack.c.l.bf16 %v494
          %v809 = vunpack.c.h.bf16 %v494
          %v810 = vunpack.c.l.bf16 %v495
          %v811 = vunpack.c.h.bf16 %v495
          %v812 = vunpack.c.l.bf16 %v496
          %v813 = vunpack.c.h.bf16 %v496
          %v814 = vunpack.c.l.bf16 %v497
          %v815 = vunpack.c.h.bf16 %v497
          %v816 = vunpack.c.l.bf16 %v498
          %v817 = vunpack.c.h.bf16 %v498
          %v818 = vunpack.c.l.bf16 %v499
          %v819 = vunpack.c.h.bf16 %v499
          %v820 = vunpack.c.l.bf16 %v500
          %v821 = vunpack.c.h.bf16 %v500
          %v822 = vunpack.c.l.bf16 %v501
          %v823 = vunpack.c.h.bf16 %v501
          %v824 = vunpack.c.l.bf16 %v502
          %v825 = vunpack.c.h.bf16 %v502
          %v826 = vunpack.c.l.bf16 %v503
          %v827 = vunpack.c.h.bf16 %v503
          %v828 = vunpack.c.l.bf16 %v504
          %v829 = vunpack.c.h.bf16 %v504
          %v830 = vunpack.c.l.bf16 %v505
          %v831 = vunpack.c.h.bf16 %v505
          %v832 = vunpack.c.l.bf16 %v506
          %v833 = vunpack.c.h.bf16 %v506
          %v834 = vunpack.c.l.bf16 %v507
          %v835 = vunpack.c.h.bf16 %v507
          %v836 = vunpack.c.l.bf16 %v508
          %v837 = vunpack.c.h.bf16 %v508
          %v838 = vunpack.c.l.bf16 %v509
          %v839 = vunpack.c.h.bf16 %v509
          %v840 = vunpack.c.l.bf16 %v510
          %v841 = vunpack.c.h.bf16 %v510
          %v842 = vunpack.c.l.bf16 %v511
          %v843 = vunpack.c.h.bf16 %v511
          %v844 = vunpack.c.l.bf16 %v512
          %v845 = vunpack.c.h.bf16 %v512
          %v846 = vunpack.c.l.bf16 %v513
          %v847 = vunpack.c.h.bf16 %v513
          %v848 = vunpack.c.l.bf16 %v514
          %v849 = vunpack.c.h.bf16 %v514
          %v850 = vunpack.c.l.bf16 %v515
          %v851 = vunpack.c.h.bf16 %v515
          %v852 = vunpack.c.l.bf16 %v516
          %v853 = vunpack.c.h.bf16 %v516
          %v854 = vunpack.c.l.bf16 %v517
          %v855 = vunpack.c.h.bf16 %v517
          %v856 = vunpack.c.l.bf16 %v518
          %v857 = vunpack.c.h.bf16 %v518
          %v858 = vunpack.c.l.bf16 %v519
          %v859 = vunpack.c.h.bf16 %v519
          %v860 = vunpack.c.l.bf16 %v520
          %v861 = vunpack.c.h.bf16 %v520
          %v862 = vunpack.c.l.bf16 %v521
          %v863 = vunpack.c.h.bf16 %v521
          %v864 = vunpack.c.l.bf16 %v522
          %v865 = vunpack.c.h.bf16 %v522
          %v866 = vunpack.c.l.bf16 %v523
          %v867 = vunpack.c.h.bf16 %v523
          %v868 = vunpack.c.l.bf16 %v524
          %v869 = vunpack.c.h.bf16 %v524
          %v870 = vunpack.c.l.bf16 %v525
          %v871 = vunpack.c.h.bf16 %v525
          %v872 = vunpack.c.l.bf16 %v526
          %v873 = vunpack.c.h.bf16 %v526
          %v874 = vunpack.c.l.bf16 %v527
          %v875 = vunpack.c.h.bf16 %v527
          %v876 = vunpack.c.l.bf16 %v528
          %v877 = vunpack.c.h.bf16 %v528
          %v878 = vunpack.c.l.bf16 %v529
          %v879 = vunpack.c.h.bf16 %v529
          %v880 = vunpack.c.l.bf16 %v530
          %v881 = vunpack.c.h.bf16 %v530
          %v882 = vunpack.c.l.bf16 %v531
          %v883 = vunpack.c.h.bf16 %v531
          %v884 = vunpack.c.l.bf16 %v532
          %v885 = vunpack.c.h.bf16 %v532
          %v886 = vunpack.c.l.bf16 %v533
          %v887 = vunpack.c.h.bf16 %v533
          %v888 = vunpack.c.l.bf16 %v534
          %v889 = vunpack.c.h.bf16 %v534
          %v890 = vunpack.c.l.bf16 %v535
          %v891 = vunpack.c.h.bf16 %v535
          %v892 = vunpack.c.l.bf16 %v536
          %v893 = vunpack.c.h.bf16 %v536
          %v894 = vunpack.c.l.bf16 %v537
          %v895 = vunpack.c.h.bf16 %v537
          %v896 = vunpack.c.l.bf16 %v538
          %v897 = vunpack.c.h.bf16 %v538
          %v898 = vunpack.c.l.bf16 %v539
          %v899 = vunpack.c.h.bf16 %v539
          %v900 = vunpack.c.l.bf16 %v540
          %v901 = vunpack.c.h.bf16 %v540
          %v902 = vunpack.c.l.bf16 %v541
          %v903 = vunpack.c.h.bf16 %v541
          %v904 = vunpack.c.l.bf16 %v542
          %v905 = vunpack.c.h.bf16 %v542
          %v906 = vunpack.c.l.bf16 %v543
          %v907 = vunpack.c.h.bf16 %v543
          %v908 = vunpack.c.l.bf16 %v544
          %v909 = vunpack.c.h.bf16 %v544
          %v910 = vunpack.c.l.bf16 %v545
          %v911 = vunpack.c.h.bf16 %v545
          %v912 = vunpack.c.l.bf16 %v546
          %v913 = vunpack.c.h.bf16 %v546
          %v914 = vunpack.c.l.bf16 %v547
          %v915 = vunpack.c.h.bf16 %v547
          %v916 = vunpack.c.l.bf16 %v548
          %v917 = vunpack.c.h.bf16 %v548
          %v918 = vunpack.c.l.bf16 %v549
          %v919 = vunpack.c.h.bf16 %v549
          %v920 = vunpack.c.l.bf16 %v550
          %v921 = vunpack.c.h.bf16 %v550
          %v922 = vunpack.c.l.bf16 %v551
          %v923 = vunpack.c.h.bf16 %v551
          %v924 = vunpack.c.l.bf16 %v552
          %v925 = vunpack.c.h.bf16 %v552
          %v926 = vunpack.c.l.bf16 %v553
          %v927 = vunpack.c.h.bf16 %v553
          %v928 = vunpack.c.l.bf16 %v554
          %v929 = vunpack.c.h.bf16 %v554
          %v930 = vunpack.c.l.bf16 %v555
          %v931 = vunpack.c.h.bf16 %v555
          %v932 = vunpack.c.l.bf16 %v556
          %v933 = vunpack.c.h.bf16 %v556
          %v934 = vunpack.c.l.bf16 %v557
          %v935 = vunpack.c.h.bf16 %v557
          %v936 = vunpack.c.l.bf16 %v558
          %v937 = vunpack.c.h.bf16 %v558
          %v938 = vunpack.c.l.bf16 %v559
          %v939 = vunpack.c.h.bf16 %v559
          %v940 = vunpack.c.l.bf16 %v560
          %v941 = vunpack.c.h.bf16 %v560
          %v942 = vunpack.c.l.bf16 %v561
          %v943 = vunpack.c.h.bf16 %v561
          %v944 = vunpack.c.l.bf16 %v562
          %v945 = vunpack.c.h.bf16 %v562
          %v946 = vunpack.c.l.bf16 %v563
          %v947 = vunpack.c.h.bf16 %v563
          %v948 = vunpack.c.l.bf16 %v564
          %v949 = vunpack.c.h.bf16 %v564
          %v950 = vunpack.c.l.bf16 %v565
          %v951 = vunpack.c.h.bf16 %v565
          %v952 = vunpack.c.l.bf16 %v566
          %v953 = vunpack.c.h.bf16 %v566
          %v954 = vunpack.c.l.bf16 %v567
          %v955 = vunpack.c.h.bf16 %v567
          %v956 = vunpack.c.l.bf16 %v568
          %v957 = vunpack.c.h.bf16 %v568
          %v958 = vmul.f32 %v766, %v862
          %v959 = vmul.f32 %v767, %v863
          %v960 = vmul.f32 %v768, %v864
          %v961 = vmul.f32 %v769, %v865
          %v962 = vmul.f32 %v770, %v866
          %v963 = vmul.f32 %v771, %v867
          %v964 = vmul.f32 %v772, %v868
          %v965 = vmul.f32 %v773, %v869
          %v966 = vmul.f32 %v774, %v870
          %v967 = vmul.f32 %v775, %v871
          %v968 = vmul.f32 %v776, %v872
          %v969 = vmul.f32 %v777, %v873
          %v970 = vmul.f32 %v778, %v874
          %v971 = vmul.f32 %v779, %v875
          %v972 = vmul.f32 %v780, %v876
          %v973 = vmul.f32 %v781, %v877
          %v974 = vmul.f32 %v782, %v878
          %v975 = vmul.f32 %v783, %v879
          %v976 = vmul.f32 %v784, %v880
          %v977 = vmul.f32 %v785, %v881
          %v978 = vmul.f32 %v786, %v882
          %v979 = vmul.f32 %v787, %v883
          %v980 = vmul.f32 %v788, %v884
          %v981 = vmul.f32 %v789, %v885
          %v982 = vmul.f32 %v790, %v886
          %v983 = vmul.f32 %v791, %v887
          %v984 = vmul.f32 %v792, %v888
          %v985 = vmul.f32 %v793, %v889
          %v986 = vmul.f32 %v794, %v890
          %v987 = vmul.f32 %v795, %v891
          %v988 = vmul.f32 %v796, %v892
          %v989 = vmul.f32 %v797, %v893
          %v990 = vmul.f32 %v798, %v894
          %v991 = vmul.f32 %v799, %v895
          %v992 = vmul.f32 %v800, %v896
          %v993 = vmul.f32 %v801, %v897
          %v994 = vmul.f32 %v802, %v898
          %v995 = vmul.f32 %v803, %v899
          %v996 = vmul.f32 %v804, %v900
          %v997 = vmul.f32 %v805, %v901
          %v998 = vmul.f32 %v806, %v902
          %v999 = vmul.f32 %v807, %v903
          %v1000 = vmul.f32 %v808, %v904
          %v1001 = vmul.f32 %v809, %v905
          %v1002 = vmul.f32 %v810, %v906
          %v1003 = vmul.f32 %v811, %v907
          %v1004 = vmul.f32 %v812, %v908
          %v1005 = vmul.f32 %v813, %v909
          %v1006 = vmul.f32 %v814, %v910
          %v1007 = vmul.f32 %v815, %v911
          %v1008 = vmul.f32 %v816, %v912
          %v1009 = vmul.f32 %v817, %v913
          %v1010 = vmul.f32 %v818, %v914
          %v1011 = vmul.f32 %v819, %v915
          %v1012 = vmul.f32 %v820, %v916
          %v1013 = vmul.f32 %v821, %v917
          %v1014 = vmul.f32 %v822, %v918
          %v1015 = vmul.f32 %v823, %v919
          %v1016 = vmul.f32 %v824, %v920
          %v1017 = vmul.f32 %v825, %v921
          %v1018 = vmul.f32 %v826, %v922
          %v1019 = vmul.f32 %v827, %v923
          %v1020 = vmul.f32 %v828, %v924
          %v1021 = vmul.f32 %v829, %v925
          %v1022 = vmul.f32 %v830, %v926
          %v1023 = vmul.f32 %v831, %v927
          %v1024 = vmul.f32 %v832, %v928
          %v1025 = vmul.f32 %v833, %v929
          %v1026 = vmul.f32 %v834, %v930
          %v1027 = vmul.f32 %v835, %v931
          %v1028 = vmul.f32 %v836, %v932
          %v1029 = vmul.f32 %v837, %v933
          %v1030 = vmul.f32 %v838, %v934
          %v1031 = vmul.f32 %v839, %v935
          %v1032 = vmul.f32 %v840, %v936
          %v1033 = vmul.f32 %v841, %v937
          %v1034 = vmul.f32 %v842, %v938
          %v1035 = vmul.f32 %v843, %v939
          %v1036 = vmul.f32 %v844, %v940
          %v1037 = vmul.f32 %v845, %v941
          %v1038 = vmul.f32 %v846, %v942
          %v1039 = vmul.f32 %v847, %v943
          %v1040 = vmul.f32 %v848, %v944
          %v1041 = vmul.f32 %v849, %v945
          %v1042 = vmul.f32 %v850, %v946
          %v1043 = vmul.f32 %v851, %v947
          %v1044 = vmul.f32 %v852, %v948
          %v1045 = vmul.f32 %v853, %v949
          %v1046 = vmul.f32 %v854, %v950
          %v1047 = vmul.f32 %v855, %v951
          %v1048 = vmul.f32 %v856, %v952
          %v1049 = vmul.f32 %v857, %v953
          %v1050 = vmul.f32 %v858, %v954
          %v1051 = vmul.f32 %v859, %v955
          %v1052 = vmul.f32 %v860, %v956
          %v1053 = vmul.f32 %v861, %v957
          %v1054 = vadd.f32 %v958, %v959
          %1055 = vadd.xlane.f32.xlu0 %v1054
          %v1056 = vpop.xlane.xlu0 %1055
          %v1057 = vadd.f32 %v960, %v961
          %1058 = vadd.xlane.f32.xlu0 %v1057
          %v1059 = vpop.xlane.xlu0 %1058
          %v1060 = vadd.f32 %v962, %v963
          %1061 = vadd.xlane.f32.xlu0 %v1060
          %v1062 = vpop.xlane.xlu0 %1061
          %v1063 = vadd.f32 %v964, %v965
          %1064 = vadd.xlane.f32.xlu0 %v1063
          %v1065 = vpop.xlane.xlu0 %1064
          %v1066 = vadd.f32 %v966, %v967
          %1067 = vadd.xlane.f32.xlu0 %v1066
          %v1068 = vpop.xlane.xlu0 %1067
          %v1069 = vadd.f32 %v968, %v969
          %1070 = vadd.xlane.f32.xlu0 %v1069
          %v1071 = vpop.xlane.xlu0 %1070
          %v1072 = vadd.f32 %v970, %v971
          %1073 = vadd.xlane.f32.xlu0 %v1072
          %v1074 = vpop.xlane.xlu0 %1073
          %v1075 = vadd.f32 %v972, %v973
          %1076 = vadd.xlane.f32.xlu0 %v1075
          %v1077 = vpop.xlane.xlu0 %1076
          %v1078 = vadd.f32 %v974, %v975
          %1079 = vadd.xlane.f32.xlu0 %v1078
          %v1080 = vpop.xlane.xlu0 %1079
          %v1081 = vadd.f32 %v976, %v977
          %1082 = vadd.xlane.f32.xlu0 %v1081
          %v1083 = vpop.xlane.xlu0 %1082
          %v1084 = vadd.f32 %v978, %v979
          %1085 = vadd.xlane.f32.xlu0 %v1084
          %v1086 = vpop.xlane.xlu0 %1085
          %v1087 = vadd.f32 %v980, %v981
          %1088 = vadd.xlane.f32.xlu0 %v1087
          %v1089 = vpop.xlane.xlu0 %1088
          %v1090 = vadd.f32 %v982, %v983
          %1091 = vadd.xlane.f32.xlu0 %v1090
          %v1092 = vpop.xlane.xlu0 %1091
          %v1093 = vadd.f32 %v984, %v985
          %1094 = vadd.xlane.f32.xlu0 %v1093
          %v1095 = vpop.xlane.xlu0 %1094
          %v1096 = vadd.f32 %v986, %v987
          %1097 = vadd.xlane.f32.xlu0 %v1096
          %v1098 = vpop.xlane.xlu0 %1097
          %v1099 = vadd.f32 %v988, %v989
          %1100 = vadd.xlane.f32.xlu0 %v1099
          %v1101 = vpop.xlane.xlu0 %1100
          %v1102 = vadd.f32 %v990, %v991
          %1103 = vadd.xlane.f32.xlu0 %v1102
          %v1104 = vpop.xlane.xlu0 %1103
          %v1105 = vadd.f32 %v992, %v993
          %1106 = vadd.xlane.f32.xlu0 %v1105
          %v1107 = vpop.xlane.xlu0 %1106
          %v1108 = vadd.f32 %v994, %v995
          %1109 = vadd.xlane.f32.xlu0 %v1108
          %v1110 = vpop.xlane.xlu0 %1109
          %v1111 = vadd.f32 %v996, %v997
          %1112 = vadd.xlane.f32.xlu0 %v1111
          %v1113 = vpop.xlane.xlu0 %1112
          %v1114 = vadd.f32 %v998, %v999
          %1115 = vadd.xlane.f32.xlu0 %v1114
          %v1116 = vpop.xlane.xlu0 %1115
          %v1117 = vadd.f32 %v1000, %v1001
          %1118 = vadd.xlane.f32.xlu0 %v1117
          %v1119 = vpop.xlane.xlu0 %1118
          %v1120 = vadd.f32 %v1002, %v1003
          %1121 = vadd.xlane.f32.xlu0 %v1120
          %v1122 = vpop.xlane.xlu0 %1121
          %v1123 = vadd.f32 %v1004, %v1005
          %1124 = vadd.xlane.f32.xlu0 %v1123
          %v1125 = vpop.xlane.xlu0 %1124
          %v1126 = vadd.f32 %v1006, %v1007
          %1127 = vadd.xlane.f32.xlu0 %v1126
          %v1128 = vpop.xlane.xlu0 %1127
          %v1129 = vadd.f32 %v1008, %v1009
          %1130 = vadd.xlane.f32.xlu0 %v1129
          %v1131 = vpop.xlane.xlu0 %1130
          %v1132 = vadd.f32 %v1010, %v1011
          %1133 = vadd.xlane.f32.xlu0 %v1132
          %v1134 = vpop.xlane.xlu0 %1133
          %v1135 = vadd.f32 %v1012, %v1013
          %1136 = vadd.xlane.f32.xlu0 %v1135
          %v1137 = vpop.xlane.xlu0 %1136
          %v1138 = vadd.f32 %v1014, %v1015
          %1139 = vadd.xlane.f32.xlu0 %v1138
          %v1140 = vpop.xlane.xlu0 %1139
          %v1141 = vadd.f32 %v1016, %v1017
          %1142 = vadd.xlane.f32.xlu0 %v1141
          %v1143 = vpop.xlane.xlu0 %1142
          %v1144 = vadd.f32 %v1018, %v1019
          %1145 = vadd.xlane.f32.xlu0 %v1144
          %v1146 = vpop.xlane.xlu0 %1145
          %v1147 = vadd.f32 %v1020, %v1021
          %1148 = vadd.xlane.f32.xlu0 %v1147
          %v1149 = vpop.xlane.xlu0 %1148
          %v1150 = vadd.f32 %v1022, %v1023
          %1151 = vadd.xlane.f32.xlu0 %v1150
          %v1152 = vpop.xlane.xlu0 %1151
          %v1153 = vadd.f32 %v1024, %v1025
          %1154 = vadd.xlane.f32.xlu0 %v1153
          %v1155 = vpop.xlane.xlu0 %1154
          %v1156 = vadd.f32 %v1026, %v1027
          %1157 = vadd.xlane.f32.xlu0 %v1156
          %v1158 = vpop.xlane.xlu0 %1157
          %v1159 = vadd.f32 %v1028, %v1029
          %1160 = vadd.xlane.f32.xlu0 %v1159
          %v1161 = vpop.xlane.xlu0 %1160
          %v1162 = vadd.f32 %v1030, %v1031
          %1163 = vadd.xlane.f32.xlu0 %v1162
          %v1164 = vpop.xlane.xlu0 %1163
          %v1165 = vadd.f32 %v1032, %v1033
          %1166 = vadd.xlane.f32.xlu0 %v1165
          %v1167 = vpop.xlane.xlu0 %1166
          %v1168 = vadd.f32 %v1034, %v1035
          %1169 = vadd.xlane.f32.xlu0 %v1168
          %v1170 = vpop.xlane.xlu0 %1169
          %v1171 = vadd.f32 %v1036, %v1037
          %1172 = vadd.xlane.f32.xlu0 %v1171
          %v1173 = vpop.xlane.xlu0 %1172
          %v1174 = vadd.f32 %v1038, %v1039
          %1175 = vadd.xlane.f32.xlu0 %v1174
          %v1176 = vpop.xlane.xlu0 %1175
          %v1177 = vadd.f32 %v1040, %v1041
          %1178 = vadd.xlane.f32.xlu0 %v1177
          %v1179 = vpop.xlane.xlu0 %1178
          %v1180 = vadd.f32 %v1042, %v1043
          %1181 = vadd.xlane.f32.xlu0 %v1180
          %v1182 = vpop.xlane.xlu0 %1181
          %v1183 = vadd.f32 %v1044, %v1045
          %1184 = vadd.xlane.f32.xlu0 %v1183
          %v1185 = vpop.xlane.xlu0 %1184
          %v1186 = vadd.f32 %v1046, %v1047
          %1187 = vadd.xlane.f32.xlu0 %v1186
          %v1188 = vpop.xlane.xlu0 %1187
          %v1189 = vadd.f32 %v1048, %v1049
          %1190 = vadd.xlane.f32.xlu0 %v1189
          %v1191 = vpop.xlane.xlu0 %1190
          %v1192 = vadd.f32 %v1050, %v1051
          %1193 = vadd.xlane.f32.xlu0 %v1192
          %v1194 = vpop.xlane.xlu0 %1193
          %v1195 = vadd.f32 %v1052, %v1053
          %1196 = vadd.xlane.f32.xlu0 %v1195
          %v1197 = vpop.xlane.xlu0 %1196
          %1198 = vst.msk [vmem:[%s471] sm:$0xff] %vm573, %v1056
          %1199 = vst.msk [vmem:[%s471 + $0x8] sm:$0xff] %vm573, %v1059
          %1200 = vst.msk [vmem:[%s471 + $0x10] sm:$0xff] %vm573, %v1062
          %1201 = vst.msk [vmem:[%s471 + $0x18] sm:$0xff] %vm573, %v1065
          %1202 = vst.msk [vmem:[%s471 + $0x20] sm:$0xff] %vm573, %v1068
          %1203 = vst.msk [vmem:[%s471 + $0x28] sm:$0xff] %vm573, %v1071
          %1204 = vst.msk [vmem:[%s471 + $0x30] sm:$0xff] %vm573, %v1074
          %1205 = vst.msk [vmem:[%s471 + $0x38] sm:$0xff] %vm573, %v1077
          %1206 = vst.msk [vmem:[%s471 + $0x40] sm:$0xff] %vm573, %v1080
          %1207 = vst.msk [vmem:[%s471 + $0x48] sm:$0xff] %vm573, %v1083
          %1208 = vst.msk [vmem:[%s471 + $0x50] sm:$0xff] %vm573, %v1086
          %1209 = vst.msk [vmem:[%s471 + $0x58] sm:$0xff] %vm573, %v1089
          %1210 = vst.msk [vmem:[%s471 + $0x60] sm:$0xff] %vm573, %v1092
          %1211 = vst.msk [vmem:[%s471 + $0x68] sm:$0xff] %vm573, %v1095
          %1212 = vst.msk [vmem:[%s471 + $0x70] sm:$0xff] %vm573, %v1098
          %1213 = vst.msk [vmem:[%s471 + $0x78] sm:$0xff] %vm573, %v1101
          %1214 = vst.msk [vmem:[%s471 + $0x80] sm:$0xff] %vm573, %v1104
          %1215 = vst.msk [vmem:[%s471 + $0x88] sm:$0xff] %vm573, %v1107
          %1216 = vst.msk [vmem:[%s471 + $0x90] sm:$0xff] %vm573, %v1110
          %1217 = vst.msk [vmem:[%s471 + $0x98] sm:$0xff] %vm573, %v1113
          %1218 = vst.msk [vmem:[%s471 + $0xa0] sm:$0xff] %vm573, %v1116
          %1219 = vst.msk [vmem:[%s471 + $0xa8] sm:$0xff] %vm573, %v1119
          %1220 = vst.msk [vmem:[%s471 + $0xb0] sm:$0xff] %vm573, %v1122
          %1221 = vst.msk [vmem:[%s471 + $0xb8] sm:$0xff] %vm573, %v1125
          %1222 = vst.msk [vmem:[%s471 + $0xc0] sm:$0xff] %vm573, %v1128
          %1223 = vst.msk [vmem:[%s471 + $0xc8] sm:$0xff] %vm573, %v1131
          %1224 = vst.msk [vmem:[%s471 + $0xd0] sm:$0xff] %vm573, %v1134
          %1225 = vst.msk [vmem:[%s471 + $0xd8] sm:$0xff] %vm573, %v1137
          %1226 = vst.msk [vmem:[%s471 + $0xe0] sm:$0xff] %vm573, %v1140
          %1227 = vst.msk [vmem:[%s471 + $0xe8] sm:$0xff] %vm573, %v1143
          %1228 = vst.msk [vmem:[%s471 + $0xf0] sm:$0xff] %vm573, %v1146
          %1229 = vst.msk [vmem:[%s471 + $0xf8] sm:$0xff] %vm573, %v1149
          %1230 = vst.msk [vmem:[%s471 + $0x100] sm:$0xff] %vm573, %v1152
          %1231 = vst.msk [vmem:[%s471 + $0x108] sm:$0xff] %vm573, %v1155
          %1232 = vst.msk [vmem:[%s471 + $0x110] sm:$0xff] %vm573, %v1158
          %1233 = vst.msk [vmem:[%s471 + $0x118] sm:$0xff] %vm573, %v1161
          %1234 = vst.msk [vmem:[%s471 + $0x120] sm:$0xff] %vm573, %v1164
          %1235 = vst.msk [vmem:[%s471 + $0x128] sm:$0xff] %vm573, %v1167
          %1236 = vst.msk [vmem:[%s471 + $0x130] sm:$0xff] %vm573, %v1170
          %1237 = vst.msk [vmem:[%s471 + $0x138] sm:$0xff] %vm573, %v1173
          %1238 = vst.msk [vmem:[%s471 + $0x140] sm:$0xff] %vm573, %v1176
          %1239 = vst.msk [vmem:[%s471 + $0x148] sm:$0xff] %vm573, %v1179
          %1240 = vst.msk [vmem:[%s471 + $0x150] sm:$0xff] %vm573, %v1182
          %1241 = vst.msk [vmem:[%s471 + $0x158] sm:$0xff] %vm573, %v1185
          %1242 = vst.msk [vmem:[%s471 + $0x160] sm:$0xff] %vm573, %v1188
          %1243 = vst.msk [vmem:[%s471 + $0x168] sm:$0xff] %vm573, %v1191
          %1244 = vst.msk [vmem:[%s471 + $0x170] sm:$0xff] %vm573, %v1194
          %1245 = vst.msk [vmem:[%s471 + $0x178] sm:$0xff] %vm573, %v1197
        $region60: #{tpu_custom_call.1} parent=39 // pred_fallthru
          _
        %s1246 = sld [smem:[#allocation6]]
        %s1247 = smul.u32 %s34, 256
        %v1248 = vlaneseq
        %v1249 = vand.u32 %v1248, 127
        %v1250 = vadd.s32 %v1249, 128
        %v1251 = vstv %s1247
        %v1252 = vadd.s32 %v1251, %v1249
        %v1253 = vadd.s32 %v1251, %v1250
        %v1254 = vstv %s1246
        %vm1255 = vcmp.lt.s32.totalorder %v1252, %v1254
        %vm1256 = vcmp.lt.s32.totalorder %v1253, %v1254
        %v1257 = vld [vmem:[%s384] sm:$0xff]
        %v1258 = vld [vmem:[%s384 + $0x8] sm:$0xff]
        %v1259 = vld [vmem:[%s384 + $0x10] sm:$0xff]
        %v1260 = vld [vmem:[%s384 + $0x18] sm:$0xff]
        %v1261 = vld [vmem:[%s384 + $0x20] sm:$0xff]
        %v1262 = vld [vmem:[%s384 + $0x28] sm:$0xff]
        %v1263 = vld [vmem:[%s384 + $0x30] sm:$0xff]
        %v1264 = vld [vmem:[%s384 + $0x38] sm:$0xff]
        %v1265 = vld [vmem:[%s384 + $0x40] sm:$0xff]
        %v1266 = vld [vmem:[%s384 + $0x48] sm:$0xff]
        %v1267 = vld [vmem:[%s384 + $0x50] sm:$0xff]
        %v1268 = vld [vmem:[%s384 + $0x58] sm:$0xff]
        %v1269 = vld [vmem:[%s384 + $0x60] sm:$0xff]
        %v1270 = vld [vmem:[%s384 + $0x68] sm:$0xff]
        %v1271 = vld [vmem:[%s384 + $0x70] sm:$0xff]
        %v1272 = vld [vmem:[%s384 + $0x78] sm:$0xff]
        %v1273 = vld [vmem:[%s384 + $0x80] sm:$0xff]
        %v1274 = vld [vmem:[%s384 + $0x88] sm:$0xff]
        %v1275 = vld [vmem:[%s384 + $0x90] sm:$0xff]
        %v1276 = vld [vmem:[%s384 + $0x98] sm:$0xff]
        %v1277 = vld [vmem:[%s384 + $0xa0] sm:$0xff]
        %v1278 = vld [vmem:[%s384 + $0xa8] sm:$0xff]
        %v1279 = vld [vmem:[%s384 + $0xb0] sm:$0xff]
        %v1280 = vld [vmem:[%s384 + $0xb8] sm:$0xff]
        %v1281 = vld [vmem:[%s384 + $0xc0] sm:$0xff]
        %v1282 = vld [vmem:[%s384 + $0xc8] sm:$0xff]
        %v1283 = vld [vmem:[%s384 + $0xd0] sm:$0xff]
        %v1284 = vld [vmem:[%s384 + $0xd8] sm:$0xff]
        %v1285 = vld [vmem:[%s384 + $0xe0] sm:$0xff]
        %v1286 = vld [vmem:[%s384 + $0xe8] sm:$0xff]
        %v1287 = vld [vmem:[%s384 + $0xf0] sm:$0xff]
        %v1288 = vld [vmem:[%s384 + $0xf8] sm:$0xff]
        %v1337 = vunpack.c.l.b16 %v473
        %v1338 = vunpack.c.h.b16 %v473
        %v1339 = vunpack.c.l.b16 %v474
        %v1340 = vunpack.c.h.b16 %v474
        %v1341 = vunpack.c.l.b16 %v475
        %v1342 = vunpack.c.h.b16 %v475
        %v1343 = vunpack.c.l.b16 %v476
        %v1344 = vunpack.c.h.b16 %v476
        %v1345 = vunpack.c.l.b16 %v477
        %v1346 = vunpack.c.h.b16 %v477
        %v1347 = vunpack.c.l.b16 %v478
        %v1348 = vunpack.c.h.b16 %v478
        %v1349 = vunpack.c.l.b16 %v479
        %v1350 = vunpack.c.h.b16 %v479
        %v1351 = vunpack.c.l.b16 %v480
        %v1352 = vunpack.c.h.b16 %v480
        %v1353 = vunpack.c.l.b16 %v481
        %v1354 = vunpack.c.h.b16 %v481
        %v1355 = vunpack.c.l.b16 %v482
        %v1356 = vunpack.c.h.b16 %v482
        %v1357 = vunpack.c.l.b16 %v483
        %v1358 = vunpack.c.h.b16 %v483
        %v1359 = vunpack.c.l.b16 %v484
        %v1360 = vunpack.c.h.b16 %v484
        %v1361 = vunpack.c.l.b16 %v485
        %v1362 = vunpack.c.h.b16 %v485
        %v1363 = vunpack.c.l.b16 %v486
        %v1364 = vunpack.c.h.b16 %v486
        %v1365 = vunpack.c.l.b16 %v487
        %v1366 = vunpack.c.h.b16 %v487
        %v1367 = vunpack.c.l.b16 %v488
        %v1368 = vunpack.c.h.b16 %v488
        %v1369 = vunpack.c.l.b16 %v489
        %v1370 = vunpack.c.h.b16 %v489
        %v1371 = vunpack.c.l.b16 %v490
        %v1372 = vunpack.c.h.b16 %v490
        %v1373 = vunpack.c.l.b16 %v491
        %v1374 = vunpack.c.h.b16 %v491
        %v1375 = vunpack.c.l.b16 %v492
        %v1376 = vunpack.c.h.b16 %v492
        %v1377 = vunpack.c.l.b16 %v493
        %v1378 = vunpack.c.h.b16 %v493
        %v1379 = vunpack.c.l.b16 %v494
        %v1380 = vunpack.c.h.b16 %v494
        %v1381 = vunpack.c.l.b16 %v495
        %v1382 = vunpack.c.h.b16 %v495
        %v1383 = vunpack.c.l.b16 %v496
        %v1384 = vunpack.c.h.b16 %v496
        %v1385 = vunpack.c.l.b16 %v497
        %v1386 = vunpack.c.h.b16 %v497
        %v1387 = vunpack.c.l.b16 %v498
        %v1388 = vunpack.c.h.b16 %v498
        %v1389 = vunpack.c.l.b16 %v499
        %v1390 = vunpack.c.h.b16 %v499
        %v1391 = vunpack.c.l.b16 %v500
        %v1392 = vunpack.c.h.b16 %v500
        %v1393 = vunpack.c.l.b16 %v501
        %v1394 = vunpack.c.h.b16 %v501
        %v1395 = vunpack.c.l.b16 %v502
        %v1396 = vunpack.c.h.b16 %v502
        %v1397 = vunpack.c.l.b16 %v503
        %v1398 = vunpack.c.h.b16 %v503
        %v1399 = vunpack.c.l.b16 %v504
        %v1400 = vunpack.c.h.b16 %v504
        %v1401 = vunpack.c.l.b16 %v505
        %v1402 = vunpack.c.h.b16 %v505
        %v1403 = vunpack.c.l.b16 %v506
        %v1404 = vunpack.c.h.b16 %v506
        %v1405 = vunpack.c.l.b16 %v507
        %v1406 = vunpack.c.h.b16 %v507
        %v1407 = vunpack.c.l.b16 %v508
        %v1408 = vunpack.c.h.b16 %v508
        %v1409 = vunpack.c.l.b16 %v509
        %v1410 = vunpack.c.h.b16 %v509
        %v1411 = vunpack.c.l.b16 %v510
        %v1412 = vunpack.c.h.b16 %v510
        %v1413 = vunpack.c.l.b16 %v511
        %v1414 = vunpack.c.h.b16 %v511
        %v1415 = vunpack.c.l.b16 %v512
        %v1416 = vunpack.c.h.b16 %v512
        %v1417 = vunpack.c.l.b16 %v513
        %v1418 = vunpack.c.h.b16 %v513
        %v1419 = vunpack.c.l.b16 %v514
        %v1420 = vunpack.c.h.b16 %v514
        %v1421 = vunpack.c.l.b16 %v515
        %v1422 = vunpack.c.h.b16 %v515
        %v1423 = vunpack.c.l.b16 %v516
        %v1424 = vunpack.c.h.b16 %v516
        %v1425 = vunpack.c.l.b16 %v517
        %v1426 = vunpack.c.h.b16 %v517
        %v1427 = vunpack.c.l.b16 %v518
        %v1428 = vunpack.c.h.b16 %v518
        %v1429 = vunpack.c.l.b16 %v519
        %v1430 = vunpack.c.h.b16 %v519
        %v1431 = vunpack.c.l.b16 %v520
        %v1432 = vunpack.c.h.b16 %v520
        %v1433 = vpack.c.b16 %v1339, %v1337
        %v1434 = vpack.c.b16 %v1340, %v1338
        %v1435 = vpack.c.b16 %v1343, %v1341
        %v1436 = vpack.c.b16 %v1344, %v1342
        %v1437 = vpack.c.b16 %v1347, %v1345
        %v1438 = vpack.c.b16 %v1348, %v1346
        %v1439 = vpack.c.b16 %v1351, %v1349
        %v1440 = vpack.c.b16 %v1352, %v1350
        %v1441 = vpack.c.b16 %v1355, %v1353
        %v1442 = vpack.c.b16 %v1356, %v1354
        %v1443 = vpack.c.b16 %v1359, %v1357
        %v1444 = vpack.c.b16 %v1360, %v1358
        %v1445 = vpack.c.b16 %v1363, %v1361
        %v1446 = vpack.c.b16 %v1364, %v1362
        %v1447 = vpack.c.b16 %v1367, %v1365
        %v1448 = vpack.c.b16 %v1368, %v1366
        %v1449 = vpack.c.b16 %v1371, %v1369
        %v1450 = vpack.c.b16 %v1372, %v1370
        %v1451 = vpack.c.b16 %v1375, %v1373
        %v1452 = vpack.c.b16 %v1376, %v1374
        %v1453 = vpack.c.b16 %v1379, %v1377
        %v1454 = vpack.c.b16 %v1380, %v1378
        %v1455 = vpack.c.b16 %v1383, %v1381
        %v1456 = vpack.c.b16 %v1384, %v1382
        %v1457 = vpack.c.b16 %v1387, %v1385
        %v1458 = vpack.c.b16 %v1388, %v1386
        %v1459 = vpack.c.b16 %v1391, %v1389
        %v1460 = vpack.c.b16 %v1392, %v1390
        %v1461 = vpack.c.b16 %v1395, %v1393
        %v1462 = vpack.c.b16 %v1396, %v1394
        %v1463 = vpack.c.b16 %v1399, %v1397
        %v1464 = vpack.c.b16 %v1400, %v1398
        %v1465 = vpack.c.b16 %v1403, %v1401
        %v1466 = vpack.c.b16 %v1404, %v1402
        %v1467 = vpack.c.b16 %v1407, %v1405
        %v1468 = vpack.c.b16 %v1408, %v1406
        %v1469 = vpack.c.b16 %v1411, %v1409
        %v1470 = vpack.c.b16 %v1412, %v1410
        %v1471 = vpack.c.b16 %v1415, %v1413
        %v1472 = vpack.c.b16 %v1416, %v1414
        %v1473 = vpack.c.b16 %v1419, %v1417
        %v1474 = vpack.c.b16 %v1420, %v1418
        %v1475 = vpack.c.b16 %v1423, %v1421
        %v1476 = vpack.c.b16 %v1424, %v1422
        %v1477 = vpack.c.b16 %v1427, %v1425
        %v1478 = vpack.c.b16 %v1428, %v1426
        %v1479 = vpack.c.b16 %v1431, %v1429
        %v1480 = vpack.c.b16 %v1432, %v1430
        %v1561 = vunpack.c.l.b16 %v1257
        %v1562 = vunpack.c.h.b16 %v1257
        %v1563 = vunpack.c.l.b16 %v1258
        %v1564 = vunpack.c.h.b16 %v1258
        %v1565 = vunpack.c.l.b16 %v1259
        %v1566 = vunpack.c.h.b16 %v1259
        %v1567 = vunpack.c.l.b16 %v1260
        %v1568 = vunpack.c.h.b16 %v1260
        %v1569 = vunpack.c.l.b16 %v1261
        %v1570 = vunpack.c.h.b16 %v1261
        %v1571 = vunpack.c.l.b16 %v1262
        %v1572 = vunpack.c.h.b16 %v1262
        %v1573 = vunpack.c.l.b16 %v1263
        %v1574 = vunpack.c.h.b16 %v1263
        %v1575 = vunpack.c.l.b16 %v1264
        %v1576 = vunpack.c.h.b16 %v1264
        %v1577 = vunpack.c.l.b16 %v1265
        %v1578 = vunpack.c.h.b16 %v1265
        %v1579 = vunpack.c.l.b16 %v1266
        %v1580 = vunpack.c.h.b16 %v1266
        %v1581 = vunpack.c.l.b16 %v1267
        %v1582 = vunpack.c.h.b16 %v1267
        %v1583 = vunpack.c.l.b16 %v1268
        %v1584 = vunpack.c.h.b16 %v1268
        %v1585 = vunpack.c.l.b16 %v1269
        %v1586 = vunpack.c.h.b16 %v1269
        %v1587 = vunpack.c.l.b16 %v1270
        %v1588 = vunpack.c.h.b16 %v1270
        %v1589 = vunpack.c.l.b16 %v1271
        %v1590 = vunpack.c.h.b16 %v1271
        %v1591 = vunpack.c.l.b16 %v1272
        %v1592 = vunpack.c.h.b16 %v1272
        %v1593 = vunpack.c.l.b16 %v1273
        %v1594 = vunpack.c.h.b16 %v1273
        %v1595 = vunpack.c.l.b16 %v1274
        %v1596 = vunpack.c.h.b16 %v1274
        %v1597 = vunpack.c.l.b16 %v1275
        %v1598 = vunpack.c.h.b16 %v1275
        %v1599 = vunpack.c.l.b16 %v1276
        %v1600 = vunpack.c.h.b16 %v1276
        %v1601 = vunpack.c.l.b16 %v1277
        %v1602 = vunpack.c.h.b16 %v1277
        %v1603 = vunpack.c.l.b16 %v1278
        %v1604 = vunpack.c.h.b16 %v1278
        %v1605 = vunpack.c.l.b16 %v1279
        %v1606 = vunpack.c.h.b16 %v1279
        %v1607 = vunpack.c.l.b16 %v1280
        %v1608 = vunpack.c.h.b16 %v1280
        %v1609 = vunpack.c.l.b16 %v1281
        %v1610 = vunpack.c.h.b16 %v1281
        %v1611 = vunpack.c.l.b16 %v1282
        %v1612 = vunpack.c.h.b16 %v1282
        %v1613 = vunpack.c.l.b16 %v1283
        %v1614 = vunpack.c.h.b16 %v1283
        %v1615 = vunpack.c.l.b16 %v1284
        %v1616 = vunpack.c.h.b16 %v1284
        %v1617 = vunpack.c.l.b16 %v1285
        %v1618 = vunpack.c.h.b16 %v1285
        %v1619 = vunpack.c.l.b16 %v1286
        %v1620 = vunpack.c.h.b16 %v1286
        %v1621 = vunpack.c.l.b16 %v1287
        %v1622 = vunpack.c.h.b16 %v1287
        %v1623 = vunpack.c.l.b16 %v1288
        %v1624 = vunpack.c.h.b16 %v1288
        %v1625 = vpack.c.b16 %v1563, %v1561
        %v1626 = vpack.c.b16 %v1564, %v1562
        %v1627 = vpack.c.b16 %v1567, %v1565
        %v1628 = vpack.c.b16 %v1568, %v1566
        %v1629 = vpack.c.b16 %v1571, %v1569
        %v1630 = vpack.c.b16 %v1572, %v1570
        %v1631 = vpack.c.b16 %v1575, %v1573
        %v1632 = vpack.c.b16 %v1576, %v1574
        %v1633 = vpack.c.b16 %v1579, %v1577
        %v1634 = vpack.c.b16 %v1580, %v1578
        %v1635 = vpack.c.b16 %v1583, %v1581
        %v1636 = vpack.c.b16 %v1584, %v1582
        %v1637 = vpack.c.b16 %v1587, %v1585
        %v1638 = vpack.c.b16 %v1588, %v1586
        %v1639 = vpack.c.b16 %v1591, %v1589
        %v1640 = vpack.c.b16 %v1592, %v1590
        %v1641 = vpack.c.b16 %v1595, %v1593
        %v1642 = vpack.c.b16 %v1596, %v1594
        %v1643 = vpack.c.b16 %v1599, %v1597
        %v1644 = vpack.c.b16 %v1600, %v1598
        %v1645 = vpack.c.b16 %v1603, %v1601
        %v1646 = vpack.c.b16 %v1604, %v1602
        %v1647 = vpack.c.b16 %v1607, %v1605
        %v1648 = vpack.c.b16 %v1608, %v1606
        %v1649 = vpack.c.b16 %v1611, %v1609
        %v1650 = vpack.c.b16 %v1612, %v1610
        %v1651 = vpack.c.b16 %v1615, %v1613
        %v1652 = vpack.c.b16 %v1616, %v1614
        %v1653 = vpack.c.b16 %v1619, %v1617
        %v1654 = vpack.c.b16 %v1620, %v1618
        %v1655 = vpack.c.b16 %v1623, %v1621
        %v1656 = vpack.c.b16 %v1624, %v1622
        %1689 = vmatpush.bf16.xpose.msra.mxu0 %v1639
        %1690 = vmatpush.bf16.xpose.msra.mxu0 %v1637
        %1691 = vmatpush.bf16.xpose.msra.mxu0 %v1635
        %1692 = vmatpush.bf16.xpose.msra.mxu0 %v1633
        %1693 = vmatpush.bf16.xpose.msra.mxu0 %v1631
        %1694 = vmatpush.bf16.xpose.msra.mxu0 %v1629
        %1695 = vmatpush.bf16.xpose.msra.mxu0 %v1627
        %1696 = vmatpush.bf16.xpose.msra.mxu0 %v1625
        %1697 = vmatmul.bf16.gmra.mxu0 %v1433
        %v1698 = vpop.f32.mrf.mxu0
        %v1699 = vadd.f32 0.0, %v1698
        %v1700 = vpop.f32.mrf.mxu0
        %v1701 = vadd.f32 0.0, %v1700
        %1702 = vmatmul.bf16.gmra.mxu0 %v1435
        %v1703 = vpop.f32.mrf.mxu0
        %v1704 = vadd.f32 0.0, %v1703
        %v1705 = vpop.f32.mrf.mxu0
        %v1706 = vadd.f32 0.0, %v1705
        %1707 = vmatmul.bf16.gmra.mxu0 %v1437
        %v1708 = vpop.f32.mrf.mxu0
        %v1709 = vadd.f32 0.0, %v1708
        %v1710 = vpop.f32.mrf.mxu0
        %v1711 = vadd.f32 0.0, %v1710
        %1712 = vmatmul.bf16.gmra.mxu0 %v1439
        %v1713 = vpop.f32.mrf.mxu0
        %v1714 = vadd.f32 0.0, %v1713
        %v1715 = vpop.f32.mrf.mxu0
        %v1716 = vadd.f32 0.0, %v1715
        %1717 = vmatmul.bf16.gmra.mxu0 %v1441
        %v1718 = vpop.f32.mrf.mxu0
        %v1719 = vadd.f32 0.0, %v1718
        %v1720 = vpop.f32.mrf.mxu0
        %v1721 = vadd.f32 0.0, %v1720
        %1722 = vmatmul.bf16.gmra.mxu0 %v1443
        %v1723 = vpop.f32.mrf.mxu0
        %v1724 = vadd.f32 0.0, %v1723
        %v1725 = vpop.f32.mrf.mxu0
        %v1726 = vadd.f32 0.0, %v1725
        %1727 = vmatmul.bf16.gmra.mxu0 %v1445
        %v1728 = vpop.f32.mrf.mxu0
        %v1729 = vadd.f32 0.0, %v1728
        %v1730 = vpop.f32.mrf.mxu0
        %v1731 = vadd.f32 0.0, %v1730
        %1732 = vmatmul.bf16.gmra.mxu0 %v1447
        %v1733 = vpop.f32.mrf.mxu0
        %v1734 = vadd.f32 0.0, %v1733
        %v1735 = vpop.f32.mrf.mxu0
        %v1736 = vadd.f32 0.0, %v1735
        %1737 = vmatmul.bf16.gmra.mxu0 %v1449
        %v1738 = vpop.f32.mrf.mxu0
        %v1739 = vadd.f32 0.0, %v1738
        %v1740 = vpop.f32.mrf.mxu0
        %v1741 = vadd.f32 0.0, %v1740
        %1742 = vmatmul.bf16.gmra.mxu0 %v1451
        %v1743 = vpop.f32.mrf.mxu0
        %v1744 = vadd.f32 0.0, %v1743
        %v1745 = vpop.f32.mrf.mxu0
        %v1746 = vadd.f32 0.0, %v1745
        %1747 = vmatmul.bf16.gmra.mxu0 %v1453
        %v1748 = vpop.f32.mrf.mxu0
        %v1749 = vadd.f32 0.0, %v1748
        %v1750 = vpop.f32.mrf.mxu0
        %v1751 = vadd.f32 0.0, %v1750
        %1752 = vmatmul.bf16.gmra.mxu0 %v1455
        %v1753 = vpop.f32.mrf.mxu0
        %v1754 = vadd.f32 0.0, %v1753
        %v1755 = vpop.f32.mrf.mxu0
        %v1756 = vadd.f32 0.0, %v1755
        %1757 = vmatmul.bf16.gmra.mxu0 %v1457
        %v1758 = vpop.f32.mrf.mxu0
        %v1759 = vadd.f32 0.0, %v1758
        %v1760 = vpop.f32.mrf.mxu0
        %v1761 = vadd.f32 0.0, %v1760
        %1762 = vmatmul.bf16.gmra.mxu0 %v1459
        %v1763 = vpop.f32.mrf.mxu0
        %v1764 = vadd.f32 0.0, %v1763
        %v1765 = vpop.f32.mrf.mxu0
        %v1766 = vadd.f32 0.0, %v1765
        %1767 = vmatmul.bf16.gmra.mxu0 %v1461
        %v1768 = vpop.f32.mrf.mxu0
        %v1769 = vadd.f32 0.0, %v1768
        %v1770 = vpop.f32.mrf.mxu0
        %v1771 = vadd.f32 0.0, %v1770
        %1772 = vmatmul.bf16.gmra.mxu0 %v1463
        %v1773 = vpop.f32.mrf.mxu0
        %v1774 = vadd.f32 0.0, %v1773
        %v1775 = vpop.f32.mrf.mxu0
        %v1776 = vadd.f32 0.0, %v1775
        %1777 = vmatmul.bf16.gmra.mxu0 %v1465
        %v1778 = vpop.f32.mrf.mxu0
        %v1779 = vadd.f32 0.0, %v1778
        %v1780 = vpop.f32.mrf.mxu0
        %v1781 = vadd.f32 0.0, %v1780
        %1782 = vmatmul.bf16.gmra.mxu0 %v1467
        %v1783 = vpop.f32.mrf.mxu0
        %v1784 = vadd.f32 0.0, %v1783
        %v1785 = vpop.f32.mrf.mxu0
        %v1786 = vadd.f32 0.0, %v1785
        %1787 = vmatmul.bf16.gmra.mxu0 %v1469
        %v1788 = vpop.f32.mrf.mxu0
        %v1789 = vadd.f32 0.0, %v1788
        %v1790 = vpop.f32.mrf.mxu0
        %v1791 = vadd.f32 0.0, %v1790
        %1792 = vmatmul.bf16.gmra.mxu0 %v1471
        %v1793 = vpop.f32.mrf.mxu0
        %v1794 = vadd.f32 0.0, %v1793
        %v1795 = vpop.f32.mrf.mxu0
        %v1796 = vadd.f32 0.0, %v1795
        %1797 = vmatmul.bf16.gmra.mxu0 %v1473
        %v1798 = vpop.f32.mrf.mxu0
        %v1799 = vadd.f32 0.0, %v1798
        %v1800 = vpop.f32.mrf.mxu0
        %v1801 = vadd.f32 0.0, %v1800
        %1802 = vmatmul.bf16.gmra.mxu0 %v1475
        %v1803 = vpop.f32.mrf.mxu0
        %v1804 = vadd.f32 0.0, %v1803
        %v1805 = vpop.f32.mrf.mxu0
        %v1806 = vadd.f32 0.0, %v1805
        %1807 = vmatmul.bf16.gmra.mxu0 %v1477
        %v1808 = vpop.f32.mrf.mxu0
        %v1809 = vadd.f32 0.0, %v1808
        %v1810 = vpop.f32.mrf.mxu0
        %v1811 = vadd.f32 0.0, %v1810
        %1812 = vmatmul.bf16.gmra.mxu0 %v1479
        %v1813 = vpop.f32.mrf.mxu0
        %v1814 = vadd.f32 0.0, %v1813
        %v1815 = vpop.f32.mrf.mxu0
        %v1816 = vadd.f32 0.0, %v1815
        %1817 = vdwg.mxu0
        %1818 = vmatpush.bf16.xpose.msra.mxu0 %v1640
        %1819 = vmatpush.bf16.xpose.msra.mxu0 %v1638
        %1820 = vmatpush.bf16.xpose.msra.mxu0 %v1636
        %1821 = vmatpush.bf16.xpose.msra.mxu0 %v1634
        %1822 = vmatpush.bf16.xpose.msra.mxu0 %v1632
        %1823 = vmatpush.bf16.xpose.msra.mxu0 %v1630
        %1824 = vmatpush.bf16.xpose.msra.mxu0 %v1628
        %1825 = vmatpush.bf16.xpose.msra.mxu0 %v1626
        %1826 = vmatmul.bf16.gmra.mxu0 %v1434
        %v1827 = vpop.f32.mrf.mxu0
        %v1828 = vadd.f32 %v1699, %v1827
        %v1829 = vpop.f32.mrf.mxu0
        %v1830 = vadd.f32 %v1701, %v1829
        %1831 = vmatmul.bf16.gmra.mxu0 %v1436
        %v1832 = vpop.f32.mrf.mxu0
        %v1833 = vadd.f32 %v1704, %v1832
        %v1834 = vpop.f32.mrf.mxu0
        %v1835 = vadd.f32 %v1706, %v1834
        %1836 = vmatmul.bf16.gmra.mxu0 %v1438
        %v1837 = vpop.f32.mrf.mxu0
        %v1838 = vadd.f32 %v1709, %v1837
        %v1839 = vpop.f32.mrf.mxu0
        %v1840 = vadd.f32 %v1711, %v1839
        %1841 = vmatmul.bf16.gmra.mxu0 %v1440
        %v1842 = vpop.f32.mrf.mxu0
        %v1843 = vadd.f32 %v1714, %v1842
        %v1844 = vpop.f32.mrf.mxu0
        %v1845 = vadd.f32 %v1716, %v1844
        %1846 = vmatmul.bf16.gmra.mxu0 %v1442
        %v1847 = vpop.f32.mrf.mxu0
        %v1848 = vadd.f32 %v1719, %v1847
        %v1849 = vpop.f32.mrf.mxu0
        %v1850 = vadd.f32 %v1721, %v1849
        %1851 = vmatmul.bf16.gmra.mxu0 %v1444
        %v1852 = vpop.f32.mrf.mxu0
        %v1853 = vadd.f32 %v1724, %v1852
        %v1854 = vpop.f32.mrf.mxu0
        %v1855 = vadd.f32 %v1726, %v1854
        %1856 = vmatmul.bf16.gmra.mxu0 %v1446
        %v1857 = vpop.f32.mrf.mxu0
        %v1858 = vadd.f32 %v1729, %v1857
        %v1859 = vpop.f32.mrf.mxu0
        %v1860 = vadd.f32 %v1731, %v1859
        %1861 = vmatmul.bf16.gmra.mxu0 %v1448
        %v1862 = vpop.f32.mrf.mxu0
        %v1863 = vadd.f32 %v1734, %v1862
        %v1864 = vpop.f32.mrf.mxu0
        %v1865 = vadd.f32 %v1736, %v1864
        %1866 = vmatmul.bf16.gmra.mxu0 %v1450
        %v1867 = vpop.f32.mrf.mxu0
        %v1868 = vadd.f32 %v1739, %v1867
        %v1869 = vpop.f32.mrf.mxu0
        %v1870 = vadd.f32 %v1741, %v1869
        %1871 = vmatmul.bf16.gmra.mxu0 %v1452
        %v1872 = vpop.f32.mrf.mxu0
        %v1873 = vadd.f32 %v1744, %v1872
        %v1874 = vpop.f32.mrf.mxu0
        %v1875 = vadd.f32 %v1746, %v1874
        %1876 = vmatmul.bf16.gmra.mxu0 %v1454
        %v1877 = vpop.f32.mrf.mxu0
        %v1878 = vadd.f32 %v1749, %v1877
        %v1879 = vpop.f32.mrf.mxu0
        %v1880 = vadd.f32 %v1751, %v1879
        %1881 = vmatmul.bf16.gmra.mxu0 %v1456
        %v1882 = vpop.f32.mrf.mxu0
        %v1883 = vadd.f32 %v1754, %v1882
        %v1884 = vpop.f32.mrf.mxu0
        %v1885 = vadd.f32 %v1756, %v1884
        %1886 = vmatmul.bf16.gmra.mxu0 %v1458
        %v1887 = vpop.f32.mrf.mxu0
        %v1888 = vadd.f32 %v1759, %v1887
        %v1889 = vpop.f32.mrf.mxu0
        %v1890 = vadd.f32 %v1761, %v1889
        %1891 = vmatmul.bf16.gmra.mxu0 %v1460
        %v1892 = vpop.f32.mrf.mxu0
        %v1893 = vadd.f32 %v1764, %v1892
        %v1894 = vpop.f32.mrf.mxu0
        %v1895 = vadd.f32 %v1766, %v1894
        %1896 = vmatmul.bf16.gmra.mxu0 %v1462
        %v1897 = vpop.f32.mrf.mxu0
        %v1898 = vadd.f32 %v1769, %v1897
        %v1899 = vpop.f32.mrf.mxu0
        %v1900 = vadd.f32 %v1771, %v1899
        %1901 = vmatmul.bf16.gmra.mxu0 %v1464
        %v1902 = vpop.f32.mrf.mxu0
        %v1903 = vadd.f32 %v1774, %v1902
        %v1904 = vpop.f32.mrf.mxu0
        %v1905 = vadd.f32 %v1776, %v1904
        %1906 = vmatmul.bf16.gmra.mxu0 %v1466
        %v1907 = vpop.f32.mrf.mxu0
        %v1908 = vadd.f32 %v1779, %v1907
        %v1909 = vpop.f32.mrf.mxu0
        %v1910 = vadd.f32 %v1781, %v1909
        %1911 = vmatmul.bf16.gmra.mxu0 %v1468
        %v1912 = vpop.f32.mrf.mxu0
        %v1913 = vadd.f32 %v1784, %v1912
        %v1914 = vpop.f32.mrf.mxu0
        %v1915 = vadd.f32 %v1786, %v1914
        %1916 = vmatmul.bf16.gmra.mxu0 %v1470
        %v1917 = vpop.f32.mrf.mxu0
        %v1918 = vadd.f32 %v1789, %v1917
        %v1919 = vpop.f32.mrf.mxu0
        %v1920 = vadd.f32 %v1791, %v1919
        %1921 = vmatmul.bf16.gmra.mxu0 %v1472
        %v1922 = vpop.f32.mrf.mxu0
        %v1923 = vadd.f32 %v1794, %v1922
        %v1924 = vpop.f32.mrf.mxu0
        %v1925 = vadd.f32 %v1796, %v1924
        %1926 = vmatmul.bf16.gmra.mxu0 %v1474
        %v1927 = vpop.f32.mrf.mxu0
        %v1928 = vadd.f32 %v1799, %v1927
        %v1929 = vpop.f32.mrf.mxu0
        %v1930 = vadd.f32 %v1801, %v1929
        %1931 = vmatmul.bf16.gmra.mxu0 %v1476
        %v1932 = vpop.f32.mrf.mxu0
        %v1933 = vadd.f32 %v1804, %v1932
        %v1934 = vpop.f32.mrf.mxu0
        %v1935 = vadd.f32 %v1806, %v1934
        %1936 = vmatmul.bf16.gmra.mxu0 %v1478
        %v1937 = vpop.f32.mrf.mxu0
        %v1938 = vadd.f32 %v1809, %v1937
        %v1939 = vpop.f32.mrf.mxu0
        %v1940 = vadd.f32 %v1811, %v1939
        %1941 = vmatmul.bf16.gmra.mxu0 %v1480
        %v1942 = vpop.f32.mrf.mxu0
        %v1943 = vadd.f32 %v1814, %v1942
        %v1944 = vpop.f32.mrf.mxu0
        %v1945 = vadd.f32 %v1816, %v1944
        %1946 = vdwg.mxu0
        %1947 = vmatpush.bf16.xpose.msra.mxu0 %v1655
        %1948 = vmatpush.bf16.xpose.msra.mxu0 %v1653
        %1949 = vmatpush.bf16.xpose.msra.mxu0 %v1651
        %1950 = vmatpush.bf16.xpose.msra.mxu0 %v1649
        %1951 = vmatpush.bf16.xpose.msra.mxu0 %v1647
        %1952 = vmatpush.bf16.xpose.msra.mxu0 %v1645
        %1953 = vmatpush.bf16.xpose.msra.mxu0 %v1643
        %1954 = vmatpush.bf16.xpose.msra.mxu0 %v1641
        %1955 = vmatmul.bf16.gmra.mxu0 %v1433
        %v1956 = vpop.f32.mrf.mxu0
        %v1957 = vadd.f32 0.0, %v1956
        %v1958 = vpop.f32.mrf.mxu0
        %v1959 = vadd.f32 0.0, %v1958
        %1960 = vmatmul.bf16.gmra.mxu0 %v1435
        %v1961 = vpop.f32.mrf.mxu0
        %v1962 = vadd.f32 0.0, %v1961
        %v1963 = vpop.f32.mrf.mxu0
        %v1964 = vadd.f32 0.0, %v1963
        %1965 = vmatmul.bf16.gmra.mxu0 %v1437
        %v1966 = vpop.f32.mrf.mxu0
        %v1967 = vadd.f32 0.0, %v1966
        %v1968 = vpop.f32.mrf.mxu0
        %v1969 = vadd.f32 0.0, %v1968
        %1970 = vmatmul.bf16.gmra.mxu0 %v1439
        %v1971 = vpop.f32.mrf.mxu0
        %v1972 = vadd.f32 0.0, %v1971
        %v1973 = vpop.f32.mrf.mxu0
        %v1974 = vadd.f32 0.0, %v1973
        %1975 = vmatmul.bf16.gmra.mxu0 %v1441
        %v1976 = vpop.f32.mrf.mxu0
        %v1977 = vadd.f32 0.0, %v1976
        %v1978 = vpop.f32.mrf.mxu0
        %v1979 = vadd.f32 0.0, %v1978
        %1980 = vmatmul.bf16.gmra.mxu0 %v1443
        %v1981 = vpop.f32.mrf.mxu0
        %v1982 = vadd.f32 0.0, %v1981
        %v1983 = vpop.f32.mrf.mxu0
        %v1984 = vadd.f32 0.0, %v1983
        %1985 = vmatmul.bf16.gmra.mxu0 %v1445
        %v1986 = vpop.f32.mrf.mxu0
        %v1987 = vadd.f32 0.0, %v1986
        %v1988 = vpop.f32.mrf.mxu0
        %v1989 = vadd.f32 0.0, %v1988
        %1990 = vmatmul.bf16.gmra.mxu0 %v1447
        %v1991 = vpop.f32.mrf.mxu0
        %v1992 = vadd.f32 0.0, %v1991
        %v1993 = vpop.f32.mrf.mxu0
        %v1994 = vadd.f32 0.0, %v1993
        %1995 = vmatmul.bf16.gmra.mxu0 %v1449
        %v1996 = vpop.f32.mrf.mxu0
        %v1997 = vadd.f32 0.0, %v1996
        %v1998 = vpop.f32.mrf.mxu0
        %v1999 = vadd.f32 0.0, %v1998
        %2000 = vmatmul.bf16.gmra.mxu0 %v1451
        %v2001 = vpop.f32.mrf.mxu0
        %v2002 = vadd.f32 0.0, %v2001
        %v2003 = vpop.f32.mrf.mxu0
        %v2004 = vadd.f32 0.0, %v2003
        %2005 = vmatmul.bf16.gmra.mxu0 %v1453
        %v2006 = vpop.f32.mrf.mxu0
        %v2007 = vadd.f32 0.0, %v2006
        %v2008 = vpop.f32.mrf.mxu0
        %v2009 = vadd.f32 0.0, %v2008
        %2010 = vmatmul.bf16.gmra.mxu0 %v1455
        %v2011 = vpop.f32.mrf.mxu0
        %v2012 = vadd.f32 0.0, %v2011
        %v2013 = vpop.f32.mrf.mxu0
        %v2014 = vadd.f32 0.0, %v2013
        %2015 = vmatmul.bf16.gmra.mxu0 %v1457
        %v2016 = vpop.f32.mrf.mxu0
        %v2017 = vadd.f32 0.0, %v2016
        %v2018 = vpop.f32.mrf.mxu0
        %v2019 = vadd.f32 0.0, %v2018
        %2020 = vmatmul.bf16.gmra.mxu0 %v1459
        %v2021 = vpop.f32.mrf.mxu0
        %v2022 = vadd.f32 0.0, %v2021
        %v2023 = vpop.f32.mrf.mxu0
        %v2024 = vadd.f32 0.0, %v2023
        %2025 = vmatmul.bf16.gmra.mxu0 %v1461
        %v2026 = vpop.f32.mrf.mxu0
        %v2027 = vadd.f32 0.0, %v2026
        %v2028 = vpop.f32.mrf.mxu0
        %v2029 = vadd.f32 0.0, %v2028
        %2030 = vmatmul.bf16.gmra.mxu0 %v1463
        %v2031 = vpop.f32.mrf.mxu0
        %v2032 = vadd.f32 0.0, %v2031
        %v2033 = vpop.f32.mrf.mxu0
        %v2034 = vadd.f32 0.0, %v2033
        %2035 = vmatmul.bf16.gmra.mxu0 %v1465
        %v2036 = vpop.f32.mrf.mxu0
        %v2037 = vadd.f32 0.0, %v2036
        %v2038 = vpop.f32.mrf.mxu0
        %v2039 = vadd.f32 0.0, %v2038
        %2040 = vmatmul.bf16.gmra.mxu0 %v1467
        %v2041 = vpop.f32.mrf.mxu0
        %v2042 = vadd.f32 0.0, %v2041
        %v2043 = vpop.f32.mrf.mxu0
        %v2044 = vadd.f32 0.0, %v2043
        %2045 = vmatmul.bf16.gmra.mxu0 %v1469
        %v2046 = vpop.f32.mrf.mxu0
        %v2047 = vadd.f32 0.0, %v2046
        %v2048 = vpop.f32.mrf.mxu0
        %v2049 = vadd.f32 0.0, %v2048
        %2050 = vmatmul.bf16.gmra.mxu0 %v1471
        %v2051 = vpop.f32.mrf.mxu0
        %v2052 = vadd.f32 0.0, %v2051
        %v2053 = vpop.f32.mrf.mxu0
        %v2054 = vadd.f32 0.0, %v2053
        %2055 = vmatmul.bf16.gmra.mxu0 %v1473
        %v2056 = vpop.f32.mrf.mxu0
        %v2057 = vadd.f32 0.0, %v2056
        %v2058 = vpop.f32.mrf.mxu0
        %v2059 = vadd.f32 0.0, %v2058
        %2060 = vmatmul.bf16.gmra.mxu0 %v1475
        %v2061 = vpop.f32.mrf.mxu0
        %v2062 = vadd.f32 0.0, %v2061
        %v2063 = vpop.f32.mrf.mxu0
        %v2064 = vadd.f32 0.0, %v2063
        %2065 = vmatmul.bf16.gmra.mxu0 %v1477
        %v2066 = vpop.f32.mrf.mxu0
        %v2067 = vadd.f32 0.0, %v2066
        %v2068 = vpop.f32.mrf.mxu0
        %v2069 = vadd.f32 0.0, %v2068
        %2070 = vmatmul.bf16.gmra.mxu0 %v1479
        %v2071 = vpop.f32.mrf.mxu0
        %v2072 = vadd.f32 0.0, %v2071
        %v2073 = vpop.f32.mrf.mxu0
        %v2074 = vadd.f32 0.0, %v2073
        %2075 = vdwg.mxu0
        %2076 = vmatpush.bf16.xpose.msra.mxu0 %v1656
        %2077 = vmatpush.bf16.xpose.msra.mxu0 %v1654
        %2078 = vmatpush.bf16.xpose.msra.mxu0 %v1652
        %2079 = vmatpush.bf16.xpose.msra.mxu0 %v1650
        %2080 = vmatpush.bf16.xpose.msra.mxu0 %v1648
        %2081 = vmatpush.bf16.xpose.msra.mxu0 %v1646
        %2082 = vmatpush.bf16.xpose.msra.mxu0 %v1644
        %2083 = vmatpush.bf16.xpose.msra.mxu0 %v1642
        %2084 = vmatmul.bf16.gmra.mxu0 %v1434
        %v2085 = vpop.f32.mrf.mxu0
        %v2086 = vadd.f32 %v1957, %v2085
        %v2087 = vpop.f32.mrf.mxu0
        %v2088 = vadd.f32 %v1959, %v2087
        %2089 = vmatmul.bf16.gmra.mxu0 %v1436
        %v2090 = vpop.f32.mrf.mxu0
        %v2091 = vadd.f32 %v1962, %v2090
        %v2092 = vpop.f32.mrf.mxu0
        %v2093 = vadd.f32 %v1964, %v2092
        %2094 = vmatmul.bf16.gmra.mxu0 %v1438
        %v2095 = vpop.f32.mrf.mxu0
        %v2096 = vadd.f32 %v1967, %v2095
        %v2097 = vpop.f32.mrf.mxu0
        %v2098 = vadd.f32 %v1969, %v2097
        %2099 = vmatmul.bf16.gmra.mxu0 %v1440
        %v2100 = vpop.f32.mrf.mxu0
        %v2101 = vadd.f32 %v1972, %v2100
        %v2102 = vpop.f32.mrf.mxu0
        %v2103 = vadd.f32 %v1974, %v2102
        %2104 = vmatmul.bf16.gmra.mxu0 %v1442
        %v2105 = vpop.f32.mrf.mxu0
        %v2106 = vadd.f32 %v1977, %v2105
        %v2107 = vpop.f32.mrf.mxu0
        %v2108 = vadd.f32 %v1979, %v2107
        %2109 = vmatmul.bf16.gmra.mxu0 %v1444
        %v2110 = vpop.f32.mrf.mxu0
        %v2111 = vadd.f32 %v1982, %v2110
        %v2112 = vpop.f32.mrf.mxu0
        %v2113 = vadd.f32 %v1984, %v2112
        %2114 = vmatmul.bf16.gmra.mxu0 %v1446
        %v2115 = vpop.f32.mrf.mxu0
        %v2116 = vadd.f32 %v1987, %v2115
        %v2117 = vpop.f32.mrf.mxu0
        %v2118 = vadd.f32 %v1989, %v2117
        %2119 = vmatmul.bf16.gmra.mxu0 %v1448
        %v2120 = vpop.f32.mrf.mxu0
        %v2121 = vadd.f32 %v1992, %v2120
        %v2122 = vpop.f32.mrf.mxu0
        %v2123 = vadd.f32 %v1994, %v2122
        %2124 = vmatmul.bf16.gmra.mxu0 %v1450
        %v2125 = vpop.f32.mrf.mxu0
        %v2126 = vadd.f32 %v1997, %v2125
        %v2127 = vpop.f32.mrf.mxu0
        %v2128 = vadd.f32 %v1999, %v2127
        %2129 = vmatmul.bf16.gmra.mxu0 %v1452
        %v2130 = vpop.f32.mrf.mxu0
        %v2131 = vadd.f32 %v2002, %v2130
        %v2132 = vpop.f32.mrf.mxu0
        %v2133 = vadd.f32 %v2004, %v2132
        %2134 = vmatmul.bf16.gmra.mxu0 %v1454
        %v2135 = vpop.f32.mrf.mxu0
        %v2136 = vadd.f32 %v2007, %v2135
        %v2137 = vpop.f32.mrf.mxu0
        %v2138 = vadd.f32 %v2009, %v2137
        %2139 = vmatmul.bf16.gmra.mxu0 %v1456
        %v2140 = vpop.f32.mrf.mxu0
        %v2141 = vadd.f32 %v2012, %v2140
        %v2142 = vpop.f32.mrf.mxu0
        %v2143 = vadd.f32 %v2014, %v2142
        %2144 = vmatmul.bf16.gmra.mxu0 %v1458
        %v2145 = vpop.f32.mrf.mxu0
        %v2146 = vadd.f32 %v2017, %v2145
        %v2147 = vpop.f32.mrf.mxu0
        %v2148 = vadd.f32 %v2019, %v2147
        %2149 = vmatmul.bf16.gmra.mxu0 %v1460
        %v2150 = vpop.f32.mrf.mxu0
        %v2151 = vadd.f32 %v2022, %v2150
        %v2152 = vpop.f32.mrf.mxu0
        %v2153 = vadd.f32 %v2024, %v2152
        %2154 = vmatmul.bf16.gmra.mxu0 %v1462
        %v2155 = vpop.f32.mrf.mxu0
        %v2156 = vadd.f32 %v2027, %v2155
        %v2157 = vpop.f32.mrf.mxu0
        %v2158 = vadd.f32 %v2029, %v2157
        %2159 = vmatmul.bf16.gmra.mxu0 %v1464
        %v2160 = vpop.f32.mrf.mxu0
        %v2161 = vadd.f32 %v2032, %v2160
        %v2162 = vpop.f32.mrf.mxu0
        %v2163 = vadd.f32 %v2034, %v2162
        %2164 = vmatmul.bf16.gmra.mxu0 %v1466
        %v2165 = vpop.f32.mrf.mxu0
        %v2166 = vadd.f32 %v2037, %v2165
        %v2167 = vpop.f32.mrf.mxu0
        %v2168 = vadd.f32 %v2039, %v2167
        %2169 = vmatmul.bf16.gmra.mxu0 %v1468
        %v2170 = vpop.f32.mrf.mxu0
        %v2171 = vadd.f32 %v2042, %v2170
        %v2172 = vpop.f32.mrf.mxu0
        %v2173 = vadd.f32 %v2044, %v2172
        %2174 = vmatmul.bf16.gmra.mxu0 %v1470
        %v2175 = vpop.f32.mrf.mxu0
        %v2176 = vadd.f32 %v2047, %v2175
        %v2177 = vpop.f32.mrf.mxu0
        %v2178 = vadd.f32 %v2049, %v2177
        %2179 = vmatmul.bf16.gmra.mxu0 %v1472
        %v2180 = vpop.f32.mrf.mxu0
        %v2181 = vadd.f32 %v2052, %v2180
        %v2182 = vpop.f32.mrf.mxu0
        %v2183 = vadd.f32 %v2054, %v2182
        %2184 = vmatmul.bf16.gmra.mxu0 %v1474
        %v2185 = vpop.f32.mrf.mxu0
        %v2186 = vadd.f32 %v2057, %v2185
        %v2187 = vpop.f32.mrf.mxu0
        %v2188 = vadd.f32 %v2059, %v2187
        %2189 = vmatmul.bf16.gmra.mxu0 %v1476
        %v2190 = vpop.f32.mrf.mxu0
        %v2191 = vadd.f32 %v2062, %v2190
        %v2192 = vpop.f32.mrf.mxu0
        %v2193 = vadd.f32 %v2064, %v2192
        %2194 = vmatmul.bf16.gmra.mxu0 %v1478
        %v2195 = vpop.f32.mrf.mxu0
        %v2196 = vadd.f32 %v2067, %v2195
        %v2197 = vpop.f32.mrf.mxu0
        %v2198 = vadd.f32 %v2069, %v2197
        %2199 = vmatmul.bf16.gmra.mxu0 %v1480
        %v2200 = vpop.f32.mrf.mxu0
        %v2201 = vadd.f32 %v2072, %v2200
        %v2202 = vpop.f32.mrf.mxu0
        %v2203 = vadd.f32 %v2074, %v2202
        %2204 = vdwg.mxu0
        %v2205 = vsel %vm1255, 1, 0
        %v2206 = vsel %vm1256, 1, 0
        %vm2207 = vcmp.eq.s32.totalorder %v2205, 1
        %vm2208 = vcmp.eq.s32.totalorder %v2206, 1
        %v2209 = vsel %vm2207, %v1828, -1e+30
        %v2210 = vsel %vm2208, %v2086, -1e+30
        %v2211 = vsel %vm2207, %v1830, -1e+30
        %v2212 = vsel %vm2208, %v2088, -1e+30
        %v2213 = vsel %vm2207, %v1833, -1e+30
        %v2214 = vsel %vm2208, %v2091, -1e+30
        %v2215 = vsel %vm2207, %v1835, -1e+30
        %v2216 = vsel %vm2208, %v2093, -1e+30
        %v2217 = vsel %vm2207, %v1838, -1e+30
        %v2218 = vsel %vm2208, %v2096, -1e+30
        %v2219 = vsel %vm2207, %v1840, -1e+30
        %v2220 = vsel %vm2208, %v2098, -1e+30
        %v2221 = vsel %vm2207, %v1843, -1e+30
        %v2222 = vsel %vm2208, %v2101, -1e+30
        %v2223 = vsel %vm2207, %v1845, -1e+30
        %v2224 = vsel %vm2208, %v2103, -1e+30
        %v2225 = vsel %vm2207, %v1848, -1e+30
        %v2226 = vsel %vm2208, %v2106, -1e+30
        %v2227 = vsel %vm2207, %v1850, -1e+30
        %v2228 = vsel %vm2208, %v2108, -1e+30
        %v2229 = vsel %vm2207, %v1853, -1e+30
        %v2230 = vsel %vm2208, %v2111, -1e+30
        %v2231 = vsel %vm2207, %v1855, -1e+30
        %v2232 = vsel %vm2208, %v2113, -1e+30
        %v2233 = vsel %vm2207, %v1858, -1e+30
        %v2234 = vsel %vm2208, %v2116, -1e+30
        %v2235 = vsel %vm2207, %v1860, -1e+30
        %v2236 = vsel %vm2208, %v2118, -1e+30
        %v2237 = vsel %vm2207, %v1863, -1e+30
        %v2238 = vsel %vm2208, %v2121, -1e+30
        %v2239 = vsel %vm2207, %v1865, -1e+30
        %v2240 = vsel %vm2208, %v2123, -1e+30
        %v2241 = vsel %vm2207, %v1868, -1e+30
        %v2242 = vsel %vm2208, %v2126, -1e+30
        %v2243 = vsel %vm2207, %v1870, -1e+30
        %v2244 = vsel %vm2208, %v2128, -1e+30
        %v2245 = vsel %vm2207, %v1873, -1e+30
        %v2246 = vsel %vm2208, %v2131, -1e+30
        %v2247 = vsel %vm2207, %v1875, -1e+30
        %v2248 = vsel %vm2208, %v2133, -1e+30
        %v2249 = vsel %vm2207, %v1878, -1e+30
        %v2250 = vsel %vm2208, %v2136, -1e+30
        %v2251 = vsel %vm2207, %v1880, -1e+30
        %v2252 = vsel %vm2208, %v2138, -1e+30
        %v2253 = vsel %vm2207, %v1883, -1e+30
        %v2254 = vsel %vm2208, %v2141, -1e+30
        %v2255 = vsel %vm2207, %v1885, -1e+30
        %v2256 = vsel %vm2208, %v2143, -1e+30
        %v2257 = vsel %vm2207, %v1888, -1e+30
        %v2258 = vsel %vm2208, %v2146, -1e+30
        %v2259 = vsel %vm2207, %v1890, -1e+30
        %v2260 = vsel %vm2208, %v2148, -1e+30
        %v2261 = vsel %vm2207, %v1893, -1e+30
        %v2262 = vsel %vm2208, %v2151, -1e+30
        %v2263 = vsel %vm2207, %v1895, -1e+30
        %v2264 = vsel %vm2208, %v2153, -1e+30
        %v2265 = vsel %vm2207, %v1898, -1e+30
        %v2266 = vsel %vm2208, %v2156, -1e+30
        %v2267 = vsel %vm2207, %v1900, -1e+30
        %v2268 = vsel %vm2208, %v2158, -1e+30
        %v2269 = vsel %vm2207, %v1903, -1e+30
        %v2270 = vsel %vm2208, %v2161, -1e+30
        %v2271 = vsel %vm2207, %v1905, -1e+30
        %v2272 = vsel %vm2208, %v2163, -1e+30
        %v2273 = vsel %vm2207, %v1908, -1e+30
        %v2274 = vsel %vm2208, %v2166, -1e+30
        %v2275 = vsel %vm2207, %v1910, -1e+30
        %v2276 = vsel %vm2208, %v2168, -1e+30
        %v2277 = vsel %vm2207, %v1913, -1e+30
        %v2278 = vsel %vm2208, %v2171, -1e+30
        %v2279 = vsel %vm2207, %v1915, -1e+30
        %v2280 = vsel %vm2208, %v2173, -1e+30
        %v2281 = vsel %vm2207, %v1918, -1e+30
        %v2282 = vsel %vm2208, %v2176, -1e+30
        %v2283 = vsel %vm2207, %v1920, -1e+30
        %v2284 = vsel %vm2208, %v2178, -1e+30
        %v2285 = vsel %vm2207, %v1923, -1e+30
        %v2286 = vsel %vm2208, %v2181, -1e+30
        %v2287 = vsel %vm2207, %v1925, -1e+30
        %v2288 = vsel %vm2208, %v2183, -1e+30
        %v2289 = vsel %vm2207, %v1928, -1e+30
        %v2290 = vsel %vm2208, %v2186, -1e+30
        %v2291 = vsel %vm2207, %v1930, -1e+30
        %v2292 = vsel %vm2208, %v2188, -1e+30
        %v2293 = vsel %vm2207, %v1933, -1e+30
        %v2294 = vsel %vm2208, %v2191, -1e+30
        %v2295 = vsel %vm2207, %v1935, -1e+30
        %v2296 = vsel %vm2208, %v2193, -1e+30
        %v2297 = vsel %vm2207, %v1938, -1e+30
        %v2298 = vsel %vm2208, %v2196, -1e+30
        %v2299 = vsel %vm2207, %v1940, -1e+30
        %v2300 = vsel %vm2208, %v2198, -1e+30
        %v2301 = vsel %vm2207, %v1943, -1e+30
        %v2302 = vsel %vm2208, %v2201, -1e+30
        %v2303 = vsel %vm2207, %v1945, -1e+30
        %v2304 = vsel %vm2208, %v2203, -1e+30
        %v2305 = vld [vmem:[#allocation2] sm:$0xff]
        %v2306 = vld [vmem:[#allocation2 + $0x8] sm:$0xff]
        %v2307 = vld [vmem:[#allocation2 + $0x10] sm:$0xff]
        %v2308 = vld [vmem:[#allocation2 + $0x18] sm:$0xff]
        %v2309 = vld [vmem:[#allocation2 + $0x20] sm:$0xff]
        %v2310 = vld [vmem:[#allocation2 + $0x28] sm:$0xff]
        %v2311 = vld [vmem:[#allocation2 + $0x30] sm:$0xff]
        %v2312 = vld [vmem:[#allocation2 + $0x38] sm:$0xff]
        %v2313 = vld [vmem:[#allocation2 + $0x40] sm:$0xff]
        %v2314 = vld [vmem:[#allocation2 + $0x48] sm:$0xff]
        %v2315 = vld [vmem:[#allocation2 + $0x50] sm:$0xff]
        %v2316 = vld [vmem:[#allocation2 + $0x58] sm:$0xff]
        %v2317 = vld [vmem:[#allocation2 + $0x60] sm:$0xff]
        %v2318 = vld [vmem:[#allocation2 + $0x68] sm:$0xff]
        %v2319 = vld [vmem:[#allocation2 + $0x70] sm:$0xff]
        %v2320 = vld [vmem:[#allocation2 + $0x78] sm:$0xff]
        %v2321 = vld [vmem:[#allocation2 + $0x80] sm:$0xff]
        %v2322 = vld [vmem:[#allocation2 + $0x88] sm:$0xff]
        %v2323 = vld [vmem:[#allocation2 + $0x90] sm:$0xff]
        %v2324 = vld [vmem:[#allocation2 + $0x98] sm:$0xff]
        %v2325 = vld [vmem:[#allocation2 + $0xa0] sm:$0xff]
        %v2326 = vld [vmem:[#allocation2 + $0xa8] sm:$0xff]
        %v2327 = vld [vmem:[#allocation2 + $0xb0] sm:$0xff]
        %v2328 = vld [vmem:[#allocation2 + $0xb8] sm:$0xff]
        %v2329 = vld [vmem:[#allocation2 + $0xc0] sm:$0xff]
        %v2330 = vld [vmem:[#allocation2 + $0xc8] sm:$0xff]
        %v2331 = vld [vmem:[#allocation2 + $0xd0] sm:$0xff]
        %v2332 = vld [vmem:[#allocation2 + $0xd8] sm:$0xff]
        %v2333 = vld [vmem:[#allocation2 + $0xe0] sm:$0xff]
        %v2334 = vld [vmem:[#allocation2 + $0xe8] sm:$0xff]
        %v2335 = vld [vmem:[#allocation2 + $0xf0] sm:$0xff]
        %v2336 = vld [vmem:[#allocation2 + $0xf8] sm:$0xff]
        %v2337 = vld [vmem:[#allocation2 + $0x100] sm:$0xff]
        %v2338 = vld [vmem:[#allocation2 + $0x108] sm:$0xff]
        %v2339 = vld [vmem:[#allocation2 + $0x110] sm:$0xff]
        %v2340 = vld [vmem:[#allocation2 + $0x118] sm:$0xff]
        %v2341 = vld [vmem:[#allocation2 + $0x120] sm:$0xff]
        %v2342 = vld [vmem:[#allocation2 + $0x128] sm:$0xff]
        %v2343 = vld [vmem:[#allocation2 + $0x130] sm:$0xff]
        %v2344 = vld [vmem:[#allocation2 + $0x138] sm:$0xff]
        %v2345 = vld [vmem:[#allocation2 + $0x140] sm:$0xff]
        %v2346 = vld [vmem:[#allocation2 + $0x148] sm:$0xff]
        %v2347 = vld [vmem:[#allocation2 + $0x150] sm:$0xff]
        %v2348 = vld [vmem:[#allocation2 + $0x158] sm:$0xff]
        %v2349 = vld [vmem:[#allocation2 + $0x160] sm:$0xff]
        %v2350 = vld [vmem:[#allocation2 + $0x168] sm:$0xff]
        %v2351 = vld [vmem:[#allocation2 + $0x170] sm:$0xff]
        %v2352 = vld [vmem:[#allocation2 + $0x178] sm:$0xff]
        %v2353 = vmax.f32 %v2209, %v2210
        %2354 = vmax.xlane.f32.xlu0 %v2353
        %v2355 = vpop.xlane.xlu0 %2354
        %v2356 = vmax.f32 %v2211, %v2212
        %2357 = vmax.xlane.f32.xlu0 %v2356
        %v2358 = vpop.xlane.xlu0 %2357
        %v2359 = vmax.f32 %v2213, %v2214
        %2360 = vmax.xlane.f32.xlu0 %v2359
        %v2361 = vpop.xlane.xlu0 %2360
        %v2362 = vmax.f32 %v2215, %v2216
        %2363 = vmax.xlane.f32.xlu0 %v2362
        %v2364 = vpop.xlane.xlu0 %2363
        %v2365 = vmax.f32 %v2217, %v2218
        %2366 = vmax.xlane.f32.xlu0 %v2365
        %v2367 = vpop.xlane.xlu0 %2366
        %v2368 = vmax.f32 %v2219, %v2220
        %2369 = vmax.xlane.f32.xlu0 %v2368
        %v2370 = vpop.xlane.xlu0 %2369
        %v2371 = vmax.f32 %v2221, %v2222
        %2372 = vmax.xlane.f32.xlu0 %v2371
        %v2373 = vpop.xlane.xlu0 %2372
        %v2374 = vmax.f32 %v2223, %v2224
        %2375 = vmax.xlane.f32.xlu0 %v2374
        %v2376 = vpop.xlane.xlu0 %2375
        %v2377 = vmax.f32 %v2225, %v2226
        %2378 = vmax.xlane.f32.xlu0 %v2377
        %v2379 = vpop.xlane.xlu0 %2378
        %v2380 = vmax.f32 %v2227, %v2228
        %2381 = vmax.xlane.f32.xlu0 %v2380
        %v2382 = vpop.xlane.xlu0 %2381
        %v2383 = vmax.f32 %v2229, %v2230
        %2384 = vmax.xlane.f32.xlu0 %v2383
        %v2385 = vpop.xlane.xlu0 %2384
        %v2386 = vmax.f32 %v2231, %v2232
        %2387 = vmax.xlane.f32.xlu0 %v2386
        %v2388 = vpop.xlane.xlu0 %2387
        %v2389 = vmax.f32 %v2233, %v2234
        %2390 = vmax.xlane.f32.xlu0 %v2389
        %v2391 = vpop.xlane.xlu0 %2390
        %v2392 = vmax.f32 %v2235, %v2236
        %2393 = vmax.xlane.f32.xlu0 %v2392
        %v2394 = vpop.xlane.xlu0 %2393
        %v2395 = vmax.f32 %v2237, %v2238
        %2396 = vmax.xlane.f32.xlu0 %v2395
        %v2397 = vpop.xlane.xlu0 %2396
        %v2398 = vmax.f32 %v2239, %v2240
        %2399 = vmax.xlane.f32.xlu0 %v2398
        %v2400 = vpop.xlane.xlu0 %2399
        %v2401 = vmax.f32 %v2241, %v2242
        %2402 = vmax.xlane.f32.xlu0 %v2401
        %v2403 = vpop.xlane.xlu0 %2402
        %v2404 = vmax.f32 %v2243, %v2244
        %2405 = vmax.xlane.f32.xlu0 %v2404
        %v2406 = vpop.xlane.xlu0 %2405
        %v2407 = vmax.f32 %v2245, %v2246
        %2408 = vmax.xlane.f32.xlu0 %v2407
        %v2409 = vpop.xlane.xlu0 %2408
        %v2410 = vmax.f32 %v2247, %v2248
        %2411 = vmax.xlane.f32.xlu0 %v2410
        %v2412 = vpop.xlane.xlu0 %2411
        %v2413 = vmax.f32 %v2249, %v2250
        %2414 = vmax.xlane.f32.xlu0 %v2413
        %v2415 = vpop.xlane.xlu0 %2414
        %v2416 = vmax.f32 %v2251, %v2252
        %2417 = vmax.xlane.f32.xlu0 %v2416
        %v2418 = vpop.xlane.xlu0 %2417
        %v2419 = vmax.f32 %v2253, %v2254
        %2420 = vmax.xlane.f32.xlu0 %v2419
        %v2421 = vpop.xlane.xlu0 %2420
        %v2422 = vmax.f32 %v2255, %v2256
        %2423 = vmax.xlane.f32.xlu0 %v2422
        %v2424 = vpop.xlane.xlu0 %2423
        %v2425 = vmax.f32 %v2257, %v2258
        %2426 = vmax.xlane.f32.xlu0 %v2425
        %v2427 = vpop.xlane.xlu0 %2426
        %v2428 = vmax.f32 %v2259, %v2260
        %2429 = vmax.xlane.f32.xlu0 %v2428
        %v2430 = vpop.xlane.xlu0 %2429
        %v2431 = vmax.f32 %v2261, %v2262
        %2432 = vmax.xlane.f32.xlu0 %v2431
        %v2433 = vpop.xlane.xlu0 %2432
        %v2434 = vmax.f32 %v2263, %v2264
        %2435 = vmax.xlane.f32.xlu0 %v2434
        %v2436 = vpop.xlane.xlu0 %2435
        %v2437 = vmax.f32 %v2265, %v2266
        %2438 = vmax.xlane.f32.xlu0 %v2437
        %v2439 = vpop.xlane.xlu0 %2438
        %v2440 = vmax.f32 %v2267, %v2268
        %2441 = vmax.xlane.f32.xlu0 %v2440
        %v2442 = vpop.xlane.xlu0 %2441
        %v2443 = vmax.f32 %v2269, %v2270
        %2444 = vmax.xlane.f32.xlu0 %v2443
        %v2445 = vpop.xlane.xlu0 %2444
        %v2446 = vmax.f32 %v2271, %v2272
        %2447 = vmax.xlane.f32.xlu0 %v2446
        %v2448 = vpop.xlane.xlu0 %2447
        %v2449 = vmax.f32 %v2273, %v2274
        %2450 = vmax.xlane.f32.xlu0 %v2449
        %v2451 = vpop.xlane.xlu0 %2450
        %v2452 = vmax.f32 %v2275, %v2276
        %2453 = vmax.xlane.f32.xlu0 %v2452
        %v2454 = vpop.xlane.xlu0 %2453
        %v2455 = vmax.f32 %v2277, %v2278
        %2456 = vmax.xlane.f32.xlu0 %v2455
        %v2457 = vpop.xlane.xlu0 %2456
        %v2458 = vmax.f32 %v2279, %v2280
        %2459 = vmax.xlane.f32.xlu0 %v2458
        %v2460 = vpop.xlane.xlu0 %2459
        %v2461 = vmax.f32 %v2281, %v2282
        %2462 = vmax.xlane.f32.xlu0 %v2461
        %v2463 = vpop.xlane.xlu0 %2462
        %v2464 = vmax.f32 %v2283, %v2284
        %2465 = vmax.xlane.f32.xlu0 %v2464
        %v2466 = vpop.xlane.xlu0 %2465
        %v2467 = vmax.f32 %v2285, %v2286
        %2468 = vmax.xlane.f32.xlu0 %v2467
        %v2469 = vpop.xlane.xlu0 %2468
        %v2470 = vmax.f32 %v2287, %v2288
        %2471 = vmax.xlane.f32.xlu0 %v2470
        %v2472 = vpop.xlane.xlu0 %2471
        %v2473 = vmax.f32 %v2289, %v2290
        %2474 = vmax.xlane.f32.xlu0 %v2473
        %v2475 = vpop.xlane.xlu0 %2474
        %v2476 = vmax.f32 %v2291, %v2292
        %2477 = vmax.xlane.f32.xlu0 %v2476
        %v2478 = vpop.xlane.xlu0 %2477
        %v2479 = vmax.f32 %v2293, %v2294
        %2480 = vmax.xlane.f32.xlu0 %v2479
        %v2481 = vpop.xlane.xlu0 %2480
        %v2482 = vmax.f32 %v2295, %v2296
        %2483 = vmax.xlane.f32.xlu0 %v2482
        %v2484 = vpop.xlane.xlu0 %2483
        %v2485 = vmax.f32 %v2297, %v2298
        %2486 = vmax.xlane.f32.xlu0 %v2485
        %v2487 = vpop.xlane.xlu0 %2486
        %v2488 = vmax.f32 %v2299, %v2300
        %2489 = vmax.xlane.f32.xlu0 %v2488
        %v2490 = vpop.xlane.xlu0 %2489
        %v2491 = vmax.f32 %v2301, %v2302
        %2492 = vmax.xlane.f32.xlu0 %v2491
        %v2493 = vpop.xlane.xlu0 %2492
        %v2494 = vmax.f32 %v2303, %v2304
        %2495 = vmax.xlane.f32.xlu0 %v2494
        %v2496 = vpop.xlane.xlu0 %2495
        %v2497 = vmax.f32 %v2305, %v2355
        %v2498 = vmax.f32 %v2306, %v2358
        %v2499 = vmax.f32 %v2307, %v2361
        %v2500 = vmax.f32 %v2308, %v2364
        %v2501 = vmax.f32 %v2309, %v2367
        %v2502 = vmax.f32 %v2310, %v2370
        %v2503 = vmax.f32 %v2311, %v2373
        %v2504 = vmax.f32 %v2312, %v2376
        %v2505 = vmax.f32 %v2313, %v2379
        %v2506 = vmax.f32 %v2314, %v2382
        %v2507 = vmax.f32 %v2315, %v2385
        %v2508 = vmax.f32 %v2316, %v2388
        %v2509 = vmax.f32 %v2317, %v2391
        %v2510 = vmax.f32 %v2318, %v2394
        %v2511 = vmax.f32 %v2319, %v2397
        %v2512 = vmax.f32 %v2320, %v2400
        %v2513 = vmax.f32 %v2321, %v2403
        %v2514 = vmax.f32 %v2322, %v2406
        %v2515 = vmax.f32 %v2323, %v2409
        %v2516 = vmax.f32 %v2324, %v2412
        %v2517 = vmax.f32 %v2325, %v2415
        %v2518 = vmax.f32 %v2326, %v2418
        %v2519 = vmax.f32 %v2327, %v2421
        %v2520 = vmax.f32 %v2328, %v2424
        %v2521 = vmax.f32 %v2329, %v2427
        %v2522 = vmax.f32 %v2330, %v2430
        %v2523 = vmax.f32 %v2331, %v2433
        %v2524 = vmax.f32 %v2332, %v2436
        %v2525 = vmax.f32 %v2333, %v2439
        %v2526 = vmax.f32 %v2334, %v2442
        %v2527 = vmax.f32 %v2335, %v2445
        %v2528 = vmax.f32 %v2336, %v2448
        %v2529 = vmax.f32 %v2337, %v2451
        %v2530 = vmax.f32 %v2338, %v2454
        %v2531 = vmax.f32 %v2339, %v2457
        %v2532 = vmax.f32 %v2340, %v2460
        %v2533 = vmax.f32 %v2341, %v2463
        %v2534 = vmax.f32 %v2342, %v2466
        %v2535 = vmax.f32 %v2343, %v2469
        %v2536 = vmax.f32 %v2344, %v2472
        %v2537 = vmax.f32 %v2345, %v2475
        %v2538 = vmax.f32 %v2346, %v2478
        %v2539 = vmax.f32 %v2347, %v2481
        %v2540 = vmax.f32 %v2348, %v2484
        %v2541 = vmax.f32 %v2349, %v2487
        %v2542 = vmax.f32 %v2350, %v2490
        %v2543 = vmax.f32 %v2351, %v2493
        %v2544 = vmax.f32 %v2352, %v2496
        %v2545 = vld [vmem:[#allocation3] sm:$0xff]
        %v2546 = vld [vmem:[#allocation3 + $0x8] sm:$0xff]
        %v2547 = vld [vmem:[#allocation3 + $0x10] sm:$0xff]
        %v2548 = vld [vmem:[#allocation3 + $0x18] sm:$0xff]
        %v2549 = vld [vmem:[#allocation3 + $0x20] sm:$0xff]
        %v2550 = vld [vmem:[#allocation3 + $0x28] sm:$0xff]
        %v2551 = vld [vmem:[#allocation3 + $0x30] sm:$0xff]
        %v2552 = vld [vmem:[#allocation3 + $0x38] sm:$0xff]
        %v2553 = vld [vmem:[#allocation3 + $0x40] sm:$0xff]
        %v2554 = vld [vmem:[#allocation3 + $0x48] sm:$0xff]
        %v2555 = vld [vmem:[#allocation3 + $0x50] sm:$0xff]
        %v2556 = vld [vmem:[#allocation3 + $0x58] sm:$0xff]
        %v2557 = vld [vmem:[#allocation3 + $0x60] sm:$0xff]
        %v2558 = vld [vmem:[#allocation3 + $0x68] sm:$0xff]
        %v2559 = vld [vmem:[#allocation3 + $0x70] sm:$0xff]
        %v2560 = vld [vmem:[#allocation3 + $0x78] sm:$0xff]
        %v2561 = vld [vmem:[#allocation3 + $0x80] sm:$0xff]
        %v2562 = vld [vmem:[#allocation3 + $0x88] sm:$0xff]
        %v2563 = vld [vmem:[#allocation3 + $0x90] sm:$0xff]
        %v2564 = vld [vmem:[#allocation3 + $0x98] sm:$0xff]
        %v2565 = vld [vmem:[#allocation3 + $0xa0] sm:$0xff]
        %v2566 = vld [vmem:[#allocation3 + $0xa8] sm:$0xff]
        %v2567 = vld [vmem:[#allocation3 + $0xb0] sm:$0xff]
        %v2568 = vld [vmem:[#allocation3 + $0xb8] sm:$0xff]
        %v2569 = vld [vmem:[#allocation3 + $0xc0] sm:$0xff]
        %v2570 = vld [vmem:[#allocation3 + $0xc8] sm:$0xff]
        %v2571 = vld [vmem:[#allocation3 + $0xd0] sm:$0xff]
        %v2572 = vld [vmem:[#allocation3 + $0xd8] sm:$0xff]
        %v2573 = vld [vmem:[#allocation3 + $0xe0] sm:$0xff]
        %v2574 = vld [vmem:[#allocation3 + $0xe8] sm:$0xff]
        %v2575 = vld [vmem:[#allocation3 + $0xf0] sm:$0xff]
        %v2576 = vld [vmem:[#allocation3 + $0xf8] sm:$0xff]
        %v2577 = vld [vmem:[#allocation3 + $0x100] sm:$0xff]
        %v2578 = vld [vmem:[#allocation3 + $0x108] sm:$0xff]
        %v2579 = vld [vmem:[#allocation3 + $0x110] sm:$0xff]
        %v2580 = vld [vmem:[#allocation3 + $0x118] sm:$0xff]
        %v2581 = vld [vmem:[#allocation3 + $0x120] sm:$0xff]
        %v2582 = vld [vmem:[#allocation3 + $0x128] sm:$0xff]
        %v2583 = vld [vmem:[#allocation3 + $0x130] sm:$0xff]
        %v2584 = vld [vmem:[#allocation3 + $0x138] sm:$0xff]
        %v2585 = vld [vmem:[#allocation3 + $0x140] sm:$0xff]
        %v2586 = vld [vmem:[#allocation3 + $0x148] sm:$0xff]
        %v2587 = vld [vmem:[#allocation3 + $0x150] sm:$0xff]
        %v2588 = vld [vmem:[#allocation3 + $0x158] sm:$0xff]
        %v2589 = vld [vmem:[#allocation3 + $0x160] sm:$0xff]
        %v2590 = vld [vmem:[#allocation3 + $0x168] sm:$0xff]
        %v2591 = vld [vmem:[#allocation3 + $0x170] sm:$0xff]
        %v2592 = vld [vmem:[#allocation3 + $0x178] sm:$0xff]
        %v2593 = vsub.f32 %v2305, %v2497
        %v2594 = vsub.f32 %v2306, %v2498
        %v2595 = vsub.f32 %v2307, %v2499
        %v2596 = vsub.f32 %v2308, %v2500
        %v2597 = vsub.f32 %v2309, %v2501
        %v2598 = vsub.f32 %v2310, %v2502
        %v2599 = vsub.f32 %v2311, %v2503
        %v2600 = vsub.f32 %v2312, %v2504
        %v2601 = vsub.f32 %v2313, %v2505
        %v2602 = vsub.f32 %v2314, %v2506
        %v2603 = vsub.f32 %v2315, %v2507
        %v2604 = vsub.f32 %v2316, %v2508
        %v2605 = vsub.f32 %v2317, %v2509
        %v2606 = vsub.f32 %v2318, %v2510
        %v2607 = vsub.f32 %v2319, %v2511
        %v2608 = vsub.f32 %v2320, %v2512
        %v2609 = vsub.f32 %v2321, %v2513
        %v2610 = vsub.f32 %v2322, %v2514
        %v2611 = vsub.f32 %v2323, %v2515
        %v2612 = vsub.f32 %v2324, %v2516
        %v2613 = vsub.f32 %v2325, %v2517
        %v2614 = vsub.f32 %v2326, %v2518
        %v2615 = vsub.f32 %v2327, %v2519
        %v2616 = vsub.f32 %v2328, %v2520
        %v2617 = vsub.f32 %v2329, %v2521
        %v2618 = vsub.f32 %v2330, %v2522
        %v2619 = vsub.f32 %v2331, %v2523
        %v2620 = vsub.f32 %v2332, %v2524
        %v2621 = vsub.f32 %v2333, %v2525
        %v2622 = vsub.f32 %v2334, %v2526
        %v2623 = vsub.f32 %v2335, %v2527
        %v2624 = vsub.f32 %v2336, %v2528
        %v2625 = vsub.f32 %v2337, %v2529
        %v2626 = vsub.f32 %v2338, %v2530
        %v2627 = vsub.f32 %v2339, %v2531
        %v2628 = vsub.f32 %v2340, %v2532
        %v2629 = vsub.f32 %v2341, %v2533
        %v2630 = vsub.f32 %v2342, %v2534
        %v2631 = vsub.f32 %v2343, %v2535
        %v2632 = vsub.f32 %v2344, %v2536
        %v2633 = vsub.f32 %v2345, %v2537
        %v2634 = vsub.f32 %v2346, %v2538
        %v2635 = vsub.f32 %v2347, %v2539
        %v2636 = vsub.f32 %v2348, %v2540
        %v2637 = vsub.f32 %v2349, %v2541
        %v2638 = vsub.f32 %v2350, %v2542
        %v2639 = vsub.f32 %v2351, %v2543
        %v2640 = vsub.f32 %v2352, %v2544
        %v2641 = vmul.f32 %v2593, 1.442695
        %v2642 = vpow.pop %v2641
        %v2643 = vmul.f32 %v2594, 1.442695
        %v2644 = vpow.pop %v2643
        %v2645 = vmul.f32 %v2595, 1.442695
        %v2646 = vpow.pop %v2645
        %v2647 = vmul.f32 %v2596, 1.442695
        %v2648 = vpow.pop %v2647
        %v2649 = vmul.f32 %v2597, 1.442695
        %v2650 = vpow.pop %v2649
        %v2651 = vmul.f32 %v2598, 1.442695
        %v2652 = vpow.pop %v2651
        %v2653 = vmul.f32 %v2599, 1.442695
        %v2654 = vpow.pop %v2653
        %v2655 = vmul.f32 %v2600, 1.442695
        %v2656 = vpow.pop %v2655
        %v2657 = vmul.f32 %v2601, 1.442695
        %v2658 = vpow.pop %v2657
        %v2659 = vmul.f32 %v2602, 1.442695
        %v2660 = vpow.pop %v2659
        %v2661 = vmul.f32 %v2603, 1.442695
        %v2662 = vpow.pop %v2661
        %v2663 = vmul.f32 %v2604, 1.442695
        %v2664 = vpow.pop %v2663
        %v2665 = vmul.f32 %v2605, 1.442695
        %v2666 = vpow.pop %v2665
        %v2667 = vmul.f32 %v2606, 1.442695
        %v2668 = vpow.pop %v2667
        %v2669 = vmul.f32 %v2607, 1.442695
        %v2670 = vpow.pop %v2669
        %v2671 = vmul.f32 %v2608, 1.442695
        %v2672 = vpow.pop %v2671
        %v2673 = vmul.f32 %v2609, 1.442695
        %v2674 = vpow.pop %v2673
        %v2675 = vmul.f32 %v2610, 1.442695
        %v2676 = vpow.pop %v2675
        %v2677 = vmul.f32 %v2611, 1.442695
        %v2678 = vpow.pop %v2677
        %v2679 = vmul.f32 %v2612, 1.442695
        %v2680 = vpow.pop %v2679
        %v2681 = vmul.f32 %v2613, 1.442695
        %v2682 = vpow.pop %v2681
        %v2683 = vmul.f32 %v2614, 1.442695
        %v2684 = vpow.pop %v2683
        %v2685 = vmul.f32 %v2615, 1.442695
        %v2686 = vpow.pop %v2685
        %v2687 = vmul.f32 %v2616, 1.442695
        %v2688 = vpow.pop %v2687
        %v2689 = vmul.f32 %v2617, 1.442695
        %v2690 = vpow.pop %v2689
        %v2691 = vmul.f32 %v2618, 1.442695
        %v2692 = vpow.pop %v2691
        %v2693 = vmul.f32 %v2619, 1.442695
        %v2694 = vpow.pop %v2693
        %v2695 = vmul.f32 %v2620, 1.442695
        %v2696 = vpow.pop %v2695
        %v2697 = vmul.f32 %v2621, 1.442695
        %v2698 = vpow.pop %v2697
        %v2699 = vmul.f32 %v2622, 1.442695
        %v2700 = vpow.pop %v2699
        %v2701 = vmul.f32 %v2623, 1.442695
        %v2702 = vpow.pop %v2701
        %v2703 = vmul.f32 %v2624, 1.442695
        %v2704 = vpow.pop %v2703
        %v2705 = vmul.f32 %v2625, 1.442695
        %v2706 = vpow.pop %v2705
        %v2707 = vmul.f32 %v2626, 1.442695
        %v2708 = vpow.pop %v2707
        %v2709 = vmul.f32 %v2627, 1.442695
        %v2710 = vpow.pop %v2709
        %v2711 = vmul.f32 %v2628, 1.442695
        %v2712 = vpow.pop %v2711
        %v2713 = vmul.f32 %v2629, 1.442695
        %v2714 = vpow.pop %v2713
        %v2715 = vmul.f32 %v2630, 1.442695
        %v2716 = vpow.pop %v2715
        %v2717 = vmul.f32 %v2631, 1.442695
        %v2718 = vpow.pop %v2717
        %v2719 = vmul.f32 %v2632, 1.442695
        %v2720 = vpow.pop %v2719
        %v2721 = vmul.f32 %v2633, 1.442695
        %v2722 = vpow.pop %v2721
        %v2723 = vmul.f32 %v2634, 1.442695
        %v2724 = vpow.pop %v2723
        %v2725 = vmul.f32 %v2635, 1.442695
        %v2726 = vpow.pop %v2725
        %v2727 = vmul.f32 %v2636, 1.442695
        %v2728 = vpow.pop %v2727
        %v2729 = vmul.f32 %v2637, 1.442695
        %v2730 = vpow.pop %v2729
        %v2731 = vmul.f32 %v2638, 1.442695
        %v2732 = vpow.pop %v2731
        %v2733 = vmul.f32 %v2639, 1.442695
        %v2734 = vpow.pop %v2733
        %v2735 = vmul.f32 %v2640, 1.442695
        %v2736 = vpow.pop %v2735
        %v2737 = vmul.f32 %v2545, %v2642
        %v2738 = vmul.f32 %v2546, %v2644
        %v2739 = vmul.f32 %v2547, %v2646
        %v2740 = vmul.f32 %v2548, %v2648
        %v2741 = vmul.f32 %v2549, %v2650
        %v2742 = vmul.f32 %v2550, %v2652
        %v2743 = vmul.f32 %v2551, %v2654
        %v2744 = vmul.f32 %v2552, %v2656
        %v2745 = vmul.f32 %v2553, %v2658
        %v2746 = vmul.f32 %v2554, %v2660
        %v2747 = vmul.f32 %v2555, %v2662
        %v2748 = vmul.f32 %v2556, %v2664
        %v2749 = vmul.f32 %v2557, %v2666
        %v2750 = vmul.f32 %v2558, %v2668
        %v2751 = vmul.f32 %v2559, %v2670
        %v2752 = vmul.f32 %v2560, %v2672
        %v2753 = vmul.f32 %v2561, %v2674
        %v2754 = vmul.f32 %v2562, %v2676
        %v2755 = vmul.f32 %v2563, %v2678
        %v2756 = vmul.f32 %v2564, %v2680
        %v2757 = vmul.f32 %v2565, %v2682
        %v2758 = vmul.f32 %v2566, %v2684
        %v2759 = vmul.f32 %v2567, %v2686
        %v2760 = vmul.f32 %v2568, %v2688
        %v2761 = vmul.f32 %v2569, %v2690
        %v2762 = vmul.f32 %v2570, %v2692
        %v2763 = vmul.f32 %v2571, %v2694
        %v2764 = vmul.f32 %v2572, %v2696
        %v2765 = vmul.f32 %v2573, %v2698
        %v2766 = vmul.f32 %v2574, %v2700
        %v2767 = vmul.f32 %v2575, %v2702
        %v2768 = vmul.f32 %v2576, %v2704
        %v2769 = vmul.f32 %v2577, %v2706
        %v2770 = vmul.f32 %v2578, %v2708
        %v2771 = vmul.f32 %v2579, %v2710
        %v2772 = vmul.f32 %v2580, %v2712
        %v2773 = vmul.f32 %v2581, %v2714
        %v2774 = vmul.f32 %v2582, %v2716
        %v2775 = vmul.f32 %v2583, %v2718
        %v2776 = vmul.f32 %v2584, %v2720
        %v2777 = vmul.f32 %v2585, %v2722
        %v2778 = vmul.f32 %v2586, %v2724
        %v2779 = vmul.f32 %v2587, %v2726
        %v2780 = vmul.f32 %v2588, %v2728
        %v2781 = vmul.f32 %v2589, %v2730
        %v2782 = vmul.f32 %v2590, %v2732
        %v2783 = vmul.f32 %v2591, %v2734
        %v2784 = vmul.f32 %v2592, %v2736
        %2786 = vset.pattern.permute.xlu0 0
        %2787 = vperm.xlu0 %2786, %v2497
        %v2788 = vpop.permute.xlu0 %2787
        %2791 = vset.pattern.permute.xlu0 0
        %2792 = vperm.xlu0 %2791, %v2498
        %v2793 = vpop.permute.xlu0 %2792
        %2796 = vset.pattern.permute.xlu0 0
        %2797 = vperm.xlu0 %2796, %v2499
        %v2798 = vpop.permute.xlu0 %2797
        %2801 = vset.pattern.permute.xlu0 0
        %2802 = vperm.xlu0 %2801, %v2500
        %v2803 = vpop.permute.xlu0 %2802
        %2806 = vset.pattern.permute.xlu0 0
        %2807 = vperm.xlu0 %2806, %v2501
        %v2808 = vpop.permute.xlu0 %2807
        %2811 = vset.pattern.permute.xlu0 0
        %2812 = vperm.xlu0 %2811, %v2502
        %v2813 = vpop.permute.xlu0 %2812
        %2816 = vset.pattern.permute.xlu0 0
        %2817 = vperm.xlu0 %2816, %v2503
        %v2818 = vpop.permute.xlu0 %2817
        %2821 = vset.pattern.permute.xlu0 0
        %2822 = vperm.xlu0 %2821, %v2504
        %v2823 = vpop.permute.xlu0 %2822
        %2826 = vset.pattern.permute.xlu0 0
        %2827 = vperm.xlu0 %2826, %v2505
        %v2828 = vpop.permute.xlu0 %2827
        %2831 = vset.pattern.permute.xlu0 0
        %2832 = vperm.xlu0 %2831, %v2506
        %v2833 = vpop.permute.xlu0 %2832
        %2836 = vset.pattern.permute.xlu0 0
        %2837 = vperm.xlu0 %2836, %v2507
        %v2838 = vpop.permute.xlu0 %2837
        %2841 = vset.pattern.permute.xlu0 0
        %2842 = vperm.xlu0 %2841, %v2508
        %v2843 = vpop.permute.xlu0 %2842
        %2846 = vset.pattern.permute.xlu0 0
        %2847 = vperm.xlu0 %2846, %v2509
        %v2848 = vpop.permute.xlu0 %2847
        %2851 = vset.pattern.permute.xlu0 0
        %2852 = vperm.xlu0 %2851, %v2510
        %v2853 = vpop.permute.xlu0 %2852
        %2856 = vset.pattern.permute.xlu0 0
        %2857 = vperm.xlu0 %2856, %v2511
        %v2858 = vpop.permute.xlu0 %2857
        %2861 = vset.pattern.permute.xlu0 0
        %2862 = vperm.xlu0 %2861, %v2512
        %v2863 = vpop.permute.xlu0 %2862
        %2866 = vset.pattern.permute.xlu0 0
        %2867 = vperm.xlu0 %2866, %v2513
        %v2868 = vpop.permute.xlu0 %2867
        %2871 = vset.pattern.permute.xlu0 0
        %2872 = vperm.xlu0 %2871, %v2514
        %v2873 = vpop.permute.xlu0 %2872
        %2876 = vset.pattern.permute.xlu0 0
        %2877 = vperm.xlu0 %2876, %v2515
        %v2878 = vpop.permute.xlu0 %2877
        %2881 = vset.pattern.permute.xlu0 0
        %2882 = vperm.xlu0 %2881, %v2516
        %v2883 = vpop.permute.xlu0 %2882
        %2886 = vset.pattern.permute.xlu0 0
        %2887 = vperm.xlu0 %2886, %v2517
        %v2888 = vpop.permute.xlu0 %2887
        %2891 = vset.pattern.permute.xlu0 0
        %2892 = vperm.xlu0 %2891, %v2518
        %v2893 = vpop.permute.xlu0 %2892
        %2896 = vset.pattern.permute.xlu0 0
        %2897 = vperm.xlu0 %2896, %v2519
        %v2898 = vpop.permute.xlu0 %2897
        %2901 = vset.pattern.permute.xlu0 0
        %2902 = vperm.xlu0 %2901, %v2520
        %v2903 = vpop.permute.xlu0 %2902
        %2906 = vset.pattern.permute.xlu0 0
        %2907 = vperm.xlu0 %2906, %v2521
        %v2908 = vpop.permute.xlu0 %2907
        %2911 = vset.pattern.permute.xlu0 0
        %2912 = vperm.xlu0 %2911, %v2522
        %v2913 = vpop.permute.xlu0 %2912
        %2916 = vset.pattern.permute.xlu0 0
        %2917 = vperm.xlu0 %2916, %v2523
        %v2918 = vpop.permute.xlu0 %2917
        %2921 = vset.pattern.permute.xlu0 0
        %2922 = vperm.xlu0 %2921, %v2524
        %v2923 = vpop.permute.xlu0 %2922
        %2926 = vset.pattern.permute.xlu0 0
        %2927 = vperm.xlu0 %2926, %v2525
        %v2928 = vpop.permute.xlu0 %2927
        %2931 = vset.pattern.permute.xlu0 0
        %2932 = vperm.xlu0 %2931, %v2526
        %v2933 = vpop.permute.xlu0 %2932
        %2936 = vset.pattern.permute.xlu0 0
        %2937 = vperm.xlu0 %2936, %v2527
        %v2938 = vpop.permute.xlu0 %2937
        %2941 = vset.pattern.permute.xlu0 0
        %2942 = vperm.xlu0 %2941, %v2528
        %v2943 = vpop.permute.xlu0 %2942
        %2946 = vset.pattern.permute.xlu0 0
        %2947 = vperm.xlu0 %2946, %v2529
        %v2948 = vpop.permute.xlu0 %2947
        %2951 = vset.pattern.permute.xlu0 0
        %2952 = vperm.xlu0 %2951, %v2530
        %v2953 = vpop.permute.xlu0 %2952
        %2956 = vset.pattern.permute.xlu0 0
        %2957 = vperm.xlu0 %2956, %v2531
        %v2958 = vpop.permute.xlu0 %2957
        %2961 = vset.pattern.permute.xlu0 0
        %2962 = vperm.xlu0 %2961, %v2532
        %v2963 = vpop.permute.xlu0 %2962
        %2966 = vset.pattern.permute.xlu0 0
        %2967 = vperm.xlu0 %2966, %v2533
        %v2968 = vpop.permute.xlu0 %2967
        %2971 = vset.pattern.permute.xlu0 0
        %2972 = vperm.xlu0 %2971, %v2534
        %v2973 = vpop.permute.xlu0 %2972
        %2976 = vset.pattern.permute.xlu0 0
        %2977 = vperm.xlu0 %2976, %v2535
        %v2978 = vpop.permute.xlu0 %2977
        %2981 = vset.pattern.permute.xlu0 0
        %2982 = vperm.xlu0 %2981, %v2536
        %v2983 = vpop.permute.xlu0 %2982
        %2986 = vset.pattern.permute.xlu0 0
        %2987 = vperm.xlu0 %2986, %v2537
        %v2988 = vpop.permute.xlu0 %2987
        %2991 = vset.pattern.permute.xlu0 0
        %2992 = vperm.xlu0 %2991, %v2538
        %v2993 = vpop.permute.xlu0 %2992
        %2996 = vset.pattern.permute.xlu0 0
        %2997 = vperm.xlu0 %2996, %v2539
        %v2998 = vpop.permute.xlu0 %2997
        %3001 = vset.pattern.permute.xlu0 0
        %3002 = vperm.xlu0 %3001, %v2540
        %v3003 = vpop.permute.xlu0 %3002
        %3006 = vset.pattern.permute.xlu0 0
        %3007 = vperm.xlu0 %3006, %v2541
        %v3008 = vpop.permute.xlu0 %3007
        %3011 = vset.pattern.permute.xlu0 0
        %3012 = vperm.xlu0 %3011, %v2542
        %v3013 = vpop.permute.xlu0 %3012
        %3016 = vset.pattern.permute.xlu0 0
        %3017 = vperm.xlu0 %3016, %v2543
        %v3018 = vpop.permute.xlu0 %3017
        %3021 = vset.pattern.permute.xlu0 0
        %3022 = vperm.xlu0 %3021, %v2544
        %v3023 = vpop.permute.xlu0 %3022
        %v3025 = vsub.f32 %v2209, %v2788
        %v3026 = vsub.f32 %v2210, %v2788
        %v3027 = vsub.f32 %v2211, %v2793
        %v3028 = vsub.f32 %v2212, %v2793
        %v3029 = vsub.f32 %v2213, %v2798
        %v3030 = vsub.f32 %v2214, %v2798
        %v3031 = vsub.f32 %v2215, %v2803
        %v3032 = vsub.f32 %v2216, %v2803
        %v3033 = vsub.f32 %v2217, %v2808
        %v3034 = vsub.f32 %v2218, %v2808
        %v3035 = vsub.f32 %v2219, %v2813
        %v3036 = vsub.f32 %v2220, %v2813
        %v3037 = vsub.f32 %v2221, %v2818
        %v3038 = vsub.f32 %v2222, %v2818
        %v3039 = vsub.f32 %v2223, %v2823
        %v3040 = vsub.f32 %v2224, %v2823
        %v3041 = vsub.f32 %v2225, %v2828
        %v3042 = vsub.f32 %v2226, %v2828
        %v3043 = vsub.f32 %v2227, %v2833
        %v3044 = vsub.f32 %v2228, %v2833
        %v3045 = vsub.f32 %v2229, %v2838
        %v3046 = vsub.f32 %v2230, %v2838
        %v3047 = vsub.f32 %v2231, %v2843
        %v3048 = vsub.f32 %v2232, %v2843
        %v3049 = vsub.f32 %v2233, %v2848
        %v3050 = vsub.f32 %v2234, %v2848
        %v3051 = vsub.f32 %v2235, %v2853
        %v3052 = vsub.f32 %v2236, %v2853
        %v3053 = vsub.f32 %v2237, %v2858
        %v3054 = vsub.f32 %v2238, %v2858
        %v3055 = vsub.f32 %v2239, %v2863
        %v3056 = vsub.f32 %v2240, %v2863
        %v3057 = vsub.f32 %v2241, %v2868
        %v3058 = vsub.f32 %v2242, %v2868
        %v3059 = vsub.f32 %v2243, %v2873
        %v3060 = vsub.f32 %v2244, %v2873
        %v3061 = vsub.f32 %v2245, %v2878
        %v3062 = vsub.f32 %v2246, %v2878
        %v3063 = vsub.f32 %v2247, %v2883
        %v3064 = vsub.f32 %v2248, %v2883
        %v3065 = vsub.f32 %v2249, %v2888
        %v3066 = vsub.f32 %v2250, %v2888
        %v3067 = vsub.f32 %v2251, %v2893
        %v3068 = vsub.f32 %v2252, %v2893
        %v3069 = vsub.f32 %v2253, %v2898
        %v3070 = vsub.f32 %v2254, %v2898
        %v3071 = vsub.f32 %v2255, %v2903
        %v3072 = vsub.f32 %v2256, %v2903
        %v3073 = vsub.f32 %v2257, %v2908
        %v3074 = vsub.f32 %v2258, %v2908
        %v3075 = vsub.f32 %v2259, %v2913
        %v3076 = vsub.f32 %v2260, %v2913
        %v3077 = vsub.f32 %v2261, %v2918
        %v3078 = vsub.f32 %v2262, %v2918
        %v3079 = vsub.f32 %v2263, %v2923
        %v3080 = vsub.f32 %v2264, %v2923
        %v3081 = vsub.f32 %v2265, %v2928
        %v3082 = vsub.f32 %v2266, %v2928
        %v3083 = vsub.f32 %v2267, %v2933
        %v3084 = vsub.f32 %v2268, %v2933
        %v3085 = vsub.f32 %v2269, %v2938
        %v3086 = vsub.f32 %v2270, %v2938
        %v3087 = vsub.f32 %v2271, %v2943
        %v3088 = vsub.f32 %v2272, %v2943
        %v3089 = vsub.f32 %v2273, %v2948
        %v3090 = vsub.f32 %v2274, %v2948
        %v3091 = vsub.f32 %v2275, %v2953
        %v3092 = vsub.f32 %v2276, %v2953
        %v3093 = vsub.f32 %v2277, %v2958
        %v3094 = vsub.f32 %v2278, %v2958
        %v3095 = vsub.f32 %v2279, %v2963
        %v3096 = vsub.f32 %v2280, %v2963
        %v3097 = vsub.f32 %v2281, %v2968
        %v3098 = vsub.f32 %v2282, %v2968
        %v3099 = vsub.f32 %v2283, %v2973
        %v3100 = vsub.f32 %v2284, %v2973
        %v3101 = vsub.f32 %v2285, %v2978
        %v3102 = vsub.f32 %v2286, %v2978
        %v3103 = vsub.f32 %v2287, %v2983
        %v3104 = vsub.f32 %v2288, %v2983
        %v3105 = vsub.f32 %v2289, %v2988
        %v3106 = vsub.f32 %v2290, %v2988
        %v3107 = vsub.f32 %v2291, %v2993
        %v3108 = vsub.f32 %v2292, %v2993
        %v3109 = vsub.f32 %v2293, %v2998
        %v3110 = vsub.f32 %v2294, %v2998
        %v3111 = vsub.f32 %v2295, %v3003
        %v3112 = vsub.f32 %v2296, %v3003
        %v3113 = vsub.f32 %v2297, %v3008
        %v3114 = vsub.f32 %v2298, %v3008
        %v3115 = vsub.f32 %v2299, %v3013
        %v3116 = vsub.f32 %v2300, %v3013
        %v3117 = vsub.f32 %v2301, %v3018
        %v3118 = vsub.f32 %v2302, %v3018
        %v3119 = vsub.f32 %v2303, %v3023
        %v3120 = vsub.f32 %v2304, %v3023
        %v3121 = vmul.f32 %v3025, 1.442695
        %v3122 = vpow.pop %v3121
        %v3123 = vmul.f32 %v3026, 1.442695
        %v3124 = vpow.pop %v3123
        %v3125 = vmul.f32 %v3027, 1.442695
        %v3126 = vpow.pop %v3125
        %v3127 = vmul.f32 %v3028, 1.442695
        %v3128 = vpow.pop %v3127
        %v3129 = vmul.f32 %v3029, 1.442695
        %v3130 = vpow.pop %v3129
        %v3131 = vmul.f32 %v3030, 1.442695
        %v3132 = vpow.pop %v3131
        %v3133 = vmul.f32 %v3031, 1.442695
        %v3134 = vpow.pop %v3133
        %v3135 = vmul.f32 %v3032, 1.442695
        %v3136 = vpow.pop %v3135
        %v3137 = vmul.f32 %v3033, 1.442695
        %v3138 = vpow.pop %v3137
        %v3139 = vmul.f32 %v3034, 1.442695
        %v3140 = vpow.pop %v3139
        %v3141 = vmul.f32 %v3035, 1.442695
        %v3142 = vpow.pop %v3141
        %v3143 = vmul.f32 %v3036, 1.442695
        %v3144 = vpow.pop %v3143
        %v3145 = vmul.f32 %v3037, 1.442695
        %v3146 = vpow.pop %v3145
        %v3147 = vmul.f32 %v3038, 1.442695
        %v3148 = vpow.pop %v3147
        %v3149 = vmul.f32 %v3039, 1.442695
        %v3150 = vpow.pop %v3149
        %v3151 = vmul.f32 %v3040, 1.442695
        %v3152 = vpow.pop %v3151
        %v3153 = vmul.f32 %v3041, 1.442695
        %v3154 = vpow.pop %v3153
        %v3155 = vmul.f32 %v3042, 1.442695
        %v3156 = vpow.pop %v3155
        %v3157 = vmul.f32 %v3043, 1.442695
        %v3158 = vpow.pop %v3157
        %v3159 = vmul.f32 %v3044, 1.442695
        %v3160 = vpow.pop %v3159
        %v3161 = vmul.f32 %v3045, 1.442695
        %v3162 = vpow.pop %v3161
        %v3163 = vmul.f32 %v3046, 1.442695
        %v3164 = vpow.pop %v3163
        %v3165 = vmul.f32 %v3047, 1.442695
        %v3166 = vpow.pop %v3165
        %v3167 = vmul.f32 %v3048, 1.442695
        %v3168 = vpow.pop %v3167
        %v3169 = vmul.f32 %v3049, 1.442695
        %v3170 = vpow.pop %v3169
        %v3171 = vmul.f32 %v3050, 1.442695
        %v3172 = vpow.pop %v3171
        %v3173 = vmul.f32 %v3051, 1.442695
        %v3174 = vpow.pop %v3173
        %v3175 = vmul.f32 %v3052, 1.442695
        %v3176 = vpow.pop %v3175
        %v3177 = vmul.f32 %v3053, 1.442695
        %v3178 = vpow.pop %v3177
        %v3179 = vmul.f32 %v3054, 1.442695
        %v3180 = vpow.pop %v3179
        %v3181 = vmul.f32 %v3055, 1.442695
        %v3182 = vpow.pop %v3181
        %v3183 = vmul.f32 %v3056, 1.442695
        %v3184 = vpow.pop %v3183
        %v3185 = vmul.f32 %v3057, 1.442695
        %v3186 = vpow.pop %v3185
        %v3187 = vmul.f32 %v3058, 1.442695
        %v3188 = vpow.pop %v3187
        %v3189 = vmul.f32 %v3059, 1.442695
        %v3190 = vpow.pop %v3189
        %v3191 = vmul.f32 %v3060, 1.442695
        %v3192 = vpow.pop %v3191
        %v3193 = vmul.f32 %v3061, 1.442695
        %v3194 = vpow.pop %v3193
        %v3195 = vmul.f32 %v3062, 1.442695
        %v3196 = vpow.pop %v3195
        %v3197 = vmul.f32 %v3063, 1.442695
        %v3198 = vpow.pop %v3197
        %v3199 = vmul.f32 %v3064, 1.442695
        %v3200 = vpow.pop %v3199
        %v3201 = vmul.f32 %v3065, 1.442695
        %v3202 = vpow.pop %v3201
        %v3203 = vmul.f32 %v3066, 1.442695
        %v3204 = vpow.pop %v3203
        %v3205 = vmul.f32 %v3067, 1.442695
        %v3206 = vpow.pop %v3205
        %v3207 = vmul.f32 %v3068, 1.442695
        %v3208 = vpow.pop %v3207
        %v3209 = vmul.f32 %v3069, 1.442695
        %v3210 = vpow.pop %v3209
        %v3211 = vmul.f32 %v3070, 1.442695
        %v3212 = vpow.pop %v3211
        %v3213 = vmul.f32 %v3071, 1.442695
        %v3214 = vpow.pop %v3213
        %v3215 = vmul.f32 %v3072, 1.442695
        %v3216 = vpow.pop %v3215
        %v3217 = vmul.f32 %v3073, 1.442695
        %v3218 = vpow.pop %v3217
        %v3219 = vmul.f32 %v3074, 1.442695
        %v3220 = vpow.pop %v3219
        %v3221 = vmul.f32 %v3075, 1.442695
        %v3222 = vpow.pop %v3221
        %v3223 = vmul.f32 %v3076, 1.442695
        %v3224 = vpow.pop %v3223
        %v3225 = vmul.f32 %v3077, 1.442695
        %v3226 = vpow.pop %v3225
        %v3227 = vmul.f32 %v3078, 1.442695
        %v3228 = vpow.pop %v3227
        %v3229 = vmul.f32 %v3079, 1.442695
        %v3230 = vpow.pop %v3229
        %v3231 = vmul.f32 %v3080, 1.442695
        %v3232 = vpow.pop %v3231
        %v3233 = vmul.f32 %v3081, 1.442695
        %v3234 = vpow.pop %v3233
        %v3235 = vmul.f32 %v3082, 1.442695
        %v3236 = vpow.pop %v3235
        %v3237 = vmul.f32 %v3083, 1.442695
        %v3238 = vpow.pop %v3237
        %v3239 = vmul.f32 %v3084, 1.442695
        %v3240 = vpow.pop %v3239
        %v3241 = vmul.f32 %v3085, 1.442695
        %v3242 = vpow.pop %v3241
        %v3243 = vmul.f32 %v3086, 1.442695
        %v3244 = vpow.pop %v3243
        %v3245 = vmul.f32 %v3087, 1.442695
        %v3246 = vpow.pop %v3245
        %v3247 = vmul.f32 %v3088, 1.442695
        %v3248 = vpow.pop %v3247
        %v3249 = vmul.f32 %v3089, 1.442695
        %v3250 = vpow.pop %v3249
        %v3251 = vmul.f32 %v3090, 1.442695
        %v3252 = vpow.pop %v3251
        %v3253 = vmul.f32 %v3091, 1.442695
        %v3254 = vpow.pop %v3253
        %v3255 = vmul.f32 %v3092, 1.442695
        %v3256 = vpow.pop %v3255
        %v3257 = vmul.f32 %v3093, 1.442695
        %v3258 = vpow.pop %v3257
        %v3259 = vmul.f32 %v3094, 1.442695
        %v3260 = vpow.pop %v3259
        %v3261 = vmul.f32 %v3095, 1.442695
        %v3262 = vpow.pop %v3261
        %v3263 = vmul.f32 %v3096, 1.442695
        %v3264 = vpow.pop %v3263
        %v3265 = vmul.f32 %v3097, 1.442695
        %v3266 = vpow.pop %v3265
        %v3267 = vmul.f32 %v3098, 1.442695
        %v3268 = vpow.pop %v3267
        %v3269 = vmul.f32 %v3099, 1.442695
        %v3270 = vpow.pop %v3269
        %v3271 = vmul.f32 %v3100, 1.442695
        %v3272 = vpow.pop %v3271
        %v3273 = vmul.f32 %v3101, 1.442695
        %v3274 = vpow.pop %v3273
        %v3275 = vmul.f32 %v3102, 1.442695
        %v3276 = vpow.pop %v3275
        %v3277 = vmul.f32 %v3103, 1.442695
        %v3278 = vpow.pop %v3277
        %v3279 = vmul.f32 %v3104, 1.442695
        %v3280 = vpow.pop %v3279
        %v3281 = vmul.f32 %v3105, 1.442695
        %v3282 = vpow.pop %v3281
        %v3283 = vmul.f32 %v3106, 1.442695
        %v3284 = vpow.pop %v3283
        %v3285 = vmul.f32 %v3107, 1.442695
        %v3286 = vpow.pop %v3285
        %v3287 = vmul.f32 %v3108, 1.442695
        %v3288 = vpow.pop %v3287
        %v3289 = vmul.f32 %v3109, 1.442695
        %v3290 = vpow.pop %v3289
        %v3291 = vmul.f32 %v3110, 1.442695
        %v3292 = vpow.pop %v3291
        %v3293 = vmul.f32 %v3111, 1.442695
        %v3294 = vpow.pop %v3293
        %v3295 = vmul.f32 %v3112, 1.442695
        %v3296 = vpow.pop %v3295
        %v3297 = vmul.f32 %v3113, 1.442695
        %v3298 = vpow.pop %v3297
        %v3299 = vmul.f32 %v3114, 1.442695
        %v3300 = vpow.pop %v3299
        %v3301 = vmul.f32 %v3115, 1.442695
        %v3302 = vpow.pop %v3301
        %v3303 = vmul.f32 %v3116, 1.442695
        %v3304 = vpow.pop %v3303
        %v3305 = vmul.f32 %v3117, 1.442695
        %v3306 = vpow.pop %v3305
        %v3307 = vmul.f32 %v3118, 1.442695
        %v3308 = vpow.pop %v3307
        %v3309 = vmul.f32 %v3119, 1.442695
        %v3310 = vpow.pop %v3309
        %v3311 = vmul.f32 %v3120, 1.442695
        %v3312 = vpow.pop %v3311
        %v3313 = vadd.f32 %v3122, %v3124
        %3314 = vadd.xlane.f32.xlu0 %v3313
        %v3315 = vpop.xlane.xlu0 %3314
        %v3316 = vadd.f32 %v3126, %v3128
        %3317 = vadd.xlane.f32.xlu0 %v3316
        %v3318 = vpop.xlane.xlu0 %3317
        %v3319 = vadd.f32 %v3130, %v3132
        %3320 = vadd.xlane.f32.xlu0 %v3319
        %v3321 = vpop.xlane.xlu0 %3320
        %v3322 = vadd.f32 %v3134, %v3136
        %3323 = vadd.xlane.f32.xlu0 %v3322
        %v3324 = vpop.xlane.xlu0 %3323
        %v3325 = vadd.f32 %v3138, %v3140
        %3326 = vadd.xlane.f32.xlu0 %v3325
        %v3327 = vpop.xlane.xlu0 %3326
        %v3328 = vadd.f32 %v3142, %v3144
        %3329 = vadd.xlane.f32.xlu0 %v3328
        %v3330 = vpop.xlane.xlu0 %3329
        %v3331 = vadd.f32 %v3146, %v3148
        %3332 = vadd.xlane.f32.xlu0 %v3331
        %v3333 = vpop.xlane.xlu0 %3332
        %v3334 = vadd.f32 %v3150, %v3152
        %3335 = vadd.xlane.f32.xlu0 %v3334
        %v3336 = vpop.xlane.xlu0 %3335
        %v3337 = vadd.f32 %v3154, %v3156
        %3338 = vadd.xlane.f32.xlu0 %v3337
        %v3339 = vpop.xlane.xlu0 %3338
        %v3340 = vadd.f32 %v3158, %v3160
        %3341 = vadd.xlane.f32.xlu0 %v3340
        %v3342 = vpop.xlane.xlu0 %3341
        %v3343 = vadd.f32 %v3162, %v3164
        %3344 = vadd.xlane.f32.xlu0 %v3343
        %v3345 = vpop.xlane.xlu0 %3344
        %v3346 = vadd.f32 %v3166, %v3168
        %3347 = vadd.xlane.f32.xlu0 %v3346
        %v3348 = vpop.xlane.xlu0 %3347
        %v3349 = vadd.f32 %v3170, %v3172
        %3350 = vadd.xlane.f32.xlu0 %v3349
        %v3351 = vpop.xlane.xlu0 %3350
        %v3352 = vadd.f32 %v3174, %v3176
        %3353 = vadd.xlane.f32.xlu0 %v3352
        %v3354 = vpop.xlane.xlu0 %3353
        %v3355 = vadd.f32 %v3178, %v3180
        %3356 = vadd.xlane.f32.xlu0 %v3355
        %v3357 = vpop.xlane.xlu0 %3356
        %v3358 = vadd.f32 %v3182, %v3184
        %3359 = vadd.xlane.f32.xlu0 %v3358
        %v3360 = vpop.xlane.xlu0 %3359
        %v3361 = vadd.f32 %v3186, %v3188
        %3362 = vadd.xlane.f32.xlu0 %v3361
        %v3363 = vpop.xlane.xlu0 %3362
        %v3364 = vadd.f32 %v3190, %v3192
        %3365 = vadd.xlane.f32.xlu0 %v3364
        %v3366 = vpop.xlane.xlu0 %3365
        %v3367 = vadd.f32 %v3194, %v3196
        %3368 = vadd.xlane.f32.xlu0 %v3367
        %v3369 = vpop.xlane.xlu0 %3368
        %v3370 = vadd.f32 %v3198, %v3200
        %3371 = vadd.xlane.f32.xlu0 %v3370
        %v3372 = vpop.xlane.xlu0 %3371
        %v3373 = vadd.f32 %v3202, %v3204
        %3374 = vadd.xlane.f32.xlu0 %v3373
        %v3375 = vpop.xlane.xlu0 %3374
        %v3376 = vadd.f32 %v3206, %v3208
        %3377 = vadd.xlane.f32.xlu0 %v3376
        %v3378 = vpop.xlane.xlu0 %3377
        %v3379 = vadd.f32 %v3210, %v3212
        %3380 = vadd.xlane.f32.xlu0 %v3379
        %v3381 = vpop.xlane.xlu0 %3380
        %v3382 = vadd.f32 %v3214, %v3216
        %3383 = vadd.xlane.f32.xlu0 %v3382
        %v3384 = vpop.xlane.xlu0 %3383
        %v3385 = vadd.f32 %v3218, %v3220
        %3386 = vadd.xlane.f32.xlu0 %v3385
        %v3387 = vpop.xlane.xlu0 %3386
        %v3388 = vadd.f32 %v3222, %v3224
        %3389 = vadd.xlane.f32.xlu0 %v3388
        %v3390 = vpop.xlane.xlu0 %3389
        %v3391 = vadd.f32 %v3226, %v3228
        %3392 = vadd.xlane.f32.xlu0 %v3391
        %v3393 = vpop.xlane.xlu0 %3392
        %v3394 = vadd.f32 %v3230, %v3232
        %3395 = vadd.xlane.f32.xlu0 %v3394
        %v3396 = vpop.xlane.xlu0 %3395
        %v3397 = vadd.f32 %v3234, %v3236
        %3398 = vadd.xlane.f32.xlu0 %v3397
        %v3399 = vpop.xlane.xlu0 %3398
        %v3400 = vadd.f32 %v3238, %v3240
        %3401 = vadd.xlane.f32.xlu0 %v3400
        %v3402 = vpop.xlane.xlu0 %3401
        %v3403 = vadd.f32 %v3242, %v3244
        %3404 = vadd.xlane.f32.xlu0 %v3403
        %v3405 = vpop.xlane.xlu0 %3404
        %v3406 = vadd.f32 %v3246, %v3248
        %3407 = vadd.xlane.f32.xlu0 %v3406
        %v3408 = vpop.xlane.xlu0 %3407
        %v3409 = vadd.f32 %v3250, %v3252
        %3410 = vadd.xlane.f32.xlu0 %v3409
        %v3411 = vpop.xlane.xlu0 %3410
        %v3412 = vadd.f32 %v3254, %v3256
        %3413 = vadd.xlane.f32.xlu0 %v3412
        %v3414 = vpop.xlane.xlu0 %3413
        %v3415 = vadd.f32 %v3258, %v3260
        %3416 = vadd.xlane.f32.xlu0 %v3415
        %v3417 = vpop.xlane.xlu0 %3416
        %v3418 = vadd.f32 %v3262, %v3264
        %3419 = vadd.xlane.f32.xlu0 %v3418
        %v3420 = vpop.xlane.xlu0 %3419
        %v3421 = vadd.f32 %v3266, %v3268
        %3422 = vadd.xlane.f32.xlu0 %v3421
        %v3423 = vpop.xlane.xlu0 %3422
        %v3424 = vadd.f32 %v3270, %v3272
        %3425 = vadd.xlane.f32.xlu0 %v3424
        %v3426 = vpop.xlane.xlu0 %3425
        %v3427 = vadd.f32 %v3274, %v3276
        %3428 = vadd.xlane.f32.xlu0 %v3427
        %v3429 = vpop.xlane.xlu0 %3428
        %v3430 = vadd.f32 %v3278, %v3280
        %3431 = vadd.xlane.f32.xlu0 %v3430
        %v3432 = vpop.xlane.xlu0 %3431
        %v3433 = vadd.f32 %v3282, %v3284
        %3434 = vadd.xlane.f32.xlu0 %v3433
        %v3435 = vpop.xlane.xlu0 %3434
        %v3436 = vadd.f32 %v3286, %v3288
        %3437 = vadd.xlane.f32.xlu0 %v3436
        %v3438 = vpop.xlane.xlu0 %3437
        %v3439 = vadd.f32 %v3290, %v3292
        %3440 = vadd.xlane.f32.xlu0 %v3439
        %v3441 = vpop.xlane.xlu0 %3440
        %v3442 = vadd.f32 %v3294, %v3296
        %3443 = vadd.xlane.f32.xlu0 %v3442
        %v3444 = vpop.xlane.xlu0 %3443
        %v3445 = vadd.f32 %v3298, %v3300
        %3446 = vadd.xlane.f32.xlu0 %v3445
        %v3447 = vpop.xlane.xlu0 %3446
        %v3448 = vadd.f32 %v3302, %v3304
        %3449 = vadd.xlane.f32.xlu0 %v3448
        %v3450 = vpop.xlane.xlu0 %3449
        %v3451 = vadd.f32 %v3306, %v3308
        %3452 = vadd.xlane.f32.xlu0 %v3451
        %v3453 = vpop.xlane.xlu0 %3452
        %v3454 = vadd.f32 %v3310, %v3312
        %3455 = vadd.xlane.f32.xlu0 %v3454
        %v3456 = vpop.xlane.xlu0 %3455
        %v3457 = vadd.f32 %v2737, %v3315
        %v3458 = vadd.f32 %v2738, %v3318
        %v3459 = vadd.f32 %v2739, %v3321
        %v3460 = vadd.f32 %v2740, %v3324
        %v3461 = vadd.f32 %v2741, %v3327
        %v3462 = vadd.f32 %v2742, %v3330
        %v3463 = vadd.f32 %v2743, %v3333
        %v3464 = vadd.f32 %v2744, %v3336
        %v3465 = vadd.f32 %v2745, %v3339
        %v3466 = vadd.f32 %v2746, %v3342
        %v3467 = vadd.f32 %v2747, %v3345
        %v3468 = vadd.f32 %v2748, %v3348
        %v3469 = vadd.f32 %v2749, %v3351
        %v3470 = vadd.f32 %v2750, %v3354
        %v3471 = vadd.f32 %v2751, %v3357
        %v3472 = vadd.f32 %v2752, %v3360
        %v3473 = vadd.f32 %v2753, %v3363
        %v3474 = vadd.f32 %v2754, %v3366
        %v3475 = vadd.f32 %v2755, %v3369
        %v3476 = vadd.f32 %v2756, %v3372
        %v3477 = vadd.f32 %v2757, %v3375
        %v3478 = vadd.f32 %v2758, %v3378
        %v3479 = vadd.f32 %v2759, %v3381
        %v3480 = vadd.f32 %v2760, %v3384
        %v3481 = vadd.f32 %v2761, %v3387
        %v3482 = vadd.f32 %v2762, %v3390
        %v3483 = vadd.f32 %v2763, %v3393
        %v3484 = vadd.f32 %v2764, %v3396
        %v3485 = vadd.f32 %v2765, %v3399
        %v3486 = vadd.f32 %v2766, %v3402
        %v3487 = vadd.f32 %v2767, %v3405
        %v3488 = vadd.f32 %v2768, %v3408
        %v3489 = vadd.f32 %v2769, %v3411
        %v3490 = vadd.f32 %v2770, %v3414
        %v3491 = vadd.f32 %v2771, %v3417
        %v3492 = vadd.f32 %v2772, %v3420
        %v3493 = vadd.f32 %v2773, %v3423
        %v3494 = vadd.f32 %v2774, %v3426
        %v3495 = vadd.f32 %v2775, %v3429
        %v3496 = vadd.f32 %v2776, %v3432
        %v3497 = vadd.f32 %v2777, %v3435
        %v3498 = vadd.f32 %v2778, %v3438
        %v3499 = vadd.f32 %v2779, %v3441
        %v3500 = vadd.f32 %v2780, %v3444
        %v3501 = vadd.f32 %v2781, %v3447
        %v3502 = vadd.f32 %v2782, %v3450
        %v3503 = vadd.f32 %v2783, %v3453
        %v3504 = vadd.f32 %v2784, %v3456
        %vm3505 = vcmask 7168
        %3506 = vst.msk [vmem:[#allocation3] sm:$0xff] %vm3505, %v3457
        %3507 = vst.msk [vmem:[#allocation3 + $0x8] sm:$0xff] %vm3505, %v3458
        %3508 = vst.msk [vmem:[#allocation3 + $0x10] sm:$0xff] %vm3505, %v3459
        %3509 = vst.msk [vmem:[#allocation3 + $0x18] sm:$0xff] %vm3505, %v3460
        %3510 = vst.msk [vmem:[#allocation3 + $0x20] sm:$0xff] %vm3505, %v3461
        %3511 = vst.msk [vmem:[#allocation3 + $0x28] sm:$0xff] %vm3505, %v3462
        %3512 = vst.msk [vmem:[#allocation3 + $0x30] sm:$0xff] %vm3505, %v3463
        %3513 = vst.msk [vmem:[#allocation3 + $0x38] sm:$0xff] %vm3505, %v3464
        %3514 = vst.msk [vmem:[#allocation3 + $0x40] sm:$0xff] %vm3505, %v3465
        %3515 = vst.msk [vmem:[#allocation3 + $0x48] sm:$0xff] %vm3505, %v3466
        %3516 = vst.msk [vmem:[#allocation3 + $0x50] sm:$0xff] %vm3505, %v3467
        %3517 = vst.msk [vmem:[#allocation3 + $0x58] sm:$0xff] %vm3505, %v3468
        %3518 = vst.msk [vmem:[#allocation3 + $0x60] sm:$0xff] %vm3505, %v3469
        %3519 = vst.msk [vmem:[#allocation3 + $0x68] sm:$0xff] %vm3505, %v3470
        %3520 = vst.msk [vmem:[#allocation3 + $0x70] sm:$0xff] %vm3505, %v3471
        %3521 = vst.msk [vmem:[#allocation3 + $0x78] sm:$0xff] %vm3505, %v3472
        %3522 = vst.msk [vmem:[#allocation3 + $0x80] sm:$0xff] %vm3505, %v3473
        %3523 = vst.msk [vmem:[#allocation3 + $0x88] sm:$0xff] %vm3505, %v3474
        %3524 = vst.msk [vmem:[#allocation3 + $0x90] sm:$0xff] %vm3505, %v3475
        %3525 = vst.msk [vmem:[#allocation3 + $0x98] sm:$0xff] %vm3505, %v3476
        %3526 = vst.msk [vmem:[#allocation3 + $0xa0] sm:$0xff] %vm3505, %v3477
        %3527 = vst.msk [vmem:[#allocation3 + $0xa8] sm:$0xff] %vm3505, %v3478
        %3528 = vst.msk [vmem:[#allocation3 + $0xb0] sm:$0xff] %vm3505, %v3479
        %3529 = vst.msk [vmem:[#allocation3 + $0xb8] sm:$0xff] %vm3505, %v3480
        %3530 = vst.msk [vmem:[#allocation3 + $0xc0] sm:$0xff] %vm3505, %v3481
        %3531 = vst.msk [vmem:[#allocation3 + $0xc8] sm:$0xff] %vm3505, %v3482
        %3532 = vst.msk [vmem:[#allocation3 + $0xd0] sm:$0xff] %vm3505, %v3483
        %3533 = vst.msk [vmem:[#allocation3 + $0xd8] sm:$0xff] %vm3505, %v3484
        %3534 = vst.msk [vmem:[#allocation3 + $0xe0] sm:$0xff] %vm3505, %v3485
        %3535 = vst.msk [vmem:[#allocation3 + $0xe8] sm:$0xff] %vm3505, %v3486
        %3536 = vst.msk [vmem:[#allocation3 + $0xf0] sm:$0xff] %vm3505, %v3487
        %3537 = vst.msk [vmem:[#allocation3 + $0xf8] sm:$0xff] %vm3505, %v3488
        %3538 = vst.msk [vmem:[#allocation3 + $0x100] sm:$0xff] %vm3505, %v3489
        %3539 = vst.msk [vmem:[#allocation3 + $0x108] sm:$0xff] %vm3505, %v3490
        %3540 = vst.msk [vmem:[#allocation3 + $0x110] sm:$0xff] %vm3505, %v3491
        %3541 = vst.msk [vmem:[#allocation3 + $0x118] sm:$0xff] %vm3505, %v3492
        %3542 = vst.msk [vmem:[#allocation3 + $0x120] sm:$0xff] %vm3505, %v3493
        %3543 = vst.msk [vmem:[#allocation3 + $0x128] sm:$0xff] %vm3505, %v3494
        %3544 = vst.msk [vmem:[#allocation3 + $0x130] sm:$0xff] %vm3505, %v3495
        %3545 = vst.msk [vmem:[#allocation3 + $0x138] sm:$0xff] %vm3505, %v3496
        %3546 = vst.msk [vmem:[#allocation3 + $0x140] sm:$0xff] %vm3505, %v3497
        %3547 = vst.msk [vmem:[#allocation3 + $0x148] sm:$0xff] %vm3505, %v3498
        %3548 = vst.msk [vmem:[#allocation3 + $0x150] sm:$0xff] %vm3505, %v3499
        %3549 = vst.msk [vmem:[#allocation3 + $0x158] sm:$0xff] %vm3505, %v3500
        %3550 = vst.msk [vmem:[#allocation3 + $0x160] sm:$0xff] %vm3505, %v3501
        %3551 = vst.msk [vmem:[#allocation3 + $0x168] sm:$0xff] %vm3505, %v3502
        %3552 = vst.msk [vmem:[#allocation3 + $0x170] sm:$0xff] %vm3505, %v3503
        %3553 = vst.msk [vmem:[#allocation3 + $0x178] sm:$0xff] %vm3505, %v3504
        %3554 = vst.msk [vmem:[#allocation2] sm:$0xff] %vm3505, %v2497
        %3555 = vst.msk [vmem:[#allocation2 + $0x8] sm:$0xff] %vm3505, %v2498
        %3556 = vst.msk [vmem:[#allocation2 + $0x10] sm:$0xff] %vm3505, %v2499
        %3557 = vst.msk [vmem:[#allocation2 + $0x18] sm:$0xff] %vm3505, %v2500
        %3558 = vst.msk [vmem:[#allocation2 + $0x20] sm:$0xff] %vm3505, %v2501
        %3559 = vst.msk [vmem:[#allocation2 + $0x28] sm:$0xff] %vm3505, %v2502
        %3560 = vst.msk [vmem:[#allocation2 + $0x30] sm:$0xff] %vm3505, %v2503
        %3561 = vst.msk [vmem:[#allocation2 + $0x38] sm:$0xff] %vm3505, %v2504
        %3562 = vst.msk [vmem:[#allocation2 + $0x40] sm:$0xff] %vm3505, %v2505
        %3563 = vst.msk [vmem:[#allocation2 + $0x48] sm:$0xff] %vm3505, %v2506
        %3564 = vst.msk [vmem:[#allocation2 + $0x50] sm:$0xff] %vm3505, %v2507
        %3565 = vst.msk [vmem:[#allocation2 + $0x58] sm:$0xff] %vm3505, %v2508
        %3566 = vst.msk [vmem:[#allocation2 + $0x60] sm:$0xff] %vm3505, %v2509
        %3567 = vst.msk [vmem:[#allocation2 + $0x68] sm:$0xff] %vm3505, %v2510
        %3568 = vst.msk [vmem:[#allocation2 + $0x70] sm:$0xff] %vm3505, %v2511
        %3569 = vst.msk [vmem:[#allocation2 + $0x78] sm:$0xff] %vm3505, %v2512
        %3570 = vst.msk [vmem:[#allocation2 + $0x80] sm:$0xff] %vm3505, %v2513
        %3571 = vst.msk [vmem:[#allocation2 + $0x88] sm:$0xff] %vm3505, %v2514
        %3572 = vst.msk [vmem:[#allocation2 + $0x90] sm:$0xff] %vm3505, %v2515
        %3573 = vst.msk [vmem:[#allocation2 + $0x98] sm:$0xff] %vm3505, %v2516
        %3574 = vst.msk [vmem:[#allocation2 + $0xa0] sm:$0xff] %vm3505, %v2517
        %3575 = vst.msk [vmem:[#allocation2 + $0xa8] sm:$0xff] %vm3505, %v2518
        %3576 = vst.msk [vmem:[#allocation2 + $0xb0] sm:$0xff] %vm3505, %v2519
        %3577 = vst.msk [vmem:[#allocation2 + $0xb8] sm:$0xff] %vm3505, %v2520
        %3578 = vst.msk [vmem:[#allocation2 + $0xc0] sm:$0xff] %vm3505, %v2521
        %3579 = vst.msk [vmem:[#allocation2 + $0xc8] sm:$0xff] %vm3505, %v2522
        %3580 = vst.msk [vmem:[#allocation2 + $0xd0] sm:$0xff] %vm3505, %v2523
        %3581 = vst.msk [vmem:[#allocation2 + $0xd8] sm:$0xff] %vm3505, %v2524
        %3582 = vst.msk [vmem:[#allocation2 + $0xe0] sm:$0xff] %vm3505, %v2525
        %3583 = vst.msk [vmem:[#allocation2 + $0xe8] sm:$0xff] %vm3505, %v2526
        %3584 = vst.msk [vmem:[#allocation2 + $0xf0] sm:$0xff] %vm3505, %v2527
        %3585 = vst.msk [vmem:[#allocation2 + $0xf8] sm:$0xff] %vm3505, %v2528
        %3586 = vst.msk [vmem:[#allocation2 + $0x100] sm:$0xff] %vm3505, %v2529
        %3587 = vst.msk [vmem:[#allocation2 + $0x108] sm:$0xff] %vm3505, %v2530
        %3588 = vst.msk [vmem:[#allocation2 + $0x110] sm:$0xff] %vm3505, %v2531
        %3589 = vst.msk [vmem:[#allocation2 + $0x118] sm:$0xff] %vm3505, %v2532
        %3590 = vst.msk [vmem:[#allocation2 + $0x120] sm:$0xff] %vm3505, %v2533
        %3591 = vst.msk [vmem:[#allocation2 + $0x128] sm:$0xff] %vm3505, %v2534
        %3592 = vst.msk [vmem:[#allocation2 + $0x130] sm:$0xff] %vm3505, %v2535
        %3593 = vst.msk [vmem:[#allocation2 + $0x138] sm:$0xff] %vm3505, %v2536
        %3594 = vst.msk [vmem:[#allocation2 + $0x140] sm:$0xff] %vm3505, %v2537
        %3595 = vst.msk [vmem:[#allocation2 + $0x148] sm:$0xff] %vm3505, %v2538
        %3596 = vst.msk [vmem:[#allocation2 + $0x150] sm:$0xff] %vm3505, %v2539
        %3597 = vst.msk [vmem:[#allocation2 + $0x158] sm:$0xff] %vm3505, %v2540
        %3598 = vst.msk [vmem:[#allocation2 + $0x160] sm:$0xff] %vm3505, %v2541
        %3599 = vst.msk [vmem:[#allocation2 + $0x168] sm:$0xff] %vm3505, %v2542
        %3600 = vst.msk [vmem:[#allocation2 + $0x170] sm:$0xff] %vm3505, %v2543
        %3601 = vst.msk [vmem:[#allocation2 + $0x178] sm:$0xff] %vm3505, %v2544
        %v3602 = vld [vmem:[%s394] sm:$0xff]
        %v3603 = vld [vmem:[%s394 + $0x8] sm:$0xff]
        %v3604 = vld [vmem:[%s394 + $0x10] sm:$0xff]
        %v3605 = vld [vmem:[%s394 + $0x18] sm:$0xff]
        %v3606 = vld [vmem:[%s394 + $0x20] sm:$0xff]
        %v3607 = vld [vmem:[%s394 + $0x28] sm:$0xff]
        %v3608 = vld [vmem:[%s394 + $0x30] sm:$0xff]
        %v3609 = vld [vmem:[%s394 + $0x38] sm:$0xff]
        %v3610 = vld [vmem:[%s394 + $0x40] sm:$0xff]
        %v3611 = vld [vmem:[%s394 + $0x48] sm:$0xff]
        %v3612 = vld [vmem:[%s394 + $0x50] sm:$0xff]
        %v3613 = vld [vmem:[%s394 + $0x58] sm:$0xff]
        %v3614 = vld [vmem:[%s394 + $0x60] sm:$0xff]
        %v3615 = vld [vmem:[%s394 + $0x68] sm:$0xff]
        %v3616 = vld [vmem:[%s394 + $0x70] sm:$0xff]
        %v3617 = vld [vmem:[%s394 + $0x78] sm:$0xff]
        %v3618 = vld [vmem:[%s394 + $0x80] sm:$0xff]
        %v3619 = vld [vmem:[%s394 + $0x88] sm:$0xff]
        %v3620 = vld [vmem:[%s394 + $0x90] sm:$0xff]
        %v3621 = vld [vmem:[%s394 + $0x98] sm:$0xff]
        %v3622 = vld [vmem:[%s394 + $0xa0] sm:$0xff]
        %v3623 = vld [vmem:[%s394 + $0xa8] sm:$0xff]
        %v3624 = vld [vmem:[%s394 + $0xb0] sm:$0xff]
        %v3625 = vld [vmem:[%s394 + $0xb8] sm:$0xff]
        %v3626 = vld [vmem:[%s394 + $0xc0] sm:$0xff]
        %v3627 = vld [vmem:[%s394 + $0xc8] sm:$0xff]
        %v3628 = vld [vmem:[%s394 + $0xd0] sm:$0xff]
        %v3629 = vld [vmem:[%s394 + $0xd8] sm:$0xff]
        %v3630 = vld [vmem:[%s394 + $0xe0] sm:$0xff]
        %v3631 = vld [vmem:[%s394 + $0xe8] sm:$0xff]
        %v3632 = vld [vmem:[%s394 + $0xf0] sm:$0xff]
        %v3633 = vld [vmem:[%s394 + $0xf8] sm:$0xff]
        %v3682 = vunpack.c.l.b16 %v521
        %v3683 = vunpack.c.h.b16 %v521
        %v3684 = vunpack.c.l.b16 %v522
        %v3685 = vunpack.c.h.b16 %v522
        %v3686 = vunpack.c.l.b16 %v523
        %v3687 = vunpack.c.h.b16 %v523
        %v3688 = vunpack.c.l.b16 %v524
        %v3689 = vunpack.c.h.b16 %v524
        %v3690 = vunpack.c.l.b16 %v525
        %v3691 = vunpack.c.h.b16 %v525
        %v3692 = vunpack.c.l.b16 %v526
        %v3693 = vunpack.c.h.b16 %v526
        %v3694 = vunpack.c.l.b16 %v527
        %v3695 = vunpack.c.h.b16 %v527
        %v3696 = vunpack.c.l.b16 %v528
        %v3697 = vunpack.c.h.b16 %v528
        %v3698 = vunpack.c.l.b16 %v529
        %v3699 = vunpack.c.h.b16 %v529
        %v3700 = vunpack.c.l.b16 %v530
        %v3701 = vunpack.c.h.b16 %v530
        %v3702 = vunpack.c.l.b16 %v531
        %v3703 = vunpack.c.h.b16 %v531
        %v3704 = vunpack.c.l.b16 %v532
        %v3705 = vunpack.c.h.b16 %v532
        %v3706 = vunpack.c.l.b16 %v533
        %v3707 = vunpack.c.h.b16 %v533
        %v3708 = vunpack.c.l.b16 %v534
        %v3709 = vunpack.c.h.b16 %v534
        %v3710 = vunpack.c.l.b16 %v535
        %v3711 = vunpack.c.h.b16 %v535
        %v3712 = vunpack.c.l.b16 %v536
        %v3713 = vunpack.c.h.b16 %v536
        %v3714 = vunpack.c.l.b16 %v537
        %v3715 = vunpack.c.h.b16 %v537
        %v3716 = vunpack.c.l.b16 %v538
        %v3717 = vunpack.c.h.b16 %v538
        %v3718 = vunpack.c.l.b16 %v539
        %v3719 = vunpack.c.h.b16 %v539
        %v3720 = vunpack.c.l.b16 %v540
        %v3721 = vunpack.c.h.b16 %v540
        %v3722 = vunpack.c.l.b16 %v541
        %v3723 = vunpack.c.h.b16 %v541
        %v3724 = vunpack.c.l.b16 %v542
        %v3725 = vunpack.c.h.b16 %v542
        %v3726 = vunpack.c.l.b16 %v543
        %v3727 = vunpack.c.h.b16 %v543
        %v3728 = vunpack.c.l.b16 %v544
        %v3729 = vunpack.c.h.b16 %v544
        %v3730 = vunpack.c.l.b16 %v545
        %v3731 = vunpack.c.h.b16 %v545
        %v3732 = vunpack.c.l.b16 %v546
        %v3733 = vunpack.c.h.b16 %v546
        %v3734 = vunpack.c.l.b16 %v547
        %v3735 = vunpack.c.h.b16 %v547
        %v3736 = vunpack.c.l.b16 %v548
        %v3737 = vunpack.c.h.b16 %v548
        %v3738 = vunpack.c.l.b16 %v549
        %v3739 = vunpack.c.h.b16 %v549
        %v3740 = vunpack.c.l.b16 %v550
        %v3741 = vunpack.c.h.b16 %v550
        %v3742 = vunpack.c.l.b16 %v551
        %v3743 = vunpack.c.h.b16 %v551
        %v3744 = vunpack.c.l.b16 %v552
        %v3745 = vunpack.c.h.b16 %v552
        %v3746 = vunpack.c.l.b16 %v553
        %v3747 = vunpack.c.h.b16 %v553
        %v3748 = vunpack.c.l.b16 %v554
        %v3749 = vunpack.c.h.b16 %v554
        %v3750 = vunpack.c.l.b16 %v555
        %v3751 = vunpack.c.h.b16 %v555
        %v3752 = vunpack.c.l.b16 %v556
        %v3753 = vunpack.c.h.b16 %v556
        %v3754 = vunpack.c.l.b16 %v557
        %v3755 = vunpack.c.h.b16 %v557
        %v3756 = vunpack.c.l.b16 %v558
        %v3757 = vunpack.c.h.b16 %v558
        %v3758 = vunpack.c.l.b16 %v559
        %v3759 = vunpack.c.h.b16 %v559
        %v3760 = vunpack.c.l.b16 %v560
        %v3761 = vunpack.c.h.b16 %v560
        %v3762 = vunpack.c.l.b16 %v561
        %v3763 = vunpack.c.h.b16 %v561
        %v3764 = vunpack.c.l.b16 %v562
        %v3765 = vunpack.c.h.b16 %v562
        %v3766 = vunpack.c.l.b16 %v563
        %v3767 = vunpack.c.h.b16 %v563
        %v3768 = vunpack.c.l.b16 %v564
        %v3769 = vunpack.c.h.b16 %v564
        %v3770 = vunpack.c.l.b16 %v565
        %v3771 = vunpack.c.h.b16 %v565
        %v3772 = vunpack.c.l.b16 %v566
        %v3773 = vunpack.c.h.b16 %v566
        %v3774 = vunpack.c.l.b16 %v567
        %v3775 = vunpack.c.h.b16 %v567
        %v3776 = vunpack.c.l.b16 %v568
        %v3777 = vunpack.c.h.b16 %v568
        %v3778 = vpack.c.b16 %v3684, %v3682
        %v3779 = vpack.c.b16 %v3685, %v3683
        %v3780 = vpack.c.b16 %v3688, %v3686
        %v3781 = vpack.c.b16 %v3689, %v3687
        %v3782 = vpack.c.b16 %v3692, %v3690
        %v3783 = vpack.c.b16 %v3693, %v3691
        %v3784 = vpack.c.b16 %v3696, %v3694
        %v3785 = vpack.c.b16 %v3697, %v3695
        %v3786 = vpack.c.b16 %v3700, %v3698
        %v3787 = vpack.c.b16 %v3701, %v3699
        %v3788 = vpack.c.b16 %v3704, %v3702
        %v3789 = vpack.c.b16 %v3705, %v3703
        %v3790 = vpack.c.b16 %v3708, %v3706
        %v3791 = vpack.c.b16 %v3709, %v3707
        %v3792 = vpack.c.b16 %v3712, %v3710
        %v3793 = vpack.c.b16 %v3713, %v3711
        %v3794 = vpack.c.b16 %v3716, %v3714
        %v3795 = vpack.c.b16 %v3717, %v3715
        %v3796 = vpack.c.b16 %v3720, %v3718
        %v3797 = vpack.c.b16 %v3721, %v3719
        %v3798 = vpack.c.b16 %v3724, %v3722
        %v3799 = vpack.c.b16 %v3725, %v3723
        %v3800 = vpack.c.b16 %v3728, %v3726
        %v3801 = vpack.c.b16 %v3729, %v3727
        %v3802 = vpack.c.b16 %v3732, %v3730
        %v3803 = vpack.c.b16 %v3733, %v3731
        %v3804 = vpack.c.b16 %v3736, %v3734
        %v3805 = vpack.c.b16 %v3737, %v3735
        %v3806 = vpack.c.b16 %v3740, %v3738
        %v3807 = vpack.c.b16 %v3741, %v3739
        %v3808 = vpack.c.b16 %v3744, %v3742
        %v3809 = vpack.c.b16 %v3745, %v3743
        %v3810 = vpack.c.b16 %v3748, %v3746
        %v3811 = vpack.c.b16 %v3749, %v3747
        %v3812 = vpack.c.b16 %v3752, %v3750
        %v3813 = vpack.c.b16 %v3753, %v3751
        %v3814 = vpack.c.b16 %v3756, %v3754
        %v3815 = vpack.c.b16 %v3757, %v3755
        %v3816 = vpack.c.b16 %v3760, %v3758
        %v3817 = vpack.c.b16 %v3761, %v3759
        %v3818 = vpack.c.b16 %v3764, %v3762
        %v3819 = vpack.c.b16 %v3765, %v3763
        %v3820 = vpack.c.b16 %v3768, %v3766
        %v3821 = vpack.c.b16 %v3769, %v3767
        %v3822 = vpack.c.b16 %v3772, %v3770
        %v3823 = vpack.c.b16 %v3773, %v3771
        %v3824 = vpack.c.b16 %v3776, %v3774
        %v3825 = vpack.c.b16 %v3777, %v3775
        %v3906 = vunpack.c.l.b16 %v3602
        %v3907 = vunpack.c.h.b16 %v3602
        %v3908 = vunpack.c.l.b16 %v3603
        %v3909 = vunpack.c.h.b16 %v3603
        %v3910 = vunpack.c.l.b16 %v3604
        %v3911 = vunpack.c.h.b16 %v3604
        %v3912 = vunpack.c.l.b16 %v3605
        %v3913 = vunpack.c.h.b16 %v3605
        %v3914 = vunpack.c.l.b16 %v3606
        %v3915 = vunpack.c.h.b16 %v3606
        %v3916 = vunpack.c.l.b16 %v3607
        %v3917 = vunpack.c.h.b16 %v3607
        %v3918 = vunpack.c.l.b16 %v3608
        %v3919 = vunpack.c.h.b16 %v3608
        %v3920 = vunpack.c.l.b16 %v3609
        %v3921 = vunpack.c.h.b16 %v3609
        %v3922 = vunpack.c.l.b16 %v3610
        %v3923 = vunpack.c.h.b16 %v3610
        %v3924 = vunpack.c.l.b16 %v3611
        %v3925 = vunpack.c.h.b16 %v3611
        %v3926 = vunpack.c.l.b16 %v3612
        %v3927 = vunpack.c.h.b16 %v3612
        %v3928 = vunpack.c.l.b16 %v3613
        %v3929 = vunpack.c.h.b16 %v3613
        %v3930 = vunpack.c.l.b16 %v3614
        %v3931 = vunpack.c.h.b16 %v3614
        %v3932 = vunpack.c.l.b16 %v3615
        %v3933 = vunpack.c.h.b16 %v3615
        %v3934 = vunpack.c.l.b16 %v3616
        %v3935 = vunpack.c.h.b16 %v3616
        %v3936 = vunpack.c.l.b16 %v3617
        %v3937 = vunpack.c.h.b16 %v3617
        %v3938 = vunpack.c.l.b16 %v3618
        %v3939 = vunpack.c.h.b16 %v3618
        %v3940 = vunpack.c.l.b16 %v3619
        %v3941 = vunpack.c.h.b16 %v3619
        %v3942 = vunpack.c.l.b16 %v3620
        %v3943 = vunpack.c.h.b16 %v3620
        %v3944 = vunpack.c.l.b16 %v3621
        %v3945 = vunpack.c.h.b16 %v3621
        %v3946 = vunpack.c.l.b16 %v3622
        %v3947 = vunpack.c.h.b16 %v3622
        %v3948 = vunpack.c.l.b16 %v3623
        %v3949 = vunpack.c.h.b16 %v3623
        %v3950 = vunpack.c.l.b16 %v3624
        %v3951 = vunpack.c.h.b16 %v3624
        %v3952 = vunpack.c.l.b16 %v3625
        %v3953 = vunpack.c.h.b16 %v3625
        %v3954 = vunpack.c.l.b16 %v3626
        %v3955 = vunpack.c.h.b16 %v3626
        %v3956 = vunpack.c.l.b16 %v3627
        %v3957 = vunpack.c.h.b16 %v3627
        %v3958 = vunpack.c.l.b16 %v3628
        %v3959 = vunpack.c.h.b16 %v3628
        %v3960 = vunpack.c.l.b16 %v3629
        %v3961 = vunpack.c.h.b16 %v3629
        %v3962 = vunpack.c.l.b16 %v3630
        %v3963 = vunpack.c.h.b16 %v3630
        %v3964 = vunpack.c.l.b16 %v3631
        %v3965 = vunpack.c.h.b16 %v3631
        %v3966 = vunpack.c.l.b16 %v3632
        %v3967 = vunpack.c.h.b16 %v3632
        %v3968 = vunpack.c.l.b16 %v3633
        %v3969 = vunpack.c.h.b16 %v3633
        %v3970 = vpack.c.b16 %v3908, %v3906
        %v3971 = vpack.c.b16 %v3909, %v3907
        %v3972 = vpack.c.b16 %v3912, %v3910
        %v3973 = vpack.c.b16 %v3913, %v3911
        %v3974 = vpack.c.b16 %v3916, %v3914
        %v3975 = vpack.c.b16 %v3917, %v3915
        %v3976 = vpack.c.b16 %v3920, %v3918
        %v3977 = vpack.c.b16 %v3921, %v3919
        %v3978 = vpack.c.b16 %v3924, %v3922
        %v3979 = vpack.c.b16 %v3925, %v3923
        %v3980 = vpack.c.b16 %v3928, %v3926
        %v3981 = vpack.c.b16 %v3929, %v3927
        %v3982 = vpack.c.b16 %v3932, %v3930
        %v3983 = vpack.c.b16 %v3933, %v3931
        %v3984 = vpack.c.b16 %v3936, %v3934
        %v3985 = vpack.c.b16 %v3937, %v3935
        %v3986 = vpack.c.b16 %v3940, %v3938
        %v3987 = vpack.c.b16 %v3941, %v3939
        %v3988 = vpack.c.b16 %v3944, %v3942
        %v3989 = vpack.c.b16 %v3945, %v3943
        %v3990 = vpack.c.b16 %v3948, %v3946
        %v3991 = vpack.c.b16 %v3949, %v3947
        %v3992 = vpack.c.b16 %v3952, %v3950
        %v3993 = vpack.c.b16 %v3953, %v3951
        %v3994 = vpack.c.b16 %v3956, %v3954
        %v3995 = vpack.c.b16 %v3957, %v3955
        %v3996 = vpack.c.b16 %v3960, %v3958
        %v3997 = vpack.c.b16 %v3961, %v3959
        %v3998 = vpack.c.b16 %v3964, %v3962
        %v3999 = vpack.c.b16 %v3965, %v3963
        %v4000 = vpack.c.b16 %v3968, %v3966
        %v4001 = vpack.c.b16 %v3969, %v3967
        %4034 = vmatpush.bf16.xpose.msra.mxu0 %v3984
        %4035 = vmatpush.bf16.xpose.msra.mxu0 %v3982
        %4036 = vmatpush.bf16.xpose.msra.mxu0 %v3980
        %4037 = vmatpush.bf16.xpose.msra.mxu0 %v3978
        %4038 = vmatpush.bf16.xpose.msra.mxu0 %v3976
        %4039 = vmatpush.bf16.xpose.msra.mxu0 %v3974
        %4040 = vmatpush.bf16.xpose.msra.mxu0 %v3972
        %4041 = vmatpush.bf16.xpose.msra.mxu0 %v3970
        %4042 = vmatmul.bf16.gmra.mxu0 %v3778
        %v4043 = vpop.f32.mrf.mxu0
        %v4044 = vadd.f32 0.0, %v4043
        %v4045 = vpop.f32.mrf.mxu0
        %v4046 = vadd.f32 0.0, %v4045
        %4047 = vmatmul.bf16.gmra.mxu0 %v3780
        %v4048 = vpop.f32.mrf.mxu0
        %v4049 = vadd.f32 0.0, %v4048
        %v4050 = vpop.f32.mrf.mxu0
        %v4051 = vadd.f32 0.0, %v4050
        %4052 = vmatmul.bf16.gmra.mxu0 %v3782
        %v4053 = vpop.f32.mrf.mxu0
        %v4054 = vadd.f32 0.0, %v4053
        %v4055 = vpop.f32.mrf.mxu0
        %v4056 = vadd.f32 0.0, %v4055
        %4057 = vmatmul.bf16.gmra.mxu0 %v3784
        %v4058 = vpop.f32.mrf.mxu0
        %v4059 = vadd.f32 0.0, %v4058
        %v4060 = vpop.f32.mrf.mxu0
        %v4061 = vadd.f32 0.0, %v4060
        %4062 = vmatmul.bf16.gmra.mxu0 %v3786
        %v4063 = vpop.f32.mrf.mxu0
        %v4064 = vadd.f32 0.0, %v4063
        %v4065 = vpop.f32.mrf.mxu0
        %v4066 = vadd.f32 0.0, %v4065
        %4067 = vmatmul.bf16.gmra.mxu0 %v3788
        %v4068 = vpop.f32.mrf.mxu0
        %v4069 = vadd.f32 0.0, %v4068
        %v4070 = vpop.f32.mrf.mxu0
        %v4071 = vadd.f32 0.0, %v4070
        %4072 = vmatmul.bf16.gmra.mxu0 %v3790
        %v4073 = vpop.f32.mrf.mxu0
        %v4074 = vadd.f32 0.0, %v4073
        %v4075 = vpop.f32.mrf.mxu0
        %v4076 = vadd.f32 0.0, %v4075
        %4077 = vmatmul.bf16.gmra.mxu0 %v3792
        %v4078 = vpop.f32.mrf.mxu0
        %v4079 = vadd.f32 0.0, %v4078
        %v4080 = vpop.f32.mrf.mxu0
        %v4081 = vadd.f32 0.0, %v4080
        %4082 = vmatmul.bf16.gmra.mxu0 %v3794
        %v4083 = vpop.f32.mrf.mxu0
        %v4084 = vadd.f32 0.0, %v4083
        %v4085 = vpop.f32.mrf.mxu0
        %v4086 = vadd.f32 0.0, %v4085
        %4087 = vmatmul.bf16.gmra.mxu0 %v3796
        %v4088 = vpop.f32.mrf.mxu0
        %v4089 = vadd.f32 0.0, %v4088
        %v4090 = vpop.f32.mrf.mxu0
        %v4091 = vadd.f32 0.0, %v4090
        %4092 = vmatmul.bf16.gmra.mxu0 %v3798
        %v4093 = vpop.f32.mrf.mxu0
        %v4094 = vadd.f32 0.0, %v4093
        %v4095 = vpop.f32.mrf.mxu0
        %v4096 = vadd.f32 0.0, %v4095
        %4097 = vmatmul.bf16.gmra.mxu0 %v3800
        %v4098 = vpop.f32.mrf.mxu0
        %v4099 = vadd.f32 0.0, %v4098
        %v4100 = vpop.f32.mrf.mxu0
        %v4101 = vadd.f32 0.0, %v4100
        %4102 = vmatmul.bf16.gmra.mxu0 %v3802
        %v4103 = vpop.f32.mrf.mxu0
        %v4104 = vadd.f32 0.0, %v4103
        %v4105 = vpop.f32.mrf.mxu0
        %v4106 = vadd.f32 0.0, %v4105
        %4107 = vmatmul.bf16.gmra.mxu0 %v3804
        %v4108 = vpop.f32.mrf.mxu0
        %v4109 = vadd.f32 0.0, %v4108
        %v4110 = vpop.f32.mrf.mxu0
        %v4111 = vadd.f32 0.0, %v4110
        %4112 = vmatmul.bf16.gmra.mxu0 %v3806
        %v4113 = vpop.f32.mrf.mxu0
        %v4114 = vadd.f32 0.0, %v4113
        %v4115 = vpop.f32.mrf.mxu0
        %v4116 = vadd.f32 0.0, %v4115
        %4117 = vmatmul.bf16.gmra.mxu0 %v3808
        %v4118 = vpop.f32.mrf.mxu0
        %v4119 = vadd.f32 0.0, %v4118
        %v4120 = vpop.f32.mrf.mxu0
        %v4121 = vadd.f32 0.0, %v4120
        %4122 = vmatmul.bf16.gmra.mxu0 %v3810
        %v4123 = vpop.f32.mrf.mxu0
        %v4124 = vadd.f32 0.0, %v4123
        %v4125 = vpop.f32.mrf.mxu0
        %v4126 = vadd.f32 0.0, %v4125
        %4127 = vmatmul.bf16.gmra.mxu0 %v3812
        %v4128 = vpop.f32.mrf.mxu0
        %v4129 = vadd.f32 0.0, %v4128
        %v4130 = vpop.f32.mrf.mxu0
        %v4131 = vadd.f32 0.0, %v4130
        %4132 = vmatmul.bf16.gmra.mxu0 %v3814
        %v4133 = vpop.f32.mrf.mxu0
        %v4134 = vadd.f32 0.0, %v4133
        %v4135 = vpop.f32.mrf.mxu0
        %v4136 = vadd.f32 0.0, %v4135
        %4137 = vmatmul.bf16.gmra.mxu0 %v3816
        %v4138 = vpop.f32.mrf.mxu0
        %v4139 = vadd.f32 0.0, %v4138
        %v4140 = vpop.f32.mrf.mxu0
        %v4141 = vadd.f32 0.0, %v4140
        %4142 = vmatmul.bf16.gmra.mxu0 %v3818
        %v4143 = vpop.f32.mrf.mxu0
        %v4144 = vadd.f32 0.0, %v4143
        %v4145 = vpop.f32.mrf.mxu0
        %v4146 = vadd.f32 0.0, %v4145
        %4147 = vmatmul.bf16.gmra.mxu0 %v3820
        %v4148 = vpop.f32.mrf.mxu0
        %v4149 = vadd.f32 0.0, %v4148
        %v4150 = vpop.f32.mrf.mxu0
        %v4151 = vadd.f32 0.0, %v4150
        %4152 = vmatmul.bf16.gmra.mxu0 %v3822
        %v4153 = vpop.f32.mrf.mxu0
        %v4154 = vadd.f32 0.0, %v4153
        %v4155 = vpop.f32.mrf.mxu0
        %v4156 = vadd.f32 0.0, %v4155
        %4157 = vmatmul.bf16.gmra.mxu0 %v3824
        %v4158 = vpop.f32.mrf.mxu0
        %v4159 = vadd.f32 0.0, %v4158
        %v4160 = vpop.f32.mrf.mxu0
        %v4161 = vadd.f32 0.0, %v4160
        %4162 = vdwg.mxu0
        %4163 = vmatpush.bf16.xpose.msra.mxu0 %v3985
        %4164 = vmatpush.bf16.xpose.msra.mxu0 %v3983
        %4165 = vmatpush.bf16.xpose.msra.mxu0 %v3981
        %4166 = vmatpush.bf16.xpose.msra.mxu0 %v3979
        %4167 = vmatpush.bf16.xpose.msra.mxu0 %v3977
        %4168 = vmatpush.bf16.xpose.msra.mxu0 %v3975
        %4169 = vmatpush.bf16.xpose.msra.mxu0 %v3973
        %4170 = vmatpush.bf16.xpose.msra.mxu0 %v3971
        %4171 = vmatmul.bf16.gmra.mxu0 %v3779
        %v4172 = vpop.f32.mrf.mxu0
        %v4173 = vadd.f32 %v4044, %v4172
        %v4174 = vpop.f32.mrf.mxu0
        %v4175 = vadd.f32 %v4046, %v4174
        %4176 = vmatmul.bf16.gmra.mxu0 %v3781
        %v4177 = vpop.f32.mrf.mxu0
        %v4178 = vadd.f32 %v4049, %v4177
        %v4179 = vpop.f32.mrf.mxu0
        %v4180 = vadd.f32 %v4051, %v4179
        %4181 = vmatmul.bf16.gmra.mxu0 %v3783
        %v4182 = vpop.f32.mrf.mxu0
        %v4183 = vadd.f32 %v4054, %v4182
        %v4184 = vpop.f32.mrf.mxu0
        %v4185 = vadd.f32 %v4056, %v4184
        %4186 = vmatmul.bf16.gmra.mxu0 %v3785
        %v4187 = vpop.f32.mrf.mxu0
        %v4188 = vadd.f32 %v4059, %v4187
        %v4189 = vpop.f32.mrf.mxu0
        %v4190 = vadd.f32 %v4061, %v4189
        %4191 = vmatmul.bf16.gmra.mxu0 %v3787
        %v4192 = vpop.f32.mrf.mxu0
        %v4193 = vadd.f32 %v4064, %v4192
        %v4194 = vpop.f32.mrf.mxu0
        %v4195 = vadd.f32 %v4066, %v4194
        %4196 = vmatmul.bf16.gmra.mxu0 %v3789
        %v4197 = vpop.f32.mrf.mxu0
        %v4198 = vadd.f32 %v4069, %v4197
        %v4199 = vpop.f32.mrf.mxu0
        %v4200 = vadd.f32 %v4071, %v4199
        %4201 = vmatmul.bf16.gmra.mxu0 %v3791
        %v4202 = vpop.f32.mrf.mxu0
        %v4203 = vadd.f32 %v4074, %v4202
        %v4204 = vpop.f32.mrf.mxu0
        %v4205 = vadd.f32 %v4076, %v4204
        %4206 = vmatmul.bf16.gmra.mxu0 %v3793
        %v4207 = vpop.f32.mrf.mxu0
        %v4208 = vadd.f32 %v4079, %v4207
        %v4209 = vpop.f32.mrf.mxu0
        %v4210 = vadd.f32 %v4081, %v4209
        %4211 = vmatmul.bf16.gmra.mxu0 %v3795
        %v4212 = vpop.f32.mrf.mxu0
        %v4213 = vadd.f32 %v4084, %v4212
        %v4214 = vpop.f32.mrf.mxu0
        %v4215 = vadd.f32 %v4086, %v4214
        %4216 = vmatmul.bf16.gmra.mxu0 %v3797
        %v4217 = vpop.f32.mrf.mxu0
        %v4218 = vadd.f32 %v4089, %v4217
        %v4219 = vpop.f32.mrf.mxu0
        %v4220 = vadd.f32 %v4091, %v4219
        %4221 = vmatmul.bf16.gmra.mxu0 %v3799
        %v4222 = vpop.f32.mrf.mxu0
        %v4223 = vadd.f32 %v4094, %v4222
        %v4224 = vpop.f32.mrf.mxu0
        %v4225 = vadd.f32 %v4096, %v4224
        %4226 = vmatmul.bf16.gmra.mxu0 %v3801
        %v4227 = vpop.f32.mrf.mxu0
        %v4228 = vadd.f32 %v4099, %v4227
        %v4229 = vpop.f32.mrf.mxu0
        %v4230 = vadd.f32 %v4101, %v4229
        %4231 = vmatmul.bf16.gmra.mxu0 %v3803
        %v4232 = vpop.f32.mrf.mxu0
        %v4233 = vadd.f32 %v4104, %v4232
        %v4234 = vpop.f32.mrf.mxu0
        %v4235 = vadd.f32 %v4106, %v4234
        %4236 = vmatmul.bf16.gmra.mxu0 %v3805
        %v4237 = vpop.f32.mrf.mxu0
        %v4238 = vadd.f32 %v4109, %v4237
        %v4239 = vpop.f32.mrf.mxu0
        %v4240 = vadd.f32 %v4111, %v4239
        %4241 = vmatmul.bf16.gmra.mxu0 %v3807
        %v4242 = vpop.f32.mrf.mxu0
        %v4243 = vadd.f32 %v4114, %v4242
        %v4244 = vpop.f32.mrf.mxu0
        %v4245 = vadd.f32 %v4116, %v4244
        %4246 = vmatmul.bf16.gmra.mxu0 %v3809
        %v4247 = vpop.f32.mrf.mxu0
        %v4248 = vadd.f32 %v4119, %v4247
        %v4249 = vpop.f32.mrf.mxu0
        %v4250 = vadd.f32 %v4121, %v4249
        %4251 = vmatmul.bf16.gmra.mxu0 %v3811
        %v4252 = vpop.f32.mrf.mxu0
        %v4253 = vadd.f32 %v4124, %v4252
        %v4254 = vpop.f32.mrf.mxu0
        %v4255 = vadd.f32 %v4126, %v4254
        %4256 = vmatmul.bf16.gmra.mxu0 %v3813
        %v4257 = vpop.f32.mrf.mxu0
        %v4258 = vadd.f32 %v4129, %v4257
        %v4259 = vpop.f32.mrf.mxu0
        %v4260 = vadd.f32 %v4131, %v4259
        %4261 = vmatmul.bf16.gmra.mxu0 %v3815
        %v4262 = vpop.f32.mrf.mxu0
        %v4263 = vadd.f32 %v4134, %v4262
        %v4264 = vpop.f32.mrf.mxu0
        %v4265 = vadd.f32 %v4136, %v4264
        %4266 = vmatmul.bf16.gmra.mxu0 %v3817
        %v4267 = vpop.f32.mrf.mxu0
        %v4268 = vadd.f32 %v4139, %v4267
        %v4269 = vpop.f32.mrf.mxu0
        %v4270 = vadd.f32 %v4141, %v4269
        %4271 = vmatmul.bf16.gmra.mxu0 %v3819
        %v4272 = vpop.f32.mrf.mxu0
        %v4273 = vadd.f32 %v4144, %v4272
        %v4274 = vpop.f32.mrf.mxu0
        %v4275 = vadd.f32 %v4146, %v4274
        %4276 = vmatmul.bf16.gmra.mxu0 %v3821
        %v4277 = vpop.f32.mrf.mxu0
        %v4278 = vadd.f32 %v4149, %v4277
        %v4279 = vpop.f32.mrf.mxu0
        %v4280 = vadd.f32 %v4151, %v4279
        %4281 = vmatmul.bf16.gmra.mxu0 %v3823
        %v4282 = vpop.f32.mrf.mxu0
        %v4283 = vadd.f32 %v4154, %v4282
        %v4284 = vpop.f32.mrf.mxu0
        %v4285 = vadd.f32 %v4156, %v4284
        %4286 = vmatmul.bf16.gmra.mxu0 %v3825
        %v4287 = vpop.f32.mrf.mxu0
        %v4288 = vadd.f32 %v4159, %v4287
        %v4289 = vpop.f32.mrf.mxu0
        %v4290 = vadd.f32 %v4161, %v4289
        %4291 = vdwg.mxu0
        %4292 = vmatpush.bf16.xpose.msra.mxu0 %v4000
        %4293 = vmatpush.bf16.xpose.msra.mxu0 %v3998
        %4294 = vmatpush.bf16.xpose.msra.mxu0 %v3996
        %4295 = vmatpush.bf16.xpose.msra.mxu0 %v3994
        %4296 = vmatpush.bf16.xpose.msra.mxu0 %v3992
        %4297 = vmatpush.bf16.xpose.msra.mxu0 %v3990
        %4298 = vmatpush.bf16.xpose.msra.mxu0 %v3988
        %4299 = vmatpush.bf16.xpose.msra.mxu0 %v3986
        %4300 = vmatmul.bf16.gmra.mxu0 %v3778
        %v4301 = vpop.f32.mrf.mxu0
        %v4302 = vadd.f32 0.0, %v4301
        %v4303 = vpop.f32.mrf.mxu0
        %v4304 = vadd.f32 0.0, %v4303
        %4305 = vmatmul.bf16.gmra.mxu0 %v3780
        %v4306 = vpop.f32.mrf.mxu0
        %v4307 = vadd.f32 0.0, %v4306
        %v4308 = vpop.f32.mrf.mxu0
        %v4309 = vadd.f32 0.0, %v4308
        %4310 = vmatmul.bf16.gmra.mxu0 %v3782
        %v4311 = vpop.f32.mrf.mxu0
        %v4312 = vadd.f32 0.0, %v4311
        %v4313 = vpop.f32.mrf.mxu0
        %v4314 = vadd.f32 0.0, %v4313
        %4315 = vmatmul.bf16.gmra.mxu0 %v3784
        %v4316 = vpop.f32.mrf.mxu0
        %v4317 = vadd.f32 0.0, %v4316
        %v4318 = vpop.f32.mrf.mxu0
        %v4319 = vadd.f32 0.0, %v4318
        %4320 = vmatmul.bf16.gmra.mxu0 %v3786
        %v4321 = vpop.f32.mrf.mxu0
        %v4322 = vadd.f32 0.0, %v4321
        %v4323 = vpop.f32.mrf.mxu0
        %v4324 = vadd.f32 0.0, %v4323
        %4325 = vmatmul.bf16.gmra.mxu0 %v3788
        %v4326 = vpop.f32.mrf.mxu0
        %v4327 = vadd.f32 0.0, %v4326
        %v4328 = vpop.f32.mrf.mxu0
        %v4329 = vadd.f32 0.0, %v4328
        %4330 = vmatmul.bf16.gmra.mxu0 %v3790
        %v4331 = vpop.f32.mrf.mxu0
        %v4332 = vadd.f32 0.0, %v4331
        %v4333 = vpop.f32.mrf.mxu0
        %v4334 = vadd.f32 0.0, %v4333
        %4335 = vmatmul.bf16.gmra.mxu0 %v3792
        %v4336 = vpop.f32.mrf.mxu0
        %v4337 = vadd.f32 0.0, %v4336
        %v4338 = vpop.f32.mrf.mxu0
        %v4339 = vadd.f32 0.0, %v4338
        %4340 = vmatmul.bf16.gmra.mxu0 %v3794
        %v4341 = vpop.f32.mrf.mxu0
        %v4342 = vadd.f32 0.0, %v4341
        %v4343 = vpop.f32.mrf.mxu0
        %v4344 = vadd.f32 0.0, %v4343
        %4345 = vmatmul.bf16.gmra.mxu0 %v3796
        %v4346 = vpop.f32.mrf.mxu0
        %v4347 = vadd.f32 0.0, %v4346
        %v4348 = vpop.f32.mrf.mxu0
        %v4349 = vadd.f32 0.0, %v4348
        %4350 = vmatmul.bf16.gmra.mxu0 %v3798
        %v4351 = vpop.f32.mrf.mxu0
        %v4352 = vadd.f32 0.0, %v4351
        %v4353 = vpop.f32.mrf.mxu0
        %v4354 = vadd.f32 0.0, %v4353
        %4355 = vmatmul.bf16.gmra.mxu0 %v3800
        %v4356 = vpop.f32.mrf.mxu0
        %v4357 = vadd.f32 0.0, %v4356
        %v4358 = vpop.f32.mrf.mxu0
        %v4359 = vadd.f32 0.0, %v4358
        %4360 = vmatmul.bf16.gmra.mxu0 %v3802
        %v4361 = vpop.f32.mrf.mxu0
        %v4362 = vadd.f32 0.0, %v4361
        %v4363 = vpop.f32.mrf.mxu0
        %v4364 = vadd.f32 0.0, %v4363
        %4365 = vmatmul.bf16.gmra.mxu0 %v3804
        %v4366 = vpop.f32.mrf.mxu0
        %v4367 = vadd.f32 0.0, %v4366
        %v4368 = vpop.f32.mrf.mxu0
        %v4369 = vadd.f32 0.0, %v4368
        %4370 = vmatmul.bf16.gmra.mxu0 %v3806
        %v4371 = vpop.f32.mrf.mxu0
        %v4372 = vadd.f32 0.0, %v4371
        %v4373 = vpop.f32.mrf.mxu0
        %v4374 = vadd.f32 0.0, %v4373
        %4375 = vmatmul.bf16.gmra.mxu0 %v3808
        %v4376 = vpop.f32.mrf.mxu0
        %v4377 = vadd.f32 0.0, %v4376
        %v4378 = vpop.f32.mrf.mxu0
        %v4379 = vadd.f32 0.0, %v4378
        %4380 = vmatmul.bf16.gmra.mxu0 %v3810
        %v4381 = vpop.f32.mrf.mxu0
        %v4382 = vadd.f32 0.0, %v4381
        %v4383 = vpop.f32.mrf.mxu0
        %v4384 = vadd.f32 0.0, %v4383
        %4385 = vmatmul.bf16.gmra.mxu0 %v3812
        %v4386 = vpop.f32.mrf.mxu0
        %v4387 = vadd.f32 0.0, %v4386
        %v4388 = vpop.f32.mrf.mxu0
        %v4389 = vadd.f32 0.0, %v4388
        %4390 = vmatmul.bf16.gmra.mxu0 %v3814
        %v4391 = vpop.f32.mrf.mxu0
        %v4392 = vadd.f32 0.0, %v4391
        %v4393 = vpop.f32.mrf.mxu0
        %v4394 = vadd.f32 0.0, %v4393
        %4395 = vmatmul.bf16.gmra.mxu0 %v3816
        %v4396 = vpop.f32.mrf.mxu0
        %v4397 = vadd.f32 0.0, %v4396
        %v4398 = vpop.f32.mrf.mxu0
        %v4399 = vadd.f32 0.0, %v4398
        %4400 = vmatmul.bf16.gmra.mxu0 %v3818
        %v4401 = vpop.f32.mrf.mxu0
        %v4402 = vadd.f32 0.0, %v4401
        %v4403 = vpop.f32.mrf.mxu0
        %v4404 = vadd.f32 0.0, %v4403
        %4405 = vmatmul.bf16.gmra.mxu0 %v3820
        %v4406 = vpop.f32.mrf.mxu0
        %v4407 = vadd.f32 0.0, %v4406
        %v4408 = vpop.f32.mrf.mxu0
        %v4409 = vadd.f32 0.0, %v4408
        %4410 = vmatmul.bf16.gmra.mxu0 %v3822
        %v4411 = vpop.f32.mrf.mxu0
        %v4412 = vadd.f32 0.0, %v4411
        %v4413 = vpop.f32.mrf.mxu0
        %v4414 = vadd.f32 0.0, %v4413
        %4415 = vmatmul.bf16.gmra.mxu0 %v3824
        %v4416 = vpop.f32.mrf.mxu0
        %v4417 = vadd.f32 0.0, %v4416
        %v4418 = vpop.f32.mrf.mxu0
        %v4419 = vadd.f32 0.0, %v4418
        %4420 = vdwg.mxu0
        %4421 = vmatpush.bf16.xpose.msra.mxu0 %v4001
        %4422 = vmatpush.bf16.xpose.msra.mxu0 %v3999
        %4423 = vmatpush.bf16.xpose.msra.mxu0 %v3997
        %4424 = vmatpush.bf16.xpose.msra.mxu0 %v3995
        %4425 = vmatpush.bf16.xpose.msra.mxu0 %v3993
        %4426 = vmatpush.bf16.xpose.msra.mxu0 %v3991
        %4427 = vmatpush.bf16.xpose.msra.mxu0 %v3989
        %4428 = vmatpush.bf16.xpose.msra.mxu0 %v3987
        %4429 = vmatmul.bf16.gmra.mxu0 %v3779
        %v4430 = vpop.f32.mrf.mxu0
        %v4431 = vadd.f32 %v4302, %v4430
        %v4432 = vpop.f32.mrf.mxu0
        %v4433 = vadd.f32 %v4304, %v4432
        %4434 = vmatmul.bf16.gmra.mxu0 %v3781
        %v4435 = vpop.f32.mrf.mxu0
        %v4436 = vadd.f32 %v4307, %v4435
        %v4437 = vpop.f32.mrf.mxu0
        %v4438 = vadd.f32 %v4309, %v4437
        %4439 = vmatmul.bf16.gmra.mxu0 %v3783
        %v4440 = vpop.f32.mrf.mxu0
        %v4441 = vadd.f32 %v4312, %v4440
        %v4442 = vpop.f32.mrf.mxu0
        %v4443 = vadd.f32 %v4314, %v4442
        %4444 = vmatmul.bf16.gmra.mxu0 %v3785
        %v4445 = vpop.f32.mrf.mxu0
        %v4446 = vadd.f32 %v4317, %v4445
        %v4447 = vpop.f32.mrf.mxu0
        %v4448 = vadd.f32 %v4319, %v4447
        %4449 = vmatmul.bf16.gmra.mxu0 %v3787
        %v4450 = vpop.f32.mrf.mxu0
        %v4451 = vadd.f32 %v4322, %v4450
        %v4452 = vpop.f32.mrf.mxu0
        %v4453 = vadd.f32 %v4324, %v4452
        %4454 = vmatmul.bf16.gmra.mxu0 %v3789
        %v4455 = vpop.f32.mrf.mxu0
        %v4456 = vadd.f32 %v4327, %v4455
        %v4457 = vpop.f32.mrf.mxu0
        %v4458 = vadd.f32 %v4329, %v4457
        %4459 = vmatmul.bf16.gmra.mxu0 %v3791
        %v4460 = vpop.f32.mrf.mxu0
        %v4461 = vadd.f32 %v4332, %v4460
        %v4462 = vpop.f32.mrf.mxu0
        %v4463 = vadd.f32 %v4334, %v4462
        %4464 = vmatmul.bf16.gmra.mxu0 %v3793
        %v4465 = vpop.f32.mrf.mxu0
        %v4466 = vadd.f32 %v4337, %v4465
        %v4467 = vpop.f32.mrf.mxu0
        %v4468 = vadd.f32 %v4339, %v4467
        %4469 = vmatmul.bf16.gmra.mxu0 %v3795
        %v4470 = vpop.f32.mrf.mxu0
        %v4471 = vadd.f32 %v4342, %v4470
        %v4472 = vpop.f32.mrf.mxu0
        %v4473 = vadd.f32 %v4344, %v4472
        %4474 = vmatmul.bf16.gmra.mxu0 %v3797
        %v4475 = vpop.f32.mrf.mxu0
        %v4476 = vadd.f32 %v4347, %v4475
        %v4477 = vpop.f32.mrf.mxu0
        %v4478 = vadd.f32 %v4349, %v4477
        %4479 = vmatmul.bf16.gmra.mxu0 %v3799
        %v4480 = vpop.f32.mrf.mxu0
        %v4481 = vadd.f32 %v4352, %v4480
        %v4482 = vpop.f32.mrf.mxu0
        %v4483 = vadd.f32 %v4354, %v4482
        %4484 = vmatmul.bf16.gmra.mxu0 %v3801
        %v4485 = vpop.f32.mrf.mxu0
        %v4486 = vadd.f32 %v4357, %v4485
        %v4487 = vpop.f32.mrf.mxu0
        %v4488 = vadd.f32 %v4359, %v4487
        %4489 = vmatmul.bf16.gmra.mxu0 %v3803
        %v4490 = vpop.f32.mrf.mxu0
        %v4491 = vadd.f32 %v4362, %v4490
        %v4492 = vpop.f32.mrf.mxu0
        %v4493 = vadd.f32 %v4364, %v4492
        %4494 = vmatmul.bf16.gmra.mxu0 %v3805
        %v4495 = vpop.f32.mrf.mxu0
        %v4496 = vadd.f32 %v4367, %v4495
        %v4497 = vpop.f32.mrf.mxu0
        %v4498 = vadd.f32 %v4369, %v4497
        %4499 = vmatmul.bf16.gmra.mxu0 %v3807
        %v4500 = vpop.f32.mrf.mxu0
        %v4501 = vadd.f32 %v4372, %v4500
        %v4502 = vpop.f32.mrf.mxu0
        %v4503 = vadd.f32 %v4374, %v4502
        %4504 = vmatmul.bf16.gmra.mxu0 %v3809
        %v4505 = vpop.f32.mrf.mxu0
        %v4506 = vadd.f32 %v4377, %v4505
        %v4507 = vpop.f32.mrf.mxu0
        %v4508 = vadd.f32 %v4379, %v4507
        %4509 = vmatmul.bf16.gmra.mxu0 %v3811
        %v4510 = vpop.f32.mrf.mxu0
        %v4511 = vadd.f32 %v4382, %v4510
        %v4512 = vpop.f32.mrf.mxu0
        %v4513 = vadd.f32 %v4384, %v4512
        %4514 = vmatmul.bf16.gmra.mxu0 %v3813
        %v4515 = vpop.f32.mrf.mxu0
        %v4516 = vadd.f32 %v4387, %v4515
        %v4517 = vpop.f32.mrf.mxu0
        %v4518 = vadd.f32 %v4389, %v4517
        %4519 = vmatmul.bf16.gmra.mxu0 %v3815
        %v4520 = vpop.f32.mrf.mxu0
        %v4521 = vadd.f32 %v4392, %v4520
        %v4522 = vpop.f32.mrf.mxu0
        %v4523 = vadd.f32 %v4394, %v4522
        %4524 = vmatmul.bf16.gmra.mxu0 %v3817
        %v4525 = vpop.f32.mrf.mxu0
        %v4526 = vadd.f32 %v4397, %v4525
        %v4527 = vpop.f32.mrf.mxu0
        %v4528 = vadd.f32 %v4399, %v4527
        %4529 = vmatmul.bf16.gmra.mxu0 %v3819
        %v4530 = vpop.f32.mrf.mxu0
        %v4531 = vadd.f32 %v4402, %v4530
        %v4532 = vpop.f32.mrf.mxu0
        %v4533 = vadd.f32 %v4404, %v4532
        %4534 = vmatmul.bf16.gmra.mxu0 %v3821
        %v4535 = vpop.f32.mrf.mxu0
        %v4536 = vadd.f32 %v4407, %v4535
        %v4537 = vpop.f32.mrf.mxu0
        %v4538 = vadd.f32 %v4409, %v4537
        %4539 = vmatmul.bf16.gmra.mxu0 %v3823
        %v4540 = vpop.f32.mrf.mxu0
        %v4541 = vadd.f32 %v4412, %v4540
        %v4542 = vpop.f32.mrf.mxu0
        %v4543 = vadd.f32 %v4414, %v4542
        %4544 = vmatmul.bf16.gmra.mxu0 %v3825
        %v4545 = vpop.f32.mrf.mxu0
        %v4546 = vadd.f32 %v4417, %v4545
        %v4547 = vpop.f32.mrf.mxu0
        %v4548 = vadd.f32 %v4419, %v4547
        %4549 = vdwg.mxu0
        %v4550 = vsel %vm2207, %v4173, -1e+30
        %v4551 = vsel %vm2208, %v4431, -1e+30
        %v4552 = vsel %vm2207, %v4175, -1e+30
        %v4553 = vsel %vm2208, %v4433, -1e+30
        %v4554 = vsel %vm2207, %v4178, -1e+30
        %v4555 = vsel %vm2208, %v4436, -1e+30
        %v4556 = vsel %vm2207, %v4180, -1e+30
        %v4557 = vsel %vm2208, %v4438, -1e+30
        %v4558 = vsel %vm2207, %v4183, -1e+30
        %v4559 = vsel %vm2208, %v4441, -1e+30
        %v4560 = vsel %vm2207, %v4185, -1e+30
        %v4561 = vsel %vm2208, %v4443, -1e+30
        %v4562 = vsel %vm2207, %v4188, -1e+30
        %v4563 = vsel %vm2208, %v4446, -1e+30
        %v4564 = vsel %vm2207, %v4190, -1e+30
        %v4565 = vsel %vm2208, %v4448, -1e+30
        %v4566 = vsel %vm2207, %v4193, -1e+30
        %v4567 = vsel %vm2208, %v4451, -1e+30
        %v4568 = vsel %vm2207, %v4195, -1e+30
        %v4569 = vsel %vm2208, %v4453, -1e+30
        %v4570 = vsel %vm2207, %v4198, -1e+30
        %v4571 = vsel %vm2208, %v4456, -1e+30
        %v4572 = vsel %vm2207, %v4200, -1e+30
        %v4573 = vsel %vm2208, %v4458, -1e+30
        %v4574 = vsel %vm2207, %v4203, -1e+30
        %v4575 = vsel %vm2208, %v4461, -1e+30
        %v4576 = vsel %vm2207, %v4205, -1e+30
        %v4577 = vsel %vm2208, %v4463, -1e+30
        %v4578 = vsel %vm2207, %v4208, -1e+30
        %v4579 = vsel %vm2208, %v4466, -1e+30
        %v4580 = vsel %vm2207, %v4210, -1e+30
        %v4581 = vsel %vm2208, %v4468, -1e+30
        %v4582 = vsel %vm2207, %v4213, -1e+30
        %v4583 = vsel %vm2208, %v4471, -1e+30
        %v4584 = vsel %vm2207, %v4215, -1e+30
        %v4585 = vsel %vm2208, %v4473, -1e+30
        %v4586 = vsel %vm2207, %v4218, -1e+30
        %v4587 = vsel %vm2208, %v4476, -1e+30
        %v4588 = vsel %vm2207, %v4220, -1e+30
        %v4589 = vsel %vm2208, %v4478, -1e+30
        %v4590 = vsel %vm2207, %v4223, -1e+30
        %v4591 = vsel %vm2208, %v4481, -1e+30
        %v4592 = vsel %vm2207, %v4225, -1e+30
        %v4593 = vsel %vm2208, %v4483, -1e+30
        %v4594 = vsel %vm2207, %v4228, -1e+30
        %v4595 = vsel %vm2208, %v4486, -1e+30
        %v4596 = vsel %vm2207, %v4230, -1e+30
        %v4597 = vsel %vm2208, %v4488, -1e+30
        %v4598 = vsel %vm2207, %v4233, -1e+30
        %v4599 = vsel %vm2208, %v4491, -1e+30
        %v4600 = vsel %vm2207, %v4235, -1e+30
        %v4601 = vsel %vm2208, %v4493, -1e+30
        %v4602 = vsel %vm2207, %v4238, -1e+30
        %v4603 = vsel %vm2208, %v4496, -1e+30
        %v4604 = vsel %vm2207, %v4240, -1e+30
        %v4605 = vsel %vm2208, %v4498, -1e+30
        %v4606 = vsel %vm2207, %v4243, -1e+30
        %v4607 = vsel %vm2208, %v4501, -1e+30
        %v4608 = vsel %vm2207, %v4245, -1e+30
        %v4609 = vsel %vm2208, %v4503, -1e+30
        %v4610 = vsel %vm2207, %v4248, -1e+30
        %v4611 = vsel %vm2208, %v4506, -1e+30
        %v4612 = vsel %vm2207, %v4250, -1e+30
        %v4613 = vsel %vm2208, %v4508, -1e+30
        %v4614 = vsel %vm2207, %v4253, -1e+30
        %v4615 = vsel %vm2208, %v4511, -1e+30
        %v4616 = vsel %vm2207, %v4255, -1e+30
        %v4617 = vsel %vm2208, %v4513, -1e+30
        %v4618 = vsel %vm2207, %v4258, -1e+30
        %v4619 = vsel %vm2208, %v4516, -1e+30
        %v4620 = vsel %vm2207, %v4260, -1e+30
        %v4621 = vsel %vm2208, %v4518, -1e+30
        %v4622 = vsel %vm2207, %v4263, -1e+30
        %v4623 = vsel %vm2208, %v4521, -1e+30
        %v4624 = vsel %vm2207, %v4265, -1e+30
        %v4625 = vsel %vm2208, %v4523, -1e+30
        %v4626 = vsel %vm2207, %v4268, -1e+30
        %v4627 = vsel %vm2208, %v4526, -1e+30
        %v4628 = vsel %vm2207, %v4270, -1e+30
        %v4629 = vsel %vm2208, %v4528, -1e+30
        %v4630 = vsel %vm2207, %v4273, -1e+30
        %v4631 = vsel %vm2208, %v4531, -1e+30
        %v4632 = vsel %vm2207, %v4275, -1e+30
        %v4633 = vsel %vm2208, %v4533, -1e+30
        %v4634 = vsel %vm2207, %v4278, -1e+30
        %v4635 = vsel %vm2208, %v4536, -1e+30
        %v4636 = vsel %vm2207, %v4280, -1e+30
        %v4637 = vsel %vm2208, %v4538, -1e+30
        %v4638 = vsel %vm2207, %v4283, -1e+30
        %v4639 = vsel %vm2208, %v4541, -1e+30
        %v4640 = vsel %vm2207, %v4285, -1e+30
        %v4641 = vsel %vm2208, %v4543, -1e+30
        %v4642 = vsel %vm2207, %v4288, -1e+30
        %v4643 = vsel %vm2208, %v4546, -1e+30
        %v4644 = vsel %vm2207, %v4290, -1e+30
        %v4645 = vsel %vm2208, %v4548, -1e+30
        %v4646 = vld [vmem:[#allocation4] sm:$0xff]
        %v4647 = vld [vmem:[#allocation4 + $0x8] sm:$0xff]
        %v4648 = vld [vmem:[#allocation4 + $0x10] sm:$0xff]
        %v4649 = vld [vmem:[#allocation4 + $0x18] sm:$0xff]
        %v4650 = vld [vmem:[#allocation4 + $0x20] sm:$0xff]
        %v4651 = vld [vmem:[#allocation4 + $0x28] sm:$0xff]
        %v4652 = vld [vmem:[#allocation4 + $0x30] sm:$0xff]
        %v4653 = vld [vmem:[#allocation4 + $0x38] sm:$0xff]
        %v4654 = vld [vmem:[#allocation4 + $0x40] sm:$0xff]
        %v4655 = vld [vmem:[#allocation4 + $0x48] sm:$0xff]
        %v4656 = vld [vmem:[#allocation4 + $0x50] sm:$0xff]
        %v4657 = vld [vmem:[#allocation4 + $0x58] sm:$0xff]
        %v4658 = vld [vmem:[#allocation4 + $0x60] sm:$0xff]
        %v4659 = vld [vmem:[#allocation4 + $0x68] sm:$0xff]
        %v4660 = vld [vmem:[#allocation4 + $0x70] sm:$0xff]
        %v4661 = vld [vmem:[#allocation4 + $0x78] sm:$0xff]
        %v4662 = vld [vmem:[#allocation4 + $0x80] sm:$0xff]
        %v4663 = vld [vmem:[#allocation4 + $0x88] sm:$0xff]
        %v4664 = vld [vmem:[#allocation4 + $0x90] sm:$0xff]
        %v4665 = vld [vmem:[#allocation4 + $0x98] sm:$0xff]
        %v4666 = vld [vmem:[#allocation4 + $0xa0] sm:$0xff]
        %v4667 = vld [vmem:[#allocation4 + $0xa8] sm:$0xff]
        %v4668 = vld [vmem:[#allocation4 + $0xb0] sm:$0xff]
        %v4669 = vld [vmem:[#allocation4 + $0xb8] sm:$0xff]
        %v4670 = vld [vmem:[#allocation4 + $0xc0] sm:$0xff]
        %v4671 = vld [vmem:[#allocation4 + $0xc8] sm:$0xff]
        %v4672 = vld [vmem:[#allocation4 + $0xd0] sm:$0xff]
        %v4673 = vld [vmem:[#allocation4 + $0xd8] sm:$0xff]
        %v4674 = vld [vmem:[#allocation4 + $0xe0] sm:$0xff]
        %v4675 = vld [vmem:[#allocation4 + $0xe8] sm:$0xff]
        %v4676 = vld [vmem:[#allocation4 + $0xf0] sm:$0xff]
        %v4677 = vld [vmem:[#allocation4 + $0xf8] sm:$0xff]
        %v4678 = vld [vmem:[#allocation4 + $0x100] sm:$0xff]
        %v4679 = vld [vmem:[#allocation4 + $0x108] sm:$0xff]
        %v4680 = vld [vmem:[#allocation4 + $0x110] sm:$0xff]
        %v4681 = vld [vmem:[#allocation4 + $0x118] sm:$0xff]
        %v4682 = vld [vmem:[#allocation4 + $0x120] sm:$0xff]
        %v4683 = vld [vmem:[#allocation4 + $0x128] sm:$0xff]
        %v4684 = vld [vmem:[#allocation4 + $0x130] sm:$0xff]
        %v4685 = vld [vmem:[#allocation4 + $0x138] sm:$0xff]
        %v4686 = vld [vmem:[#allocation4 + $0x140] sm:$0xff]
        %v4687 = vld [vmem:[#allocation4 + $0x148] sm:$0xff]
        %v4688 = vld [vmem:[#allocation4 + $0x150] sm:$0xff]
        %v4689 = vld [vmem:[#allocation4 + $0x158] sm:$0xff]
        %v4690 = vld [vmem:[#allocation4 + $0x160] sm:$0xff]
        %v4691 = vld [vmem:[#allocation4 + $0x168] sm:$0xff]
        %v4692 = vld [vmem:[#allocation4 + $0x170] sm:$0xff]
        %v4693 = vld [vmem:[#allocation4 + $0x178] sm:$0xff]
        %v4694 = vmax.f32 %v4550, %v4551
        %4695 = vmax.xlane.f32.xlu0 %v4694
        %v4696 = vpop.xlane.xlu0 %4695
        %v4697 = vmax.f32 %v4552, %v4553
        %4698 = vmax.xlane.f32.xlu0 %v4697
        %v4699 = vpop.xlane.xlu0 %4698
        %v4700 = vmax.f32 %v4554, %v4555
        %4701 = vmax.xlane.f32.xlu0 %v4700
        %v4702 = vpop.xlane.xlu0 %4701
        %v4703 = vmax.f32 %v4556, %v4557
        %4704 = vmax.xlane.f32.xlu0 %v4703
        %v4705 = vpop.xlane.xlu0 %4704
        %v4706 = vmax.f32 %v4558, %v4559
        %4707 = vmax.xlane.f32.xlu0 %v4706
        %v4708 = vpop.xlane.xlu0 %4707
        %v4709 = vmax.f32 %v4560, %v4561
        %4710 = vmax.xlane.f32.xlu0 %v4709
        %v4711 = vpop.xlane.xlu0 %4710
        %v4712 = vmax.f32 %v4562, %v4563
        %4713 = vmax.xlane.f32.xlu0 %v4712
        %v4714 = vpop.xlane.xlu0 %4713
        %v4715 = vmax.f32 %v4564, %v4565
        %4716 = vmax.xlane.f32.xlu0 %v4715
        %v4717 = vpop.xlane.xlu0 %4716
        %v4718 = vmax.f32 %v4566, %v4567
        %4719 = vmax.xlane.f32.xlu0 %v4718
        %v4720 = vpop.xlane.xlu0 %4719
        %v4721 = vmax.f32 %v4568, %v4569
        %4722 = vmax.xlane.f32.xlu0 %v4721
        %v4723 = vpop.xlane.xlu0 %4722
        %v4724 = vmax.f32 %v4570, %v4571
        %4725 = vmax.xlane.f32.xlu0 %v4724
        %v4726 = vpop.xlane.xlu0 %4725
        %v4727 = vmax.f32 %v4572, %v4573
        %4728 = vmax.xlane.f32.xlu0 %v4727
        %v4729 = vpop.xlane.xlu0 %4728
        %v4730 = vmax.f32 %v4574, %v4575
        %4731 = vmax.xlane.f32.xlu0 %v4730
        %v4732 = vpop.xlane.xlu0 %4731
        %v4733 = vmax.f32 %v4576, %v4577
        %4734 = vmax.xlane.f32.xlu0 %v4733
        %v4735 = vpop.xlane.xlu0 %4734
        %v4736 = vmax.f32 %v4578, %v4579
        %4737 = vmax.xlane.f32.xlu0 %v4736
        %v4738 = vpop.xlane.xlu0 %4737
        %v4739 = vmax.f32 %v4580, %v4581
        %4740 = vmax.xlane.f32.xlu0 %v4739
        %v4741 = vpop.xlane.xlu0 %4740
        %v4742 = vmax.f32 %v4582, %v4583
        %4743 = vmax.xlane.f32.xlu0 %v4742
        %v4744 = vpop.xlane.xlu0 %4743
        %v4745 = vmax.f32 %v4584, %v4585
        %4746 = vmax.xlane.f32.xlu0 %v4745
        %v4747 = vpop.xlane.xlu0 %4746
        %v4748 = vmax.f32 %v4586, %v4587
        %4749 = vmax.xlane.f32.xlu0 %v4748
        %v4750 = vpop.xlane.xlu0 %4749
        %v4751 = vmax.f32 %v4588, %v4589
        %4752 = vmax.xlane.f32.xlu0 %v4751
        %v4753 = vpop.xlane.xlu0 %4752
        %v4754 = vmax.f32 %v4590, %v4591
        %4755 = vmax.xlane.f32.xlu0 %v4754
        %v4756 = vpop.xlane.xlu0 %4755
        %v4757 = vmax.f32 %v4592, %v4593
        %4758 = vmax.xlane.f32.xlu0 %v4757
        %v4759 = vpop.xlane.xlu0 %4758
        %v4760 = vmax.f32 %v4594, %v4595
        %4761 = vmax.xlane.f32.xlu0 %v4760
        %v4762 = vpop.xlane.xlu0 %4761
        %v4763 = vmax.f32 %v4596, %v4597
        %4764 = vmax.xlane.f32.xlu0 %v4763
        %v4765 = vpop.xlane.xlu0 %4764
        %v4766 = vmax.f32 %v4598, %v4599
        %4767 = vmax.xlane.f32.xlu0 %v4766
        %v4768 = vpop.xlane.xlu0 %4767
        %v4769 = vmax.f32 %v4600, %v4601
        %4770 = vmax.xlane.f32.xlu0 %v4769
        %v4771 = vpop.xlane.xlu0 %4770
        %v4772 = vmax.f32 %v4602, %v4603
        %4773 = vmax.xlane.f32.xlu0 %v4772
        %v4774 = vpop.xlane.xlu0 %4773
        %v4775 = vmax.f32 %v4604, %v4605
        %4776 = vmax.xlane.f32.xlu0 %v4775
        %v4777 = vpop.xlane.xlu0 %4776
        %v4778 = vmax.f32 %v4606, %v4607
        %4779 = vmax.xlane.f32.xlu0 %v4778
        %v4780 = vpop.xlane.xlu0 %4779
        %v4781 = vmax.f32 %v4608, %v4609
        %4782 = vmax.xlane.f32.xlu0 %v4781
        %v4783 = vpop.xlane.xlu0 %4782
        %v4784 = vmax.f32 %v4610, %v4611
        %4785 = vmax.xlane.f32.xlu0 %v4784
        %v4786 = vpop.xlane.xlu0 %4785
        %v4787 = vmax.f32 %v4612, %v4613
        %4788 = vmax.xlane.f32.xlu0 %v4787
        %v4789 = vpop.xlane.xlu0 %4788
        %v4790 = vmax.f32 %v4614, %v4615
        %4791 = vmax.xlane.f32.xlu0 %v4790
        %v4792 = vpop.xlane.xlu0 %4791
        %v4793 = vmax.f32 %v4616, %v4617
        %4794 = vmax.xlane.f32.xlu0 %v4793
        %v4795 = vpop.xlane.xlu0 %4794
        %v4796 = vmax.f32 %v4618, %v4619
        %4797 = vmax.xlane.f32.xlu0 %v4796
        %v4798 = vpop.xlane.xlu0 %4797
        %v4799 = vmax.f32 %v4620, %v4621
        %4800 = vmax.xlane.f32.xlu0 %v4799
        %v4801 = vpop.xlane.xlu0 %4800
        %v4802 = vmax.f32 %v4622, %v4623
        %4803 = vmax.xlane.f32.xlu0 %v4802
        %v4804 = vpop.xlane.xlu0 %4803
        %v4805 = vmax.f32 %v4624, %v4625
        %4806 = vmax.xlane.f32.xlu0 %v4805
        %v4807 = vpop.xlane.xlu0 %4806
        %v4808 = vmax.f32 %v4626, %v4627
        %4809 = vmax.xlane.f32.xlu0 %v4808
        %v4810 = vpop.xlane.xlu0 %4809
        %v4811 = vmax.f32 %v4628, %v4629
        %4812 = vmax.xlane.f32.xlu0 %v4811
        %v4813 = vpop.xlane.xlu0 %4812
        %v4814 = vmax.f32 %v4630, %v4631
        %4815 = vmax.xlane.f32.xlu0 %v4814
        %v4816 = vpop.xlane.xlu0 %4815
        %v4817 = vmax.f32 %v4632, %v4633
        %4818 = vmax.xlane.f32.xlu0 %v4817
        %v4819 = vpop.xlane.xlu0 %4818
        %v4820 = vmax.f32 %v4634, %v4635
        %4821 = vmax.xlane.f32.xlu0 %v4820
        %v4822 = vpop.xlane.xlu0 %4821
        %v4823 = vmax.f32 %v4636, %v4637
        %4824 = vmax.xlane.f32.xlu0 %v4823
        %v4825 = vpop.xlane.xlu0 %4824
        %v4826 = vmax.f32 %v4638, %v4639
        %4827 = vmax.xlane.f32.xlu0 %v4826
        %v4828 = vpop.xlane.xlu0 %4827
        %v4829 = vmax.f32 %v4640, %v4641
        %4830 = vmax.xlane.f32.xlu0 %v4829
        %v4831 = vpop.xlane.xlu0 %4830
        %v4832 = vmax.f32 %v4642, %v4643
        %4833 = vmax.xlane.f32.xlu0 %v4832
        %v4834 = vpop.xlane.xlu0 %4833
        %v4835 = vmax.f32 %v4644, %v4645
        %4836 = vmax.xlane.f32.xlu0 %v4835
        %v4837 = vpop.xlane.xlu0 %4836
        %v4838 = vmax.f32 %v4646, %v4696
        %v4839 = vmax.f32 %v4647, %v4699
        %v4840 = vmax.f32 %v4648, %v4702
        %v4841 = vmax.f32 %v4649, %v4705
        %v4842 = vmax.f32 %v4650, %v4708
        %v4843 = vmax.f32 %v4651, %v4711
        %v4844 = vmax.f32 %v4652, %v4714
        %v4845 = vmax.f32 %v4653, %v4717
        %v4846 = vmax.f32 %v4654, %v4720
        %v4847 = vmax.f32 %v4655, %v4723
        %v4848 = vmax.f32 %v4656, %v4726
        %v4849 = vmax.f32 %v4657, %v4729
        %v4850 = vmax.f32 %v4658, %v4732
        %v4851 = vmax.f32 %v4659, %v4735
        %v4852 = vmax.f32 %v4660, %v4738
        %v4853 = vmax.f32 %v4661, %v4741
        %v4854 = vmax.f32 %v4662, %v4744
        %v4855 = vmax.f32 %v4663, %v4747
        %v4856 = vmax.f32 %v4664, %v4750
        %v4857 = vmax.f32 %v4665, %v4753
        %v4858 = vmax.f32 %v4666, %v4756
        %v4859 = vmax.f32 %v4667, %v4759
        %v4860 = vmax.f32 %v4668, %v4762
        %v4861 = vmax.f32 %v4669, %v4765
        %v4862 = vmax.f32 %v4670, %v4768
        %v4863 = vmax.f32 %v4671, %v4771
        %v4864 = vmax.f32 %v4672, %v4774
        %v4865 = vmax.f32 %v4673, %v4777
        %v4866 = vmax.f32 %v4674, %v4780
        %v4867 = vmax.f32 %v4675, %v4783
        %v4868 = vmax.f32 %v4676, %v4786
        %v4869 = vmax.f32 %v4677, %v4789
        %v4870 = vmax.f32 %v4678, %v4792
        %v4871 = vmax.f32 %v4679, %v4795
        %v4872 = vmax.f32 %v4680, %v4798
        %v4873 = vmax.f32 %v4681, %v4801
        %v4874 = vmax.f32 %v4682, %v4804
        %v4875 = vmax.f32 %v4683, %v4807
        %v4876 = vmax.f32 %v4684, %v4810
        %v4877 = vmax.f32 %v4685, %v4813
        %v4878 = vmax.f32 %v4686, %v4816
        %v4879 = vmax.f32 %v4687, %v4819
        %v4880 = vmax.f32 %v4688, %v4822
        %v4881 = vmax.f32 %v4689, %v4825
        %v4882 = vmax.f32 %v4690, %v4828
        %v4883 = vmax.f32 %v4691, %v4831
        %v4884 = vmax.f32 %v4692, %v4834
        %v4885 = vmax.f32 %v4693, %v4837
        %v4886 = vld [vmem:[#allocation5] sm:$0xff]
        %v4887 = vld [vmem:[#allocation5 + $0x8] sm:$0xff]
        %v4888 = vld [vmem:[#allocation5 + $0x10] sm:$0xff]
        %v4889 = vld [vmem:[#allocation5 + $0x18] sm:$0xff]
        %v4890 = vld [vmem:[#allocation5 + $0x20] sm:$0xff]
        %v4891 = vld [vmem:[#allocation5 + $0x28] sm:$0xff]
        %v4892 = vld [vmem:[#allocation5 + $0x30] sm:$0xff]
        %v4893 = vld [vmem:[#allocation5 + $0x38] sm:$0xff]
        %v4894 = vld [vmem:[#allocation5 + $0x40] sm:$0xff]
        %v4895 = vld [vmem:[#allocation5 + $0x48] sm:$0xff]
        %v4896 = vld [vmem:[#allocation5 + $0x50] sm:$0xff]
        %v4897 = vld [vmem:[#allocation5 + $0x58] sm:$0xff]
        %v4898 = vld [vmem:[#allocation5 + $0x60] sm:$0xff]
        %v4899 = vld [vmem:[#allocation5 + $0x68] sm:$0xff]
        %v4900 = vld [vmem:[#allocation5 + $0x70] sm:$0xff]
        %v4901 = vld [vmem:[#allocation5 + $0x78] sm:$0xff]
        %v4902 = vld [vmem:[#allocation5 + $0x80] sm:$0xff]
        %v4903 = vld [vmem:[#allocation5 + $0x88] sm:$0xff]
        %v4904 = vld [vmem:[#allocation5 + $0x90] sm:$0xff]
        %v4905 = vld [vmem:[#allocation5 + $0x98] sm:$0xff]
        %v4906 = vld [vmem:[#allocation5 + $0xa0] sm:$0xff]
        %v4907 = vld [vmem:[#allocation5 + $0xa8] sm:$0xff]
        %v4908 = vld [vmem:[#allocation5 + $0xb0] sm:$0xff]
        %v4909 = vld [vmem:[#allocation5 + $0xb8] sm:$0xff]
        %v4910 = vld [vmem:[#allocation5 + $0xc0] sm:$0xff]
        %v4911 = vld [vmem:[#allocation5 + $0xc8] sm:$0xff]
        %v4912 = vld [vmem:[#allocation5 + $0xd0] sm:$0xff]
        %v4913 = vld [vmem:[#allocation5 + $0xd8] sm:$0xff]
        %v4914 = vld [vmem:[#allocation5 + $0xe0] sm:$0xff]
        %v4915 = vld [vmem:[#allocation5 + $0xe8] sm:$0xff]
        %v4916 = vld [vmem:[#allocation5 + $0xf0] sm:$0xff]
        %v4917 = vld [vmem:[#allocation5 + $0xf8] sm:$0xff]
        %v4918 = vld [vmem:[#allocation5 + $0x100] sm:$0xff]
        %v4919 = vld [vmem:[#allocation5 + $0x108] sm:$0xff]
        %v4920 = vld [vmem:[#allocation5 + $0x110] sm:$0xff]
        %v4921 = vld [vmem:[#allocation5 + $0x118] sm:$0xff]
        %v4922 = vld [vmem:[#allocation5 + $0x120] sm:$0xff]
        %v4923 = vld [vmem:[#allocation5 + $0x128] sm:$0xff]
        %v4924 = vld [vmem:[#allocation5 + $0x130] sm:$0xff]
        %v4925 = vld [vmem:[#allocation5 + $0x138] sm:$0xff]
        %v4926 = vld [vmem:[#allocation5 + $0x140] sm:$0xff]
        %v4927 = vld [vmem:[#allocation5 + $0x148] sm:$0xff]
        %v4928 = vld [vmem:[#allocation5 + $0x150] sm:$0xff]
        %v4929 = vld [vmem:[#allocation5 + $0x158] sm:$0xff]
        %v4930 = vld [vmem:[#allocation5 + $0x160] sm:$0xff]
        %v4931 = vld [vmem:[#allocation5 + $0x168] sm:$0xff]
        %v4932 = vld [vmem:[#allocation5 + $0x170] sm:$0xff]
        %v4933 = vld [vmem:[#allocation5 + $0x178] sm:$0xff]
        %v4934 = vsub.f32 %v4646, %v4838
        %v4935 = vsub.f32 %v4647, %v4839
        %v4936 = vsub.f32 %v4648, %v4840
        %v4937 = vsub.f32 %v4649, %v4841
        %v4938 = vsub.f32 %v4650, %v4842
        %v4939 = vsub.f32 %v4651, %v4843
        %v4940 = vsub.f32 %v4652, %v4844
        %v4941 = vsub.f32 %v4653, %v4845
        %v4942 = vsub.f32 %v4654, %v4846
        %v4943 = vsub.f32 %v4655, %v4847
        %v4944 = vsub.f32 %v4656, %v4848
        %v4945 = vsub.f32 %v4657, %v4849
        %v4946 = vsub.f32 %v4658, %v4850
        %v4947 = vsub.f32 %v4659, %v4851
        %v4948 = vsub.f32 %v4660, %v4852
        %v4949 = vsub.f32 %v4661, %v4853
        %v4950 = vsub.f32 %v4662, %v4854
        %v4951 = vsub.f32 %v4663, %v4855
        %v4952 = vsub.f32 %v4664, %v4856
        %v4953 = vsub.f32 %v4665, %v4857
        %v4954 = vsub.f32 %v4666, %v4858
        %v4955 = vsub.f32 %v4667, %v4859
        %v4956 = vsub.f32 %v4668, %v4860
        %v4957 = vsub.f32 %v4669, %v4861
        %v4958 = vsub.f32 %v4670, %v4862
        %v4959 = vsub.f32 %v4671, %v4863
        %v4960 = vsub.f32 %v4672, %v4864
        %v4961 = vsub.f32 %v4673, %v4865
        %v4962 = vsub.f32 %v4674, %v4866
        %v4963 = vsub.f32 %v4675, %v4867
        %v4964 = vsub.f32 %v4676, %v4868
        %v4965 = vsub.f32 %v4677, %v4869
        %v4966 = vsub.f32 %v4678, %v4870
        %v4967 = vsub.f32 %v4679, %v4871
        %v4968 = vsub.f32 %v4680, %v4872
        %v4969 = vsub.f32 %v4681, %v4873
        %v4970 = vsub.f32 %v4682, %v4874
        %v4971 = vsub.f32 %v4683, %v4875
        %v4972 = vsub.f32 %v4684, %v4876
        %v4973 = vsub.f32 %v4685, %v4877
        %v4974 = vsub.f32 %v4686, %v4878
        %v4975 = vsub.f32 %v4687, %v4879
        %v4976 = vsub.f32 %v4688, %v4880
        %v4977 = vsub.f32 %v4689, %v4881
        %v4978 = vsub.f32 %v4690, %v4882
        %v4979 = vsub.f32 %v4691, %v4883
        %v4980 = vsub.f32 %v4692, %v4884
        %v4981 = vsub.f32 %v4693, %v4885
        %v4982 = vmul.f32 %v4934, 1.442695
        %v4983 = vpow.pop %v4982
        %v4984 = vmul.f32 %v4935, 1.442695
        %v4985 = vpow.pop %v4984
        %v4986 = vmul.f32 %v4936, 1.442695
        %v4987 = vpow.pop %v4986
        %v4988 = vmul.f32 %v4937, 1.442695
        %v4989 = vpow.pop %v4988
        %v4990 = vmul.f32 %v4938, 1.442695
        %v4991 = vpow.pop %v4990
        %v4992 = vmul.f32 %v4939, 1.442695
        %v4993 = vpow.pop %v4992
        %v4994 = vmul.f32 %v4940, 1.442695
        %v4995 = vpow.pop %v4994
        %v4996 = vmul.f32 %v4941, 1.442695
        %v4997 = vpow.pop %v4996
        %v4998 = vmul.f32 %v4942, 1.442695
        %v4999 = vpow.pop %v4998
        %v5000 = vmul.f32 %v4943, 1.442695
        %v5001 = vpow.pop %v5000
        %v5002 = vmul.f32 %v4944, 1.442695
        %v5003 = vpow.pop %v5002
        %v5004 = vmul.f32 %v4945, 1.442695
        %v5005 = vpow.pop %v5004
        %v5006 = vmul.f32 %v4946, 1.442695
        %v5007 = vpow.pop %v5006
        %v5008 = vmul.f32 %v4947, 1.442695
        %v5009 = vpow.pop %v5008
        %v5010 = vmul.f32 %v4948, 1.442695
        %v5011 = vpow.pop %v5010
        %v5012 = vmul.f32 %v4949, 1.442695
        %v5013 = vpow.pop %v5012
        %v5014 = vmul.f32 %v4950, 1.442695
        %v5015 = vpow.pop %v5014
        %v5016 = vmul.f32 %v4951, 1.442695
        %v5017 = vpow.pop %v5016
        %v5018 = vmul.f32 %v4952, 1.442695
        %v5019 = vpow.pop %v5018
        %v5020 = vmul.f32 %v4953, 1.442695
        %v5021 = vpow.pop %v5020
        %v5022 = vmul.f32 %v4954, 1.442695
        %v5023 = vpow.pop %v5022
        %v5024 = vmul.f32 %v4955, 1.442695
        %v5025 = vpow.pop %v5024
        %v5026 = vmul.f32 %v4956, 1.442695
        %v5027 = vpow.pop %v5026
        %v5028 = vmul.f32 %v4957, 1.442695
        %v5029 = vpow.pop %v5028
        %v5030 = vmul.f32 %v4958, 1.442695
        %v5031 = vpow.pop %v5030
        %v5032 = vmul.f32 %v4959, 1.442695
        %v5033 = vpow.pop %v5032
        %v5034 = vmul.f32 %v4960, 1.442695
        %v5035 = vpow.pop %v5034
        %v5036 = vmul.f32 %v4961, 1.442695
        %v5037 = vpow.pop %v5036
        %v5038 = vmul.f32 %v4962, 1.442695
        %v5039 = vpow.pop %v5038
        %v5040 = vmul.f32 %v4963, 1.442695
        %v5041 = vpow.pop %v5040
        %v5042 = vmul.f32 %v4964, 1.442695
        %v5043 = vpow.pop %v5042
        %v5044 = vmul.f32 %v4965, 1.442695
        %v5045 = vpow.pop %v5044
        %v5046 = vmul.f32 %v4966, 1.442695
        %v5047 = vpow.pop %v5046
        %v5048 = vmul.f32 %v4967, 1.442695
        %v5049 = vpow.pop %v5048
        %v5050 = vmul.f32 %v4968, 1.442695
        %v5051 = vpow.pop %v5050
        %v5052 = vmul.f32 %v4969, 1.442695
        %v5053 = vpow.pop %v5052
        %v5054 = vmul.f32 %v4970, 1.442695
        %v5055 = vpow.pop %v5054
        %v5056 = vmul.f32 %v4971, 1.442695
        %v5057 = vpow.pop %v5056
        %v5058 = vmul.f32 %v4972, 1.442695
        %v5059 = vpow.pop %v5058
        %v5060 = vmul.f32 %v4973, 1.442695
        %v5061 = vpow.pop %v5060
        %v5062 = vmul.f32 %v4974, 1.442695
        %v5063 = vpow.pop %v5062
        %v5064 = vmul.f32 %v4975, 1.442695
        %v5065 = vpow.pop %v5064
        %v5066 = vmul.f32 %v4976, 1.442695
        %v5067 = vpow.pop %v5066
        %v5068 = vmul.f32 %v4977, 1.442695
        %v5069 = vpow.pop %v5068
        %v5070 = vmul.f32 %v4978, 1.442695
        %v5071 = vpow.pop %v5070
        %v5072 = vmul.f32 %v4979, 1.442695
        %v5073 = vpow.pop %v5072
        %v5074 = vmul.f32 %v4980, 1.442695
        %v5075 = vpow.pop %v5074
        %v5076 = vmul.f32 %v4981, 1.442695
        %v5077 = vpow.pop %v5076
        %v5078 = vmul.f32 %v4886, %v4983
        %v5079 = vmul.f32 %v4887, %v4985
        %v5080 = vmul.f32 %v4888, %v4987
        %v5081 = vmul.f32 %v4889, %v4989
        %v5082 = vmul.f32 %v4890, %v4991
        %v5083 = vmul.f32 %v4891, %v4993
        %v5084 = vmul.f32 %v4892, %v4995
        %v5085 = vmul.f32 %v4893, %v4997
        %v5086 = vmul.f32 %v4894, %v4999
        %v5087 = vmul.f32 %v4895, %v5001
        %v5088 = vmul.f32 %v4896, %v5003
        %v5089 = vmul.f32 %v4897, %v5005
        %v5090 = vmul.f32 %v4898, %v5007
        %v5091 = vmul.f32 %v4899, %v5009
        %v5092 = vmul.f32 %v4900, %v5011
        %v5093 = vmul.f32 %v4901, %v5013
        %v5094 = vmul.f32 %v4902, %v5015
        %v5095 = vmul.f32 %v4903, %v5017
        %v5096 = vmul.f32 %v4904, %v5019
        %v5097 = vmul.f32 %v4905, %v5021
        %v5098 = vmul.f32 %v4906, %v5023
        %v5099 = vmul.f32 %v4907, %v5025
        %v5100 = vmul.f32 %v4908, %v5027
        %v5101 = vmul.f32 %v4909, %v5029
        %v5102 = vmul.f32 %v4910, %v5031
        %v5103 = vmul.f32 %v4911, %v5033
        %v5104 = vmul.f32 %v4912, %v5035
        %v5105 = vmul.f32 %v4913, %v5037
        %v5106 = vmul.f32 %v4914, %v5039
        %v5107 = vmul.f32 %v4915, %v5041
        %v5108 = vmul.f32 %v4916, %v5043
        %v5109 = vmul.f32 %v4917, %v5045
        %v5110 = vmul.f32 %v4918, %v5047
        %v5111 = vmul.f32 %v4919, %v5049
        %v5112 = vmul.f32 %v4920, %v5051
        %v5113 = vmul.f32 %v4921, %v5053
        %v5114 = vmul.f32 %v4922, %v5055
        %v5115 = vmul.f32 %v4923, %v5057
        %v5116 = vmul.f32 %v4924, %v5059
        %v5117 = vmul.f32 %v4925, %v5061
        %v5118 = vmul.f32 %v4926, %v5063
        %v5119 = vmul.f32 %v4927, %v5065
        %v5120 = vmul.f32 %v4928, %v5067
        %v5121 = vmul.f32 %v4929, %v5069
        %v5122 = vmul.f32 %v4930, %v5071
        %v5123 = vmul.f32 %v4931, %v5073
        %v5124 = vmul.f32 %v4932, %v5075
        %v5125 = vmul.f32 %v4933, %v5077
        %5127 = vset.pattern.permute.xlu0 0
        %5128 = vperm.xlu0 %5127, %v4838
        %v5129 = vpop.permute.xlu0 %5128
        %5132 = vset.pattern.permute.xlu0 0
        %5133 = vperm.xlu0 %5132, %v4839
        %v5134 = vpop.permute.xlu0 %5133
        %5137 = vset.pattern.permute.xlu0 0
        %5138 = vperm.xlu0 %5137, %v4840
        %v5139 = vpop.permute.xlu0 %5138
        %5142 = vset.pattern.permute.xlu0 0
        %5143 = vperm.xlu0 %5142, %v4841
        %v5144 = vpop.permute.xlu0 %5143
        %5147 = vset.pattern.permute.xlu0 0
        %5148 = vperm.xlu0 %5147, %v4842
        %v5149 = vpop.permute.xlu0 %5148
        %5152 = vset.pattern.permute.xlu0 0
        %5153 = vperm.xlu0 %5152, %v4843
        %v5154 = vpop.permute.xlu0 %5153
        %5157 = vset.pattern.permute.xlu0 0
        %5158 = vperm.xlu0 %5157, %v4844
        %v5159 = vpop.permute.xlu0 %5158
        %5162 = vset.pattern.permute.xlu0 0
        %5163 = vperm.xlu0 %5162, %v4845
        %v5164 = vpop.permute.xlu0 %5163
        %5167 = vset.pattern.permute.xlu0 0
        %5168 = vperm.xlu0 %5167, %v4846
        %v5169 = vpop.permute.xlu0 %5168
        %5172 = vset.pattern.permute.xlu0 0
        %5173 = vperm.xlu0 %5172, %v4847
        %v5174 = vpop.permute.xlu0 %5173
        %5177 = vset.pattern.permute.xlu0 0
        %5178 = vperm.xlu0 %5177, %v4848
        %v5179 = vpop.permute.xlu0 %5178
        %5182 = vset.pattern.permute.xlu0 0
        %5183 = vperm.xlu0 %5182, %v4849
        %v5184 = vpop.permute.xlu0 %5183
        %5187 = vset.pattern.permute.xlu0 0
        %5188 = vperm.xlu0 %5187, %v4850
        %v5189 = vpop.permute.xlu0 %5188
        %5192 = vset.pattern.permute.xlu0 0
        %5193 = vperm.xlu0 %5192, %v4851
        %v5194 = vpop.permute.xlu0 %5193
        %5197 = vset.pattern.permute.xlu0 0
        %5198 = vperm.xlu0 %5197, %v4852
        %v5199 = vpop.permute.xlu0 %5198
        %5202 = vset.pattern.permute.xlu0 0
        %5203 = vperm.xlu0 %5202, %v4853
        %v5204 = vpop.permute.xlu0 %5203
        %5207 = vset.pattern.permute.xlu0 0
        %5208 = vperm.xlu0 %5207, %v4854
        %v5209 = vpop.permute.xlu0 %5208
        %5212 = vset.pattern.permute.xlu0 0
        %5213 = vperm.xlu0 %5212, %v4855
        %v5214 = vpop.permute.xlu0 %5213
        %5217 = vset.pattern.permute.xlu0 0
        %5218 = vperm.xlu0 %5217, %v4856
        %v5219 = vpop.permute.xlu0 %5218
        %5222 = vset.pattern.permute.xlu0 0
        %5223 = vperm.xlu0 %5222, %v4857
        %v5224 = vpop.permute.xlu0 %5223
        %5227 = vset.pattern.permute.xlu0 0
        %5228 = vperm.xlu0 %5227, %v4858
        %v5229 = vpop.permute.xlu0 %5228
        %5232 = vset.pattern.permute.xlu0 0
        %5233 = vperm.xlu0 %5232, %v4859
        %v5234 = vpop.permute.xlu0 %5233
        %5237 = vset.pattern.permute.xlu0 0
        %5238 = vperm.xlu0 %5237, %v4860
        %v5239 = vpop.permute.xlu0 %5238
        %5242 = vset.pattern.permute.xlu0 0
        %5243 = vperm.xlu0 %5242, %v4861
        %v5244 = vpop.permute.xlu0 %5243
        %5247 = vset.pattern.permute.xlu0 0
        %5248 = vperm.xlu0 %5247, %v4862
        %v5249 = vpop.permute.xlu0 %5248
        %5252 = vset.pattern.permute.xlu0 0
        %5253 = vperm.xlu0 %5252, %v4863
        %v5254 = vpop.permute.xlu0 %5253
        %5257 = vset.pattern.permute.xlu0 0
        %5258 = vperm.xlu0 %5257, %v4864
        %v5259 = vpop.permute.xlu0 %5258
        %5262 = vset.pattern.permute.xlu0 0
        %5263 = vperm.xlu0 %5262, %v4865
        %v5264 = vpop.permute.xlu0 %5263
        %5267 = vset.pattern.permute.xlu0 0
        %5268 = vperm.xlu0 %5267, %v4866
        %v5269 = vpop.permute.xlu0 %5268
        %5272 = vset.pattern.permute.xlu0 0
        %5273 = vperm.xlu0 %5272, %v4867
        %v5274 = vpop.permute.xlu0 %5273
        %5277 = vset.pattern.permute.xlu0 0
        %5278 = vperm.xlu0 %5277, %v4868
        %v5279 = vpop.permute.xlu0 %5278
        %5282 = vset.pattern.permute.xlu0 0
        %5283 = vperm.xlu0 %5282, %v4869
        %v5284 = vpop.permute.xlu0 %5283
        %5287 = vset.pattern.permute.xlu0 0
        %5288 = vperm.xlu0 %5287, %v4870
        %v5289 = vpop.permute.xlu0 %5288
        %5292 = vset.pattern.permute.xlu0 0
        %5293 = vperm.xlu0 %5292, %v4871
        %v5294 = vpop.permute.xlu0 %5293
        %5297 = vset.pattern.permute.xlu0 0
        %5298 = vperm.xlu0 %5297, %v4872
        %v5299 = vpop.permute.xlu0 %5298
        %5302 = vset.pattern.permute.xlu0 0
        %5303 = vperm.xlu0 %5302, %v4873
        %v5304 = vpop.permute.xlu0 %5303
        %5307 = vset.pattern.permute.xlu0 0
        %5308 = vperm.xlu0 %5307, %v4874
        %v5309 = vpop.permute.xlu0 %5308
        %5312 = vset.pattern.permute.xlu0 0
        %5313 = vperm.xlu0 %5312, %v4875
        %v5314 = vpop.permute.xlu0 %5313
        %5317 = vset.pattern.permute.xlu0 0
        %5318 = vperm.xlu0 %5317, %v4876
        %v5319 = vpop.permute.xlu0 %5318
        %5322 = vset.pattern.permute.xlu0 0
        %5323 = vperm.xlu0 %5322, %v4877
        %v5324 = vpop.permute.xlu0 %5323
        %5327 = vset.pattern.permute.xlu0 0
        %5328 = vperm.xlu0 %5327, %v4878
        %v5329 = vpop.permute.xlu0 %5328
        %5332 = vset.pattern.permute.xlu0 0
        %5333 = vperm.xlu0 %5332, %v4879
        %v5334 = vpop.permute.xlu0 %5333
        %5337 = vset.pattern.permute.xlu0 0
        %5338 = vperm.xlu0 %5337, %v4880
        %v5339 = vpop.permute.xlu0 %5338
        %5342 = vset.pattern.permute.xlu0 0
        %5343 = vperm.xlu0 %5342, %v4881
        %v5344 = vpop.permute.xlu0 %5343
        %5347 = vset.pattern.permute.xlu0 0
        %5348 = vperm.xlu0 %5347, %v4882
        %v5349 = vpop.permute.xlu0 %5348
        %5352 = vset.pattern.permute.xlu0 0
        %5353 = vperm.xlu0 %5352, %v4883
        %v5354 = vpop.permute.xlu0 %5353
        %5357 = vset.pattern.permute.xlu0 0
        %5358 = vperm.xlu0 %5357, %v4884
        %v5359 = vpop.permute.xlu0 %5358
        %5362 = vset.pattern.permute.xlu0 0
        %5363 = vperm.xlu0 %5362, %v4885
        %v5364 = vpop.permute.xlu0 %5363
        %v5366 = vsub.f32 %v4550, %v5129
        %v5367 = vsub.f32 %v4551, %v5129
        %v5368 = vsub.f32 %v4552, %v5134
        %v5369 = vsub.f32 %v4553, %v5134
        %v5370 = vsub.f32 %v4554, %v5139
        %v5371 = vsub.f32 %v4555, %v5139
        %v5372 = vsub.f32 %v4556, %v5144
        %v5373 = vsub.f32 %v4557, %v5144
        %v5374 = vsub.f32 %v4558, %v5149
        %v5375 = vsub.f32 %v4559, %v5149
        %v5376 = vsub.f32 %v4560, %v5154
        %v5377 = vsub.f32 %v4561, %v5154
        %v5378 = vsub.f32 %v4562, %v5159
        %v5379 = vsub.f32 %v4563, %v5159
        %v5380 = vsub.f32 %v4564, %v5164
        %v5381 = vsub.f32 %v4565, %v5164
        %v5382 = vsub.f32 %v4566, %v5169
        %v5383 = vsub.f32 %v4567, %v5169
        %v5384 = vsub.f32 %v4568, %v5174
        %v5385 = vsub.f32 %v4569, %v5174
        %v5386 = vsub.f32 %v4570, %v5179
        %v5387 = vsub.f32 %v4571, %v5179
        %v5388 = vsub.f32 %v4572, %v5184
        %v5389 = vsub.f32 %v4573, %v5184
        %v5390 = vsub.f32 %v4574, %v5189
        %v5391 = vsub.f32 %v4575, %v5189
        %v5392 = vsub.f32 %v4576, %v5194
        %v5393 = vsub.f32 %v4577, %v5194
        %v5394 = vsub.f32 %v4578, %v5199
        %v5395 = vsub.f32 %v4579, %v5199
        %v5396 = vsub.f32 %v4580, %v5204
        %v5397 = vsub.f32 %v4581, %v5204
        %v5398 = vsub.f32 %v4582, %v5209
        %v5399 = vsub.f32 %v4583, %v5209
        %v5400 = vsub.f32 %v4584, %v5214
        %v5401 = vsub.f32 %v4585, %v5214
        %v5402 = vsub.f32 %v4586, %v5219
        %v5403 = vsub.f32 %v4587, %v5219
        %v5404 = vsub.f32 %v4588, %v5224
        %v5405 = vsub.f32 %v4589, %v5224
        %v5406 = vsub.f32 %v4590, %v5229
        %v5407 = vsub.f32 %v4591, %v5229
        %v5408 = vsub.f32 %v4592, %v5234
        %v5409 = vsub.f32 %v4593, %v5234
        %v5410 = vsub.f32 %v4594, %v5239
        %v5411 = vsub.f32 %v4595, %v5239
        %v5412 = vsub.f32 %v4596, %v5244
        %v5413 = vsub.f32 %v4597, %v5244
        %v5414 = vsub.f32 %v4598, %v5249
        %v5415 = vsub.f32 %v4599, %v5249
        %v5416 = vsub.f32 %v4600, %v5254
        %v5417 = vsub.f32 %v4601, %v5254
        %v5418 = vsub.f32 %v4602, %v5259
        %v5419 = vsub.f32 %v4603, %v5259
        %v5420 = vsub.f32 %v4604, %v5264
        %v5421 = vsub.f32 %v4605, %v5264
        %v5422 = vsub.f32 %v4606, %v5269
        %v5423 = vsub.f32 %v4607, %v5269
        %v5424 = vsub.f32 %v4608, %v5274
        %v5425 = vsub.f32 %v4609, %v5274
        %v5426 = vsub.f32 %v4610, %v5279
        %v5427 = vsub.f32 %v4611, %v5279
        %v5428 = vsub.f32 %v4612, %v5284
        %v5429 = vsub.f32 %v4613, %v5284
        %v5430 = vsub.f32 %v4614, %v5289
        %v5431 = vsub.f32 %v4615, %v5289
        %v5432 = vsub.f32 %v4616, %v5294
        %v5433 = vsub.f32 %v4617, %v5294
        %v5434 = vsub.f32 %v4618, %v5299
        %v5435 = vsub.f32 %v4619, %v5299
        %v5436 = vsub.f32 %v4620, %v5304
        %v5437 = vsub.f32 %v4621, %v5304
        %v5438 = vsub.f32 %v4622, %v5309
        %v5439 = vsub.f32 %v4623, %v5309
        %v5440 = vsub.f32 %v4624, %v5314
        %v5441 = vsub.f32 %v4625, %v5314
        %v5442 = vsub.f32 %v4626, %v5319
        %v5443 = vsub.f32 %v4627, %v5319
        %v5444 = vsub.f32 %v4628, %v5324
        %v5445 = vsub.f32 %v4629, %v5324
        %v5446 = vsub.f32 %v4630, %v5329
        %v5447 = vsub.f32 %v4631, %v5329
        %v5448 = vsub.f32 %v4632, %v5334
        %v5449 = vsub.f32 %v4633, %v5334
        %v5450 = vsub.f32 %v4634, %v5339
        %v5451 = vsub.f32 %v4635, %v5339
        %v5452 = vsub.f32 %v4636, %v5344
        %v5453 = vsub.f32 %v4637, %v5344
        %v5454 = vsub.f32 %v4638, %v5349
        %v5455 = vsub.f32 %v4639, %v5349
        %v5456 = vsub.f32 %v4640, %v5354
        %v5457 = vsub.f32 %v4641, %v5354
        %v5458 = vsub.f32 %v4642, %v5359
        %v5459 = vsub.f32 %v4643, %v5359
        %v5460 = vsub.f32 %v4644, %v5364
        %v5461 = vsub.f32 %v4645, %v5364
        %v5462 = vmul.f32 %v5366, 1.442695
        %v5463 = vpow.pop %v5462
        %v5464 = vmul.f32 %v5367, 1.442695
        %v5465 = vpow.pop %v5464
        %v5466 = vmul.f32 %v5368, 1.442695
        %v5467 = vpow.pop %v5466
        %v5468 = vmul.f32 %v5369, 1.442695
        %v5469 = vpow.pop %v5468
        %v5470 = vmul.f32 %v5370, 1.442695
        %v5471 = vpow.pop %v5470
        %v5472 = vmul.f32 %v5371, 1.442695
        %v5473 = vpow.pop %v5472
        %v5474 = vmul.f32 %v5372, 1.442695
        %v5475 = vpow.pop %v5474
        %v5476 = vmul.f32 %v5373, 1.442695
        %v5477 = vpow.pop %v5476
        %v5478 = vmul.f32 %v5374, 1.442695
        %v5479 = vpow.pop %v5478
        %v5480 = vmul.f32 %v5375, 1.442695
        %v5481 = vpow.pop %v5480
        %v5482 = vmul.f32 %v5376, 1.442695
        %v5483 = vpow.pop %v5482
        %v5484 = vmul.f32 %v5377, 1.442695
        %v5485 = vpow.pop %v5484
        %v5486 = vmul.f32 %v5378, 1.442695
        %v5487 = vpow.pop %v5486
        %v5488 = vmul.f32 %v5379, 1.442695
        %v5489 = vpow.pop %v5488
        %v5490 = vmul.f32 %v5380, 1.442695
        %v5491 = vpow.pop %v5490
        %v5492 = vmul.f32 %v5381, 1.442695
        %v5493 = vpow.pop %v5492
        %v5494 = vmul.f32 %v5382, 1.442695
        %v5495 = vpow.pop %v5494
        %v5496 = vmul.f32 %v5383, 1.442695
        %v5497 = vpow.pop %v5496
        %v5498 = vmul.f32 %v5384, 1.442695
        %v5499 = vpow.pop %v5498
        %v5500 = vmul.f32 %v5385, 1.442695
        %v5501 = vpow.pop %v5500
        %v5502 = vmul.f32 %v5386, 1.442695
        %v5503 = vpow.pop %v5502
        %v5504 = vmul.f32 %v5387, 1.442695
        %v5505 = vpow.pop %v5504
        %v5506 = vmul.f32 %v5388, 1.442695
        %v5507 = vpow.pop %v5506
        %v5508 = vmul.f32 %v5389, 1.442695
        %v5509 = vpow.pop %v5508
        %v5510 = vmul.f32 %v5390, 1.442695
        %v5511 = vpow.pop %v5510
        %v5512 = vmul.f32 %v5391, 1.442695
        %v5513 = vpow.pop %v5512
        %v5514 = vmul.f32 %v5392, 1.442695
        %v5515 = vpow.pop %v5514
        %v5516 = vmul.f32 %v5393, 1.442695
        %v5517 = vpow.pop %v5516
        %v5518 = vmul.f32 %v5394, 1.442695
        %v5519 = vpow.pop %v5518
        %v5520 = vmul.f32 %v5395, 1.442695
        %v5521 = vpow.pop %v5520
        %v5522 = vmul.f32 %v5396, 1.442695
        %v5523 = vpow.pop %v5522
        %v5524 = vmul.f32 %v5397, 1.442695
        %v5525 = vpow.pop %v5524
        %v5526 = vmul.f32 %v5398, 1.442695
        %v5527 = vpow.pop %v5526
        %v5528 = vmul.f32 %v5399, 1.442695
        %v5529 = vpow.pop %v5528
        %v5530 = vmul.f32 %v5400, 1.442695
        %v5531 = vpow.pop %v5530
        %v5532 = vmul.f32 %v5401, 1.442695
        %v5533 = vpow.pop %v5532
        %v5534 = vmul.f32 %v5402, 1.442695
        %v5535 = vpow.pop %v5534
        %v5536 = vmul.f32 %v5403, 1.442695
        %v5537 = vpow.pop %v5536
        %v5538 = vmul.f32 %v5404, 1.442695
        %v5539 = vpow.pop %v5538
        %v5540 = vmul.f32 %v5405, 1.442695
        %v5541 = vpow.pop %v5540
        %v5542 = vmul.f32 %v5406, 1.442695
        %v5543 = vpow.pop %v5542
        %v5544 = vmul.f32 %v5407, 1.442695
        %v5545 = vpow.pop %v5544
        %v5546 = vmul.f32 %v5408, 1.442695
        %v5547 = vpow.pop %v5546
        %v5548 = vmul.f32 %v5409, 1.442695
        %v5549 = vpow.pop %v5548
        %v5550 = vmul.f32 %v5410, 1.442695
        %v5551 = vpow.pop %v5550
        %v5552 = vmul.f32 %v5411, 1.442695
        %v5553 = vpow.pop %v5552
        %v5554 = vmul.f32 %v5412, 1.442695
        %v5555 = vpow.pop %v5554
        %v5556 = vmul.f32 %v5413, 1.442695
        %v5557 = vpow.pop %v5556
        %v5558 = vmul.f32 %v5414, 1.442695
        %v5559 = vpow.pop %v5558
        %v5560 = vmul.f32 %v5415, 1.442695
        %v5561 = vpow.pop %v5560
        %v5562 = vmul.f32 %v5416, 1.442695
        %v5563 = vpow.pop %v5562
        %v5564 = vmul.f32 %v5417, 1.442695
        %v5565 = vpow.pop %v5564
        %v5566 = vmul.f32 %v5418, 1.442695
        %v5567 = vpow.pop %v5566
        %v5568 = vmul.f32 %v5419, 1.442695
        %v5569 = vpow.pop %v5568
        %v5570 = vmul.f32 %v5420, 1.442695
        %v5571 = vpow.pop %v5570
        %v5572 = vmul.f32 %v5421, 1.442695
        %v5573 = vpow.pop %v5572
        %v5574 = vmul.f32 %v5422, 1.442695
        %v5575 = vpow.pop %v5574
        %v5576 = vmul.f32 %v5423, 1.442695
        %v5577 = vpow.pop %v5576
        %v5578 = vmul.f32 %v5424, 1.442695
        %v5579 = vpow.pop %v5578
        %v5580 = vmul.f32 %v5425, 1.442695
        %v5581 = vpow.pop %v5580
        %v5582 = vmul.f32 %v5426, 1.442695
        %v5583 = vpow.pop %v5582
        %v5584 = vmul.f32 %v5427, 1.442695
        %v5585 = vpow.pop %v5584
        %v5586 = vmul.f32 %v5428, 1.442695
        %v5587 = vpow.pop %v5586
        %v5588 = vmul.f32 %v5429, 1.442695
        %v5589 = vpow.pop %v5588
        %v5590 = vmul.f32 %v5430, 1.442695
        %v5591 = vpow.pop %v5590
        %v5592 = vmul.f32 %v5431, 1.442695
        %v5593 = vpow.pop %v5592
        %v5594 = vmul.f32 %v5432, 1.442695
        %v5595 = vpow.pop %v5594
        %v5596 = vmul.f32 %v5433, 1.442695
        %v5597 = vpow.pop %v5596
        %v5598 = vmul.f32 %v5434, 1.442695
        %v5599 = vpow.pop %v5598
        %v5600 = vmul.f32 %v5435, 1.442695
        %v5601 = vpow.pop %v5600
        %v5602 = vmul.f32 %v5436, 1.442695
        %v5603 = vpow.pop %v5602
        %v5604 = vmul.f32 %v5437, 1.442695
        %v5605 = vpow.pop %v5604
        %v5606 = vmul.f32 %v5438, 1.442695
        %v5607 = vpow.pop %v5606
        %v5608 = vmul.f32 %v5439, 1.442695
        %v5609 = vpow.pop %v5608
        %v5610 = vmul.f32 %v5440, 1.442695
        %v5611 = vpow.pop %v5610
        %v5612 = vmul.f32 %v5441, 1.442695
        %v5613 = vpow.pop %v5612
        %v5614 = vmul.f32 %v5442, 1.442695
        %v5615 = vpow.pop %v5614
        %v5616 = vmul.f32 %v5443, 1.442695
        %v5617 = vpow.pop %v5616
        %v5618 = vmul.f32 %v5444, 1.442695
        %v5619 = vpow.pop %v5618
        %v5620 = vmul.f32 %v5445, 1.442695
        %v5621 = vpow.pop %v5620
        %v5622 = vmul.f32 %v5446, 1.442695
        %v5623 = vpow.pop %v5622
        %v5624 = vmul.f32 %v5447, 1.442695
        %v5625 = vpow.pop %v5624
        %v5626 = vmul.f32 %v5448, 1.442695
        %v5627 = vpow.pop %v5626
        %v5628 = vmul.f32 %v5449, 1.442695
        %v5629 = vpow.pop %v5628
        %v5630 = vmul.f32 %v5450, 1.442695
        %v5631 = vpow.pop %v5630
        %v5632 = vmul.f32 %v5451, 1.442695
        %v5633 = vpow.pop %v5632
        %v5634 = vmul.f32 %v5452, 1.442695
        %v5635 = vpow.pop %v5634
        %v5636 = vmul.f32 %v5453, 1.442695
        %v5637 = vpow.pop %v5636
        %v5638 = vmul.f32 %v5454, 1.442695
        %v5639 = vpow.pop %v5638
        %v5640 = vmul.f32 %v5455, 1.442695
        %v5641 = vpow.pop %v5640
        %v5642 = vmul.f32 %v5456, 1.442695
        %v5643 = vpow.pop %v5642
        %v5644 = vmul.f32 %v5457, 1.442695
        %v5645 = vpow.pop %v5644
        %v5646 = vmul.f32 %v5458, 1.442695
        %v5647 = vpow.pop %v5646
        %v5648 = vmul.f32 %v5459, 1.442695
        %v5649 = vpow.pop %v5648
        %v5650 = vmul.f32 %v5460, 1.442695
        %v5651 = vpow.pop %v5650
        %v5652 = vmul.f32 %v5461, 1.442695
        %v5653 = vpow.pop %v5652
        %v5654 = vadd.f32 %v5463, %v5465
        %5655 = vadd.xlane.f32.xlu0 %v5654
        %v5656 = vpop.xlane.xlu0 %5655
        %v5657 = vadd.f32 %v5467, %v5469
        %5658 = vadd.xlane.f32.xlu0 %v5657
        %v5659 = vpop.xlane.xlu0 %5658
        %v5660 = vadd.f32 %v5471, %v5473
        %5661 = vadd.xlane.f32.xlu0 %v5660
        %v5662 = vpop.xlane.xlu0 %5661
        %v5663 = vadd.f32 %v5475, %v5477
        %5664 = vadd.xlane.f32.xlu0 %v5663
        %v5665 = vpop.xlane.xlu0 %5664
        %v5666 = vadd.f32 %v5479, %v5481
        %5667 = vadd.xlane.f32.xlu0 %v5666
        %v5668 = vpop.xlane.xlu0 %5667
        %v5669 = vadd.f32 %v5483, %v5485
        %5670 = vadd.xlane.f32.xlu0 %v5669
        %v5671 = vpop.xlane.xlu0 %5670
        %v5672 = vadd.f32 %v5487, %v5489
        %5673 = vadd.xlane.f32.xlu0 %v5672
        %v5674 = vpop.xlane.xlu0 %5673
        %v5675 = vadd.f32 %v5491, %v5493
        %5676 = vadd.xlane.f32.xlu0 %v5675
        %v5677 = vpop.xlane.xlu0 %5676
        %v5678 = vadd.f32 %v5495, %v5497
        %5679 = vadd.xlane.f32.xlu0 %v5678
        %v5680 = vpop.xlane.xlu0 %5679
        %v5681 = vadd.f32 %v5499, %v5501
        %5682 = vadd.xlane.f32.xlu0 %v5681
        %v5683 = vpop.xlane.xlu0 %5682
        %v5684 = vadd.f32 %v5503, %v5505
        %5685 = vadd.xlane.f32.xlu0 %v5684
        %v5686 = vpop.xlane.xlu0 %5685
        %v5687 = vadd.f32 %v5507, %v5509
        %5688 = vadd.xlane.f32.xlu0 %v5687
        %v5689 = vpop.xlane.xlu0 %5688
        %v5690 = vadd.f32 %v5511, %v5513
        %5691 = vadd.xlane.f32.xlu0 %v5690
        %v5692 = vpop.xlane.xlu0 %5691
        %v5693 = vadd.f32 %v5515, %v5517
        %5694 = vadd.xlane.f32.xlu0 %v5693
        %v5695 = vpop.xlane.xlu0 %5694
        %v5696 = vadd.f32 %v5519, %v5521
        %5697 = vadd.xlane.f32.xlu0 %v5696
        %v5698 = vpop.xlane.xlu0 %5697
        %v5699 = vadd.f32 %v5523, %v5525
        %5700 = vadd.xlane.f32.xlu0 %v5699
        %v5701 = vpop.xlane.xlu0 %5700
        %v5702 = vadd.f32 %v5527, %v5529
        %5703 = vadd.xlane.f32.xlu0 %v5702
        %v5704 = vpop.xlane.xlu0 %5703
        %v5705 = vadd.f32 %v5531, %v5533
        %5706 = vadd.xlane.f32.xlu0 %v5705
        %v5707 = vpop.xlane.xlu0 %5706
        %v5708 = vadd.f32 %v5535, %v5537
        %5709 = vadd.xlane.f32.xlu0 %v5708
        %v5710 = vpop.xlane.xlu0 %5709
        %v5711 = vadd.f32 %v5539, %v5541
        %5712 = vadd.xlane.f32.xlu0 %v5711
        %v5713 = vpop.xlane.xlu0 %5712
        %v5714 = vadd.f32 %v5543, %v5545
        %5715 = vadd.xlane.f32.xlu0 %v5714
        %v5716 = vpop.xlane.xlu0 %5715
        %v5717 = vadd.f32 %v5547, %v5549
        %5718 = vadd.xlane.f32.xlu0 %v5717
        %v5719 = vpop.xlane.xlu0 %5718
        %v5720 = vadd.f32 %v5551, %v5553
        %5721 = vadd.xlane.f32.xlu0 %v5720
        %v5722 = vpop.xlane.xlu0 %5721
        %v5723 = vadd.f32 %v5555, %v5557
        %5724 = vadd.xlane.f32.xlu0 %v5723
        %v5725 = vpop.xlane.xlu0 %5724
        %v5726 = vadd.f32 %v5559, %v5561
        %5727 = vadd.xlane.f32.xlu0 %v5726
        %v5728 = vpop.xlane.xlu0 %5727
        %v5729 = vadd.f32 %v5563, %v5565
        %5730 = vadd.xlane.f32.xlu0 %v5729
        %v5731 = vpop.xlane.xlu0 %5730
        %v5732 = vadd.f32 %v5567, %v5569
        %5733 = vadd.xlane.f32.xlu0 %v5732
        %v5734 = vpop.xlane.xlu0 %5733
        %v5735 = vadd.f32 %v5571, %v5573
        %5736 = vadd.xlane.f32.xlu0 %v5735
        %v5737 = vpop.xlane.xlu0 %5736
        %v5738 = vadd.f32 %v5575, %v5577
        %5739 = vadd.xlane.f32.xlu0 %v5738
        %v5740 = vpop.xlane.xlu0 %5739
        %v5741 = vadd.f32 %v5579, %v5581
        %5742 = vadd.xlane.f32.xlu0 %v5741
        %v5743 = vpop.xlane.xlu0 %5742
        %v5744 = vadd.f32 %v5583, %v5585
        %5745 = vadd.xlane.f32.xlu0 %v5744
        %v5746 = vpop.xlane.xlu0 %5745
        %v5747 = vadd.f32 %v5587, %v5589
        %5748 = vadd.xlane.f32.xlu0 %v5747
        %v5749 = vpop.xlane.xlu0 %5748
        %v5750 = vadd.f32 %v5591, %v5593
        %5751 = vadd.xlane.f32.xlu0 %v5750
        %v5752 = vpop.xlane.xlu0 %5751
        %v5753 = vadd.f32 %v5595, %v5597
        %5754 = vadd.xlane.f32.xlu0 %v5753
        %v5755 = vpop.xlane.xlu0 %5754
        %v5756 = vadd.f32 %v5599, %v5601
        %5757 = vadd.xlane.f32.xlu0 %v5756
        %v5758 = vpop.xlane.xlu0 %5757
        %v5759 = vadd.f32 %v5603, %v5605
        %5760 = vadd.xlane.f32.xlu0 %v5759
        %v5761 = vpop.xlane.xlu0 %5760
        %v5762 = vadd.f32 %v5607, %v5609
        %5763 = vadd.xlane.f32.xlu0 %v5762
        %v5764 = vpop.xlane.xlu0 %5763
        %v5765 = vadd.f32 %v5611, %v5613
        %5766 = vadd.xlane.f32.xlu0 %v5765
        %v5767 = vpop.xlane.xlu0 %5766
        %v5768 = vadd.f32 %v5615, %v5617
        %5769 = vadd.xlane.f32.xlu0 %v5768
        %v5770 = vpop.xlane.xlu0 %5769
        %v5771 = vadd.f32 %v5619, %v5621
        %5772 = vadd.xlane.f32.xlu0 %v5771
        %v5773 = vpop.xlane.xlu0 %5772
        %v5774 = vadd.f32 %v5623, %v5625
        %5775 = vadd.xlane.f32.xlu0 %v5774
        %v5776 = vpop.xlane.xlu0 %5775
        %v5777 = vadd.f32 %v5627, %v5629
        %5778 = vadd.xlane.f32.xlu0 %v5777
        %v5779 = vpop.xlane.xlu0 %5778
        %v5780 = vadd.f32 %v5631, %v5633
        %5781 = vadd.xlane.f32.xlu0 %v5780
        %v5782 = vpop.xlane.xlu0 %5781
        %v5783 = vadd.f32 %v5635, %v5637
        %5784 = vadd.xlane.f32.xlu0 %v5783
        %v5785 = vpop.xlane.xlu0 %5784
        %v5786 = vadd.f32 %v5639, %v5641
        %5787 = vadd.xlane.f32.xlu0 %v5786
        %v5788 = vpop.xlane.xlu0 %5787
        %v5789 = vadd.f32 %v5643, %v5645
        %5790 = vadd.xlane.f32.xlu0 %v5789
        %v5791 = vpop.xlane.xlu0 %5790
        %v5792 = vadd.f32 %v5647, %v5649
        %5793 = vadd.xlane.f32.xlu0 %v5792
        %v5794 = vpop.xlane.xlu0 %5793
        %v5795 = vadd.f32 %v5651, %v5653
        %5796 = vadd.xlane.f32.xlu0 %v5795
        %v5797 = vpop.xlane.xlu0 %5796
        %v5798 = vadd.f32 %v5078, %v5656
        %v5799 = vadd.f32 %v5079, %v5659
        %v5800 = vadd.f32 %v5080, %v5662
        %v5801 = vadd.f32 %v5081, %v5665
        %v5802 = vadd.f32 %v5082, %v5668
        %v5803 = vadd.f32 %v5083, %v5671
        %v5804 = vadd.f32 %v5084, %v5674
        %v5805 = vadd.f32 %v5085, %v5677
        %v5806 = vadd.f32 %v5086, %v5680
        %v5807 = vadd.f32 %v5087, %v5683
        %v5808 = vadd.f32 %v5088, %v5686
        %v5809 = vadd.f32 %v5089, %v5689
        %v5810 = vadd.f32 %v5090, %v5692
        %v5811 = vadd.f32 %v5091, %v5695
        %v5812 = vadd.f32 %v5092, %v5698
        %v5813 = vadd.f32 %v5093, %v5701
        %v5814 = vadd.f32 %v5094, %v5704
        %v5815 = vadd.f32 %v5095, %v5707
        %v5816 = vadd.f32 %v5096, %v5710
        %v5817 = vadd.f32 %v5097, %v5713
        %v5818 = vadd.f32 %v5098, %v5716
        %v5819 = vadd.f32 %v5099, %v5719
        %v5820 = vadd.f32 %v5100, %v5722
        %v5821 = vadd.f32 %v5101, %v5725
        %v5822 = vadd.f32 %v5102, %v5728
        %v5823 = vadd.f32 %v5103, %v5731
        %v5824 = vadd.f32 %v5104, %v5734
        %v5825 = vadd.f32 %v5105, %v5737
        %v5826 = vadd.f32 %v5106, %v5740
        %v5827 = vadd.f32 %v5107, %v5743
        %v5828 = vadd.f32 %v5108, %v5746
        %v5829 = vadd.f32 %v5109, %v5749
        %v5830 = vadd.f32 %v5110, %v5752
        %v5831 = vadd.f32 %v5111, %v5755
        %v5832 = vadd.f32 %v5112, %v5758
        %v5833 = vadd.f32 %v5113, %v5761
        %v5834 = vadd.f32 %v5114, %v5764
        %v5835 = vadd.f32 %v5115, %v5767
        %v5836 = vadd.f32 %v5116, %v5770
        %v5837 = vadd.f32 %v5117, %v5773
        %v5838 = vadd.f32 %v5118, %v5776
        %v5839 = vadd.f32 %v5119, %v5779
        %v5840 = vadd.f32 %v5120, %v5782
        %v5841 = vadd.f32 %v5121, %v5785
        %v5842 = vadd.f32 %v5122, %v5788
        %v5843 = vadd.f32 %v5123, %v5791
        %v5844 = vadd.f32 %v5124, %v5794
        %v5845 = vadd.f32 %v5125, %v5797
        %5846 = vst.msk [vmem:[#allocation5] sm:$0xff] %vm3505, %v5798
        %5847 = vst.msk [vmem:[#allocation5 + $0x8] sm:$0xff] %vm3505, %v5799
        %5848 = vst.msk [vmem:[#allocation5 + $0x10] sm:$0xff] %vm3505, %v5800
        %5849 = vst.msk [vmem:[#allocation5 + $0x18] sm:$0xff] %vm3505, %v5801
        %5850 = vst.msk [vmem:[#allocation5 + $0x20] sm:$0xff] %vm3505, %v5802
        %5851 = vst.msk [vmem:[#allocation5 + $0x28] sm:$0xff] %vm3505, %v5803
        %5852 = vst.msk [vmem:[#allocation5 + $0x30] sm:$0xff] %vm3505, %v5804
        %5853 = vst.msk [vmem:[#allocation5 + $0x38] sm:$0xff] %vm3505, %v5805
        %5854 = vst.msk [vmem:[#allocation5 + $0x40] sm:$0xff] %vm3505, %v5806
        %5855 = vst.msk [vmem:[#allocation5 + $0x48] sm:$0xff] %vm3505, %v5807
        %5856 = vst.msk [vmem:[#allocation5 + $0x50] sm:$0xff] %vm3505, %v5808
        %5857 = vst.msk [vmem:[#allocation5 + $0x58] sm:$0xff] %vm3505, %v5809
        %5858 = vst.msk [vmem:[#allocation5 + $0x60] sm:$0xff] %vm3505, %v5810
        %5859 = vst.msk [vmem:[#allocation5 + $0x68] sm:$0xff] %vm3505, %v5811
        %5860 = vst.msk [vmem:[#allocation5 + $0x70] sm:$0xff] %vm3505, %v5812
        %5861 = vst.msk [vmem:[#allocation5 + $0x78] sm:$0xff] %vm3505, %v5813
        %5862 = vst.msk [vmem:[#allocation5 + $0x80] sm:$0xff] %vm3505, %v5814
        %5863 = vst.msk [vmem:[#allocation5 + $0x88] sm:$0xff] %vm3505, %v5815
        %5864 = vst.msk [vmem:[#allocation5 + $0x90] sm:$0xff] %vm3505, %v5816
        %5865 = vst.msk [vmem:[#allocation5 + $0x98] sm:$0xff] %vm3505, %v5817
        %5866 = vst.msk [vmem:[#allocation5 + $0xa0] sm:$0xff] %vm3505, %v5818
        %5867 = vst.msk [vmem:[#allocation5 + $0xa8] sm:$0xff] %vm3505, %v5819
        %5868 = vst.msk [vmem:[#allocation5 + $0xb0] sm:$0xff] %vm3505, %v5820
        %5869 = vst.msk [vmem:[#allocation5 + $0xb8] sm:$0xff] %vm3505, %v5821
        %5870 = vst.msk [vmem:[#allocation5 + $0xc0] sm:$0xff] %vm3505, %v5822
        %5871 = vst.msk [vmem:[#allocation5 + $0xc8] sm:$0xff] %vm3505, %v5823
        %5872 = vst.msk [vmem:[#allocation5 + $0xd0] sm:$0xff] %vm3505, %v5824
        %5873 = vst.msk [vmem:[#allocation5 + $0xd8] sm:$0xff] %vm3505, %v5825
        %5874 = vst.msk [vmem:[#allocation5 + $0xe0] sm:$0xff] %vm3505, %v5826
        %5875 = vst.msk [vmem:[#allocation5 + $0xe8] sm:$0xff] %vm3505, %v5827
        %5876 = vst.msk [vmem:[#allocation5 + $0xf0] sm:$0xff] %vm3505, %v5828
        %5877 = vst.msk [vmem:[#allocation5 + $0xf8] sm:$0xff] %vm3505, %v5829
        %5878 = vst.msk [vmem:[#allocation5 + $0x100] sm:$0xff] %vm3505, %v5830
        %5879 = vst.msk [vmem:[#allocation5 + $0x108] sm:$0xff] %vm3505, %v5831
        %5880 = vst.msk [vmem:[#allocation5 + $0x110] sm:$0xff] %vm3505, %v5832
        %5881 = vst.msk [vmem:[#allocation5 + $0x118] sm:$0xff] %vm3505, %v5833
        %5882 = vst.msk [vmem:[#allocation5 + $0x120] sm:$0xff] %vm3505, %v5834
        %5883 = vst.msk [vmem:[#allocation5 + $0x128] sm:$0xff] %vm3505, %v5835
        %5884 = vst.msk [vmem:[#allocation5 + $0x130] sm:$0xff] %vm3505, %v5836
        %5885 = vst.msk [vmem:[#allocation5 + $0x138] sm:$0xff] %vm3505, %v5837
        %5886 = vst.msk [vmem:[#allocation5 + $0x140] sm:$0xff] %vm3505, %v5838
        %5887 = vst.msk [vmem:[#allocation5 + $0x148] sm:$0xff] %vm3505, %v5839
        %5888 = vst.msk [vmem:[#allocation5 + $0x150] sm:$0xff] %vm3505, %v5840
        %5889 = vst.msk [vmem:[#allocation5 + $0x158] sm:$0xff] %vm3505, %v5841
        %5890 = vst.msk [vmem:[#allocation5 + $0x160] sm:$0xff] %vm3505, %v5842
        %5891 = vst.msk [vmem:[#allocation5 + $0x168] sm:$0xff] %vm3505, %v5843
        %5892 = vst.msk [vmem:[#allocation5 + $0x170] sm:$0xff] %vm3505, %v5844
        %5893 = vst.msk [vmem:[#allocation5 + $0x178] sm:$0xff] %vm3505, %v5845
        %5894 = vst.msk [vmem:[#allocation4] sm:$0xff] %vm3505, %v4838
        %5895 = vst.msk [vmem:[#allocation4 + $0x8] sm:$0xff] %vm3505, %v4839
        %5896 = vst.msk [vmem:[#allocation4 + $0x10] sm:$0xff] %vm3505, %v4840
        %5897 = vst.msk [vmem:[#allocation4 + $0x18] sm:$0xff] %vm3505, %v4841
        %5898 = vst.msk [vmem:[#allocation4 + $0x20] sm:$0xff] %vm3505, %v4842
        %5899 = vst.msk [vmem:[#allocation4 + $0x28] sm:$0xff] %vm3505, %v4843
        %5900 = vst.msk [vmem:[#allocation4 + $0x30] sm:$0xff] %vm3505, %v4844
        %5901 = vst.msk [vmem:[#allocation4 + $0x38] sm:$0xff] %vm3505, %v4845
        %5902 = vst.msk [vmem:[#allocation4 + $0x40] sm:$0xff] %vm3505, %v4846
        %5903 = vst.msk [vmem:[#allocation4 + $0x48] sm:$0xff] %vm3505, %v4847
        %5904 = vst.msk [vmem:[#allocation4 + $0x50] sm:$0xff] %vm3505, %v4848
        %5905 = vst.msk [vmem:[#allocation4 + $0x58] sm:$0xff] %vm3505, %v4849
        %5906 = vst.msk [vmem:[#allocation4 + $0x60] sm:$0xff] %vm3505, %v4850
        %5907 = vst.msk [vmem:[#allocation4 + $0x68] sm:$0xff] %vm3505, %v4851
        %5908 = vst.msk [vmem:[#allocation4 + $0x70] sm:$0xff] %vm3505, %v4852
        %5909 = vst.msk [vmem:[#allocation4 + $0x78] sm:$0xff] %vm3505, %v4853
        %5910 = vst.msk [vmem:[#allocation4 + $0x80] sm:$0xff] %vm3505, %v4854
        %5911 = vst.msk [vmem:[#allocation4 + $0x88] sm:$0xff] %vm3505, %v4855
        %5912 = vst.msk [vmem:[#allocation4 + $0x90] sm:$0xff] %vm3505, %v4856
        %5913 = vst.msk [vmem:[#allocation4 + $0x98] sm:$0xff] %vm3505, %v4857
        %5914 = vst.msk [vmem:[#allocation4 + $0xa0] sm:$0xff] %vm3505, %v4858
        %5915 = vst.msk [vmem:[#allocation4 + $0xa8] sm:$0xff] %vm3505, %v4859
        %5916 = vst.msk [vmem:[#allocation4 + $0xb0] sm:$0xff] %vm3505, %v4860
        %5917 = vst.msk [vmem:[#allocation4 + $0xb8] sm:$0xff] %vm3505, %v4861
        %5918 = vst.msk [vmem:[#allocation4 + $0xc0] sm:$0xff] %vm3505, %v4862
        %5919 = vst.msk [vmem:[#allocation4 + $0xc8] sm:$0xff] %vm3505, %v4863
        %5920 = vst.msk [vmem:[#allocation4 + $0xd0] sm:$0xff] %vm3505, %v4864
        %5921 = vst.msk [vmem:[#allocation4 + $0xd8] sm:$0xff] %vm3505, %v4865
        %5922 = vst.msk [vmem:[#allocation4 + $0xe0] sm:$0xff] %vm3505, %v4866
        %5923 = vst.msk [vmem:[#allocation4 + $0xe8] sm:$0xff] %vm3505, %v4867
        %5924 = vst.msk [vmem:[#allocation4 + $0xf0] sm:$0xff] %vm3505, %v4868
        %5925 = vst.msk [vmem:[#allocation4 + $0xf8] sm:$0xff] %vm3505, %v4869
        %5926 = vst.msk [vmem:[#allocation4 + $0x100] sm:$0xff] %vm3505, %v4870
        %5927 = vst.msk [vmem:[#allocation4 + $0x108] sm:$0xff] %vm3505, %v4871
        %5928 = vst.msk [vmem:[#allocation4 + $0x110] sm:$0xff] %vm3505, %v4872
        %5929 = vst.msk [vmem:[#allocation4 + $0x118] sm:$0xff] %vm3505, %v4873
        %5930 = vst.msk [vmem:[#allocation4 + $0x120] sm:$0xff] %vm3505, %v4874
        %5931 = vst.msk [vmem:[#allocation4 + $0x128] sm:$0xff] %vm3505, %v4875
        %5932 = vst.msk [vmem:[#allocation4 + $0x130] sm:$0xff] %vm3505, %v4876
        %5933 = vst.msk [vmem:[#allocation4 + $0x138] sm:$0xff] %vm3505, %v4877
        %5934 = vst.msk [vmem:[#allocation4 + $0x140] sm:$0xff] %vm3505, %v4878
        %5935 = vst.msk [vmem:[#allocation4 + $0x148] sm:$0xff] %vm3505, %v4879
        %5936 = vst.msk [vmem:[#allocation4 + $0x150] sm:$0xff] %vm3505, %v4880
        %5937 = vst.msk [vmem:[#allocation4 + $0x158] sm:$0xff] %vm3505, %v4881
        %5938 = vst.msk [vmem:[#allocation4 + $0x160] sm:$0xff] %vm3505, %v4882
        %5939 = vst.msk [vmem:[#allocation4 + $0x168] sm:$0xff] %vm3505, %v4883
        %5940 = vst.msk [vmem:[#allocation4 + $0x170] sm:$0xff] %vm3505, %v4884
        %5941 = vst.msk [vmem:[#allocation4 + $0x178] sm:$0xff] %vm3505, %v4885
        %p5942 = scmp.eq.s32.totalorder %s34, 2
        // Predicated region
        $region61: #{tpu_custom_call.1} parent=39 // pred_check
          %p5943 = pneg %p5942
        $region62: #{tpu_custom_call.1} parent=39 // pred_check_branch
          %5945 = sbr.rel (%p5943) target = $region64
        $region63: #{tpu_custom_call.1} parent=39 // pred_region
          %v5946 = vld [vmem:[#allocation2] sm:$0xff]
          %v5947 = vld [vmem:[#allocation2 + $0x8] sm:$0xff]
          %v5948 = vld [vmem:[#allocation2 + $0x10] sm:$0xff]
          %v5949 = vld [vmem:[#allocation2 + $0x18] sm:$0xff]
          %v5950 = vld [vmem:[#allocation2 + $0x20] sm:$0xff]
          %v5951 = vld [vmem:[#allocation2 + $0x28] sm:$0xff]
          %v5952 = vld [vmem:[#allocation2 + $0x30] sm:$0xff]
          %v5953 = vld [vmem:[#allocation2 + $0x38] sm:$0xff]
          %v5954 = vld [vmem:[#allocation2 + $0x40] sm:$0xff]
          %v5955 = vld [vmem:[#allocation2 + $0x48] sm:$0xff]
          %v5956 = vld [vmem:[#allocation2 + $0x50] sm:$0xff]
          %v5957 = vld [vmem:[#allocation2 + $0x58] sm:$0xff]
          %v5958 = vld [vmem:[#allocation2 + $0x60] sm:$0xff]
          %v5959 = vld [vmem:[#allocation2 + $0x68] sm:$0xff]
          %v5960 = vld [vmem:[#allocation2 + $0x70] sm:$0xff]
          %v5961 = vld [vmem:[#allocation2 + $0x78] sm:$0xff]
          %v5962 = vld [vmem:[#allocation2 + $0x80] sm:$0xff]
          %v5963 = vld [vmem:[#allocation2 + $0x88] sm:$0xff]
          %v5964 = vld [vmem:[#allocation2 + $0x90] sm:$0xff]
          %v5965 = vld [vmem:[#allocation2 + $0x98] sm:$0xff]
          %v5966 = vld [vmem:[#allocation2 + $0xa0] sm:$0xff]
          %v5967 = vld [vmem:[#allocation2 + $0xa8] sm:$0xff]
          %v5968 = vld [vmem:[#allocation2 + $0xb0] sm:$0xff]
          %v5969 = vld [vmem:[#allocation2 + $0xb8] sm:$0xff]
          %v5970 = vld [vmem:[#allocation2 + $0xc0] sm:$0xff]
          %v5971 = vld [vmem:[#allocation2 + $0xc8] sm:$0xff]
          %v5972 = vld [vmem:[#allocation2 + $0xd0] sm:$0xff]
          %v5973 = vld [vmem:[#allocation2 + $0xd8] sm:$0xff]
          %v5974 = vld [vmem:[#allocation2 + $0xe0] sm:$0xff]
          %v5975 = vld [vmem:[#allocation2 + $0xe8] sm:$0xff]
          %v5976 = vld [vmem:[#allocation2 + $0xf0] sm:$0xff]
          %v5977 = vld [vmem:[#allocation2 + $0xf8] sm:$0xff]
          %v5978 = vld [vmem:[#allocation2 + $0x100] sm:$0xff]
          %v5979 = vld [vmem:[#allocation2 + $0x108] sm:$0xff]
          %v5980 = vld [vmem:[#allocation2 + $0x110] sm:$0xff]
          %v5981 = vld [vmem:[#allocation2 + $0x118] sm:$0xff]
          %v5982 = vld [vmem:[#allocation2 + $0x120] sm:$0xff]
          %v5983 = vld [vmem:[#allocation2 + $0x128] sm:$0xff]
          %v5984 = vld [vmem:[#allocation2 + $0x130] sm:$0xff]
          %v5985 = vld [vmem:[#allocation2 + $0x138] sm:$0xff]
          %v5986 = vld [vmem:[#allocation2 + $0x140] sm:$0xff]
          %v5987 = vld [vmem:[#allocation2 + $0x148] sm:$0xff]
          %v5988 = vld [vmem:[#allocation2 + $0x150] sm:$0xff]
          %v5989 = vld [vmem:[#allocation2 + $0x158] sm:$0xff]
          %v5990 = vld [vmem:[#allocation2 + $0x160] sm:$0xff]
          %v5991 = vld [vmem:[#allocation2 + $0x168] sm:$0xff]
          %v5992 = vld [vmem:[#allocation2 + $0x170] sm:$0xff]
          %v5993 = vld [vmem:[#allocation2 + $0x178] sm:$0xff]
          %v5994 = vld [vmem:[#allocation3] sm:$0xff]
          %v5995 = vld [vmem:[#allocation3 + $0x8] sm:$0xff]
          %v5996 = vld [vmem:[#allocation3 + $0x10] sm:$0xff]
          %v5997 = vld [vmem:[#allocation3 + $0x18] sm:$0xff]
          %v5998 = vld [vmem:[#allocation3 + $0x20] sm:$0xff]
          %v5999 = vld [vmem:[#allocation3 + $0x28] sm:$0xff]
          %v6000 = vld [vmem:[#allocation3 + $0x30] sm:$0xff]
          %v6001 = vld [vmem:[#allocation3 + $0x38] sm:$0xff]
          %v6002 = vld [vmem:[#allocation3 + $0x40] sm:$0xff]
          %v6003 = vld [vmem:[#allocation3 + $0x48] sm:$0xff]
          %v6004 = vld [vmem:[#allocation3 + $0x50] sm:$0xff]
          %v6005 = vld [vmem:[#allocation3 + $0x58] sm:$0xff]
          %v6006 = vld [vmem:[#allocation3 + $0x60] sm:$0xff]
          %v6007 = vld [vmem:[#allocation3 + $0x68] sm:$0xff]
          %v6008 = vld [vmem:[#allocation3 + $0x70] sm:$0xff]
          %v6009 = vld [vmem:[#allocation3 + $0x78] sm:$0xff]
          %v6010 = vld [vmem:[#allocation3 + $0x80] sm:$0xff]
          %v6011 = vld [vmem:[#allocation3 + $0x88] sm:$0xff]
          %v6012 = vld [vmem:[#allocation3 + $0x90] sm:$0xff]
          %v6013 = vld [vmem:[#allocation3 + $0x98] sm:$0xff]
          %v6014 = vld [vmem:[#allocation3 + $0xa0] sm:$0xff]
          %v6015 = vld [vmem:[#allocation3 + $0xa8] sm:$0xff]
          %v6016 = vld [vmem:[#allocation3 + $0xb0] sm:$0xff]
          %v6017 = vld [vmem:[#allocation3 + $0xb8] sm:$0xff]
          %v6018 = vld [vmem:[#allocation3 + $0xc0] sm:$0xff]
          %v6019 = vld [vmem:[#allocation3 + $0xc8] sm:$0xff]
          %v6020 = vld [vmem:[#allocation3 + $0xd0] sm:$0xff]
          %v6021 = vld [vmem:[#allocation3 + $0xd8] sm:$0xff]
          %v6022 = vld [vmem:[#allocation3 + $0xe0] sm:$0xff]
          %v6023 = vld [vmem:[#allocation3 + $0xe8] sm:$0xff]
          %v6024 = vld [vmem:[#allocation3 + $0xf0] sm:$0xff]
          %v6025 = vld [vmem:[#allocation3 + $0xf8] sm:$0xff]
          %v6026 = vld [vmem:[#allocation3 + $0x100] sm:$0xff]
          %v6027 = vld [vmem:[#allocation3 + $0x108] sm:$0xff]
          %v6028 = vld [vmem:[#allocation3 + $0x110] sm:$0xff]
          %v6029 = vld [vmem:[#allocation3 + $0x118] sm:$0xff]
          %v6030 = vld [vmem:[#allocation3 + $0x120] sm:$0xff]
          %v6031 = vld [vmem:[#allocation3 + $0x128] sm:$0xff]
          %v6032 = vld [vmem:[#allocation3 + $0x130] sm:$0xff]
          %v6033 = vld [vmem:[#allocation3 + $0x138] sm:$0xff]
          %v6034 = vld [vmem:[#allocation3 + $0x140] sm:$0xff]
          %v6035 = vld [vmem:[#allocation3 + $0x148] sm:$0xff]
          %v6036 = vld [vmem:[#allocation3 + $0x150] sm:$0xff]
          %v6037 = vld [vmem:[#allocation3 + $0x158] sm:$0xff]
          %v6038 = vld [vmem:[#allocation3 + $0x160] sm:$0xff]
          %v6039 = vld [vmem:[#allocation3 + $0x168] sm:$0xff]
          %v6040 = vld [vmem:[#allocation3 + $0x170] sm:$0xff]
          %v6041 = vld [vmem:[#allocation3 + $0x178] sm:$0xff]
          %v6042 = vlog2.pop %v5994
          %v6043 = vmul.f32 %v6042, 0.6931472
          %v6044 = vlog2.pop %v5995
          %v6045 = vmul.f32 %v6044, 0.6931472
          %v6046 = vlog2.pop %v5996
          %v6047 = vmul.f32 %v6046, 0.6931472
          %v6048 = vlog2.pop %v5997
          %v6049 = vmul.f32 %v6048, 0.6931472
          %v6050 = vlog2.pop %v5998
          %v6051 = vmul.f32 %v6050, 0.6931472
          %v6052 = vlog2.pop %v5999
          %v6053 = vmul.f32 %v6052, 0.6931472
          %v6054 = vlog2.pop %v6000
          %v6055 = vmul.f32 %v6054, 0.6931472
          %v6056 = vlog2.pop %v6001
          %v6057 = vmul.f32 %v6056, 0.6931472
          %v6058 = vlog2.pop %v6002
          %v6059 = vmul.f32 %v6058, 0.6931472
          %v6060 = vlog2.pop %v6003
          %v6061 = vmul.f32 %v6060, 0.6931472
          %v6062 = vlog2.pop %v6004
          %v6063 = vmul.f32 %v6062, 0.6931472
          %v6064 = vlog2.pop %v6005
          %v6065 = vmul.f32 %v6064, 0.6931472
          %v6066 = vlog2.pop %v6006
          %v6067 = vmul.f32 %v6066, 0.6931472
          %v6068 = vlog2.pop %v6007
          %v6069 = vmul.f32 %v6068, 0.6931472
          %v6070 = vlog2.pop %v6008
          %v6071 = vmul.f32 %v6070, 0.6931472
          %v6072 = vlog2.pop %v6009
          %v6073 = vmul.f32 %v6072, 0.6931472
          %v6074 = vlog2.pop %v6010
          %v6075 = vmul.f32 %v6074, 0.6931472
          %v6076 = vlog2.pop %v6011
          %v6077 = vmul.f32 %v6076, 0.6931472
          %v6078 = vlog2.pop %v6012
          %v6079 = vmul.f32 %v6078, 0.6931472
          %v6080 = vlog2.pop %v6013
          %v6081 = vmul.f32 %v6080, 0.6931472
          %v6082 = vlog2.pop %v6014
          %v6083 = vmul.f32 %v6082, 0.6931472
          %v6084 = vlog2.pop %v6015
          %v6085 = vmul.f32 %v6084, 0.6931472
          %v6086 = vlog2.pop %v6016
          %v6087 = vmul.f32 %v6086, 0.6931472
          %v6088 = vlog2.pop %v6017
          %v6089 = vmul.f32 %v6088, 0.6931472
          %v6090 = vlog2.pop %v6018
          %v6091 = vmul.f32 %v6090, 0.6931472
          %v6092 = vlog2.pop %v6019
          %v6093 = vmul.f32 %v6092, 0.6931472
          %v6094 = vlog2.pop %v6020
          %v6095 = vmul.f32 %v6094, 0.6931472
          %v6096 = vlog2.pop %v6021
          %v6097 = vmul.f32 %v6096, 0.6931472
          %v6098 = vlog2.pop %v6022
          %v6099 = vmul.f32 %v6098, 0.6931472
          %v6100 = vlog2.pop %v6023
          %v6101 = vmul.f32 %v6100, 0.6931472
          %v6102 = vlog2.pop %v6024
          %v6103 = vmul.f32 %v6102, 0.6931472
          %v6104 = vlog2.pop %v6025
          %v6105 = vmul.f32 %v6104, 0.6931472
          %v6106 = vlog2.pop %v6026
          %v6107 = vmul.f32 %v6106, 0.6931472
          %v6108 = vlog2.pop %v6027
          %v6109 = vmul.f32 %v6108, 0.6931472
          %v6110 = vlog2.pop %v6028
          %v6111 = vmul.f32 %v6110, 0.6931472
          %v6112 = vlog2.pop %v6029
          %v6113 = vmul.f32 %v6112, 0.6931472
          %v6114 = vlog2.pop %v6030
          %v6115 = vmul.f32 %v6114, 0.6931472
          %v6116 = vlog2.pop %v6031
          %v6117 = vmul.f32 %v6116, 0.6931472
          %v6118 = vlog2.pop %v6032
          %v6119 = vmul.f32 %v6118, 0.6931472
          %v6120 = vlog2.pop %v6033
          %v6121 = vmul.f32 %v6120, 0.6931472
          %v6122 = vlog2.pop %v6034
          %v6123 = vmul.f32 %v6122, 0.6931472
          %v6124 = vlog2.pop %v6035
          %v6125 = vmul.f32 %v6124, 0.6931472
          %v6126 = vlog2.pop %v6036
          %v6127 = vmul.f32 %v6126, 0.6931472
          %v6128 = vlog2.pop %v6037
          %v6129 = vmul.f32 %v6128, 0.6931472
          %v6130 = vlog2.pop %v6038
          %v6131 = vmul.f32 %v6130, 0.6931472
          %v6132 = vlog2.pop %v6039
          %v6133 = vmul.f32 %v6132, 0.6931472
          %v6134 = vlog2.pop %v6040
          %v6135 = vmul.f32 %v6134, 0.6931472
          %v6136 = vlog2.pop %v6041
          %v6137 = vmul.f32 %v6136, 0.6931472
          %v6138 = vadd.f32 %v5946, %v6043
          %v6139 = vadd.f32 %v5947, %v6045
          %v6140 = vadd.f32 %v5948, %v6047
          %v6141 = vadd.f32 %v5949, %v6049
          %v6142 = vadd.f32 %v5950, %v6051
          %v6143 = vadd.f32 %v5951, %v6053
          %v6144 = vadd.f32 %v5952, %v6055
          %v6145 = vadd.f32 %v5953, %v6057
          %v6146 = vadd.f32 %v5954, %v6059
          %v6147 = vadd.f32 %v5955, %v6061
          %v6148 = vadd.f32 %v5956, %v6063
          %v6149 = vadd.f32 %v5957, %v6065
          %v6150 = vadd.f32 %v5958, %v6067
          %v6151 = vadd.f32 %v5959, %v6069
          %v6152 = vadd.f32 %v5960, %v6071
          %v6153 = vadd.f32 %v5961, %v6073
          %v6154 = vadd.f32 %v5962, %v6075
          %v6155 = vadd.f32 %v5963, %v6077
          %v6156 = vadd.f32 %v5964, %v6079
          %v6157 = vadd.f32 %v5965, %v6081
          %v6158 = vadd.f32 %v5966, %v6083
          %v6159 = vadd.f32 %v5967, %v6085
          %v6160 = vadd.f32 %v5968, %v6087
          %v6161 = vadd.f32 %v5969, %v6089
          %v6162 = vadd.f32 %v5970, %v6091
          %v6163 = vadd.f32 %v5971, %v6093
          %v6164 = vadd.f32 %v5972, %v6095
          %v6165 = vadd.f32 %v5973, %v6097
          %v6166 = vadd.f32 %v5974, %v6099
          %v6167 = vadd.f32 %v5975, %v6101
          %v6168 = vadd.f32 %v5976, %v6103
          %v6169 = vadd.f32 %v5977, %v6105
          %v6170 = vadd.f32 %v5978, %v6107
          %v6171 = vadd.f32 %v5979, %v6109
          %v6172 = vadd.f32 %v5980, %v6111
          %v6173 = vadd.f32 %v5981, %v6113
          %v6174 = vadd.f32 %v5982, %v6115
          %v6175 = vadd.f32 %v5983, %v6117
          %v6176 = vadd.f32 %v5984, %v6119
          %v6177 = vadd.f32 %v5985, %v6121
          %v6178 = vadd.f32 %v5986, %v6123
          %v6179 = vadd.f32 %v5987, %v6125
          %v6180 = vadd.f32 %v5988, %v6127
          %v6181 = vadd.f32 %v5989, %v6129
          %v6182 = vadd.f32 %v5990, %v6131
          %v6183 = vadd.f32 %v5991, %v6133
          %v6184 = vadd.f32 %v5992, %v6135
          %v6185 = vadd.f32 %v5993, %v6137
          %6186 = vst.msk [vmem:[%s459] sm:$0xff] %vm3505, %v6138
          %6187 = vst.msk [vmem:[%s459 + $0x8] sm:$0xff] %vm3505, %v6139
          %6188 = vst.msk [vmem:[%s459 + $0x10] sm:$0xff] %vm3505, %v6140
          %6189 = vst.msk [vmem:[%s459 + $0x18] sm:$0xff] %vm3505, %v6141
          %6190 = vst.msk [vmem:[%s459 + $0x20] sm:$0xff] %vm3505, %v6142
          %6191 = vst.msk [vmem:[%s459 + $0x28] sm:$0xff] %vm3505, %v6143
          %6192 = vst.msk [vmem:[%s459 + $0x30] sm:$0xff] %vm3505, %v6144
          %6193 = vst.msk [vmem:[%s459 + $0x38] sm:$0xff] %vm3505, %v6145
          %6194 = vst.msk [vmem:[%s459 + $0x40] sm:$0xff] %vm3505, %v6146
          %6195 = vst.msk [vmem:[%s459 + $0x48] sm:$0xff] %vm3505, %v6147
          %6196 = vst.msk [vmem:[%s459 + $0x50] sm:$0xff] %vm3505, %v6148
          %6197 = vst.msk [vmem:[%s459 + $0x58] sm:$0xff] %vm3505, %v6149
          %6198 = vst.msk [vmem:[%s459 + $0x60] sm:$0xff] %vm3505, %v6150
          %6199 = vst.msk [vmem:[%s459 + $0x68] sm:$0xff] %vm3505, %v6151
          %6200 = vst.msk [vmem:[%s459 + $0x70] sm:$0xff] %vm3505, %v6152
          %6201 = vst.msk [vmem:[%s459 + $0x78] sm:$0xff] %vm3505, %v6153
          %6202 = vst.msk [vmem:[%s459 + $0x80] sm:$0xff] %vm3505, %v6154
          %6203 = vst.msk [vmem:[%s459 + $0x88] sm:$0xff] %vm3505, %v6155
          %6204 = vst.msk [vmem:[%s459 + $0x90] sm:$0xff] %vm3505, %v6156
          %6205 = vst.msk [vmem:[%s459 + $0x98] sm:$0xff] %vm3505, %v6157
          %6206 = vst.msk [vmem:[%s459 + $0xa0] sm:$0xff] %vm3505, %v6158
          %6207 = vst.msk [vmem:[%s459 + $0xa8] sm:$0xff] %vm3505, %v6159
          %6208 = vst.msk [vmem:[%s459 + $0xb0] sm:$0xff] %vm3505, %v6160
          %6209 = vst.msk [vmem:[%s459 + $0xb8] sm:$0xff] %vm3505, %v6161
          %6210 = vst.msk [vmem:[%s459 + $0xc0] sm:$0xff] %vm3505, %v6162
          %6211 = vst.msk [vmem:[%s459 + $0xc8] sm:$0xff] %vm3505, %v6163
          %6212 = vst.msk [vmem:[%s459 + $0xd0] sm:$0xff] %vm3505, %v6164
          %6213 = vst.msk [vmem:[%s459 + $0xd8] sm:$0xff] %vm3505, %v6165
          %6214 = vst.msk [vmem:[%s459 + $0xe0] sm:$0xff] %vm3505, %v6166
          %6215 = vst.msk [vmem:[%s459 + $0xe8] sm:$0xff] %vm3505, %v6167
          %6216 = vst.msk [vmem:[%s459 + $0xf0] sm:$0xff] %vm3505, %v6168
          %6217 = vst.msk [vmem:[%s459 + $0xf8] sm:$0xff] %vm3505, %v6169
          %6218 = vst.msk [vmem:[%s459 + $0x100] sm:$0xff] %vm3505, %v6170
          %6219 = vst.msk [vmem:[%s459 + $0x108] sm:$0xff] %vm3505, %v6171
          %6220 = vst.msk [vmem:[%s459 + $0x110] sm:$0xff] %vm3505, %v6172
          %6221 = vst.msk [vmem:[%s459 + $0x118] sm:$0xff] %vm3505, %v6173
          %6222 = vst.msk [vmem:[%s459 + $0x120] sm:$0xff] %vm3505, %v6174
          %6223 = vst.msk [vmem:[%s459 + $0x128] sm:$0xff] %vm3505, %v6175
          %6224 = vst.msk [vmem:[%s459 + $0x130] sm:$0xff] %vm3505, %v6176
          %6225 = vst.msk [vmem:[%s459 + $0x138] sm:$0xff] %vm3505, %v6177
          %6226 = vst.msk [vmem:[%s459 + $0x140] sm:$0xff] %vm3505, %v6178
          %6227 = vst.msk [vmem:[%s459 + $0x148] sm:$0xff] %vm3505, %v6179
          %6228 = vst.msk [vmem:[%s459 + $0x150] sm:$0xff] %vm3505, %v6180
          %6229 = vst.msk [vmem:[%s459 + $0x158] sm:$0xff] %vm3505, %v6181
          %6230 = vst.msk [vmem:[%s459 + $0x160] sm:$0xff] %vm3505, %v6182
          %6231 = vst.msk [vmem:[%s459 + $0x168] sm:$0xff] %vm3505, %v6183
          %6232 = vst.msk [vmem:[%s459 + $0x170] sm:$0xff] %vm3505, %v6184
          %6233 = vst.msk [vmem:[%s459 + $0x178] sm:$0xff] %vm3505, %v6185
          %v6234 = vld [vmem:[#allocation4] sm:$0xff]
          %v6235 = vld [vmem:[#allocation4 + $0x8] sm:$0xff]
          %v6236 = vld [vmem:[#allocation4 + $0x10] sm:$0xff]
          %v6237 = vld [vmem:[#allocation4 + $0x18] sm:$0xff]
          %v6238 = vld [vmem:[#allocation4 + $0x20] sm:$0xff]
          %v6239 = vld [vmem:[#allocation4 + $0x28] sm:$0xff]
          %v6240 = vld [vmem:[#allocation4 + $0x30] sm:$0xff]
          %v6241 = vld [vmem:[#allocation4 + $0x38] sm:$0xff]
          %v6242 = vld [vmem:[#allocation4 + $0x40] sm:$0xff]
          %v6243 = vld [vmem:[#allocation4 + $0x48] sm:$0xff]
          %v6244 = vld [vmem:[#allocation4 + $0x50] sm:$0xff]
          %v6245 = vld [vmem:[#allocation4 + $0x58] sm:$0xff]
          %v6246 = vld [vmem:[#allocation4 + $0x60] sm:$0xff]
          %v6247 = vld [vmem:[#allocation4 + $0x68] sm:$0xff]
          %v6248 = vld [vmem:[#allocation4 + $0x70] sm:$0xff]
          %v6249 = vld [vmem:[#allocation4 + $0x78] sm:$0xff]
          %v6250 = vld [vmem:[#allocation4 + $0x80] sm:$0xff]
          %v6251 = vld [vmem:[#allocation4 + $0x88] sm:$0xff]
          %v6252 = vld [vmem:[#allocation4 + $0x90] sm:$0xff]
          %v6253 = vld [vmem:[#allocation4 + $0x98] sm:$0xff]
          %v6254 = vld [vmem:[#allocation4 + $0xa0] sm:$0xff]
          %v6255 = vld [vmem:[#allocation4 + $0xa8] sm:$0xff]
          %v6256 = vld [vmem:[#allocation4 + $0xb0] sm:$0xff]
          %v6257 = vld [vmem:[#allocation4 + $0xb8] sm:$0xff]
          %v6258 = vld [vmem:[#allocation4 + $0xc0] sm:$0xff]
          %v6259 = vld [vmem:[#allocation4 + $0xc8] sm:$0xff]
          %v6260 = vld [vmem:[#allocation4 + $0xd0] sm:$0xff]
          %v6261 = vld [vmem:[#allocation4 + $0xd8] sm:$0xff]
          %v6262 = vld [vmem:[#allocation4 + $0xe0] sm:$0xff]
          %v6263 = vld [vmem:[#allocation4 + $0xe8] sm:$0xff]
          %v6264 = vld [vmem:[#allocation4 + $0xf0] sm:$0xff]
          %v6265 = vld [vmem:[#allocation4 + $0xf8] sm:$0xff]
          %v6266 = vld [vmem:[#allocation4 + $0x100] sm:$0xff]
          %v6267 = vld [vmem:[#allocation4 + $0x108] sm:$0xff]
          %v6268 = vld [vmem:[#allocation4 + $0x110] sm:$0xff]
          %v6269 = vld [vmem:[#allocation4 + $0x118] sm:$0xff]
          %v6270 = vld [vmem:[#allocation4 + $0x120] sm:$0xff]
          %v6271 = vld [vmem:[#allocation4 + $0x128] sm:$0xff]
          %v6272 = vld [vmem:[#allocation4 + $0x130] sm:$0xff]
          %v6273 = vld [vmem:[#allocation4 + $0x138] sm:$0xff]
          %v6274 = vld [vmem:[#allocation4 + $0x140] sm:$0xff]
          %v6275 = vld [vmem:[#allocation4 + $0x148] sm:$0xff]
          %v6276 = vld [vmem:[#allocation4 + $0x150] sm:$0xff]
          %v6277 = vld [vmem:[#allocation4 + $0x158] sm:$0xff]
          %v6278 = vld [vmem:[#allocation4 + $0x160] sm:$0xff]
          %v6279 = vld [vmem:[#allocation4 + $0x168] sm:$0xff]
          %v6280 = vld [vmem:[#allocation4 + $0x170] sm:$0xff]
          %v6281 = vld [vmem:[#allocation4 + $0x178] sm:$0xff]
          %v6282 = vld [vmem:[#allocation5] sm:$0xff]
          %v6283 = vld [vmem:[#allocation5 + $0x8] sm:$0xff]
          %v6284 = vld [vmem:[#allocation5 + $0x10] sm:$0xff]
          %v6285 = vld [vmem:[#allocation5 + $0x18] sm:$0xff]
          %v6286 = vld [vmem:[#allocation5 + $0x20] sm:$0xff]
          %v6287 = vld [vmem:[#allocation5 + $0x28] sm:$0xff]
          %v6288 = vld [vmem:[#allocation5 + $0x30] sm:$0xff]
          %v6289 = vld [vmem:[#allocation5 + $0x38] sm:$0xff]
          %v6290 = vld [vmem:[#allocation5 + $0x40] sm:$0xff]
          %v6291 = vld [vmem:[#allocation5 + $0x48] sm:$0xff]
          %v6292 = vld [vmem:[#allocation5 + $0x50] sm:$0xff]
          %v6293 = vld [vmem:[#allocation5 + $0x58] sm:$0xff]
          %v6294 = vld [vmem:[#allocation5 + $0x60] sm:$0xff]
          %v6295 = vld [vmem:[#allocation5 + $0x68] sm:$0xff]
          %v6296 = vld [vmem:[#allocation5 + $0x70] sm:$0xff]
          %v6297 = vld [vmem:[#allocation5 + $0x78] sm:$0xff]
          %v6298 = vld [vmem:[#allocation5 + $0x80] sm:$0xff]
          %v6299 = vld [vmem:[#allocation5 + $0x88] sm:$0xff]
          %v6300 = vld [vmem:[#allocation5 + $0x90] sm:$0xff]
          %v6301 = vld [vmem:[#allocation5 + $0x98] sm:$0xff]
          %v6302 = vld [vmem:[#allocation5 + $0xa0] sm:$0xff]
          %v6303 = vld [vmem:[#allocation5 + $0xa8] sm:$0xff]
          %v6304 = vld [vmem:[#allocation5 + $0xb0] sm:$0xff]
          %v6305 = vld [vmem:[#allocation5 + $0xb8] sm:$0xff]
          %v6306 = vld [vmem:[#allocation5 + $0xc0] sm:$0xff]
          %v6307 = vld [vmem:[#allocation5 + $0xc8] sm:$0xff]
          %v6308 = vld [vmem:[#allocation5 + $0xd0] sm:$0xff]
          %v6309 = vld [vmem:[#allocation5 + $0xd8] sm:$0xff]
          %v6310 = vld [vmem:[#allocation5 + $0xe0] sm:$0xff]
          %v6311 = vld [vmem:[#allocation5 + $0xe8] sm:$0xff]
          %v6312 = vld [vmem:[#allocation5 + $0xf0] sm:$0xff]
          %v6313 = vld [vmem:[#allocation5 + $0xf8] sm:$0xff]
          %v6314 = vld [vmem:[#allocation5 + $0x100] sm:$0xff]
          %v6315 = vld [vmem:[#allocation5 + $0x108] sm:$0xff]
          %v6316 = vld [vmem:[#allocation5 + $0x110] sm:$0xff]
          %v6317 = vld [vmem:[#allocation5 + $0x118] sm:$0xff]
          %v6318 = vld [vmem:[#allocation5 + $0x120] sm:$0xff]
          %v6319 = vld [vmem:[#allocation5 + $0x128] sm:$0xff]
          %v6320 = vld [vmem:[#allocation5 + $0x130] sm:$0xff]
          %v6321 = vld [vmem:[#allocation5 + $0x138] sm:$0xff]
          %v6322 = vld [vmem:[#allocation5 + $0x140] sm:$0xff]
          %v6323 = vld [vmem:[#allocation5 + $0x148] sm:$0xff]
          %v6324 = vld [vmem:[#allocation5 + $0x150] sm:$0xff]
          %v6325 = vld [vmem:[#allocation5 + $0x158] sm:$0xff]
          %v6326 = vld [vmem:[#allocation5 + $0x160] sm:$0xff]
          %v6327 = vld [vmem:[#allocation5 + $0x168] sm:$0xff]
          %v6328 = vld [vmem:[#allocation5 + $0x170] sm:$0xff]
          %v6329 = vld [vmem:[#allocation5 + $0x178] sm:$0xff]
          %v6330 = vlog2.pop %v6282
          %v6331 = vmul.f32 %v6330, 0.6931472
          %v6332 = vlog2.pop %v6283
          %v6333 = vmul.f32 %v6332, 0.6931472
          %v6334 = vlog2.pop %v6284
          %v6335 = vmul.f32 %v6334, 0.6931472
          %v6336 = vlog2.pop %v6285
          %v6337 = vmul.f32 %v6336, 0.6931472
          %v6338 = vlog2.pop %v6286
          %v6339 = vmul.f32 %v6338, 0.6931472
          %v6340 = vlog2.pop %v6287
          %v6341 = vmul.f32 %v6340, 0.6931472
          %v6342 = vlog2.pop %v6288
          %v6343 = vmul.f32 %v6342, 0.6931472
          %v6344 = vlog2.pop %v6289
          %v6345 = vmul.f32 %v6344, 0.6931472
          %v6346 = vlog2.pop %v6290
          %v6347 = vmul.f32 %v6346, 0.6931472
          %v6348 = vlog2.pop %v6291
          %v6349 = vmul.f32 %v6348, 0.6931472
          %v6350 = vlog2.pop %v6292
          %v6351 = vmul.f32 %v6350, 0.6931472
          %v6352 = vlog2.pop %v6293
          %v6353 = vmul.f32 %v6352, 0.6931472
          %v6354 = vlog2.pop %v6294
          %v6355 = vmul.f32 %v6354, 0.6931472
          %v6356 = vlog2.pop %v6295
          %v6357 = vmul.f32 %v6356, 0.6931472
          %v6358 = vlog2.pop %v6296
          %v6359 = vmul.f32 %v6358, 0.6931472
          %v6360 = vlog2.pop %v6297
          %v6361 = vmul.f32 %v6360, 0.6931472
          %v6362 = vlog2.pop %v6298
          %v6363 = vmul.f32 %v6362, 0.6931472
          %v6364 = vlog2.pop %v6299
          %v6365 = vmul.f32 %v6364, 0.6931472
          %v6366 = vlog2.pop %v6300
          %v6367 = vmul.f32 %v6366, 0.6931472
          %v6368 = vlog2.pop %v6301
          %v6369 = vmul.f32 %v6368, 0.6931472
          %v6370 = vlog2.pop %v6302
          %v6371 = vmul.f32 %v6370, 0.6931472
          %v6372 = vlog2.pop %v6303
          %v6373 = vmul.f32 %v6372, 0.6931472
          %v6374 = vlog2.pop %v6304
          %v6375 = vmul.f32 %v6374, 0.6931472
          %v6376 = vlog2.pop %v6305
          %v6377 = vmul.f32 %v6376, 0.6931472
          %v6378 = vlog2.pop %v6306
          %v6379 = vmul.f32 %v6378, 0.6931472
          %v6380 = vlog2.pop %v6307
          %v6381 = vmul.f32 %v6380, 0.6931472
          %v6382 = vlog2.pop %v6308
          %v6383 = vmul.f32 %v6382, 0.6931472
          %v6384 = vlog2.pop %v6309
          %v6385 = vmul.f32 %v6384, 0.6931472
          %v6386 = vlog2.pop %v6310
          %v6387 = vmul.f32 %v6386, 0.6931472
          %v6388 = vlog2.pop %v6311
          %v6389 = vmul.f32 %v6388, 0.6931472
          %v6390 = vlog2.pop %v6312
          %v6391 = vmul.f32 %v6390, 0.6931472
          %v6392 = vlog2.pop %v6313
          %v6393 = vmul.f32 %v6392, 0.6931472
          %v6394 = vlog2.pop %v6314
          %v6395 = vmul.f32 %v6394, 0.6931472
          %v6396 = vlog2.pop %v6315
          %v6397 = vmul.f32 %v6396, 0.6931472
          %v6398 = vlog2.pop %v6316
          %v6399 = vmul.f32 %v6398, 0.6931472
          %v6400 = vlog2.pop %v6317
          %v6401 = vmul.f32 %v6400, 0.6931472
          %v6402 = vlog2.pop %v6318
          %v6403 = vmul.f32 %v6402, 0.6931472
          %v6404 = vlog2.pop %v6319
          %v6405 = vmul.f32 %v6404, 0.6931472
          %v6406 = vlog2.pop %v6320
          %v6407 = vmul.f32 %v6406, 0.6931472
          %v6408 = vlog2.pop %v6321
          %v6409 = vmul.f32 %v6408, 0.6931472
          %v6410 = vlog2.pop %v6322
          %v6411 = vmul.f32 %v6410, 0.6931472
          %v6412 = vlog2.pop %v6323
          %v6413 = vmul.f32 %v6412, 0.6931472
          %v6414 = vlog2.pop %v6324
          %v6415 = vmul.f32 %v6414, 0.6931472
          %v6416 = vlog2.pop %v6325
          %v6417 = vmul.f32 %v6416, 0.6931472
          %v6418 = vlog2.pop %v6326
          %v6419 = vmul.f32 %v6418, 0.6931472
          %v6420 = vlog2.pop %v6327
          %v6421 = vmul.f32 %v6420, 0.6931472
          %v6422 = vlog2.pop %v6328
          %v6423 = vmul.f32 %v6422, 0.6931472
          %v6424 = vlog2.pop %v6329
          %v6425 = vmul.f32 %v6424, 0.6931472
          %v6426 = vadd.f32 %v6234, %v6331
          %v6427 = vadd.f32 %v6235, %v6333
          %v6428 = vadd.f32 %v6236, %v6335
          %v6429 = vadd.f32 %v6237, %v6337
          %v6430 = vadd.f32 %v6238, %v6339
          %v6431 = vadd.f32 %v6239, %v6341
          %v6432 = vadd.f32 %v6240, %v6343
          %v6433 = vadd.f32 %v6241, %v6345
          %v6434 = vadd.f32 %v6242, %v6347
          %v6435 = vadd.f32 %v6243, %v6349
          %v6436 = vadd.f32 %v6244, %v6351
          %v6437 = vadd.f32 %v6245, %v6353
          %v6438 = vadd.f32 %v6246, %v6355
          %v6439 = vadd.f32 %v6247, %v6357
          %v6440 = vadd.f32 %v6248, %v6359
          %v6441 = vadd.f32 %v6249, %v6361
          %v6442 = vadd.f32 %v6250, %v6363
          %v6443 = vadd.f32 %v6251, %v6365
          %v6444 = vadd.f32 %v6252, %v6367
          %v6445 = vadd.f32 %v6253, %v6369
          %v6446 = vadd.f32 %v6254, %v6371
          %v6447 = vadd.f32 %v6255, %v6373
          %v6448 = vadd.f32 %v6256, %v6375
          %v6449 = vadd.f32 %v6257, %v6377
          %v6450 = vadd.f32 %v6258, %v6379
          %v6451 = vadd.f32 %v6259, %v6381
          %v6452 = vadd.f32 %v6260, %v6383
          %v6453 = vadd.f32 %v6261, %v6385
          %v6454 = vadd.f32 %v6262, %v6387
          %v6455 = vadd.f32 %v6263, %v6389
          %v6456 = vadd.f32 %v6264, %v6391
          %v6457 = vadd.f32 %v6265, %v6393
          %v6458 = vadd.f32 %v6266, %v6395
          %v6459 = vadd.f32 %v6267, %v6397
          %v6460 = vadd.f32 %v6268, %v6399
          %v6461 = vadd.f32 %v6269, %v6401
          %v6462 = vadd.f32 %v6270, %v6403
          %v6463 = vadd.f32 %v6271, %v6405
          %v6464 = vadd.f32 %v6272, %v6407
          %v6465 = vadd.f32 %v6273, %v6409
          %v6466 = vadd.f32 %v6274, %v6411
          %v6467 = vadd.f32 %v6275, %v6413
          %v6468 = vadd.f32 %v6276, %v6415
          %v6469 = vadd.f32 %v6277, %v6417
          %v6470 = vadd.f32 %v6278, %v6419
          %v6471 = vadd.f32 %v6279, %v6421
          %v6472 = vadd.f32 %v6280, %v6423
          %v6473 = vadd.f32 %v6281, %v6425
          %6474 = vst.msk [vmem:[%s465] sm:$0xff] %vm3505, %v6426
          %6475 = vst.msk [vmem:[%s465 + $0x8] sm:$0xff] %vm3505, %v6427
          %6476 = vst.msk [vmem:[%s465 + $0x10] sm:$0xff] %vm3505, %v6428
          %6477 = vst.msk [vmem:[%s465 + $0x18] sm:$0xff] %vm3505, %v6429
          %6478 = vst.msk [vmem:[%s465 + $0x20] sm:$0xff] %vm3505, %v6430
          %6479 = vst.msk [vmem:[%s465 + $0x28] sm:$0xff] %vm3505, %v6431
          %6480 = vst.msk [vmem:[%s465 + $0x30] sm:$0xff] %vm3505, %v6432
          %6481 = vst.msk [vmem:[%s465 + $0x38] sm:$0xff] %vm3505, %v6433
          %6482 = vst.msk [vmem:[%s465 + $0x40] sm:$0xff] %vm3505, %v6434
          %6483 = vst.msk [vmem:[%s465 + $0x48] sm:$0xff] %vm3505, %v6435
          %6484 = vst.msk [vmem:[%s465 + $0x50] sm:$0xff] %vm3505, %v6436
          %6485 = vst.msk [vmem:[%s465 + $0x58] sm:$0xff] %vm3505, %v6437
          %6486 = vst.msk [vmem:[%s465 + $0x60] sm:$0xff] %vm3505, %v6438
          %6487 = vst.msk [vmem:[%s465 + $0x68] sm:$0xff] %vm3505, %v6439
          %6488 = vst.msk [vmem:[%s465 + $0x70] sm:$0xff] %vm3505, %v6440
          %6489 = vst.msk [vmem:[%s465 + $0x78] sm:$0xff] %vm3505, %v6441
          %6490 = vst.msk [vmem:[%s465 + $0x80] sm:$0xff] %vm3505, %v6442
          %6491 = vst.msk [vmem:[%s465 + $0x88] sm:$0xff] %vm3505, %v6443
          %6492 = vst.msk [vmem:[%s465 + $0x90] sm:$0xff] %vm3505, %v6444
          %6493 = vst.msk [vmem:[%s465 + $0x98] sm:$0xff] %vm3505, %v6445
          %6494 = vst.msk [vmem:[%s465 + $0xa0] sm:$0xff] %vm3505, %v6446
          %6495 = vst.msk [vmem:[%s465 + $0xa8] sm:$0xff] %vm3505, %v6447
          %6496 = vst.msk [vmem:[%s465 + $0xb0] sm:$0xff] %vm3505, %v6448
          %6497 = vst.msk [vmem:[%s465 + $0xb8] sm:$0xff] %vm3505, %v6449
          %6498 = vst.msk [vmem:[%s465 + $0xc0] sm:$0xff] %vm3505, %v6450
          %6499 = vst.msk [vmem:[%s465 + $0xc8] sm:$0xff] %vm3505, %v6451
          %6500 = vst.msk [vmem:[%s465 + $0xd0] sm:$0xff] %vm3505, %v6452
          %6501 = vst.msk [vmem:[%s465 + $0xd8] sm:$0xff] %vm3505, %v6453
          %6502 = vst.msk [vmem:[%s465 + $0xe0] sm:$0xff] %vm3505, %v6454
          %6503 = vst.msk [vmem:[%s465 + $0xe8] sm:$0xff] %vm3505, %v6455
          %6504 = vst.msk [vmem:[%s465 + $0xf0] sm:$0xff] %vm3505, %v6456
          %6505 = vst.msk [vmem:[%s465 + $0xf8] sm:$0xff] %vm3505, %v6457
          %6506 = vst.msk [vmem:[%s465 + $0x100] sm:$0xff] %vm3505, %v6458
          %6507 = vst.msk [vmem:[%s465 + $0x108] sm:$0xff] %vm3505, %v6459
          %6508 = vst.msk [vmem:[%s465 + $0x110] sm:$0xff] %vm3505, %v6460
          %6509 = vst.msk [vmem:[%s465 + $0x118] sm:$0xff] %vm3505, %v6461
          %6510 = vst.msk [vmem:[%s465 + $0x120] sm:$0xff] %vm3505, %v6462
          %6511 = vst.msk [vmem:[%s465 + $0x128] sm:$0xff] %vm3505, %v6463
          %6512 = vst.msk [vmem:[%s465 + $0x130] sm:$0xff] %vm3505, %v6464
          %6513 = vst.msk [vmem:[%s465 + $0x138] sm:$0xff] %vm3505, %v6465
          %6514 = vst.msk [vmem:[%s465 + $0x140] sm:$0xff] %vm3505, %v6466
          %6515 = vst.msk [vmem:[%s465 + $0x148] sm:$0xff] %vm3505, %v6467
          %6516 = vst.msk [vmem:[%s465 + $0x150] sm:$0xff] %vm3505, %v6468
          %6517 = vst.msk [vmem:[%s465 + $0x158] sm:$0xff] %vm3505, %v6469
          %6518 = vst.msk [vmem:[%s465 + $0x160] sm:$0xff] %vm3505, %v6470
          %6519 = vst.msk [vmem:[%s465 + $0x168] sm:$0xff] %vm3505, %v6471
          %6520 = vst.msk [vmem:[%s465 + $0x170] sm:$0xff] %vm3505, %v6472
          %6521 = vst.msk [vmem:[%s465 + $0x178] sm:$0xff] %vm3505, %v6473
        $region64: #{tpu_custom_call.1} parent=39 // pred_fallthru
          _
        %s6522 = smul.u32 48, %s33
        %p6523 = scmp.lt.s32.totalorder %s6522, 95
        %s6524 = scalar_select %p6523, %s6522, 95
        %s6525 = smul.addr %s6524, 8
        %s6526 = scalar_lea.vmem %s5, %s6525
        %s6527 = smul.u32 48, %s33
        %p6528 = scmp.lt.s32.totalorder %s6527, 95
        %s6529 = scalar_select %p6528, %s6527, 95
        %s6530 = smul.addr %s6529, 8
        %s6531 = scalar_lea.vmem %s6, %s6530
        %s6532 = smul.u32 48, %s33
        %p6533 = scmp.lt.s32.totalorder %s6532, 95
        %s6534 = scalar_select %p6533, %s6532, 95
        %s6535 = smul.addr %s6534, 8
        %s6536 = scalar_lea.vmem %s7, %s6535
        // Predicated region
        $region65: #{tpu_custom_call.1} parent=39 // pred_check
          %p6537 = pneg %p184
        $region66: #{tpu_custom_call.1} parent=39 // pred_check_branch
          %6539 = sbr.rel (%p6537) target = $region68
        $region67: #{tpu_custom_call.1} parent=39 // pred_region
          %s6540 = smul.u32 48, %s33
        $region68: #{tpu_custom_call.1} parent=39 // pred_fallthru
          _
        // Predicated region
        $region69: #{tpu_custom_call.1} parent=39 // pred_check
          %p6541 = pneg %p210
        $region70: #{tpu_custom_call.1} parent=39 // pred_check_branch
          %6543 = sbr.rel (%p6541) target = $region72
        $region71: #{tpu_custom_call.1} parent=39 // pred_region
          %s6544 = smul.u32 48, %s33
        $region72: #{tpu_custom_call.1} parent=39 // pred_fallthru
          _
        // Predicated region
        $region73: #{tpu_custom_call.1} parent=39 // pred_check
          %p6545 = pneg %p236
        $region74: #{tpu_custom_call.1} parent=39 // pred_check_branch
          %6547 = sbr.rel (%p6545) target = $region76
        $region75: #{tpu_custom_call.1} parent=39 // pred_region
          %s6548 = smul.u32 48, %s33
        $region76: #{tpu_custom_call.1} parent=39 // pred_fallthru
          _
      $region40: #{tpu_custom_call.1} parent=5 // pred_fallthru
        _
      %p6549 = scmp.le.s32.totalorder 2, %s24
      // Predicated region
      $region77: #{tpu_custom_call.1} parent=5 // pred_check
        %p6550 = pneg %p6549
      $region78: #{tpu_custom_call.1} parent=5 // pred_check_branch
        %6552 = sbr.rel (%p6550) target = $region80
      $region79: #{tpu_custom_call.1} parent=5 // pred_region
        %s6553 = ssub.s32 %s24, 2
        // Predicated region
        $region81: #{tpu_custom_call.1} parent=79 // pred_check
          %p6554 = pneg %p190
        $region82: #{tpu_custom_call.1} parent=79 // pred_check_branch
          %6556 = sbr.rel (%p6554) target = $region84
        $region83: #{tpu_custom_call.1} parent=79 // pred_region
          %s6557 = smul.u32 48, %s35
          %p6558 = scmp.lt.s32.totalorder %s6557, 95
          %s6559 = scalar_select %p6558, %s6557, 95
          %s6560 = smul.addr %s6559, 8
          %s6561 = scalar_lea.vmem %s5, %s6560
        $region84: #{tpu_custom_call.1} parent=79 // pred_fallthru
          _
        // Predicated region
        $region85: #{tpu_custom_call.1} parent=79 // pred_check
          %p6562 = pneg %p216
        $region86: #{tpu_custom_call.1} parent=79 // pred_check_branch
          %6564 = sbr.rel (%p6562) target = $region88
        $region87: #{tpu_custom_call.1} parent=79 // pred_region
          %s6565 = smul.u32 48, %s35
          %p6566 = scmp.lt.s32.totalorder %s6565, 95
          %s6567 = scalar_select %p6566, %s6565, 95
          %s6568 = smul.addr %s6567, 8
          %s6569 = scalar_lea.vmem %s6, %s6568
        $region88: #{tpu_custom_call.1} parent=79 // pred_fallthru
          _
        // Predicated region
        $region89: #{tpu_custom_call.1} parent=79 // pred_check
          %p6570 = pneg %p242
        $region90: #{tpu_custom_call.1} parent=79 // pred_check_branch
          %6572 = sbr.rel (%p6570) target = $region92
        $region91: #{tpu_custom_call.1} parent=79 // pred_region
          %s6573 = smul.u32 48, %s35
          %p6574 = scmp.lt.s32.totalorder %s6573, 95
          %s6575 = scalar_select %p6574, %s6573, 95
          %s6576 = smul.addr %s6575, 8
          %s6577 = scalar_lea.vmem %s7, %s6576
        $region92: #{tpu_custom_call.1} parent=79 // pred_fallthru
          _
      $region80: #{tpu_custom_call.1} parent=5 // pred_fallthru
        _
    $region6: #{tpu_custom_call.1} parent=1 // loop_footer
      %s28 = sadd.s32 1, %s24
    $region7: #{tpu_custom_call.1} parent=1 // loop_footer_branch
      %23 = sbr.rel target = $region3
    $region8: #{tpu_custom_call.1} parent=1 // loop_exit
      _
    %6578 = vsyncpa [#allocation8], 1
    %s6579 = scalar_lea.sflag [#allocation8], 1
    %6580 = vsyncpa %s6579, 1
    %6581 = vsyncpa [#allocation10], 1
    %s6582 = scalar_lea.sflag [#allocation10], 1
    %6583 = vsyncpa %s6582, 1
    %6584 = vsyncpa [#allocation13], 1
    %s6585 = scalar_lea.sflag [#allocation13], 1
    %6586 = vsyncpa %s6585, 1

</llo_original>
